<compile_context>
chip_gen: v5e
topology: v5e:2x2
jax: 0.10.0
libtpu: 0.0.40
codegen_flags: <defaults>
</compile_context>

<pallas_src>
from functools import partial

import numpy as np
import jax
import jax.numpy as jnp
from jax.experimental import pallas as pl
from jax.experimental.pallas import tpu as pltpu


# --------------------------------------------------------------------------
# Tiling / compiler knobs
# --------------------------------------------------------------------------
def _batch_tile(batch: int) -> int:
    """Images per grid step: 32 for large batches; >=2 grid steps when batch>8."""
    if batch >= 64:
        return 32
    return max(8, ((batch + 15) // 16) * 8)


def _vmem_limit_bytes() -> int:
    try:
        cap = pltpu.get_tpu_info().vmem_capacity_bytes
    except Exception:  # conservative fallback (safe on v5e/v6e/v7x)
        cap = 64 * 1024 * 1024
    return int(min(cap * 3 // 4, 96 * 1024 * 1024))


# --------------------------------------------------------------------------
# Fused kernel: conv1+relu+pool1 -> conv2+relu+pool2 -> fc1+relu -> fc2
#
# Per image the kernel works on 16 rows: [zero, y=0..13, zero].  The zero rows
# give conv2 its H zero-padding AND isolate images from each other, so the
# +-1 row shifts feeding conv2 are plain whole-array shifts.
# --------------------------------------------------------------------------
def _fused_cnn_kernel(x_ref, w1_ref, w2_ref, b2_ref, wf1_ref, bf1_ref,
                      wf2_ref, bf2_ref, out_ref, *, tb):
    f32 = jnp.float32
    rows = tb * 16

    # conv1 (+ bias folded via indicator column) + ReLU: one MXU matmul.
    # Output columns = (hin, win, x_pair, c1) -> (rows, 1792), lane-dense.
    a1 = jnp.dot(x_ref[...], w1_ref[...], preferred_element_type=f32)
    a1 = jnp.maximum(a1, 0.0)

    # pool1 (2x2 max): lane-half max over hin, then over win.
    hmax = jnp.maximum(a1[:, :896], a1[:, 896:])            # (rows, 896)
    p1 = jnp.maximum(hmax[:, :448], hmax[:, 448:])          # (rows, 448) = (x, c1)

    # Zero-pad the W direction for conv2 (one 32-lane channel block each side).
    zlane = jnp.zeros((rows, 32), f32)
    p1p = jnp.concatenate([zlane, p1, zlane], axis=1)       # (rows, 512)

    # conv2 LHS = previous / current / next padded row (image-local thanks to
    # the zero rows at every image's top & bottom).
    zrow = jnp.zeros((1, 512), f32)
    up = jnp.concatenate([zrow, p1p[:-1, :]], axis=0)
    dn = jnp.concatenate([p1p[1:, :], zrow], axis=0)
    l2 = jnp.concatenate([up, p1p, dn], axis=1)             # (rows, 1536)

    # conv2 + bias + ReLU: one stationary-weight MXU matmul.
    # Output columns = (win, x_pair, c2) -> (rows, 896), lane-dense.
    a2 = jnp.dot(l2, w2_ref[...], preferred_element_type=f32) + b2_ref[...]
    a2 = jnp.maximum(a2, 0.0)

    # pool2 W direction: lane-half max over win.
    xmax = jnp.maximum(a2[:, :448], a2[:, 448:])            # (rows, 448) = (x_pair, c2)

    # pool2 H direction + flatten: per-image adjacent-row maxima -> (tb, 3136).
    xm3 = xmax.reshape(tb, 16, 448)                         # leading-dim split (16 % 8 == 0)
    flat = jnp.concatenate(
        [jnp.maximum(xm3[:, 2 * y2 + 1, :], xm3[:, 2 * y2 + 2, :])
         for y2 in range(7)],
        axis=1)                                             # (tb, 3136)

    # fc1 + ReLU, fc2 (N padded to 128 -> lane-dense store).
    z1 = jnp.dot(flat, wf1_ref[...], preferred_element_type=f32) + bf1_ref[...]
    z1 = jnp.maximum(z1, 0.0)                               # (tb, 128)
    z2 = jnp.dot(z1, wf2_ref[...], preferred_element_type=f32) + bf2_ref[...]
    out_ref[...] = z2.astype(out_ref.dtype)                 # (tb, 128)


def _whole(arr):
    nd = arr.ndim
    return pl.BlockSpec(arr.shape, lambda b, _nd=nd: (0,) * _nd)


@partial(jax.jit, static_argnums=(2,))
def _forward(x_nchw, prepared, tb):
    B = x_nchw.shape[0]
    b_pad = ((B + tb - 1) // tb) * tb

    # Host-side layout plumbing (cheap): squeeze C=1, add the conv-padding
    # ring, and gather the 4 input rows feeding each pooled-output-row pair.
    x = jnp.pad(x_nchw[:, 0, :, :].astype(jnp.float32),
                ((0, b_pad - B), (1, 1), (1, 1)))             # (b_pad, 30, 30)
    row_idx = 2 * np.arange(14)[:, None] + np.arange(4)[None, :]   # (14, 4)
    quads = x[:, row_idx, :].reshape(b_pad, 14, 120)          # (b_pad, 14, 4*30)
    ones = jnp.ones((b_pad, 14, 1), jnp.float32)              # bias indicator
    body = jnp.concatenate([quads, ones], axis=-1)            # (b_pad, 14, 121)
    zrow = jnp.zeros((b_pad, 1, 121), jnp.float32)
    lhs = jnp.concatenate([zrow, body, zrow], axis=1)         # (b_pad, 16, 121)
    lhs = lhs.reshape(b_pad * 16, 121)

    weights = (prepared["w1p"], prepared["w2p"], prepared["b2p"],
               prepared["wf1p"], prepared["bf1p"], prepared["wf2p"],
               prepared["bf2p"])

    out = pl.pallas_call(
        partial(_fused_cnn_kernel, tb=tb),
        out_shape=jax.ShapeDtypeStruct((b_pad, 128), jnp.float32),
        grid=(b_pad // tb,),
        in_specs=[pl.BlockSpec((tb * 16, 121), lambda b: (b, 0))]
                 + [_whole(w) for w in weights],
        out_specs=pl.BlockSpec((tb, 128), lambda b: (b, 0)),
        compiler_params=pltpu.CompilerParams(
            dimension_semantics=("parallel",),       # batch tiles across cores
            vmem_limit_bytes=_vmem_limit_bytes()),
    )(lhs, *weights)
    return out[:B, :10]


def simple_cnn_forward(x_nchw, prepared):
    """SimpleCNN forward.  x_nchw: (B, 1, 28, 28) float32 -> (B, 10) logits."""
    return _forward(x_nchw, prepared, _batch_tile(x_nchw.shape[0]))


# --------------------------------------------------------------------------
# Parameter handling (PyTorch conventions -> one-time banded-matmul layouts)
# --------------------------------------------------------------------------
def init_params(key):
    ks = jax.random.split(key, 8)

    def nrm(k, shape, scale):
        return (scale * jax.random.normal(k, shape)).astype(jnp.float32)

    # Shapes follow nn.Conv2d / nn.Linear conventions from SimpleCNN.__init__
    return {
        "w_conv1": nrm(ks[0], (32, 1, 3, 3), 0.10),
        "b_conv1": nrm(ks[1], (32,), 0.10),
        "w_conv2": nrm(ks[2], (64, 32, 3, 3), 0.05),
        "b_conv2": nrm(ks[3], (64,), 0.05),
        "w_fc1":   nrm(ks[4], (128, 64 * 7 * 7), 0.02),
        "b_fc1":   nrm(ks[5], (128,), 0.02),
        "w_fc2":   nrm(ks[6], (10, 128), 0.05),
        "b_fc2":   nrm(ks[7], (10,), 0.05),
    }


def prepare_params(params):
    """One-time re-layout of the PyTorch weights into the banded (Toeplitz)
    matmul operands used by the kernel."""
    w1 = np.asarray(params["w_conv1"], np.float32)   # (32, 1, 3, 3)  [c1, 1, kh, kw]
    b1 = np.asarray(params["b_conv1"], np.float32)   # (32,)
    w2 = np.asarray(params["w_conv2"], np.float32)   # (64, 32, 3, 3) [c2, c1, kh, kw]
    b2 = np.asarray(params["b_conv2"], np.float32)   # (64,)
    wf1 = np.asarray(params["w_fc1"], np.float32)    # (128, 3136)
    bf1 = np.asarray(params["b_fc1"], np.float32)    # (128,)
    wf2 = np.asarray(params["w_fc2"], np.float32)    # (10, 128)
    bf2 = np.asarray(params["b_fc2"], np.float32)    # (10,)

    # conv1: rows = 4 gathered input rows x 30 padded cols (+ bias indicator);
    # cols = (hin, win, x_pair, c1) so both legs of the 2x2 pool come out of
    # one matmul and pool1 becomes lane-slice maxima.
    w1p = np.zeros((121, 1792), np.float32)
    for hin in range(2):
        for win in range(2):
            for xq in range(14):
                col = hin * 896 + win * 448 + xq * 32
                for kh in range(3):
                    for kw in range(3):
                        w1p[(hin + kh) * 30 + (2 * xq + win + kw),
                            col:col + 32] = w1[:, 0, kh, kw]
                w1p[120, col:col + 32] = b1

    # conv2: rows = (kh, padded x index j, c1); cols = (win, x_pair, c2).
    w2p = np.zeros((1536, 896), np.float32)
    b2p = np.zeros((1, 896), np.float32)
    for win in range(2):
        for xq in range(7):
            col = win * 448 + xq * 64
            x = 2 * xq + win
            for kh in range(3):
                for kw in range(3):
                    r0 = kh * 512 + (x + kw) * 32
                    w2p[r0:r0 + 32, col:col + 64] = w2[:, :, kh, kw].T  # (c1, c2)
            b2p[0, col:col + 64] = b2

    # fc1: rows ordered (y_pair, x_pair, c2) to match the kernel's flatten,
    # i.e. torch's x.view(B, -1) on the NCHW (64,7,7) tensor.
    wf1p = np.zeros((3136, 128), np.float32)
    for y2 in range(7):
        for xq in range(7):
            src = np.arange(64) * 49 + y2 * 7 + xq
            wf1p[y2 * 448 + xq * 64: y2 * 448 + (xq + 1) * 64, :] = wf1[:, src].T

    wf2p = np.zeros((128, 128), np.float32)
    wf2p[:, :10] = wf2.T
    bf2p = np.zeros((1, 128), np.float32)
    bf2p[0, :10] = bf2

    return {
        "w1p": jnp.asarray(w1p), "w2p": jnp.asarray(w2p), "b2p": jnp.asarray(b2p),
        "wf1p": jnp.asarray(wf1p), "bf1p": jnp.asarray(bf1.reshape(1, 128)),
        "wf2p": jnp.asarray(wf2p), "bf2p": jnp.asarray(bf2p),
    }


# --------------------------------------------------------------------------
# Pure-JAX reference (mirrors the PyTorch module) for a correctness check
# --------------------------------------------------------------------------
def _reference_forward(x_nchw, params):
    dn = ("NCHW", "OIHW", "NCHW")
    y = jax.lax.conv_general_dilated(x_nchw, params["w_conv1"], (1, 1),
                                     ((1, 1), (1, 1)), dimension_numbers=dn)
    y = jax.nn.relu(y + params["b_conv1"][None, :, None, None])
    y = jax.lax.reduce_window(y, -jnp.inf, jax.lax.max,
                              (1, 1, 2, 2), (1, 1, 2, 2), "VALID")
    y = jax.lax.conv_general_dilated(y, params["w_conv2"], (1, 1),
                                     ((1, 1), (1, 1)), dimension_numbers=dn)
    y = jax.nn.relu(y + params["b_conv2"][None, :, None, None])
    y = jax.lax.reduce_window(y, -jnp.inf, jax.lax.max,
                              (1, 1, 2, 2), (1, 1, 2, 2), "VALID")
    y = y.reshape(y.shape[0], -1)                       # NCHW flatten
    y = jax.nn.relu(y @ params["w_fc1"].T + params["b_fc1"])
    return y @ params["w_fc2"].T + params["b_fc2"]


if __name__ == "__main__":
    key = jax.random.PRNGKey(0)
    kp, kx, kx2 = jax.random.split(key, 3)
    params = init_params(kp)
    prepared = prepare_params(params)

    # 28x28 spatial size is forced by fc1 expecting 64*7*7 features; batch = 2.
    x = jax.random.normal(kx, (2, 1, 28, 28), dtype=jnp.float32)
    out = jax.block_until_ready(simple_cnn_forward(x, prepared))
    assert out.shape == (2, 10) and out.dtype == jnp.float32
    err = float(jnp.max(jnp.abs(out - _reference_forward(x, params))))
    assert err < 1e-3, f"mismatch vs reference: {err}"

    # Second shape exercises batch padding and a multi-step "parallel" grid.
    x2 = jax.random.normal(kx2, (10, 1, 28, 28), dtype=jnp.float32)
    out2 = jax.block_until_ready(simple_cnn_forward(x2, prepared))
    err2 = float(jnp.max(jnp.abs(out2 - _reference_forward(x2, params))))
    assert out2.shape == (10, 10) and err2 < 1e-3, f"mismatch vs reference: {err2}"

    print("KERNEL_OK")
</pallas_src>

<mosaic_0001>
module attributes {stable_mosaic.version = 11 : i64} {
  func.func @_fused_cnn_kernel(%arg0: i32, %arg1: memref<128x121xf32, #tpu.memory_space<vmem>>, %arg2: memref<121x1792xf32, #tpu.memory_space<vmem>>, %arg3: memref<1536x896xf32, #tpu.memory_space<vmem>>, %arg4: memref<1x896xf32, #tpu.memory_space<vmem>>, %arg5: memref<3136x128xf32, #tpu.memory_space<vmem>>, %arg6: memref<1x128xf32, #tpu.memory_space<vmem>>, %arg7: memref<128x128xf32, #tpu.memory_space<vmem>>, %arg8: memref<1x128xf32, #tpu.memory_space<vmem>>, %arg9: memref<8x128xf32, #tpu.memory_space<vmem>>) attributes {dimension_semantics = [#tpu.dimension_semantics<parallel>], iteration_bounds = array<i64: 1>, scalar_prefetch = 0 : i64, scratch_operands = 0 : i64, tpu.core_type = #tpu.core_type<tc>, window_params = [{transform_indices = @transform_0, window_bounds = array<i64: 128, 121>}, {pipeline_mode = #tpu.pipeline_mode<synchronous>, transform_indices = @transform_1, window_bounds = array<i64: 121, 1792>}, {pipeline_mode = #tpu.pipeline_mode<synchronous>, transform_indices = @transform_2, window_bounds = array<i64: 1536, 896>}, {pipeline_mode = #tpu.pipeline_mode<synchronous>, transform_indices = @transform_3, window_bounds = array<i64: 1, 896>}, {pipeline_mode = #tpu.pipeline_mode<synchronous>, transform_indices = @transform_4, window_bounds = array<i64: 3136, 128>}, {pipeline_mode = #tpu.pipeline_mode<synchronous>, transform_indices = @transform_5, window_bounds = array<i64: 1, 128>}, {pipeline_mode = #tpu.pipeline_mode<synchronous>, transform_indices = @transform_6, window_bounds = array<i64: 128, 128>}, {pipeline_mode = #tpu.pipeline_mode<synchronous>, transform_indices = @transform_7, window_bounds = array<i64: 1, 128>}, {transform_indices = @transform_8, window_bounds = array<i64: 8, 128>}]} {
    %c0 = arith.constant 0 : index
    %c0_0 = arith.constant 0 : index
    %0 = vector.load %arg1[%c0, %c0_0] : memref<128x121xf32, #tpu.memory_space<vmem>>, vector<128x121xf32>
    %c0_1 = arith.constant 0 : index
    %c0_2 = arith.constant 0 : index
    %1 = vector.load %arg2[%c0_1, %c0_2] : memref<121x1792xf32, #tpu.memory_space<vmem>>, vector<121x1792xf32>
    %cst = arith.constant dense<0.000000e+00> : vector<128x1792xf32>
    %2 = tpu.matmul %0, %1, %cst {dimension_numbers = #tpu.dot_dimension_numbers<[1], [0], [0], [1], [0, 0, 1, 1], [], []>} : vector<128x121xf32>, vector<121x1792xf32>, vector<128x1792xf32> -> vector<128x1792xf32>
    %cst_3 = arith.constant 0.000000e+00 : f32
    %3 = vector.broadcast %cst_3 : f32 to vector<128x1792xf32>
    %4 = arith.maximumf %2, %3 : vector<128x1792xf32>
    %5 = vector.extract_strided_slice %4 {offsets = [0, 0], sizes = [128, 896], strides = [1, 1]} : vector<128x1792xf32> to vector<128x896xf32>
    %6 = vector.extract_strided_slice %4 {offsets = [0, 896], sizes = [128, 896], strides = [1, 1]} : vector<128x1792xf32> to vector<128x896xf32>
    %7 = arith.maximumf %5, %6 : vector<128x896xf32>
    %8 = vector.extract_strided_slice %7 {offsets = [0, 0], sizes = [128, 448], strides = [1, 1]} : vector<128x896xf32> to vector<128x448xf32>
    %9 = vector.extract_strided_slice %7 {offsets = [0, 448], sizes = [128, 448], strides = [1, 1]} : vector<128x896xf32> to vector<128x448xf32>
    %10 = arith.maximumf %8, %9 : vector<128x448xf32>
    %cst_4 = arith.constant 0.000000e+00 : f32
    %11 = vector.broadcast %cst_4 : f32 to vector<128x32xf32>
    %12 = tpu.concatenate %11, %10, %11 in 1 : vector<128x32xf32>, vector<128x448xf32>, vector<128x32xf32> -> vector<128x512xf32>
    %cst_5 = arith.constant 0.000000e+00 : f32
    %13 = vector.broadcast %cst_5 : f32 to vector<1x512xf32>
    %14 = vector.extract_strided_slice %12 {offsets = [0, 0], sizes = [127, 512], strides = [1, 1]} : vector<128x512xf32> to vector<127x512xf32>
    %15 = tpu.concatenate %13, %14 in 0 : vector<1x512xf32>, vector<127x512xf32> -> vector<128x512xf32>
    %16 = vector.extract_strided_slice %12 {offsets = [1, 0], sizes = [127, 512], strides = [1, 1]} : vector<128x512xf32> to vector<127x512xf32>
    %17 = tpu.concatenate %16, %13 in 0 : vector<127x512xf32>, vector<1x512xf32> -> vector<128x512xf32>
    %18 = tpu.concatenate %15, %12, %17 in 1 : vector<128x512xf32>, vector<128x512xf32>, vector<128x512xf32> -> vector<128x1536xf32>
    %c0_6 = arith.constant 0 : index
    %c0_7 = arith.constant 0 : index
    %19 = vector.load %arg3[%c0_6, %c0_7] : memref<1536x896xf32, #tpu.memory_space<vmem>>, vector<1536x896xf32>
    %cst_8 = arith.constant dense<0.000000e+00> : vector<128x896xf32>
    %20 = tpu.matmul %18, %19, %cst_8 {dimension_numbers = #tpu.dot_dimension_numbers<[1], [0], [0], [1], [0, 0, 1, 1], [], []>} : vector<128x1536xf32>, vector<1536x896xf32>, vector<128x896xf32> -> vector<128x896xf32>
    %c0_9 = arith.constant 0 : index
    %c0_10 = arith.constant 0 : index
    %21 = vector.load %arg4[%c0_9, %c0_10] : memref<1x896xf32, #tpu.memory_space<vmem>>, vector<1x896xf32>
    %22 = vector.broadcast %21 : vector<1x896xf32> to vector<128x896xf32>
    %23 = arith.addf %20, %22 : vector<128x896xf32>
    %cst_11 = arith.constant 0.000000e+00 : f32
    %24 = vector.broadcast %cst_11 : f32 to vector<128x896xf32>
    %25 = arith.maximumf %23, %24 : vector<128x896xf32>
    %26 = vector.extract_strided_slice %25 {offsets = [0, 0], sizes = [128, 448], strides = [1, 1]} : vector<128x896xf32> to vector<128x448xf32>
    %27 = vector.extract_strided_slice %25 {offsets = [0, 448], sizes = [128, 448], strides = [1, 1]} : vector<128x896xf32> to vector<128x448xf32>
    %28 = arith.maximumf %26, %27 : vector<128x448xf32>
    %29 = vector.shape_cast %28 : vector<128x448xf32> to vector<8x16x448xf32>
    %30 = vector.extract_strided_slice %29 {offsets = [0, 1, 0], sizes = [8, 1, 448], strides = [1, 1, 1]} : vector<8x16x448xf32> to vector<8x1x448xf32>
    %31 = vector.shape_cast %30 : vector<8x1x448xf32> to vector<8x448xf32>
    %32 = vector.extract_strided_slice %29 {offsets = [0, 2, 0], sizes = [8, 1, 448], strides = [1, 1, 1]} : vector<8x16x448xf32> to vector<8x1x448xf32>
    %33 = vector.shape_cast %32 : vector<8x1x448xf32> to vector<8x448xf32>
    %34 = arith.maximumf %31, %33 : vector<8x448xf32>
    %35 = vector.extract_strided_slice %29 {offsets = [0, 3, 0], sizes = [8, 1, 448], strides = [1, 1, 1]} : vector<8x16x448xf32> to vector<8x1x448xf32>
    %36 = vector.shape_cast %35 : vector<8x1x448xf32> to vector<8x448xf32>
    %37 = vector.extract_strided_slice %29 {offsets = [0, 4, 0], sizes = [8, 1, 448], strides = [1, 1, 1]} : vector<8x16x448xf32> to vector<8x1x448xf32>
    %38 = vector.shape_cast %37 : vector<8x1x448xf32> to vector<8x448xf32>
    %39 = arith.maximumf %36, %38 : vector<8x448xf32>
    %40 = vector.extract_strided_slice %29 {offsets = [0, 5, 0], sizes = [8, 1, 448], strides = [1, 1, 1]} : vector<8x16x448xf32> to vector<8x1x448xf32>
    %41 = vector.shape_cast %40 : vector<8x1x448xf32> to vector<8x448xf32>
    %42 = vector.extract_strided_slice %29 {offsets = [0, 6, 0], sizes = [8, 1, 448], strides = [1, 1, 1]} : vector<8x16x448xf32> to vector<8x1x448xf32>
    %43 = vector.shape_cast %42 : vector<8x1x448xf32> to vector<8x448xf32>
    %44 = arith.maximumf %41, %43 : vector<8x448xf32>
    %45 = vector.extract_strided_slice %29 {offsets = [0, 7, 0], sizes = [8, 1, 448], strides = [1, 1, 1]} : vector<8x16x448xf32> to vector<8x1x448xf32>
    %46 = vector.shape_cast %45 : vector<8x1x448xf32> to vector<8x448xf32>
    %47 = vector.extract_strided_slice %29 {offsets = [0, 8, 0], sizes = [8, 1, 448], strides = [1, 1, 1]} : vector<8x16x448xf32> to vector<8x1x448xf32>
    %48 = vector.shape_cast %47 : vector<8x1x448xf32> to vector<8x448xf32>
    %49 = arith.maximumf %46, %48 : vector<8x448xf32>
    %50 = vector.extract_strided_slice %29 {offsets = [0, 9, 0], sizes = [8, 1, 448], strides = [1, 1, 1]} : vector<8x16x448xf32> to vector<8x1x448xf32>
    %51 = vector.shape_cast %50 : vector<8x1x448xf32> to vector<8x448xf32>
    %52 = vector.extract_strided_slice %29 {offsets = [0, 10, 0], sizes = [8, 1, 448], strides = [1, 1, 1]} : vector<8x16x448xf32> to vector<8x1x448xf32>
    %53 = vector.shape_cast %52 : vector<8x1x448xf32> to vector<8x448xf32>
    %54 = arith.maximumf %51, %53 : vector<8x448xf32>
    %55 = vector.extract_strided_slice %29 {offsets = [0, 11, 0], sizes = [8, 1, 448], strides = [1, 1, 1]} : vector<8x16x448xf32> to vector<8x1x448xf32>
    %56 = vector.shape_cast %55 : vector<8x1x448xf32> to vector<8x448xf32>
    %57 = vector.extract_strided_slice %29 {offsets = [0, 12, 0], sizes = [8, 1, 448], strides = [1, 1, 1]} : vector<8x16x448xf32> to vector<8x1x448xf32>
    %58 = vector.shape_cast %57 : vector<8x1x448xf32> to vector<8x448xf32>
    %59 = arith.maximumf %56, %58 : vector<8x448xf32>
    %60 = vector.extract_strided_slice %29 {offsets = [0, 13, 0], sizes = [8, 1, 448], strides = [1, 1, 1]} : vector<8x16x448xf32> to vector<8x1x448xf32>
    %61 = vector.shape_cast %60 : vector<8x1x448xf32> to vector<8x448xf32>
    %62 = vector.extract_strided_slice %29 {offsets = [0, 14, 0], sizes = [8, 1, 448], strides = [1, 1, 1]} : vector<8x16x448xf32> to vector<8x1x448xf32>
    %63 = vector.shape_cast %62 : vector<8x1x448xf32> to vector<8x448xf32>
    %64 = arith.maximumf %61, %63 : vector<8x448xf32>
    %65 = tpu.concatenate %34, %39, %44, %49, %54, %59, %64 in 1 : vector<8x448xf32>, vector<8x448xf32>, vector<8x448xf32>, vector<8x448xf32>, vector<8x448xf32>, vector<8x448xf32>, vector<8x448xf32> -> vector<8x3136xf32>
    %c0_12 = arith.constant 0 : index
    %c0_13 = arith.constant 0 : index
    %66 = vector.load %arg5[%c0_12, %c0_13] : memref<3136x128xf32, #tpu.memory_space<vmem>>, vector<3136x128xf32>
    %cst_14 = arith.constant dense<0.000000e+00> : vector<8x128xf32>
    %67 = tpu.matmul %65, %66, %cst_14 {dimension_numbers = #tpu.dot_dimension_numbers<[1], [0], [0], [1], [0, 0, 1, 1], [], []>} : vector<8x3136xf32>, vector<3136x128xf32>, vector<8x128xf32> -> vector<8x128xf32>
    %c0_15 = arith.constant 0 : index
    %c0_16 = arith.constant 0 : index
    %68 = vector.load %arg6[%c0_15, %c0_16] : memref<1x128xf32, #tpu.memory_space<vmem>>, vector<1x128xf32>
    %69 = vector.broadcast %68 : vector<1x128xf32> to vector<8x128xf32>
    %70 = arith.addf %67, %69 : vector<8x128xf32>
    %cst_17 = arith.constant 0.000000e+00 : f32
    %71 = vector.broadcast %cst_17 : f32 to vector<8x128xf32>
    %72 = arith.maximumf %70, %71 : vector<8x128xf32>
    %c0_18 = arith.constant 0 : index
    %c0_19 = arith.constant 0 : index
    %73 = vector.load %arg7[%c0_18, %c0_19] : memref<128x128xf32, #tpu.memory_space<vmem>>, vector<128x128xf32>
    %cst_20 = arith.constant dense<0.000000e+00> : vector<8x128xf32>
    %74 = tpu.matmul %72, %73, %cst_20 {dimension_numbers = #tpu.dot_dimension_numbers<[1], [0], [0], [1], [0, 0, 1, 1], [], []>} : vector<8x128xf32>, vector<128x128xf32>, vector<8x128xf32> -> vector<8x128xf32>
    %c0_21 = arith.constant 0 : index
    %c0_22 = arith.constant 0 : index
    %75 = vector.load %arg8[%c0_21, %c0_22] : memref<1x128xf32, #tpu.memory_space<vmem>>, vector<1x128xf32>
    %76 = vector.broadcast %75 : vector<1x128xf32> to vector<8x128xf32>
    %77 = arith.addf %74, %76 : vector<8x128xf32>
    %c0_23 = arith.constant 0 : index
    %c0_24 = arith.constant 0 : index
    %78 = vector.load %arg9[%c0_23, %c0_24] : memref<8x128xf32, #tpu.memory_space<vmem>>, vector<8x128xf32>
    tpu.vector_store %arg9[%c0_23, %c0_24], %77 {strides = array<i32>} : memref<8x128xf32, #tpu.memory_space<vmem>>, vector<8x128xf32>,
    return
  }
  func.func @transform_0(%arg0: i32) -> (i32, i32) {
    %c0_i32 = arith.constant 0 : i32
    %c0_i32_0 = arith.constant 0 : i32
    return %arg0, %c0_i32 : i32, i32
  }
  func.func @transform_1(%arg0: i32) -> (i32, i32) {
    %c0_i32 = arith.constant 0 : i32
    %c0_i32_0 = arith.constant 0 : i32
    %c0_i32_1 = arith.constant 0 : i32
    return %c0_i32, %c0_i32_0 : i32, i32
  }
  func.func @transform_2(%arg0: i32) -> (i32, i32) {
    %c0_i32 = arith.constant 0 : i32
    %c0_i32_0 = arith.constant 0 : i32
    %c0_i32_1 = arith.constant 0 : i32
    return %c0_i32, %c0_i32_0 : i32, i32
  }
  func.func @transform_3(%arg0: i32) -> (i32, i32) {
    %c0_i32 = arith.constant 0 : i32
    %c0_i32_0 = arith.constant 0 : i32
    %c0_i32_1 = arith.constant 0 : i32
    return %c0_i32, %c0_i32_0 : i32, i32
  }
  func.func @transform_4(%arg0: i32) -> (i32, i32) {
    %c0_i32 = arith.constant 0 : i32
    %c0_i32_0 = arith.constant 0 : i32
    %c0_i32_1 = arith.constant 0 : i32
    return %c0_i32, %c0_i32_0 : i32, i32
  }
  func.func @transform_5(%arg0: i32) -> (i32, i32) {
    %c0_i32 = arith.constant 0 : i32
    %c0_i32_0 = arith.constant 0 : i32
    %c0_i32_1 = arith.constant 0 : i32
    return %c0_i32, %c0_i32_0 : i32, i32
  }
  func.func @transform_6(%arg0: i32) -> (i32, i32) {
    %c0_i32 = arith.constant 0 : i32
    %c0_i32_0 = arith.constant 0 : i32
    %c0_i32_1 = arith.constant 0 : i32
    return %c0_i32, %c0_i32_0 : i32, i32
  }
  func.func @transform_7(%arg0: i32) -> (i32, i32) {
    %c0_i32 = arith.constant 0 : i32
    %c0_i32_0 = arith.constant 0 : i32
    %c0_i32_1 = arith.constant 0 : i32
    return %c0_i32, %c0_i32_0 : i32, i32
  }
  func.func @transform_8(%arg0: i32) -> (i32, i32) {
    %c0_i32 = arith.constant 0 : i32
    %c0_i32_0 = arith.constant 0 : i32
    return %arg0, %c0_i32 : i32, i32
  }
}

</mosaic_0001>

<llo_original>
// kernel: _forward.1
$region0: #{_forward.1}
  #allocation0 [shape = 'u32[]', space=smem, size = 0x4, offset = 0x4, fixed_abs, tag = 'smem constant byte address 0x4 - core index']
  #allocation1 [shape = 'u32[72,128]{1,0:T(1,128)}', space=vmem, size = 0x9000, scoped, tag = 'internal scratch']
  %s0 = inlined_call_operand.vmem [shape: f32[128,121], index: 0, kind: input, shape index: {}]
  %s1 = inlined_call_operand.hbm [shape: f32[121,1792], index: 1, kind: input, shape index: {}]
  %s2 = inlined_call_operand.hbm [shape: f32[1536,896], index: 2, kind: input, shape index: {}]
  %s3 = inlined_call_operand.hbm [shape: f32[1,896], index: 3, kind: input, shape index: {}]
  %s4 = inlined_call_operand.hbm [shape: f32[3136,128], index: 4, kind: input, shape index: {}]
  %s5 = inlined_call_operand.hbm [shape: f32[1,128], index: 5, kind: input, shape index: {}]
  %s6 = inlined_call_operand.hbm [shape: f32[128,128], index: 6, kind: input, shape index: {}]
  %s7 = inlined_call_operand.hbm [shape: f32[1,128], index: 7, kind: input, shape index: {}]
  %s8 = inlined_call_operand.vmem [shape: f32[8,128], index: 8, kind: output, shape index: {}]
  %s9 = sld [smem:[#allocation0]]
  $region70: #{_forward.1} parent=0
    _
  %s11 = ssub.s32 1, %s9
  %s12 = scalar_select 0, %s11, %s9
  $region1: #{_forward.1} parent=0
    #allocation2 [shape = 'u8[917504]{0}', space=vmem, size = 0xe0000, scoped, tag = 'input window, operand 1, single buffered']
    #allocation3 [shape = 's32[1]{0}', space=sflag, size = 0x4, scoped, tag = 'scoped memory for _forward.1']
    #allocation4 [shape = 'u8[5505024]{0}', space=vmem, size = 0x540000, scoped, tag = 'input window, operand 2, single buffered']
    #allocation5 [shape = 's32[1]{0}', space=sflag, size = 0x4, scoped, tag = 'scoped memory for _forward.1']
    #allocation6 [shape = 'u8[3584]{0}', space=vmem, size = 0x1000, scoped, tag = 'input window, operand 3, single buffered']
    #allocation7 [shape = 'u8[1605632]{0}', space=vmem, size = 0x188000, scoped, tag = 'input window, operand 4, single buffered']
    #allocation8 [shape = 's32[1]{0}', space=sflag, size = 0x4, scoped, tag = 'scoped memory for _forward.1']
    #allocation9 [shape = 'u8[512]{0}', space=vmem, size = 0x400, scoped, tag = 'input window, operand 5, single buffered']
    #allocation10 [shape = 'u8[65536]{0}', space=vmem, size = 0x10000, scoped, tag = 'input window, operand 6, single buffered']
    #allocation11 [shape = 's32[1]{0}', space=sflag, size = 0x4, scoped, tag = 'scoped memory for _forward.1']
    #allocation12 [shape = 'u8[512]{0}', space=vmem, size = 0x400, scoped, tag = 'input window, operand 7, single buffered']
    %13 = vsyncpa [#allocation3], 0
    %14 = vsyncpa [#allocation5], 0
    %15 = vsyncpa [#allocation8], 0
    %16 = vsyncpa [#allocation11], 0
    // Predicated region
    $region2: #{_forward.1} parent=1 // pred_check
      _
    $region3: #{_forward.1} parent=1 // pred_check_branch
      %18 = sbr.rel (0) target = $region5
    $region4: #{_forward.1} parent=1 // pred_region
      _
    $region5: #{_forward.1} parent=1 // pred_fallthru
      _
    // Predicated region
    $region6: #{_forward.1} parent=1 // pred_check
      _
    $region7: #{_forward.1} parent=1 // pred_check_branch
      %20 = sbr.rel (0) target = $region9
    $region8: #{_forward.1} parent=1 // pred_region
      %22 = vsyncadd [#allocation3], 0
      %s23 = sshll.u32 %s1, 4
      %s24 = int_to_ptr.hbm [resolvable:$true] %s23
      %s25 = sshll.u32 [#allocation2], 4
      %s26 = int_to_ptr.vmem [resolvable:$true] %s25
      %31 = dma.hbm_to_vmem [thread:$0]  %s24, 28672, %s26, [#allocation3], 1792, 1792, 112
    $region9: #{_forward.1} parent=1 // pred_fallthru
      _
    // Predicated region
    $region10: #{_forward.1} parent=1 // pred_check
      _
    $region11: #{_forward.1} parent=1 // pred_check_branch
      %33 = sbr.rel (0) target = $region13
    $region12: #{_forward.1} parent=1 // pred_region
      %35 = vsyncadd [#allocation5], 0
      %s36 = sshll.u32 %s2, 4
      %s37 = int_to_ptr.hbm [resolvable:$true] %s36
      %s38 = sshll.u32 [#allocation4], 4
      %s39 = int_to_ptr.vmem [resolvable:$true] %s38
      %44 = dma.hbm_to_vmem [thread:$0]  %s37, 172032, %s39, [#allocation5], 896, 896, 56
    $region13: #{_forward.1} parent=1 // pred_fallthru
      _
    // Predicated region
    $region14: #{_forward.1} parent=1 // pred_check
      _
    $region15: #{_forward.1} parent=1 // pred_check_branch
      %46 = sbr.rel (0) target = $region17
    $region16: #{_forward.1} parent=1 // pred_region
      %48 = vsyncadd [#allocation5], 0
      %s50 = sshll.u32 %s3, 4
      %s51 = int_to_ptr.hbm [resolvable:$true] %s50
      %s52 = sshll.u32 [#allocation6], 4
      %s53 = int_to_ptr.vmem [resolvable:$true] %s52
      %55 = dma.hbm_to_vmem [thread:$0]  %s51, 112, %s53, [#allocation5]
    $region17: #{_forward.1} parent=1 // pred_fallthru
      _
    // Predicated region
    $region18: #{_forward.1} parent=1 // pred_check
      _
    $region19: #{_forward.1} parent=1 // pred_check_branch
      %57 = sbr.rel (0) target = $region21
    $region20: #{_forward.1} parent=1 // pred_region
      %59 = vsyncadd [#allocation8], 0
      %s60 = sshll.u32 %s4, 4
      %s61 = int_to_ptr.hbm [resolvable:$true] %s60
      %s62 = sshll.u32 [#allocation7], 4
      %s63 = int_to_ptr.vmem [resolvable:$true] %s62
      %68 = dma.hbm_to_vmem [thread:$0]  %s61, 50176, %s63, [#allocation8], 128, 128, 8
    $region21: #{_forward.1} parent=1 // pred_fallthru
      _
    // Predicated region
    $region22: #{_forward.1} parent=1 // pred_check
      _
    $region23: #{_forward.1} parent=1 // pred_check_branch
      %70 = sbr.rel (0) target = $region25
    $region24: #{_forward.1} parent=1 // pred_region
      %72 = vsyncadd [#allocation8], 0
      %s74 = sshll.u32 %s5, 4
      %s75 = int_to_ptr.hbm [resolvable:$true] %s74
      %s76 = sshll.u32 [#allocation9], 4
      %s77 = int_to_ptr.vmem [resolvable:$true] %s76
      %79 = dma.hbm_to_vmem [thread:$0]  %s75, 16, %s77, [#allocation8]
    $region25: #{_forward.1} parent=1 // pred_fallthru
      _
    // Predicated region
    $region26: #{_forward.1} parent=1 // pred_check
      _
    $region27: #{_forward.1} parent=1 // pred_check_branch
      %81 = sbr.rel (0) target = $region29
    $region28: #{_forward.1} parent=1 // pred_region
      %83 = vsyncadd [#allocation11], 0
      %s84 = sshll.u32 %s6, 4
      %s85 = int_to_ptr.hbm [resolvable:$true] %s84
      %s86 = sshll.u32 [#allocation10], 4
      %s87 = int_to_ptr.vmem [resolvable:$true] %s86
      %92 = dma.hbm_to_vmem [thread:$0]  %s85, 2048, %s87, [#allocation11], 128, 128, 8
    $region29: #{_forward.1} parent=1 // pred_fallthru
      _
    // Predicated region
    $region30: #{_forward.1} parent=1 // pred_check
      _
    $region31: #{_forward.1} parent=1 // pred_check_branch
      %94 = sbr.rel (0) target = $region33
    $region32: #{_forward.1} parent=1 // pred_region
      %96 = vsyncadd [#allocation11], 0
      %s98 = sshll.u32 %s7, 4
      %s99 = int_to_ptr.hbm [resolvable:$true] %s98
      %s100 = sshll.u32 [#allocation12], 4
      %s101 = int_to_ptr.vmem [resolvable:$true] %s100
      %103 = dma.hbm_to_vmem [thread:$0]  %s99, 16, %s101, [#allocation11]
    $region33: #{_forward.1} parent=1 // pred_fallthru
      _
    // Predicated region
    $region34: #{_forward.1} parent=1 // pred_check
      _
    $region35: #{_forward.1} parent=1 // pred_check_branch
      %105 = sbr.rel (0) target = $region37
    $region36: #{_forward.1} parent=1 // pred_region
      %107 = dma.done [#allocation3], 28672
    $region37: #{_forward.1} parent=1 // pred_fallthru
      _
    // Predicated region
    $region38: #{_forward.1} parent=1 // pred_check
      _
    $region39: #{_forward.1} parent=1 // pred_check_branch
      %109 = sbr.rel (0) target = $region41
    $region40: #{_forward.1} parent=1 // pred_region
      %111 = dma.done [#allocation5], 172032
    $region41: #{_forward.1} parent=1 // pred_fallthru
      _
    // Predicated region
    $region42: #{_forward.1} parent=1 // pred_check
      _
    $region43: #{_forward.1} parent=1 // pred_check_branch
      %113 = sbr.rel (0) target = $region45
    $region44: #{_forward.1} parent=1 // pred_region
      %115 = dma.done [#allocation5], 112
    $region45: #{_forward.1} parent=1 // pred_fallthru
      _
    // Predicated region
    $region46: #{_forward.1} parent=1 // pred_check
      _
    $region47: #{_forward.1} parent=1 // pred_check_branch
      %117 = sbr.rel (0) target = $region49
    $region48: #{_forward.1} parent=1 // pred_region
      %119 = dma.done [#allocation8], 50176
    $region49: #{_forward.1} parent=1 // pred_fallthru
      _
    // Predicated region
    $region50: #{_forward.1} parent=1 // pred_check
      _
    $region51: #{_forward.1} parent=1 // pred_check_branch
      %121 = sbr.rel (0) target = $region53
    $region52: #{_forward.1} parent=1 // pred_region
      %123 = dma.done [#allocation8], 16
    $region53: #{_forward.1} parent=1 // pred_fallthru
      _
    // Predicated region
    $region54: #{_forward.1} parent=1 // pred_check
      _
    $region55: #{_forward.1} parent=1 // pred_check_branch
      %125 = sbr.rel (0) target = $region57
    $region56: #{_forward.1} parent=1 // pred_region
      %127 = dma.done [#allocation11], 2048
    $region57: #{_forward.1} parent=1 // pred_fallthru
      _
    // Predicated region
    $region58: #{_forward.1} parent=1 // pred_check
      _
    $region59: #{_forward.1} parent=1 // pred_check_branch
      %129 = sbr.rel (0) target = $region61
    $region60: #{_forward.1} parent=1 // pred_region
      %131 = dma.done [#allocation11], 16
    $region61: #{_forward.1} parent=1 // pred_fallthru
      _
    %v132 = vld [vmem:[%s0] sm:$0xff]
    %v133 = vld [vmem:[%s0 + $0x8] sm:$0xff]
    %v134 = vld [vmem:[%s0 + $0x10] sm:$0xff]
    %v135 = vld [vmem:[%s0 + $0x18] sm:$0xff]
    %v136 = vld [vmem:[%s0 + $0x20] sm:$0xff]
    %v137 = vld [vmem:[%s0 + $0x28] sm:$0xff]
    %v138 = vld [vmem:[%s0 + $0x30] sm:$0xff]
    %v139 = vld [vmem:[%s0 + $0x38] sm:$0xff]
    %v140 = vld [vmem:[%s0 + $0x40] sm:$0xff]
    %v141 = vld [vmem:[%s0 + $0x48] sm:$0xff]
    %v142 = vld [vmem:[%s0 + $0x50] sm:$0xff]
    %v143 = vld [vmem:[%s0 + $0x58] sm:$0xff]
    %v144 = vld [vmem:[%s0 + $0x60] sm:$0xff]
    %v145 = vld [vmem:[%s0 + $0x68] sm:$0xff]
    %v146 = vld [vmem:[%s0 + $0x70] sm:$0xff]
    %v147 = vld [vmem:[%s0 + $0x78] sm:$0xff]
    %v148 = vld [vmem:[#allocation2] sm:$0xff]
    %v149 = vld [vmem:[#allocation2 + $0x8] sm:$0xff]
    %v150 = vld [vmem:[#allocation2 + $0x10] sm:$0xff]
    %v151 = vld [vmem:[#allocation2 + $0x18] sm:$0xff]
    %v152 = vld [vmem:[#allocation2 + $0x20] sm:$0xff]
    %v153 = vld [vmem:[#allocation2 + $0x28] sm:$0xff]
    %v154 = vld [vmem:[#allocation2 + $0x30] sm:$0xff]
    %v155 = vld [vmem:[#allocation2 + $0x38] sm:$0xff]
    %v156 = vld [vmem:[#allocation2 + $0x40] sm:$0xff]
    %v157 = vld [vmem:[#allocation2 + $0x48] sm:$0xff]
    %v158 = vld [vmem:[#allocation2 + $0x50] sm:$0xff]
    %v159 = vld [vmem:[#allocation2 + $0x58] sm:$0xff]
    %v160 = vld [vmem:[#allocation2 + $0x60] sm:$0xff]
    %v161 = vld [vmem:[#allocation2 + $0x68] sm:$0xff]
    %v162 = vld [vmem:[#allocation2 + $0x70] sm:$0xff]
    %v163 = vld [vmem:[#allocation2 + $0x78] sm:$0xff]
    %v164 = vld [vmem:[#allocation2 + $0x80] sm:$0xff]
    %v165 = vld [vmem:[#allocation2 + $0x88] sm:$0xff]
    %v166 = vld [vmem:[#allocation2 + $0x90] sm:$0xff]
    %v167 = vld [vmem:[#allocation2 + $0x98] sm:$0xff]
    %v168 = vld [vmem:[#allocation2 + $0xa0] sm:$0xff]
    %v169 = vld [vmem:[#allocation2 + $0xa8] sm:$0xff]
    %v170 = vld [vmem:[#allocation2 + $0xb0] sm:$0xff]
    %v171 = vld [vmem:[#allocation2 + $0xb8] sm:$0xff]
    %v172 = vld [vmem:[#allocation2 + $0xc0] sm:$0xff]
    %v173 = vld [vmem:[#allocation2 + $0xc8] sm:$0xff]
    %v174 = vld [vmem:[#allocation2 + $0xd0] sm:$0xff]
    %v175 = vld [vmem:[#allocation2 + $0xd8] sm:$0xff]
    %v176 = vld [vmem:[#allocation2 + $0xe0] sm:$0xff]
    %v177 = vld [vmem:[#allocation2 + $0xe8] sm:$0xff]
    %v178 = vld [vmem:[#allocation2 + $0xf0] sm:$0xff]
    %v179 = vld [vmem:[#allocation2 + $0xf8] sm:$0xff]
    %v180 = vld [vmem:[#allocation2 + $0x100] sm:$0xff]
    %v181 = vld [vmem:[#allocation2 + $0x108] sm:$0xff]
    %v182 = vld [vmem:[#allocation2 + $0x110] sm:$0xff]
    %v183 = vld [vmem:[#allocation2 + $0x118] sm:$0xff]
    %v184 = vld [vmem:[#allocation2 + $0x120] sm:$0xff]
    %v185 = vld [vmem:[#allocation2 + $0x128] sm:$0xff]
    %v186 = vld [vmem:[#allocation2 + $0x130] sm:$0xff]
    %v187 = vld [vmem:[#allocation2 + $0x138] sm:$0xff]
    %v188 = vld [vmem:[#allocation2 + $0x140] sm:$0xff]
    %v189 = vld [vmem:[#allocation2 + $0x148] sm:$0xff]
    %v190 = vld [vmem:[#allocation2 + $0x150] sm:$0xff]
    %v191 = vld [vmem:[#allocation2 + $0x158] sm:$0xff]
    %v192 = vld [vmem:[#allocation2 + $0x160] sm:$0xff]
    %v193 = vld [vmem:[#allocation2 + $0x168] sm:$0xff]
    %v194 = vld [vmem:[#allocation2 + $0x170] sm:$0xff]
    %v195 = vld [vmem:[#allocation2 + $0x178] sm:$0xff]
    %v196 = vld [vmem:[#allocation2 + $0x180] sm:$0xff]
    %v197 = vld [vmem:[#allocation2 + $0x188] sm:$0xff]
    %v198 = vld [vmem:[#allocation2 + $0x190] sm:$0xff]
    %v199 = vld [vmem:[#allocation2 + $0x198] sm:$0xff]
    %v200 = vld [vmem:[#allocation2 + $0x1a0] sm:$0xff]
    %v201 = vld [vmem:[#allocation2 + $0x1a8] sm:$0xff]
    %v202 = vld [vmem:[#allocation2 + $0x1b0] sm:$0xff]
    %v203 = vld [vmem:[#allocation2 + $0x1b8] sm:$0xff]
    %v204 = vld [vmem:[#allocation2 + $0x1c0] sm:$0xff]
    %v205 = vld [vmem:[#allocation2 + $0x1c8] sm:$0xff]
    %v206 = vld [vmem:[#allocation2 + $0x1d0] sm:$0xff]
    %v207 = vld [vmem:[#allocation2 + $0x1d8] sm:$0xff]
    %v208 = vld [vmem:[#allocation2 + $0x1e0] sm:$0xff]
    %v209 = vld [vmem:[#allocation2 + $0x1e8] sm:$0xff]
    %v210 = vld [vmem:[#allocation2 + $0x1f0] sm:$0xff]
    %v211 = vld [vmem:[#allocation2 + $0x1f8] sm:$0xff]
    %v212 = vld [vmem:[#allocation2 + $0x200] sm:$0xff]
    %v213 = vld [vmem:[#allocation2 + $0x208] sm:$0xff]
    %v214 = vld [vmem:[#allocation2 + $0x210] sm:$0xff]
    %v215 = vld [vmem:[#allocation2 + $0x218] sm:$0xff]
    %v216 = vld [vmem:[#allocation2 + $0x220] sm:$0xff]
    %v217 = vld [vmem:[#allocation2 + $0x228] sm:$0xff]
    %v218 = vld [vmem:[#allocation2 + $0x230] sm:$0xff]
    %v219 = vld [vmem:[#allocation2 + $0x238] sm:$0xff]
    %v220 = vld [vmem:[#allocation2 + $0x240] sm:$0xff]
    %v221 = vld [vmem:[#allocation2 + $0x248] sm:$0xff]
    %v222 = vld [vmem:[#allocation2 + $0x250] sm:$0xff]
    %v223 = vld [vmem:[#allocation2 + $0x258] sm:$0xff]
    %v224 = vld [vmem:[#allocation2 + $0x260] sm:$0xff]
    %v225 = vld [vmem:[#allocation2 + $0x268] sm:$0xff]
    %v226 = vld [vmem:[#allocation2 + $0x270] sm:$0xff]
    %v227 = vld [vmem:[#allocation2 + $0x278] sm:$0xff]
    %v228 = vld [vmem:[#allocation2 + $0x280] sm:$0xff]
    %v229 = vld [vmem:[#allocation2 + $0x288] sm:$0xff]
    %v230 = vld [vmem:[#allocation2 + $0x290] sm:$0xff]
    %v231 = vld [vmem:[#allocation2 + $0x298] sm:$0xff]
    %v232 = vld [vmem:[#allocation2 + $0x2a0] sm:$0xff]
    %v233 = vld [vmem:[#allocation2 + $0x2a8] sm:$0xff]
    %v234 = vld [vmem:[#allocation2 + $0x2b0] sm:$0xff]
    %v235 = vld [vmem:[#allocation2 + $0x2b8] sm:$0xff]
    %v236 = vld [vmem:[#allocation2 + $0x2c0] sm:$0xff]
    %v237 = vld [vmem:[#allocation2 + $0x2c8] sm:$0xff]
    %v238 = vld [vmem:[#allocation2 + $0x2d0] sm:$0xff]
    %v239 = vld [vmem:[#allocation2 + $0x2d8] sm:$0xff]
    %v240 = vld [vmem:[#allocation2 + $0x2e0] sm:$0xff]
    %v241 = vld [vmem:[#allocation2 + $0x2e8] sm:$0xff]
    %v242 = vld [vmem:[#allocation2 + $0x2f0] sm:$0xff]
    %v243 = vld [vmem:[#allocation2 + $0x2f8] sm:$0xff]
    %v244 = vld [vmem:[#allocation2 + $0x300] sm:$0xff]
    %v245 = vld [vmem:[#allocation2 + $0x308] sm:$0xff]
    %v246 = vld [vmem:[#allocation2 + $0x310] sm:$0xff]
    %v247 = vld [vmem:[#allocation2 + $0x318] sm:$0xff]
    %v248 = vld [vmem:[#allocation2 + $0x320] sm:$0xff]
    %v249 = vld [vmem:[#allocation2 + $0x328] sm:$0xff]
    %v250 = vld [vmem:[#allocation2 + $0x330] sm:$0xff]
    %v251 = vld [vmem:[#allocation2 + $0x338] sm:$0xff]
    %v252 = vld [vmem:[#allocation2 + $0x340] sm:$0xff]
    %v253 = vld [vmem:[#allocation2 + $0x348] sm:$0xff]
    %v254 = vld [vmem:[#allocation2 + $0x350] sm:$0xff]
    %v255 = vld [vmem:[#allocation2 + $0x358] sm:$0xff]
    %v256 = vld [vmem:[#allocation2 + $0x360] sm:$0xff]
    %v257 = vld [vmem:[#allocation2 + $0x368] sm:$0xff]
    %v258 = vld [vmem:[#allocation2 + $0x370] sm:$0xff]
    %v259 = vld [vmem:[#allocation2 + $0x378] sm:$0xff]
    %v260 = vld [vmem:[#allocation2 + $0x380] sm:$0xff]
    %v261 = vld [vmem:[#allocation2 + $0x388] sm:$0xff]
    %v262 = vld [vmem:[#allocation2 + $0x390] sm:$0xff]
    %v263 = vld [vmem:[#allocation2 + $0x398] sm:$0xff]
    %v264 = vld [vmem:[#allocation2 + $0x3a0] sm:$0xff]
    %v265 = vld [vmem:[#allocation2 + $0x3a8] sm:$0xff]
    %v266 = vld [vmem:[#allocation2 + $0x3b0] sm:$0xff]
    %v267 = vld [vmem:[#allocation2 + $0x3b8] sm:$0xff]
    %v268 = vld [vmem:[#allocation2 + $0x3c0] sm:$0xff]
    %v269 = vld [vmem:[#allocation2 + $0x3c8] sm:$0xff]
    %v270 = vld [vmem:[#allocation2 + $0x3d0] sm:$0xff]
    %v271 = vld [vmem:[#allocation2 + $0x3d8] sm:$0xff]
    %v272 = vld [vmem:[#allocation2 + $0x3e0] sm:$0xff]
    %v273 = vld [vmem:[#allocation2 + $0x3e8] sm:$0xff]
    %v274 = vld [vmem:[#allocation2 + $0x3f0] sm:$0xff]
    %v275 = vld [vmem:[#allocation2 + $0x3f8] sm:$0xff]
    %v276 = vld [vmem:[#allocation2 + $0x400] sm:$0xff]
    %v277 = vld [vmem:[#allocation2 + $0x408] sm:$0xff]
    %v278 = vld [vmem:[#allocation2 + $0x410] sm:$0xff]
    %v279 = vld [vmem:[#allocation2 + $0x418] sm:$0xff]
    %v280 = vld [vmem:[#allocation2 + $0x420] sm:$0xff]
    %v281 = vld [vmem:[#allocation2 + $0x428] sm:$0xff]
    %v282 = vld [vmem:[#allocation2 + $0x430] sm:$0xff]
    %v283 = vld [vmem:[#allocation2 + $0x438] sm:$0xff]
    %v284 = vld [vmem:[#allocation2 + $0x440] sm:$0xff]
    %v285 = vld [vmem:[#allocation2 + $0x448] sm:$0xff]
    %v286 = vld [vmem:[#allocation2 + $0x450] sm:$0xff]
    %v287 = vld [vmem:[#allocation2 + $0x458] sm:$0xff]
    %v288 = vld [vmem:[#allocation2 + $0x460] sm:$0xff]
    %v289 = vld [vmem:[#allocation2 + $0x468] sm:$0xff]
    %v290 = vld [vmem:[#allocation2 + $0x470] sm:$0xff]
    %v291 = vld [vmem:[#allocation2 + $0x478] sm:$0xff]
    %v292 = vld [vmem:[#allocation2 + $0x480] sm:$0xff]
    %v293 = vld [vmem:[#allocation2 + $0x488] sm:$0xff]
    %v294 = vld [vmem:[#allocation2 + $0x490] sm:$0xff]
    %v295 = vld [vmem:[#allocation2 + $0x498] sm:$0xff]
    %v296 = vld [vmem:[#allocation2 + $0x4a0] sm:$0xff]
    %v297 = vld [vmem:[#allocation2 + $0x4a8] sm:$0xff]
    %v298 = vld [vmem:[#allocation2 + $0x4b0] sm:$0xff]
    %v299 = vld [vmem:[#allocation2 + $0x4b8] sm:$0xff]
    %v300 = vld [vmem:[#allocation2 + $0x4c0] sm:$0xff]
    %v301 = vld [vmem:[#allocation2 + $0x4c8] sm:$0xff]
    %v302 = vld [vmem:[#allocation2 + $0x4d0] sm:$0xff]
    %v303 = vld [vmem:[#allocation2 + $0x4d8] sm:$0xff]
    %v304 = vld [vmem:[#allocation2 + $0x4e0] sm:$0xff]
    %v305 = vld [vmem:[#allocation2 + $0x4e8] sm:$0xff]
    %v306 = vld [vmem:[#allocation2 + $0x4f0] sm:$0xff]
    %v307 = vld [vmem:[#allocation2 + $0x4f8] sm:$0xff]
    %v308 = vld [vmem:[#allocation2 + $0x500] sm:$0xff]
    %v309 = vld [vmem:[#allocation2 + $0x508] sm:$0xff]
    %v310 = vld [vmem:[#allocation2 + $0x510] sm:$0xff]
    %v311 = vld [vmem:[#allocation2 + $0x518] sm:$0xff]
    %v312 = vld [vmem:[#allocation2 + $0x520] sm:$0xff]
    %v313 = vld [vmem:[#allocation2 + $0x528] sm:$0xff]
    %v314 = vld [vmem:[#allocation2 + $0x530] sm:$0xff]
    %v315 = vld [vmem:[#allocation2 + $0x538] sm:$0xff]
    %v316 = vld [vmem:[#allocation2 + $0x540] sm:$0xff]
    %v317 = vld [vmem:[#allocation2 + $0x548] sm:$0xff]
    %v318 = vld [vmem:[#allocation2 + $0x550] sm:$0xff]
    %v319 = vld [vmem:[#allocation2 + $0x558] sm:$0xff]
    %v320 = vld [vmem:[#allocation2 + $0x560] sm:$0xff]
    %v321 = vld [vmem:[#allocation2 + $0x568] sm:$0xff]
    %v322 = vld [vmem:[#allocation2 + $0x570] sm:$0xff]
    %v323 = vld [vmem:[#allocation2 + $0x578] sm:$0xff]
    %v324 = vld [vmem:[#allocation2 + $0x580] sm:$0xff]
    %v325 = vld [vmem:[#allocation2 + $0x588] sm:$0xff]
    %v326 = vld [vmem:[#allocation2 + $0x590] sm:$0xff]
    %v327 = vld [vmem:[#allocation2 + $0x598] sm:$0xff]
    %v328 = vld [vmem:[#allocation2 + $0x5a0] sm:$0xff]
    %v329 = vld [vmem:[#allocation2 + $0x5a8] sm:$0xff]
    %v330 = vld [vmem:[#allocation2 + $0x5b0] sm:$0xff]
    %v331 = vld [vmem:[#allocation2 + $0x5b8] sm:$0xff]
    %v332 = vld [vmem:[#allocation2 + $0x5c0] sm:$0xff]
    %v333 = vld [vmem:[#allocation2 + $0x5c8] sm:$0xff]
    %v334 = vld [vmem:[#allocation2 + $0x5d0] sm:$0xff]
    %v335 = vld [vmem:[#allocation2 + $0x5d8] sm:$0xff]
    %v336 = vld [vmem:[#allocation2 + $0x5e0] sm:$0xff]
    %v337 = vld [vmem:[#allocation2 + $0x5e8] sm:$0xff]
    %v338 = vld [vmem:[#allocation2 + $0x5f0] sm:$0xff]
    %v339 = vld [vmem:[#allocation2 + $0x5f8] sm:$0xff]
    %v340 = vld [vmem:[#allocation2 + $0x600] sm:$0xff]
    %v341 = vld [vmem:[#allocation2 + $0x608] sm:$0xff]
    %v342 = vld [vmem:[#allocation2 + $0x610] sm:$0xff]
    %v343 = vld [vmem:[#allocation2 + $0x618] sm:$0xff]
    %v344 = vld [vmem:[#allocation2 + $0x620] sm:$0xff]
    %v345 = vld [vmem:[#allocation2 + $0x628] sm:$0xff]
    %v346 = vld [vmem:[#allocation2 + $0x630] sm:$0xff]
    %v347 = vld [vmem:[#allocation2 + $0x638] sm:$0xff]
    %v348 = vld [vmem:[#allocation2 + $0x640] sm:$0xff]
    %v349 = vld [vmem:[#allocation2 + $0x648] sm:$0xff]
    %v350 = vld [vmem:[#allocation2 + $0x650] sm:$0xff]
    %v351 = vld [vmem:[#allocation2 + $0x658] sm:$0xff]
    %v352 = vld [vmem:[#allocation2 + $0x660] sm:$0xff]
    %v353 = vld [vmem:[#allocation2 + $0x668] sm:$0xff]
    %v354 = vld [vmem:[#allocation2 + $0x670] sm:$0xff]
    %v355 = vld [vmem:[#allocation2 + $0x678] sm:$0xff]
    %v356 = vld [vmem:[#allocation2 + $0x680] sm:$0xff]
    %v357 = vld [vmem:[#allocation2 + $0x688] sm:$0xff]
    %v358 = vld [vmem:[#allocation2 + $0x690] sm:$0x1]
    %v359 = vld [vmem:[#allocation2 + $0x698] sm:$0x1]
    %v360 = vld [vmem:[#allocation2 + $0x6a0] sm:$0x1]
    %v361 = vld [vmem:[#allocation2 + $0x6a8] sm:$0x1]
    %v362 = vld [vmem:[#allocation2 + $0x6b0] sm:$0x1]
    %v363 = vld [vmem:[#allocation2 + $0x6b8] sm:$0x1]
    %v364 = vld [vmem:[#allocation2 + $0x6c0] sm:$0x1]
    %v365 = vld [vmem:[#allocation2 + $0x6c8] sm:$0x1]
    %v366 = vld [vmem:[#allocation2 + $0x6d0] sm:$0x1]
    %v367 = vld [vmem:[#allocation2 + $0x6d8] sm:$0x1]
    %v368 = vld [vmem:[#allocation2 + $0x6e0] sm:$0x1]
    %v369 = vld [vmem:[#allocation2 + $0x6e8] sm:$0x1]
    %v370 = vld [vmem:[#allocation2 + $0x6f0] sm:$0x1]
    %v371 = vld [vmem:[#allocation2 + $0x6f8] sm:$0x1]
    %vm372 = vcmask 990208
    %v374 = vsel %vm372, %v132, 0
    %v377 = vsel %vm372, %v133, 0
    %v380 = vsel %vm372, %v134, 0
    %v383 = vsel %vm372, %v135, 0
    %v386 = vsel %vm372, %v136, 0
    %v389 = vsel %vm372, %v137, 0
    %v392 = vsel %vm372, %v138, 0
    %v395 = vsel %vm372, %v139, 0
    %v398 = vsel %vm372, %v140, 0
    %v401 = vsel %vm372, %v141, 0
    %v404 = vsel %vm372, %v142, 0
    %v407 = vsel %vm372, %v143, 0
    %v410 = vsel %vm372, %v144, 0
    %v413 = vsel %vm372, %v145, 0
    %v416 = vsel %vm372, %v146, 0
    %v419 = vsel %vm372, %v147, 0
    %vm421 = vcmask 1040384
    %v423 = vsel %vm421, %v358, 0
    %v426 = vsel %vm421, %v359, 0
    %v429 = vsel %vm421, %v360, 0
    %v432 = vsel %vm421, %v361, 0
    %v435 = vsel %vm421, %v362, 0
    %v438 = vsel %vm421, %v363, 0
    %v441 = vsel %vm421, %v364, 0
    %v444 = vsel %vm421, %v365, 0
    %v447 = vsel %vm421, %v366, 0
    %v450 = vsel %vm421, %v367, 0
    %v453 = vsel %vm421, %v368, 0
    %v456 = vsel %vm421, %v369, 0
    %v459 = vsel %vm421, %v370, 0
    %v462 = vsel %vm421, %v371, 0
    %464 = vmatpush.msra.mxu0 %v423
    %465 = vmatpush.msra.mxu0 %v344
    %466 = vmatpush.msra.mxu0 %v330
    %467 = vmatpush.msra.mxu0 %v316
    %468 = vmatpush.msra.mxu0 %v302
    %469 = vmatpush.msra.mxu0 %v288
    %470 = vmatpush.msra.mxu0 %v274
    %471 = vmatpush.msra.mxu0 %v260
    %472 = vmatpush.msra.mxu0 %v246
    %473 = vmatpush.msra.mxu0 %v232
    %474 = vmatpush.msra.mxu0 %v218
    %475 = vmatpush.msra.mxu0 %v204
    %476 = vmatpush.msra.mxu0 %v190
    %477 = vmatpush.msra.mxu0 %v176
    %478 = vmatpush.msra.mxu0 %v162
    %479 = vmatpush.msra.mxu0 %v148
    %480 = vmatmul.f32.gmra.mxu0 %v374
    %v481 = vpop.f32.mrf.mxu0
    %v482 = vadd.f32 0.0, %v481
    %483 = vmatmul.f32.gmra.mxu0 %v377
    %v484 = vpop.f32.mrf.mxu0
    %v485 = vadd.f32 0.0, %v484
    %486 = vmatmul.f32.gmra.mxu0 %v380
    %v487 = vpop.f32.mrf.mxu0
    %v488 = vadd.f32 0.0, %v487
    %489 = vmatmul.f32.gmra.mxu0 %v383
    %v490 = vpop.f32.mrf.mxu0
    %v491 = vadd.f32 0.0, %v490
    %492 = vmatmul.f32.gmra.mxu0 %v386
    %v493 = vpop.f32.mrf.mxu0
    %v494 = vadd.f32 0.0, %v493
    %495 = vmatmul.f32.gmra.mxu0 %v389
    %v496 = vpop.f32.mrf.mxu0
    %v497 = vadd.f32 0.0, %v496
    %498 = vmatmul.f32.gmra.mxu0 %v392
    %v499 = vpop.f32.mrf.mxu0
    %v500 = vadd.f32 0.0, %v499
    %501 = vmatmul.f32.gmra.mxu0 %v395
    %v502 = vpop.f32.mrf.mxu0
    %v503 = vadd.f32 0.0, %v502
    %504 = vmatmul.f32.gmra.mxu0 %v398
    %v505 = vpop.f32.mrf.mxu0
    %v506 = vadd.f32 0.0, %v505
    %507 = vmatmul.f32.gmra.mxu0 %v401
    %v508 = vpop.f32.mrf.mxu0
    %v509 = vadd.f32 0.0, %v508
    %510 = vmatmul.f32.gmra.mxu0 %v404
    %v511 = vpop.f32.mrf.mxu0
    %v512 = vadd.f32 0.0, %v511
    %513 = vmatmul.f32.gmra.mxu0 %v407
    %v514 = vpop.f32.mrf.mxu0
    %v515 = vadd.f32 0.0, %v514
    %516 = vmatmul.f32.gmra.mxu0 %v410
    %v517 = vpop.f32.mrf.mxu0
    %v518 = vadd.f32 0.0, %v517
    %519 = vmatmul.f32.gmra.mxu0 %v413
    %v520 = vpop.f32.mrf.mxu0
    %v521 = vadd.f32 0.0, %v520
    %522 = vmatmul.f32.gmra.mxu0 %v416
    %v523 = vpop.f32.mrf.mxu0
    %v524 = vadd.f32 0.0, %v523
    %525 = vmatmul.f32.gmra.mxu0 %v419
    %v526 = vpop.f32.mrf.mxu0
    %v527 = vadd.f32 0.0, %v526
    %528 = vdwg.mxu0
    %529 = vmatpush.msra.mxu0 %v426
    %530 = vmatpush.msra.mxu0 %v345
    %531 = vmatpush.msra.mxu0 %v331
    %532 = vmatpush.msra.mxu0 %v317
    %533 = vmatpush.msra.mxu0 %v303
    %534 = vmatpush.msra.mxu0 %v289
    %535 = vmatpush.msra.mxu0 %v275
    %536 = vmatpush.msra.mxu0 %v261
    %537 = vmatpush.msra.mxu0 %v247
    %538 = vmatpush.msra.mxu0 %v233
    %539 = vmatpush.msra.mxu0 %v219
    %540 = vmatpush.msra.mxu0 %v205
    %541 = vmatpush.msra.mxu0 %v191
    %542 = vmatpush.msra.mxu0 %v177
    %543 = vmatpush.msra.mxu0 %v163
    %544 = vmatpush.msra.mxu0 %v149
    %545 = vmatmul.f32.gmra.mxu0 %v374
    %v546 = vpop.f32.mrf.mxu0
    %v547 = vadd.f32 0.0, %v546
    %548 = vmatmul.f32.gmra.mxu0 %v377
    %v549 = vpop.f32.mrf.mxu0
    %v550 = vadd.f32 0.0, %v549
    %551 = vmatmul.f32.gmra.mxu0 %v380
    %v552 = vpop.f32.mrf.mxu0
    %v553 = vadd.f32 0.0, %v552
    %554 = vmatmul.f32.gmra.mxu0 %v383
    %v555 = vpop.f32.mrf.mxu0
    %v556 = vadd.f32 0.0, %v555
    %557 = vmatmul.f32.gmra.mxu0 %v386
    %v558 = vpop.f32.mrf.mxu0
    %v559 = vadd.f32 0.0, %v558
    %560 = vmatmul.f32.gmra.mxu0 %v389
    %v561 = vpop.f32.mrf.mxu0
    %v562 = vadd.f32 0.0, %v561
    %563 = vmatmul.f32.gmra.mxu0 %v392
    %v564 = vpop.f32.mrf.mxu0
    %v565 = vadd.f32 0.0, %v564
    %566 = vmatmul.f32.gmra.mxu0 %v395
    %v567 = vpop.f32.mrf.mxu0
    %v568 = vadd.f32 0.0, %v567
    %569 = vmatmul.f32.gmra.mxu0 %v398
    %v570 = vpop.f32.mrf.mxu0
    %v571 = vadd.f32 0.0, %v570
    %572 = vmatmul.f32.gmra.mxu0 %v401
    %v573 = vpop.f32.mrf.mxu0
    %v574 = vadd.f32 0.0, %v573
    %575 = vmatmul.f32.gmra.mxu0 %v404
    %v576 = vpop.f32.mrf.mxu0
    %v577 = vadd.f32 0.0, %v576
    %578 = vmatmul.f32.gmra.mxu0 %v407
    %v579 = vpop.f32.mrf.mxu0
    %v580 = vadd.f32 0.0, %v579
    %581 = vmatmul.f32.gmra.mxu0 %v410
    %v582 = vpop.f32.mrf.mxu0
    %v583 = vadd.f32 0.0, %v582
    %584 = vmatmul.f32.gmra.mxu0 %v413
    %v585 = vpop.f32.mrf.mxu0
    %v586 = vadd.f32 0.0, %v585
    %587 = vmatmul.f32.gmra.mxu0 %v416
    %v588 = vpop.f32.mrf.mxu0
    %v589 = vadd.f32 0.0, %v588
    %590 = vmatmul.f32.gmra.mxu0 %v419
    %v591 = vpop.f32.mrf.mxu0
    %v592 = vadd.f32 0.0, %v591
    %593 = vdwg.mxu0
    %594 = vmatpush.msra.mxu0 %v429
    %595 = vmatpush.msra.mxu0 %v346
    %596 = vmatpush.msra.mxu0 %v332
    %597 = vmatpush.msra.mxu0 %v318
    %598 = vmatpush.msra.mxu0 %v304
    %599 = vmatpush.msra.mxu0 %v290
    %600 = vmatpush.msra.mxu0 %v276
    %601 = vmatpush.msra.mxu0 %v262
    %602 = vmatpush.msra.mxu0 %v248
    %603 = vmatpush.msra.mxu0 %v234
    %604 = vmatpush.msra.mxu0 %v220
    %605 = vmatpush.msra.mxu0 %v206
    %606 = vmatpush.msra.mxu0 %v192
    %607 = vmatpush.msra.mxu0 %v178
    %608 = vmatpush.msra.mxu0 %v164
    %609 = vmatpush.msra.mxu0 %v150
    %610 = vmatmul.f32.gmra.mxu0 %v374
    %v611 = vpop.f32.mrf.mxu0
    %v612 = vadd.f32 0.0, %v611
    %613 = vmatmul.f32.gmra.mxu0 %v377
    %v614 = vpop.f32.mrf.mxu0
    %v615 = vadd.f32 0.0, %v614
    %616 = vmatmul.f32.gmra.mxu0 %v380
    %v617 = vpop.f32.mrf.mxu0
    %v618 = vadd.f32 0.0, %v617
    %619 = vmatmul.f32.gmra.mxu0 %v383
    %v620 = vpop.f32.mrf.mxu0
    %v621 = vadd.f32 0.0, %v620
    %622 = vmatmul.f32.gmra.mxu0 %v386
    %v623 = vpop.f32.mrf.mxu0
    %v624 = vadd.f32 0.0, %v623
    %625 = vmatmul.f32.gmra.mxu0 %v389
    %v626 = vpop.f32.mrf.mxu0
    %v627 = vadd.f32 0.0, %v626
    %628 = vmatmul.f32.gmra.mxu0 %v392
    %v629 = vpop.f32.mrf.mxu0
    %v630 = vadd.f32 0.0, %v629
    %631 = vmatmul.f32.gmra.mxu0 %v395
    %v632 = vpop.f32.mrf.mxu0
    %v633 = vadd.f32 0.0, %v632
    %634 = vmatmul.f32.gmra.mxu0 %v398
    %v635 = vpop.f32.mrf.mxu0
    %v636 = vadd.f32 0.0, %v635
    %637 = vmatmul.f32.gmra.mxu0 %v401
    %v638 = vpop.f32.mrf.mxu0
    %v639 = vadd.f32 0.0, %v638
    %640 = vmatmul.f32.gmra.mxu0 %v404
    %v641 = vpop.f32.mrf.mxu0
    %v642 = vadd.f32 0.0, %v641
    %643 = vmatmul.f32.gmra.mxu0 %v407
    %v644 = vpop.f32.mrf.mxu0
    %v645 = vadd.f32 0.0, %v644
    %646 = vmatmul.f32.gmra.mxu0 %v410
    %v647 = vpop.f32.mrf.mxu0
    %v648 = vadd.f32 0.0, %v647
    %649 = vmatmul.f32.gmra.mxu0 %v413
    %v650 = vpop.f32.mrf.mxu0
    %v651 = vadd.f32 0.0, %v650
    %652 = vmatmul.f32.gmra.mxu0 %v416
    %v653 = vpop.f32.mrf.mxu0
    %v654 = vadd.f32 0.0, %v653
    %655 = vmatmul.f32.gmra.mxu0 %v419
    %v656 = vpop.f32.mrf.mxu0
    %v657 = vadd.f32 0.0, %v656
    %658 = vdwg.mxu0
    %659 = vmatpush.msra.mxu0 %v432
    %660 = vmatpush.msra.mxu0 %v347
    %661 = vmatpush.msra.mxu0 %v333
    %662 = vmatpush.msra.mxu0 %v319
    %663 = vmatpush.msra.mxu0 %v305
    %664 = vmatpush.msra.mxu0 %v291
    %665 = vmatpush.msra.mxu0 %v277
    %666 = vmatpush.msra.mxu0 %v263
    %667 = vmatpush.msra.mxu0 %v249
    %668 = vmatpush.msra.mxu0 %v235
    %669 = vmatpush.msra.mxu0 %v221
    %670 = vmatpush.msra.mxu0 %v207
    %671 = vmatpush.msra.mxu0 %v193
    %672 = vmatpush.msra.mxu0 %v179
    %673 = vmatpush.msra.mxu0 %v165
    %674 = vmatpush.msra.mxu0 %v151
    %675 = vmatmul.f32.gmra.mxu0 %v374
    %v676 = vpop.f32.mrf.mxu0
    %v677 = vadd.f32 0.0, %v676
    %678 = vmatmul.f32.gmra.mxu0 %v377
    %v679 = vpop.f32.mrf.mxu0
    %v680 = vadd.f32 0.0, %v679
    %681 = vmatmul.f32.gmra.mxu0 %v380
    %v682 = vpop.f32.mrf.mxu0
    %v683 = vadd.f32 0.0, %v682
    %684 = vmatmul.f32.gmra.mxu0 %v383
    %v685 = vpop.f32.mrf.mxu0
    %v686 = vadd.f32 0.0, %v685
    %687 = vmatmul.f32.gmra.mxu0 %v386
    %v688 = vpop.f32.mrf.mxu0
    %v689 = vadd.f32 0.0, %v688
    %690 = vmatmul.f32.gmra.mxu0 %v389
    %v691 = vpop.f32.mrf.mxu0
    %v692 = vadd.f32 0.0, %v691
    %693 = vmatmul.f32.gmra.mxu0 %v392
    %v694 = vpop.f32.mrf.mxu0
    %v695 = vadd.f32 0.0, %v694
    %696 = vmatmul.f32.gmra.mxu0 %v395
    %v697 = vpop.f32.mrf.mxu0
    %v698 = vadd.f32 0.0, %v697
    %699 = vmatmul.f32.gmra.mxu0 %v398
    %v700 = vpop.f32.mrf.mxu0
    %v701 = vadd.f32 0.0, %v700
    %702 = vmatmul.f32.gmra.mxu0 %v401
    %v703 = vpop.f32.mrf.mxu0
    %v704 = vadd.f32 0.0, %v703
    %705 = vmatmul.f32.gmra.mxu0 %v404
    %v706 = vpop.f32.mrf.mxu0
    %v707 = vadd.f32 0.0, %v706
    %708 = vmatmul.f32.gmra.mxu0 %v407
    %v709 = vpop.f32.mrf.mxu0
    %v710 = vadd.f32 0.0, %v709
    %711 = vmatmul.f32.gmra.mxu0 %v410
    %v712 = vpop.f32.mrf.mxu0
    %v713 = vadd.f32 0.0, %v712
    %714 = vmatmul.f32.gmra.mxu0 %v413
    %v715 = vpop.f32.mrf.mxu0
    %v716 = vadd.f32 0.0, %v715
    %717 = vmatmul.f32.gmra.mxu0 %v416
    %v718 = vpop.f32.mrf.mxu0
    %v719 = vadd.f32 0.0, %v718
    %720 = vmatmul.f32.gmra.mxu0 %v419
    %v721 = vpop.f32.mrf.mxu0
    %v722 = vadd.f32 0.0, %v721
    %723 = vdwg.mxu0
    %724 = vmatpush.msra.mxu0 %v435
    %725 = vmatpush.msra.mxu0 %v348
    %726 = vmatpush.msra.mxu0 %v334
    %727 = vmatpush.msra.mxu0 %v320
    %728 = vmatpush.msra.mxu0 %v306
    %729 = vmatpush.msra.mxu0 %v292
    %730 = vmatpush.msra.mxu0 %v278
    %731 = vmatpush.msra.mxu0 %v264
    %732 = vmatpush.msra.mxu0 %v250
    %733 = vmatpush.msra.mxu0 %v236
    %734 = vmatpush.msra.mxu0 %v222
    %735 = vmatpush.msra.mxu0 %v208
    %736 = vmatpush.msra.mxu0 %v194
    %737 = vmatpush.msra.mxu0 %v180
    %738 = vmatpush.msra.mxu0 %v166
    %739 = vmatpush.msra.mxu0 %v152
    %740 = vmatmul.f32.gmra.mxu0 %v374
    %v741 = vpop.f32.mrf.mxu0
    %v742 = vadd.f32 0.0, %v741
    %743 = vmatmul.f32.gmra.mxu0 %v377
    %v744 = vpop.f32.mrf.mxu0
    %v745 = vadd.f32 0.0, %v744
    %746 = vmatmul.f32.gmra.mxu0 %v380
    %v747 = vpop.f32.mrf.mxu0
    %v748 = vadd.f32 0.0, %v747
    %749 = vmatmul.f32.gmra.mxu0 %v383
    %v750 = vpop.f32.mrf.mxu0
    %v751 = vadd.f32 0.0, %v750
    %752 = vmatmul.f32.gmra.mxu0 %v386
    %v753 = vpop.f32.mrf.mxu0
    %v754 = vadd.f32 0.0, %v753
    %755 = vmatmul.f32.gmra.mxu0 %v389
    %v756 = vpop.f32.mrf.mxu0
    %v757 = vadd.f32 0.0, %v756
    %758 = vmatmul.f32.gmra.mxu0 %v392
    %v759 = vpop.f32.mrf.mxu0
    %v760 = vadd.f32 0.0, %v759
    %761 = vmatmul.f32.gmra.mxu0 %v395
    %v762 = vpop.f32.mrf.mxu0
    %v763 = vadd.f32 0.0, %v762
    %764 = vmatmul.f32.gmra.mxu0 %v398
    %v765 = vpop.f32.mrf.mxu0
    %v766 = vadd.f32 0.0, %v765
    %767 = vmatmul.f32.gmra.mxu0 %v401
    %v768 = vpop.f32.mrf.mxu0
    %v769 = vadd.f32 0.0, %v768
    %770 = vmatmul.f32.gmra.mxu0 %v404
    %v771 = vpop.f32.mrf.mxu0
    %v772 = vadd.f32 0.0, %v771
    %773 = vmatmul.f32.gmra.mxu0 %v407
    %v774 = vpop.f32.mrf.mxu0
    %v775 = vadd.f32 0.0, %v774
    %776 = vmatmul.f32.gmra.mxu0 %v410
    %v777 = vpop.f32.mrf.mxu0
    %v778 = vadd.f32 0.0, %v777
    %779 = vmatmul.f32.gmra.mxu0 %v413
    %v780 = vpop.f32.mrf.mxu0
    %v781 = vadd.f32 0.0, %v780
    %782 = vmatmul.f32.gmra.mxu0 %v416
    %v783 = vpop.f32.mrf.mxu0
    %v784 = vadd.f32 0.0, %v783
    %785 = vmatmul.f32.gmra.mxu0 %v419
    %v786 = vpop.f32.mrf.mxu0
    %v787 = vadd.f32 0.0, %v786
    %788 = vdwg.mxu0
    %789 = vmatpush.msra.mxu0 %v438
    %790 = vmatpush.msra.mxu0 %v349
    %791 = vmatpush.msra.mxu0 %v335
    %792 = vmatpush.msra.mxu0 %v321
    %793 = vmatpush.msra.mxu0 %v307
    %794 = vmatpush.msra.mxu0 %v293
    %795 = vmatpush.msra.mxu0 %v279
    %796 = vmatpush.msra.mxu0 %v265
    %797 = vmatpush.msra.mxu0 %v251
    %798 = vmatpush.msra.mxu0 %v237
    %799 = vmatpush.msra.mxu0 %v223
    %800 = vmatpush.msra.mxu0 %v209
    %801 = vmatpush.msra.mxu0 %v195
    %802 = vmatpush.msra.mxu0 %v181
    %803 = vmatpush.msra.mxu0 %v167
    %804 = vmatpush.msra.mxu0 %v153
    %805 = vmatmul.f32.gmra.mxu0 %v374
    %v806 = vpop.f32.mrf.mxu0
    %v807 = vadd.f32 0.0, %v806
    %808 = vmatmul.f32.gmra.mxu0 %v377
    %v809 = vpop.f32.mrf.mxu0
    %v810 = vadd.f32 0.0, %v809
    %811 = vmatmul.f32.gmra.mxu0 %v380
    %v812 = vpop.f32.mrf.mxu0
    %v813 = vadd.f32 0.0, %v812
    %814 = vmatmul.f32.gmra.mxu0 %v383
    %v815 = vpop.f32.mrf.mxu0
    %v816 = vadd.f32 0.0, %v815
    %817 = vmatmul.f32.gmra.mxu0 %v386
    %v818 = vpop.f32.mrf.mxu0
    %v819 = vadd.f32 0.0, %v818
    %820 = vmatmul.f32.gmra.mxu0 %v389
    %v821 = vpop.f32.mrf.mxu0
    %v822 = vadd.f32 0.0, %v821
    %823 = vmatmul.f32.gmra.mxu0 %v392
    %v824 = vpop.f32.mrf.mxu0
    %v825 = vadd.f32 0.0, %v824
    %826 = vmatmul.f32.gmra.mxu0 %v395
    %v827 = vpop.f32.mrf.mxu0
    %v828 = vadd.f32 0.0, %v827
    %829 = vmatmul.f32.gmra.mxu0 %v398
    %v830 = vpop.f32.mrf.mxu0
    %v831 = vadd.f32 0.0, %v830
    %832 = vmatmul.f32.gmra.mxu0 %v401
    %v833 = vpop.f32.mrf.mxu0
    %v834 = vadd.f32 0.0, %v833
    %835 = vmatmul.f32.gmra.mxu0 %v404
    %v836 = vpop.f32.mrf.mxu0
    %v837 = vadd.f32 0.0, %v836
    %838 = vmatmul.f32.gmra.mxu0 %v407
    %v839 = vpop.f32.mrf.mxu0
    %v840 = vadd.f32 0.0, %v839
    %841 = vmatmul.f32.gmra.mxu0 %v410
    %v842 = vpop.f32.mrf.mxu0
    %v843 = vadd.f32 0.0, %v842
    %844 = vmatmul.f32.gmra.mxu0 %v413
    %v845 = vpop.f32.mrf.mxu0
    %v846 = vadd.f32 0.0, %v845
    %847 = vmatmul.f32.gmra.mxu0 %v416
    %v848 = vpop.f32.mrf.mxu0
    %v849 = vadd.f32 0.0, %v848
    %850 = vmatmul.f32.gmra.mxu0 %v419
    %v851 = vpop.f32.mrf.mxu0
    %v852 = vadd.f32 0.0, %v851
    %853 = vdwg.mxu0
    %854 = vmatpush.msra.mxu0 %v441
    %855 = vmatpush.msra.mxu0 %v350
    %856 = vmatpush.msra.mxu0 %v336
    %857 = vmatpush.msra.mxu0 %v322
    %858 = vmatpush.msra.mxu0 %v308
    %859 = vmatpush.msra.mxu0 %v294
    %860 = vmatpush.msra.mxu0 %v280
    %861 = vmatpush.msra.mxu0 %v266
    %862 = vmatpush.msra.mxu0 %v252
    %863 = vmatpush.msra.mxu0 %v238
    %864 = vmatpush.msra.mxu0 %v224
    %865 = vmatpush.msra.mxu0 %v210
    %866 = vmatpush.msra.mxu0 %v196
    %867 = vmatpush.msra.mxu0 %v182
    %868 = vmatpush.msra.mxu0 %v168
    %869 = vmatpush.msra.mxu0 %v154
    %870 = vmatmul.f32.gmra.mxu0 %v374
    %v871 = vpop.f32.mrf.mxu0
    %v872 = vadd.f32 0.0, %v871
    %873 = vmatmul.f32.gmra.mxu0 %v377
    %v874 = vpop.f32.mrf.mxu0
    %v875 = vadd.f32 0.0, %v874
    %876 = vmatmul.f32.gmra.mxu0 %v380
    %v877 = vpop.f32.mrf.mxu0
    %v878 = vadd.f32 0.0, %v877
    %879 = vmatmul.f32.gmra.mxu0 %v383
    %v880 = vpop.f32.mrf.mxu0
    %v881 = vadd.f32 0.0, %v880
    %882 = vmatmul.f32.gmra.mxu0 %v386
    %v883 = vpop.f32.mrf.mxu0
    %v884 = vadd.f32 0.0, %v883
    %885 = vmatmul.f32.gmra.mxu0 %v389
    %v886 = vpop.f32.mrf.mxu0
    %v887 = vadd.f32 0.0, %v886
    %888 = vmatmul.f32.gmra.mxu0 %v392
    %v889 = vpop.f32.mrf.mxu0
    %v890 = vadd.f32 0.0, %v889
    %891 = vmatmul.f32.gmra.mxu0 %v395
    %v892 = vpop.f32.mrf.mxu0
    %v893 = vadd.f32 0.0, %v892
    %894 = vmatmul.f32.gmra.mxu0 %v398
    %v895 = vpop.f32.mrf.mxu0
    %v896 = vadd.f32 0.0, %v895
    %897 = vmatmul.f32.gmra.mxu0 %v401
    %v898 = vpop.f32.mrf.mxu0
    %v899 = vadd.f32 0.0, %v898
    %900 = vmatmul.f32.gmra.mxu0 %v404
    %v901 = vpop.f32.mrf.mxu0
    %v902 = vadd.f32 0.0, %v901
    %903 = vmatmul.f32.gmra.mxu0 %v407
    %v904 = vpop.f32.mrf.mxu0
    %v905 = vadd.f32 0.0, %v904
    %906 = vmatmul.f32.gmra.mxu0 %v410
    %v907 = vpop.f32.mrf.mxu0
    %v908 = vadd.f32 0.0, %v907
    %909 = vmatmul.f32.gmra.mxu0 %v413
    %v910 = vpop.f32.mrf.mxu0
    %v911 = vadd.f32 0.0, %v910
    %912 = vmatmul.f32.gmra.mxu0 %v416
    %v913 = vpop.f32.mrf.mxu0
    %v914 = vadd.f32 0.0, %v913
    %915 = vmatmul.f32.gmra.mxu0 %v419
    %v916 = vpop.f32.mrf.mxu0
    %v917 = vadd.f32 0.0, %v916
    %918 = vdwg.mxu0
    %919 = vmatpush.msra.mxu0 %v444
    %920 = vmatpush.msra.mxu0 %v351
    %921 = vmatpush.msra.mxu0 %v337
    %922 = vmatpush.msra.mxu0 %v323
    %923 = vmatpush.msra.mxu0 %v309
    %924 = vmatpush.msra.mxu0 %v295
    %925 = vmatpush.msra.mxu0 %v281
    %926 = vmatpush.msra.mxu0 %v267
    %927 = vmatpush.msra.mxu0 %v253
    %928 = vmatpush.msra.mxu0 %v239
    %929 = vmatpush.msra.mxu0 %v225
    %930 = vmatpush.msra.mxu0 %v211
    %931 = vmatpush.msra.mxu0 %v197
    %932 = vmatpush.msra.mxu0 %v183
    %933 = vmatpush.msra.mxu0 %v169
    %934 = vmatpush.msra.mxu0 %v155
    %935 = vmatmul.f32.gmra.mxu0 %v374
    %v936 = vpop.f32.mrf.mxu0
    %v937 = vadd.f32 0.0, %v936
    %938 = vmatmul.f32.gmra.mxu0 %v377
    %v939 = vpop.f32.mrf.mxu0
    %v940 = vadd.f32 0.0, %v939
    %941 = vmatmul.f32.gmra.mxu0 %v380
    %v942 = vpop.f32.mrf.mxu0
    %v943 = vadd.f32 0.0, %v942
    %944 = vmatmul.f32.gmra.mxu0 %v383
    %v945 = vpop.f32.mrf.mxu0
    %v946 = vadd.f32 0.0, %v945
    %947 = vmatmul.f32.gmra.mxu0 %v386
    %v948 = vpop.f32.mrf.mxu0
    %v949 = vadd.f32 0.0, %v948
    %950 = vmatmul.f32.gmra.mxu0 %v389
    %v951 = vpop.f32.mrf.mxu0
    %v952 = vadd.f32 0.0, %v951
    %953 = vmatmul.f32.gmra.mxu0 %v392
    %v954 = vpop.f32.mrf.mxu0
    %v955 = vadd.f32 0.0, %v954
    %956 = vmatmul.f32.gmra.mxu0 %v395
    %v957 = vpop.f32.mrf.mxu0
    %v958 = vadd.f32 0.0, %v957
    %959 = vmatmul.f32.gmra.mxu0 %v398
    %v960 = vpop.f32.mrf.mxu0
    %v961 = vadd.f32 0.0, %v960
    %962 = vmatmul.f32.gmra.mxu0 %v401
    %v963 = vpop.f32.mrf.mxu0
    %v964 = vadd.f32 0.0, %v963
    %965 = vmatmul.f32.gmra.mxu0 %v404
    %v966 = vpop.f32.mrf.mxu0
    %v967 = vadd.f32 0.0, %v966
    %968 = vmatmul.f32.gmra.mxu0 %v407
    %v969 = vpop.f32.mrf.mxu0
    %v970 = vadd.f32 0.0, %v969
    %971 = vmatmul.f32.gmra.mxu0 %v410
    %v972 = vpop.f32.mrf.mxu0
    %v973 = vadd.f32 0.0, %v972
    %974 = vmatmul.f32.gmra.mxu0 %v413
    %v975 = vpop.f32.mrf.mxu0
    %v976 = vadd.f32 0.0, %v975
    %977 = vmatmul.f32.gmra.mxu0 %v416
    %v978 = vpop.f32.mrf.mxu0
    %v979 = vadd.f32 0.0, %v978
    %980 = vmatmul.f32.gmra.mxu0 %v419
    %v981 = vpop.f32.mrf.mxu0
    %v982 = vadd.f32 0.0, %v981
    %983 = vdwg.mxu0
    %984 = vmatpush.msra.mxu0 %v447
    %985 = vmatpush.msra.mxu0 %v352
    %986 = vmatpush.msra.mxu0 %v338
    %987 = vmatpush.msra.mxu0 %v324
    %988 = vmatpush.msra.mxu0 %v310
    %989 = vmatpush.msra.mxu0 %v296
    %990 = vmatpush.msra.mxu0 %v282
    %991 = vmatpush.msra.mxu0 %v268
    %992 = vmatpush.msra.mxu0 %v254
    %993 = vmatpush.msra.mxu0 %v240
    %994 = vmatpush.msra.mxu0 %v226
    %995 = vmatpush.msra.mxu0 %v212
    %996 = vmatpush.msra.mxu0 %v198
    %997 = vmatpush.msra.mxu0 %v184
    %998 = vmatpush.msra.mxu0 %v170
    %999 = vmatpush.msra.mxu0 %v156
    %1000 = vmatmul.f32.gmra.mxu0 %v374
    %v1001 = vpop.f32.mrf.mxu0
    %v1002 = vadd.f32 0.0, %v1001
    %1003 = vmatmul.f32.gmra.mxu0 %v377
    %v1004 = vpop.f32.mrf.mxu0
    %v1005 = vadd.f32 0.0, %v1004
    %1006 = vmatmul.f32.gmra.mxu0 %v380
    %v1007 = vpop.f32.mrf.mxu0
    %v1008 = vadd.f32 0.0, %v1007
    %1009 = vmatmul.f32.gmra.mxu0 %v383
    %v1010 = vpop.f32.mrf.mxu0
    %v1011 = vadd.f32 0.0, %v1010
    %1012 = vmatmul.f32.gmra.mxu0 %v386
    %v1013 = vpop.f32.mrf.mxu0
    %v1014 = vadd.f32 0.0, %v1013
    %1015 = vmatmul.f32.gmra.mxu0 %v389
    %v1016 = vpop.f32.mrf.mxu0
    %v1017 = vadd.f32 0.0, %v1016
    %1018 = vmatmul.f32.gmra.mxu0 %v392
    %v1019 = vpop.f32.mrf.mxu0
    %v1020 = vadd.f32 0.0, %v1019
    %1021 = vmatmul.f32.gmra.mxu0 %v395
    %v1022 = vpop.f32.mrf.mxu0
    %v1023 = vadd.f32 0.0, %v1022
    %1024 = vmatmul.f32.gmra.mxu0 %v398
    %v1025 = vpop.f32.mrf.mxu0
    %v1026 = vadd.f32 0.0, %v1025
    %1027 = vmatmul.f32.gmra.mxu0 %v401
    %v1028 = vpop.f32.mrf.mxu0
    %v1029 = vadd.f32 0.0, %v1028
    %1030 = vmatmul.f32.gmra.mxu0 %v404
    %v1031 = vpop.f32.mrf.mxu0
    %v1032 = vadd.f32 0.0, %v1031
    %1033 = vmatmul.f32.gmra.mxu0 %v407
    %v1034 = vpop.f32.mrf.mxu0
    %v1035 = vadd.f32 0.0, %v1034
    %1036 = vmatmul.f32.gmra.mxu0 %v410
    %v1037 = vpop.f32.mrf.mxu0
    %v1038 = vadd.f32 0.0, %v1037
    %1039 = vmatmul.f32.gmra.mxu0 %v413
    %v1040 = vpop.f32.mrf.mxu0
    %v1041 = vadd.f32 0.0, %v1040
    %1042 = vmatmul.f32.gmra.mxu0 %v416
    %v1043 = vpop.f32.mrf.mxu0
    %v1044 = vadd.f32 0.0, %v1043
    %1045 = vmatmul.f32.gmra.mxu0 %v419
    %v1046 = vpop.f32.mrf.mxu0
    %v1047 = vadd.f32 0.0, %v1046
    %1048 = vdwg.mxu0
    %1049 = vmatpush.msra.mxu0 %v450
    %1050 = vmatpush.msra.mxu0 %v353
    %1051 = vmatpush.msra.mxu0 %v339
    %1052 = vmatpush.msra.mxu0 %v325
    %1053 = vmatpush.msra.mxu0 %v311
    %1054 = vmatpush.msra.mxu0 %v297
    %1055 = vmatpush.msra.mxu0 %v283
    %1056 = vmatpush.msra.mxu0 %v269
    %1057 = vmatpush.msra.mxu0 %v255
    %1058 = vmatpush.msra.mxu0 %v241
    %1059 = vmatpush.msra.mxu0 %v227
    %1060 = vmatpush.msra.mxu0 %v213
    %1061 = vmatpush.msra.mxu0 %v199
    %1062 = vmatpush.msra.mxu0 %v185
    %1063 = vmatpush.msra.mxu0 %v171
    %1064 = vmatpush.msra.mxu0 %v157
    %1065 = vmatmul.f32.gmra.mxu0 %v374
    %v1066 = vpop.f32.mrf.mxu0
    %v1067 = vadd.f32 0.0, %v1066
    %1068 = vmatmul.f32.gmra.mxu0 %v377
    %v1069 = vpop.f32.mrf.mxu0
    %v1070 = vadd.f32 0.0, %v1069
    %1071 = vmatmul.f32.gmra.mxu0 %v380
    %v1072 = vpop.f32.mrf.mxu0
    %v1073 = vadd.f32 0.0, %v1072
    %1074 = vmatmul.f32.gmra.mxu0 %v383
    %v1075 = vpop.f32.mrf.mxu0
    %v1076 = vadd.f32 0.0, %v1075
    %1077 = vmatmul.f32.gmra.mxu0 %v386
    %v1078 = vpop.f32.mrf.mxu0
    %v1079 = vadd.f32 0.0, %v1078
    %1080 = vmatmul.f32.gmra.mxu0 %v389
    %v1081 = vpop.f32.mrf.mxu0
    %v1082 = vadd.f32 0.0, %v1081
    %1083 = vmatmul.f32.gmra.mxu0 %v392
    %v1084 = vpop.f32.mrf.mxu0
    %v1085 = vadd.f32 0.0, %v1084
    %1086 = vmatmul.f32.gmra.mxu0 %v395
    %v1087 = vpop.f32.mrf.mxu0
    %v1088 = vadd.f32 0.0, %v1087
    %1089 = vmatmul.f32.gmra.mxu0 %v398
    %v1090 = vpop.f32.mrf.mxu0
    %v1091 = vadd.f32 0.0, %v1090
    %1092 = vmatmul.f32.gmra.mxu0 %v401
    %v1093 = vpop.f32.mrf.mxu0
    %v1094 = vadd.f32 0.0, %v1093
    %1095 = vmatmul.f32.gmra.mxu0 %v404
    %v1096 = vpop.f32.mrf.mxu0
    %v1097 = vadd.f32 0.0, %v1096
    %1098 = vmatmul.f32.gmra.mxu0 %v407
    %v1099 = vpop.f32.mrf.mxu0
    %v1100 = vadd.f32 0.0, %v1099
    %1101 = vmatmul.f32.gmra.mxu0 %v410
    %v1102 = vpop.f32.mrf.mxu0
    %v1103 = vadd.f32 0.0, %v1102
    %1104 = vmatmul.f32.gmra.mxu0 %v413
    %v1105 = vpop.f32.mrf.mxu0
    %v1106 = vadd.f32 0.0, %v1105
    %1107 = vmatmul.f32.gmra.mxu0 %v416
    %v1108 = vpop.f32.mrf.mxu0
    %v1109 = vadd.f32 0.0, %v1108
    %1110 = vmatmul.f32.gmra.mxu0 %v419
    %v1111 = vpop.f32.mrf.mxu0
    %v1112 = vadd.f32 0.0, %v1111
    %1113 = vdwg.mxu0
    %1114 = vmatpush.msra.mxu0 %v453
    %1115 = vmatpush.msra.mxu0 %v354
    %1116 = vmatpush.msra.mxu0 %v340
    %1117 = vmatpush.msra.mxu0 %v326
    %1118 = vmatpush.msra.mxu0 %v312
    %1119 = vmatpush.msra.mxu0 %v298
    %1120 = vmatpush.msra.mxu0 %v284
    %1121 = vmatpush.msra.mxu0 %v270
    %1122 = vmatpush.msra.mxu0 %v256
    %1123 = vmatpush.msra.mxu0 %v242
    %1124 = vmatpush.msra.mxu0 %v228
    %1125 = vmatpush.msra.mxu0 %v214
    %1126 = vmatpush.msra.mxu0 %v200
    %1127 = vmatpush.msra.mxu0 %v186
    %1128 = vmatpush.msra.mxu0 %v172
    %1129 = vmatpush.msra.mxu0 %v158
    %1130 = vmatmul.f32.gmra.mxu0 %v374
    %v1131 = vpop.f32.mrf.mxu0
    %v1132 = vadd.f32 0.0, %v1131
    %1133 = vmatmul.f32.gmra.mxu0 %v377
    %v1134 = vpop.f32.mrf.mxu0
    %v1135 = vadd.f32 0.0, %v1134
    %1136 = vmatmul.f32.gmra.mxu0 %v380
    %v1137 = vpop.f32.mrf.mxu0
    %v1138 = vadd.f32 0.0, %v1137
    %1139 = vmatmul.f32.gmra.mxu0 %v383
    %v1140 = vpop.f32.mrf.mxu0
    %v1141 = vadd.f32 0.0, %v1140
    %1142 = vmatmul.f32.gmra.mxu0 %v386
    %v1143 = vpop.f32.mrf.mxu0
    %v1144 = vadd.f32 0.0, %v1143
    %1145 = vmatmul.f32.gmra.mxu0 %v389
    %v1146 = vpop.f32.mrf.mxu0
    %v1147 = vadd.f32 0.0, %v1146
    %1148 = vmatmul.f32.gmra.mxu0 %v392
    %v1149 = vpop.f32.mrf.mxu0
    %v1150 = vadd.f32 0.0, %v1149
    %1151 = vmatmul.f32.gmra.mxu0 %v395
    %v1152 = vpop.f32.mrf.mxu0
    %v1153 = vadd.f32 0.0, %v1152
    %1154 = vmatmul.f32.gmra.mxu0 %v398
    %v1155 = vpop.f32.mrf.mxu0
    %v1156 = vadd.f32 0.0, %v1155
    %1157 = vmatmul.f32.gmra.mxu0 %v401
    %v1158 = vpop.f32.mrf.mxu0
    %v1159 = vadd.f32 0.0, %v1158
    %1160 = vmatmul.f32.gmra.mxu0 %v404
    %v1161 = vpop.f32.mrf.mxu0
    %v1162 = vadd.f32 0.0, %v1161
    %1163 = vmatmul.f32.gmra.mxu0 %v407
    %v1164 = vpop.f32.mrf.mxu0
    %v1165 = vadd.f32 0.0, %v1164
    %1166 = vmatmul.f32.gmra.mxu0 %v410
    %v1167 = vpop.f32.mrf.mxu0
    %v1168 = vadd.f32 0.0, %v1167
    %1169 = vmatmul.f32.gmra.mxu0 %v413
    %v1170 = vpop.f32.mrf.mxu0
    %v1171 = vadd.f32 0.0, %v1170
    %1172 = vmatmul.f32.gmra.mxu0 %v416
    %v1173 = vpop.f32.mrf.mxu0
    %v1174 = vadd.f32 0.0, %v1173
    %1175 = vmatmul.f32.gmra.mxu0 %v419
    %v1176 = vpop.f32.mrf.mxu0
    %v1177 = vadd.f32 0.0, %v1176
    %1178 = vdwg.mxu0
    %1179 = vmatpush.msra.mxu0 %v456
    %1180 = vmatpush.msra.mxu0 %v355
    %1181 = vmatpush.msra.mxu0 %v341
    %1182 = vmatpush.msra.mxu0 %v327
    %1183 = vmatpush.msra.mxu0 %v313
    %1184 = vmatpush.msra.mxu0 %v299
    %1185 = vmatpush.msra.mxu0 %v285
    %1186 = vmatpush.msra.mxu0 %v271
    %1187 = vmatpush.msra.mxu0 %v257
    %1188 = vmatpush.msra.mxu0 %v243
    %1189 = vmatpush.msra.mxu0 %v229
    %1190 = vmatpush.msra.mxu0 %v215
    %1191 = vmatpush.msra.mxu0 %v201
    %1192 = vmatpush.msra.mxu0 %v187
    %1193 = vmatpush.msra.mxu0 %v173
    %1194 = vmatpush.msra.mxu0 %v159
    %1195 = vmatmul.f32.gmra.mxu0 %v374
    %v1196 = vpop.f32.mrf.mxu0
    %v1197 = vadd.f32 0.0, %v1196
    %1198 = vmatmul.f32.gmra.mxu0 %v377
    %v1199 = vpop.f32.mrf.mxu0
    %v1200 = vadd.f32 0.0, %v1199
    %1201 = vmatmul.f32.gmra.mxu0 %v380
    %v1202 = vpop.f32.mrf.mxu0
    %v1203 = vadd.f32 0.0, %v1202
    %1204 = vmatmul.f32.gmra.mxu0 %v383
    %v1205 = vpop.f32.mrf.mxu0
    %v1206 = vadd.f32 0.0, %v1205
    %1207 = vmatmul.f32.gmra.mxu0 %v386
    %v1208 = vpop.f32.mrf.mxu0
    %v1209 = vadd.f32 0.0, %v1208
    %1210 = vmatmul.f32.gmra.mxu0 %v389
    %v1211 = vpop.f32.mrf.mxu0
    %v1212 = vadd.f32 0.0, %v1211
    %1213 = vmatmul.f32.gmra.mxu0 %v392
    %v1214 = vpop.f32.mrf.mxu0
    %v1215 = vadd.f32 0.0, %v1214
    %1216 = vmatmul.f32.gmra.mxu0 %v395
    %v1217 = vpop.f32.mrf.mxu0
    %v1218 = vadd.f32 0.0, %v1217
    %1219 = vmatmul.f32.gmra.mxu0 %v398
    %v1220 = vpop.f32.mrf.mxu0
    %v1221 = vadd.f32 0.0, %v1220
    %1222 = vmatmul.f32.gmra.mxu0 %v401
    %v1223 = vpop.f32.mrf.mxu0
    %v1224 = vadd.f32 0.0, %v1223
    %1225 = vmatmul.f32.gmra.mxu0 %v404
    %v1226 = vpop.f32.mrf.mxu0
    %v1227 = vadd.f32 0.0, %v1226
    %1228 = vmatmul.f32.gmra.mxu0 %v407
    %v1229 = vpop.f32.mrf.mxu0
    %v1230 = vadd.f32 0.0, %v1229
    %1231 = vmatmul.f32.gmra.mxu0 %v410
    %v1232 = vpop.f32.mrf.mxu0
    %v1233 = vadd.f32 0.0, %v1232
    %1234 = vmatmul.f32.gmra.mxu0 %v413
    %v1235 = vpop.f32.mrf.mxu0
    %v1236 = vadd.f32 0.0, %v1235
    %1237 = vmatmul.f32.gmra.mxu0 %v416
    %v1238 = vpop.f32.mrf.mxu0
    %v1239 = vadd.f32 0.0, %v1238
    %1240 = vmatmul.f32.gmra.mxu0 %v419
    %v1241 = vpop.f32.mrf.mxu0
    %v1242 = vadd.f32 0.0, %v1241
    %1243 = vdwg.mxu0
    %1244 = vmatpush.msra.mxu0 %v459
    %1245 = vmatpush.msra.mxu0 %v356
    %1246 = vmatpush.msra.mxu0 %v342
    %1247 = vmatpush.msra.mxu0 %v328
    %1248 = vmatpush.msra.mxu0 %v314
    %1249 = vmatpush.msra.mxu0 %v300
    %1250 = vmatpush.msra.mxu0 %v286
    %1251 = vmatpush.msra.mxu0 %v272
    %1252 = vmatpush.msra.mxu0 %v258
    %1253 = vmatpush.msra.mxu0 %v244
    %1254 = vmatpush.msra.mxu0 %v230
    %1255 = vmatpush.msra.mxu0 %v216
    %1256 = vmatpush.msra.mxu0 %v202
    %1257 = vmatpush.msra.mxu0 %v188
    %1258 = vmatpush.msra.mxu0 %v174
    %1259 = vmatpush.msra.mxu0 %v160
    %1260 = vmatmul.f32.gmra.mxu0 %v374
    %v1261 = vpop.f32.mrf.mxu0
    %v1262 = vadd.f32 0.0, %v1261
    %1263 = vmatmul.f32.gmra.mxu0 %v377
    %v1264 = vpop.f32.mrf.mxu0
    %v1265 = vadd.f32 0.0, %v1264
    %1266 = vmatmul.f32.gmra.mxu0 %v380
    %v1267 = vpop.f32.mrf.mxu0
    %v1268 = vadd.f32 0.0, %v1267
    %1269 = vmatmul.f32.gmra.mxu0 %v383
    %v1270 = vpop.f32.mrf.mxu0
    %v1271 = vadd.f32 0.0, %v1270
    %1272 = vmatmul.f32.gmra.mxu0 %v386
    %v1273 = vpop.f32.mrf.mxu0
    %v1274 = vadd.f32 0.0, %v1273
    %1275 = vmatmul.f32.gmra.mxu0 %v389
    %v1276 = vpop.f32.mrf.mxu0
    %v1277 = vadd.f32 0.0, %v1276
    %1278 = vmatmul.f32.gmra.mxu0 %v392
    %v1279 = vpop.f32.mrf.mxu0
    %v1280 = vadd.f32 0.0, %v1279
    %1281 = vmatmul.f32.gmra.mxu0 %v395
    %v1282 = vpop.f32.mrf.mxu0
    %v1283 = vadd.f32 0.0, %v1282
    %1284 = vmatmul.f32.gmra.mxu0 %v398
    %v1285 = vpop.f32.mrf.mxu0
    %v1286 = vadd.f32 0.0, %v1285
    %1287 = vmatmul.f32.gmra.mxu0 %v401
    %v1288 = vpop.f32.mrf.mxu0
    %v1289 = vadd.f32 0.0, %v1288
    %1290 = vmatmul.f32.gmra.mxu0 %v404
    %v1291 = vpop.f32.mrf.mxu0
    %v1292 = vadd.f32 0.0, %v1291
    %1293 = vmatmul.f32.gmra.mxu0 %v407
    %v1294 = vpop.f32.mrf.mxu0
    %v1295 = vadd.f32 0.0, %v1294
    %1296 = vmatmul.f32.gmra.mxu0 %v410
    %v1297 = vpop.f32.mrf.mxu0
    %v1298 = vadd.f32 0.0, %v1297
    %1299 = vmatmul.f32.gmra.mxu0 %v413
    %v1300 = vpop.f32.mrf.mxu0
    %v1301 = vadd.f32 0.0, %v1300
    %1302 = vmatmul.f32.gmra.mxu0 %v416
    %v1303 = vpop.f32.mrf.mxu0
    %v1304 = vadd.f32 0.0, %v1303
    %1305 = vmatmul.f32.gmra.mxu0 %v419
    %v1306 = vpop.f32.mrf.mxu0
    %v1307 = vadd.f32 0.0, %v1306
    %1308 = vdwg.mxu0
    %1309 = vmatpush.msra.mxu0 %v462
    %1310 = vmatpush.msra.mxu0 %v357
    %1311 = vmatpush.msra.mxu0 %v343
    %1312 = vmatpush.msra.mxu0 %v329
    %1313 = vmatpush.msra.mxu0 %v315
    %1314 = vmatpush.msra.mxu0 %v301
    %1315 = vmatpush.msra.mxu0 %v287
    %1316 = vmatpush.msra.mxu0 %v273
    %1317 = vmatpush.msra.mxu0 %v259
    %1318 = vmatpush.msra.mxu0 %v245
    %1319 = vmatpush.msra.mxu0 %v231
    %1320 = vmatpush.msra.mxu0 %v217
    %1321 = vmatpush.msra.mxu0 %v203
    %1322 = vmatpush.msra.mxu0 %v189
    %1323 = vmatpush.msra.mxu0 %v175
    %1324 = vmatpush.msra.mxu0 %v161
    %1325 = vmatmul.f32.gmra.mxu0 %v374
    %v1326 = vpop.f32.mrf.mxu0
    %v1327 = vadd.f32 0.0, %v1326
    %1328 = vmatmul.f32.gmra.mxu0 %v377
    %v1329 = vpop.f32.mrf.mxu0
    %v1330 = vadd.f32 0.0, %v1329
    %1331 = vmatmul.f32.gmra.mxu0 %v380
    %v1332 = vpop.f32.mrf.mxu0
    %v1333 = vadd.f32 0.0, %v1332
    %1334 = vmatmul.f32.gmra.mxu0 %v383
    %v1335 = vpop.f32.mrf.mxu0
    %v1336 = vadd.f32 0.0, %v1335
    %1337 = vmatmul.f32.gmra.mxu0 %v386
    %v1338 = vpop.f32.mrf.mxu0
    %v1339 = vadd.f32 0.0, %v1338
    %1340 = vmatmul.f32.gmra.mxu0 %v389
    %v1341 = vpop.f32.mrf.mxu0
    %v1342 = vadd.f32 0.0, %v1341
    %1343 = vmatmul.f32.gmra.mxu0 %v392
    %v1344 = vpop.f32.mrf.mxu0
    %v1345 = vadd.f32 0.0, %v1344
    %1346 = vmatmul.f32.gmra.mxu0 %v395
    %v1347 = vpop.f32.mrf.mxu0
    %v1348 = vadd.f32 0.0, %v1347
    %1349 = vmatmul.f32.gmra.mxu0 %v398
    %v1350 = vpop.f32.mrf.mxu0
    %v1351 = vadd.f32 0.0, %v1350
    %1352 = vmatmul.f32.gmra.mxu0 %v401
    %v1353 = vpop.f32.mrf.mxu0
    %v1354 = vadd.f32 0.0, %v1353
    %1355 = vmatmul.f32.gmra.mxu0 %v404
    %v1356 = vpop.f32.mrf.mxu0
    %v1357 = vadd.f32 0.0, %v1356
    %1358 = vmatmul.f32.gmra.mxu0 %v407
    %v1359 = vpop.f32.mrf.mxu0
    %v1360 = vadd.f32 0.0, %v1359
    %1361 = vmatmul.f32.gmra.mxu0 %v410
    %v1362 = vpop.f32.mrf.mxu0
    %v1363 = vadd.f32 0.0, %v1362
    %1364 = vmatmul.f32.gmra.mxu0 %v413
    %v1365 = vpop.f32.mrf.mxu0
    %v1366 = vadd.f32 0.0, %v1365
    %1367 = vmatmul.f32.gmra.mxu0 %v416
    %v1368 = vpop.f32.mrf.mxu0
    %v1369 = vadd.f32 0.0, %v1368
    %1370 = vmatmul.f32.gmra.mxu0 %v419
    %v1371 = vpop.f32.mrf.mxu0
    %v1372 = vadd.f32 0.0, %v1371
    %1373 = vdwg.mxu0
    %v1374 = vmax.f32 %v482, 0.0
    %v1375 = vmax.f32 %v547, 0.0
    %v1376 = vmax.f32 %v612, 0.0
    %v1377 = vmax.f32 %v677, 0.0
    %v1378 = vmax.f32 %v742, 0.0
    %v1379 = vmax.f32 %v807, 0.0
    %v1380 = vmax.f32 %v872, 0.0
    %v1381 = vmax.f32 %v937, 0.0
    %v1382 = vmax.f32 %v1002, 0.0
    %v1383 = vmax.f32 %v1067, 0.0
    %v1384 = vmax.f32 %v1132, 0.0
    %v1385 = vmax.f32 %v1197, 0.0
    %v1386 = vmax.f32 %v1262, 0.0
    %v1387 = vmax.f32 %v1327, 0.0
    %v1388 = vmax.f32 %v485, 0.0
    %v1389 = vmax.f32 %v550, 0.0
    %v1390 = vmax.f32 %v615, 0.0
    %v1391 = vmax.f32 %v680, 0.0
    %v1392 = vmax.f32 %v745, 0.0
    %v1393 = vmax.f32 %v810, 0.0
    %v1394 = vmax.f32 %v875, 0.0
    %v1395 = vmax.f32 %v940, 0.0
    %v1396 = vmax.f32 %v1005, 0.0
    %v1397 = vmax.f32 %v1070, 0.0
    %v1398 = vmax.f32 %v1135, 0.0
    %v1399 = vmax.f32 %v1200, 0.0
    %v1400 = vmax.f32 %v1265, 0.0
    %v1401 = vmax.f32 %v1330, 0.0
    %v1402 = vmax.f32 %v488, 0.0
    %v1403 = vmax.f32 %v553, 0.0
    %v1404 = vmax.f32 %v618, 0.0
    %v1405 = vmax.f32 %v683, 0.0
    %v1406 = vmax.f32 %v748, 0.0
    %v1407 = vmax.f32 %v813, 0.0
    %v1408 = vmax.f32 %v878, 0.0
    %v1409 = vmax.f32 %v943, 0.0
    %v1410 = vmax.f32 %v1008, 0.0
    %v1411 = vmax.f32 %v1073, 0.0
    %v1412 = vmax.f32 %v1138, 0.0
    %v1413 = vmax.f32 %v1203, 0.0
    %v1414 = vmax.f32 %v1268, 0.0
    %v1415 = vmax.f32 %v1333, 0.0
    %v1416 = vmax.f32 %v491, 0.0
    %v1417 = vmax.f32 %v556, 0.0
    %v1418 = vmax.f32 %v621, 0.0
    %v1419 = vmax.f32 %v686, 0.0
    %v1420 = vmax.f32 %v751, 0.0
    %v1421 = vmax.f32 %v816, 0.0
    %v1422 = vmax.f32 %v881, 0.0
    %v1423 = vmax.f32 %v946, 0.0
    %v1424 = vmax.f32 %v1011, 0.0
    %v1425 = vmax.f32 %v1076, 0.0
    %v1426 = vmax.f32 %v1141, 0.0
    %v1427 = vmax.f32 %v1206, 0.0
    %v1428 = vmax.f32 %v1271, 0.0
    %v1429 = vmax.f32 %v1336, 0.0
    %v1430 = vmax.f32 %v494, 0.0
    %v1431 = vmax.f32 %v559, 0.0
    %v1432 = vmax.f32 %v624, 0.0
    %v1433 = vmax.f32 %v689, 0.0
    %v1434 = vmax.f32 %v754, 0.0
    %v1435 = vmax.f32 %v819, 0.0
    %v1436 = vmax.f32 %v884, 0.0
    %v1437 = vmax.f32 %v949, 0.0
    %v1438 = vmax.f32 %v1014, 0.0
    %v1439 = vmax.f32 %v1079, 0.0
    %v1440 = vmax.f32 %v1144, 0.0
    %v1441 = vmax.f32 %v1209, 0.0
    %v1442 = vmax.f32 %v1274, 0.0
    %v1443 = vmax.f32 %v1339, 0.0
    %v1444 = vmax.f32 %v497, 0.0
    %v1445 = vmax.f32 %v562, 0.0
    %v1446 = vmax.f32 %v627, 0.0
    %v1447 = vmax.f32 %v692, 0.0
    %v1448 = vmax.f32 %v757, 0.0
    %v1449 = vmax.f32 %v822, 0.0
    %v1450 = vmax.f32 %v887, 0.0
    %v1451 = vmax.f32 %v952, 0.0
    %v1452 = vmax.f32 %v1017, 0.0
    %v1453 = vmax.f32 %v1082, 0.0
    %v1454 = vmax.f32 %v1147, 0.0
    %v1455 = vmax.f32 %v1212, 0.0
    %v1456 = vmax.f32 %v1277, 0.0
    %v1457 = vmax.f32 %v1342, 0.0
    %v1458 = vmax.f32 %v500, 0.0
    %v1459 = vmax.f32 %v565, 0.0
    %v1460 = vmax.f32 %v630, 0.0
    %v1461 = vmax.f32 %v695, 0.0
    %v1462 = vmax.f32 %v760, 0.0
    %v1463 = vmax.f32 %v825, 0.0
    %v1464 = vmax.f32 %v890, 0.0
    %v1465 = vmax.f32 %v955, 0.0
    %v1466 = vmax.f32 %v1020, 0.0
    %v1467 = vmax.f32 %v1085, 0.0
    %v1468 = vmax.f32 %v1150, 0.0
    %v1469 = vmax.f32 %v1215, 0.0
    %v1470 = vmax.f32 %v1280, 0.0
    %v1471 = vmax.f32 %v1345, 0.0
    %v1472 = vmax.f32 %v503, 0.0
    %v1473 = vmax.f32 %v568, 0.0
    %v1474 = vmax.f32 %v633, 0.0
    %v1475 = vmax.f32 %v698, 0.0
    %v1476 = vmax.f32 %v763, 0.0
    %v1477 = vmax.f32 %v828, 0.0
    %v1478 = vmax.f32 %v893, 0.0
    %v1479 = vmax.f32 %v958, 0.0
    %v1480 = vmax.f32 %v1023, 0.0
    %v1481 = vmax.f32 %v1088, 0.0
    %v1482 = vmax.f32 %v1153, 0.0
    %v1483 = vmax.f32 %v1218, 0.0
    %v1484 = vmax.f32 %v1283, 0.0
    %v1485 = vmax.f32 %v1348, 0.0
    %v1486 = vmax.f32 %v506, 0.0
    %v1487 = vmax.f32 %v571, 0.0
    %v1488 = vmax.f32 %v636, 0.0
    %v1489 = vmax.f32 %v701, 0.0
    %v1490 = vmax.f32 %v766, 0.0
    %v1491 = vmax.f32 %v831, 0.0
    %v1492 = vmax.f32 %v896, 0.0
    %v1493 = vmax.f32 %v961, 0.0
    %v1494 = vmax.f32 %v1026, 0.0
    %v1495 = vmax.f32 %v1091, 0.0
    %v1496 = vmax.f32 %v1156, 0.0
    %v1497 = vmax.f32 %v1221, 0.0
    %v1498 = vmax.f32 %v1286, 0.0
    %v1499 = vmax.f32 %v1351, 0.0
    %v1500 = vmax.f32 %v509, 0.0
    %v1501 = vmax.f32 %v574, 0.0
    %v1502 = vmax.f32 %v639, 0.0
    %v1503 = vmax.f32 %v704, 0.0
    %v1504 = vmax.f32 %v769, 0.0
    %v1505 = vmax.f32 %v834, 0.0
    %v1506 = vmax.f32 %v899, 0.0
    %v1507 = vmax.f32 %v964, 0.0
    %v1508 = vmax.f32 %v1029, 0.0
    %v1509 = vmax.f32 %v1094, 0.0
    %v1510 = vmax.f32 %v1159, 0.0
    %v1511 = vmax.f32 %v1224, 0.0
    %v1512 = vmax.f32 %v1289, 0.0
    %v1513 = vmax.f32 %v1354, 0.0
    %v1514 = vmax.f32 %v512, 0.0
    %v1515 = vmax.f32 %v577, 0.0
    %v1516 = vmax.f32 %v642, 0.0
    %v1517 = vmax.f32 %v707, 0.0
    %v1518 = vmax.f32 %v772, 0.0
    %v1519 = vmax.f32 %v837, 0.0
    %v1520 = vmax.f32 %v902, 0.0
    %v1521 = vmax.f32 %v967, 0.0
    %v1522 = vmax.f32 %v1032, 0.0
    %v1523 = vmax.f32 %v1097, 0.0
    %v1524 = vmax.f32 %v1162, 0.0
    %v1525 = vmax.f32 %v1227, 0.0
    %v1526 = vmax.f32 %v1292, 0.0
    %v1527 = vmax.f32 %v1357, 0.0
    %v1528 = vmax.f32 %v515, 0.0
    %v1529 = vmax.f32 %v580, 0.0
    %v1530 = vmax.f32 %v645, 0.0
    %v1531 = vmax.f32 %v710, 0.0
    %v1532 = vmax.f32 %v775, 0.0
    %v1533 = vmax.f32 %v840, 0.0
    %v1534 = vmax.f32 %v905, 0.0
    %v1535 = vmax.f32 %v970, 0.0
    %v1536 = vmax.f32 %v1035, 0.0
    %v1537 = vmax.f32 %v1100, 0.0
    %v1538 = vmax.f32 %v1165, 0.0
    %v1539 = vmax.f32 %v1230, 0.0
    %v1540 = vmax.f32 %v1295, 0.0
    %v1541 = vmax.f32 %v1360, 0.0
    %v1542 = vmax.f32 %v518, 0.0
    %v1543 = vmax.f32 %v583, 0.0
    %v1544 = vmax.f32 %v648, 0.0
    %v1545 = vmax.f32 %v713, 0.0
    %v1546 = vmax.f32 %v778, 0.0
    %v1547 = vmax.f32 %v843, 0.0
    %v1548 = vmax.f32 %v908, 0.0
    %v1549 = vmax.f32 %v973, 0.0
    %v1550 = vmax.f32 %v1038, 0.0
    %v1551 = vmax.f32 %v1103, 0.0
    %v1552 = vmax.f32 %v1168, 0.0
    %v1553 = vmax.f32 %v1233, 0.0
    %v1554 = vmax.f32 %v1298, 0.0
    %v1555 = vmax.f32 %v1363, 0.0
    %v1556 = vmax.f32 %v521, 0.0
    %v1557 = vmax.f32 %v586, 0.0
    %v1558 = vmax.f32 %v651, 0.0
    %v1559 = vmax.f32 %v716, 0.0
    %v1560 = vmax.f32 %v781, 0.0
    %v1561 = vmax.f32 %v846, 0.0
    %v1562 = vmax.f32 %v911, 0.0
    %v1563 = vmax.f32 %v976, 0.0
    %v1564 = vmax.f32 %v1041, 0.0
    %v1565 = vmax.f32 %v1106, 0.0
    %v1566 = vmax.f32 %v1171, 0.0
    %v1567 = vmax.f32 %v1236, 0.0
    %v1568 = vmax.f32 %v1301, 0.0
    %v1569 = vmax.f32 %v1366, 0.0
    %v1570 = vmax.f32 %v524, 0.0
    %v1571 = vmax.f32 %v589, 0.0
    %v1572 = vmax.f32 %v654, 0.0
    %v1573 = vmax.f32 %v719, 0.0
    %v1574 = vmax.f32 %v784, 0.0
    %v1575 = vmax.f32 %v849, 0.0
    %v1576 = vmax.f32 %v914, 0.0
    %v1577 = vmax.f32 %v979, 0.0
    %v1578 = vmax.f32 %v1044, 0.0
    %v1579 = vmax.f32 %v1109, 0.0
    %v1580 = vmax.f32 %v1174, 0.0
    %v1581 = vmax.f32 %v1239, 0.0
    %v1582 = vmax.f32 %v1304, 0.0
    %v1583 = vmax.f32 %v1369, 0.0
    %v1584 = vmax.f32 %v527, 0.0
    %v1585 = vmax.f32 %v592, 0.0
    %v1586 = vmax.f32 %v657, 0.0
    %v1587 = vmax.f32 %v722, 0.0
    %v1588 = vmax.f32 %v787, 0.0
    %v1589 = vmax.f32 %v852, 0.0
    %v1590 = vmax.f32 %v917, 0.0
    %v1591 = vmax.f32 %v982, 0.0
    %v1592 = vmax.f32 %v1047, 0.0
    %v1593 = vmax.f32 %v1112, 0.0
    %v1594 = vmax.f32 %v1177, 0.0
    %v1595 = vmax.f32 %v1242, 0.0
    %v1596 = vmax.f32 %v1307, 0.0
    %v1597 = vmax.f32 %v1372, 0.0
    %v1598 = vmax.f32 %v1374, %v1381
    %v1599 = vmax.f32 %v1375, %v1382
    %v1600 = vmax.f32 %v1376, %v1383
    %v1601 = vmax.f32 %v1377, %v1384
    %v1602 = vmax.f32 %v1378, %v1385
    %v1603 = vmax.f32 %v1379, %v1386
    %v1604 = vmax.f32 %v1380, %v1387
    %v1605 = vmax.f32 %v1388, %v1395
    %v1606 = vmax.f32 %v1389, %v1396
    %v1607 = vmax.f32 %v1390, %v1397
    %v1608 = vmax.f32 %v1391, %v1398
    %v1609 = vmax.f32 %v1392, %v1399
    %v1610 = vmax.f32 %v1393, %v1400
    %v1611 = vmax.f32 %v1394, %v1401
    %v1612 = vmax.f32 %v1402, %v1409
    %v1613 = vmax.f32 %v1403, %v1410
    %v1614 = vmax.f32 %v1404, %v1411
    %v1615 = vmax.f32 %v1405, %v1412
    %v1616 = vmax.f32 %v1406, %v1413
    %v1617 = vmax.f32 %v1407, %v1414
    %v1618 = vmax.f32 %v1408, %v1415
    %v1619 = vmax.f32 %v1416, %v1423
    %v1620 = vmax.f32 %v1417, %v1424
    %v1621 = vmax.f32 %v1418, %v1425
    %v1622 = vmax.f32 %v1419, %v1426
    %v1623 = vmax.f32 %v1420, %v1427
    %v1624 = vmax.f32 %v1421, %v1428
    %v1625 = vmax.f32 %v1422, %v1429
    %v1626 = vmax.f32 %v1430, %v1437
    %v1627 = vmax.f32 %v1431, %v1438
    %v1628 = vmax.f32 %v1432, %v1439
    %v1629 = vmax.f32 %v1433, %v1440
    %v1630 = vmax.f32 %v1434, %v1441
    %v1631 = vmax.f32 %v1435, %v1442
    %v1632 = vmax.f32 %v1436, %v1443
    %v1633 = vmax.f32 %v1444, %v1451
    %v1634 = vmax.f32 %v1445, %v1452
    %v1635 = vmax.f32 %v1446, %v1453
    %v1636 = vmax.f32 %v1447, %v1454
    %v1637 = vmax.f32 %v1448, %v1455
    %v1638 = vmax.f32 %v1449, %v1456
    %v1639 = vmax.f32 %v1450, %v1457
    %v1640 = vmax.f32 %v1458, %v1465
    %v1641 = vmax.f32 %v1459, %v1466
    %v1642 = vmax.f32 %v1460, %v1467
    %v1643 = vmax.f32 %v1461, %v1468
    %v1644 = vmax.f32 %v1462, %v1469
    %v1645 = vmax.f32 %v1463, %v1470
    %v1646 = vmax.f32 %v1464, %v1471
    %v1647 = vmax.f32 %v1472, %v1479
    %v1648 = vmax.f32 %v1473, %v1480
    %v1649 = vmax.f32 %v1474, %v1481
    %v1650 = vmax.f32 %v1475, %v1482
    %v1651 = vmax.f32 %v1476, %v1483
    %v1652 = vmax.f32 %v1477, %v1484
    %v1653 = vmax.f32 %v1478, %v1485
    %v1654 = vmax.f32 %v1486, %v1493
    %v1655 = vmax.f32 %v1487, %v1494
    %v1656 = vmax.f32 %v1488, %v1495
    %v1657 = vmax.f32 %v1489, %v1496
    %v1658 = vmax.f32 %v1490, %v1497
    %v1659 = vmax.f32 %v1491, %v1498
    %v1660 = vmax.f32 %v1492, %v1499
    %v1661 = vmax.f32 %v1500, %v1507
    %v1662 = vmax.f32 %v1501, %v1508
    %v1663 = vmax.f32 %v1502, %v1509
    %v1664 = vmax.f32 %v1503, %v1510
    %v1665 = vmax.f32 %v1504, %v1511
    %v1666 = vmax.f32 %v1505, %v1512
    %v1667 = vmax.f32 %v1506, %v1513
    %v1668 = vmax.f32 %v1514, %v1521
    %v1669 = vmax.f32 %v1515, %v1522
    %v1670 = vmax.f32 %v1516, %v1523
    %v1671 = vmax.f32 %v1517, %v1524
    %v1672 = vmax.f32 %v1518, %v1525
    %v1673 = vmax.f32 %v1519, %v1526
    %v1674 = vmax.f32 %v1520, %v1527
    %v1675 = vmax.f32 %v1528, %v1535
    %v1676 = vmax.f32 %v1529, %v1536
    %v1677 = vmax.f32 %v1530, %v1537
    %v1678 = vmax.f32 %v1531, %v1538
    %v1679 = vmax.f32 %v1532, %v1539
    %v1680 = vmax.f32 %v1533, %v1540
    %v1681 = vmax.f32 %v1534, %v1541
    %v1682 = vmax.f32 %v1542, %v1549
    %v1683 = vmax.f32 %v1543, %v1550
    %v1684 = vmax.f32 %v1544, %v1551
    %v1685 = vmax.f32 %v1545, %v1552
    %v1686 = vmax.f32 %v1546, %v1553
    %v1687 = vmax.f32 %v1547, %v1554
    %v1688 = vmax.f32 %v1548, %v1555
    %v1689 = vmax.f32 %v1556, %v1563
    %v1690 = vmax.f32 %v1557, %v1564
    %v1691 = vmax.f32 %v1558, %v1565
    %v1692 = vmax.f32 %v1559, %v1566
    %v1693 = vmax.f32 %v1560, %v1567
    %v1694 = vmax.f32 %v1561, %v1568
    %v1695 = vmax.f32 %v1562, %v1569
    %v1696 = vmax.f32 %v1570, %v1577
    %v1697 = vmax.f32 %v1571, %v1578
    %v1698 = vmax.f32 %v1572, %v1579
    %v1699 = vmax.f32 %v1573, %v1580
    %v1700 = vmax.f32 %v1574, %v1581
    %v1701 = vmax.f32 %v1575, %v1582
    %v1702 = vmax.f32 %v1576, %v1583
    %v1703 = vmax.f32 %v1584, %v1591
    %v1704 = vmax.f32 %v1585, %v1592
    %v1705 = vmax.f32 %v1586, %v1593
    %v1706 = vmax.f32 %v1587, %v1594
    %v1707 = vmax.f32 %v1588, %v1595
    %v1708 = vmax.f32 %v1589, %v1596
    %v1709 = vmax.f32 %v1590, %v1597
    %1774 = vrot.lane.b32.xlu0 %v1601, 64
    %v1775 = vpop.permute.xlu0 %1774
    %1776 = vrot.lane.b32.xlu0 %v1602, 64
    %v1777 = vpop.permute.xlu0 %1776
    %1778 = vrot.lane.b32.xlu0 %v1603, 64
    %v1779 = vpop.permute.xlu0 %1778
    %1780 = vrot.lane.b32.xlu0 %v1604, 64
    %v1781 = vpop.permute.xlu0 %1780
    %1782 = vrot.lane.b32.xlu0 %v1608, 64
    %v1783 = vpop.permute.xlu0 %1782
    %1784 = vrot.lane.b32.xlu0 %v1609, 64
    %v1785 = vpop.permute.xlu0 %1784
    %1786 = vrot.lane.b32.xlu0 %v1610, 64
    %v1787 = vpop.permute.xlu0 %1786
    %1788 = vrot.lane.b32.xlu0 %v1611, 64
    %v1789 = vpop.permute.xlu0 %1788
    %1790 = vrot.lane.b32.xlu0 %v1615, 64
    %v1791 = vpop.permute.xlu0 %1790
    %1792 = vrot.lane.b32.xlu0 %v1616, 64
    %v1793 = vpop.permute.xlu0 %1792
    %1794 = vrot.lane.b32.xlu0 %v1617, 64
    %v1795 = vpop.permute.xlu0 %1794
    %1796 = vrot.lane.b32.xlu0 %v1618, 64
    %v1797 = vpop.permute.xlu0 %1796
    %1798 = vrot.lane.b32.xlu0 %v1622, 64
    %v1799 = vpop.permute.xlu0 %1798
    %1800 = vrot.lane.b32.xlu0 %v1623, 64
    %v1801 = vpop.permute.xlu0 %1800
    %1802 = vrot.lane.b32.xlu0 %v1624, 64
    %v1803 = vpop.permute.xlu0 %1802
    %1804 = vrot.lane.b32.xlu0 %v1625, 64
    %v1805 = vpop.permute.xlu0 %1804
    %1806 = vrot.lane.b32.xlu0 %v1629, 64
    %v1807 = vpop.permute.xlu0 %1806
    %1808 = vrot.lane.b32.xlu0 %v1630, 64
    %v1809 = vpop.permute.xlu0 %1808
    %1810 = vrot.lane.b32.xlu0 %v1631, 64
    %v1811 = vpop.permute.xlu0 %1810
    %1812 = vrot.lane.b32.xlu0 %v1632, 64
    %v1813 = vpop.permute.xlu0 %1812
    %1814 = vrot.lane.b32.xlu0 %v1636, 64
    %v1815 = vpop.permute.xlu0 %1814
    %1816 = vrot.lane.b32.xlu0 %v1637, 64
    %v1817 = vpop.permute.xlu0 %1816
    %1818 = vrot.lane.b32.xlu0 %v1638, 64
    %v1819 = vpop.permute.xlu0 %1818
    %1820 = vrot.lane.b32.xlu0 %v1639, 64
    %v1821 = vpop.permute.xlu0 %1820
    %1822 = vrot.lane.b32.xlu0 %v1643, 64
    %v1823 = vpop.permute.xlu0 %1822
    %1824 = vrot.lane.b32.xlu0 %v1644, 64
    %v1825 = vpop.permute.xlu0 %1824
    %1826 = vrot.lane.b32.xlu0 %v1645, 64
    %v1827 = vpop.permute.xlu0 %1826
    %1828 = vrot.lane.b32.xlu0 %v1646, 64
    %v1829 = vpop.permute.xlu0 %1828
    %1830 = vrot.lane.b32.xlu0 %v1650, 64
    %v1831 = vpop.permute.xlu0 %1830
    %1832 = vrot.lane.b32.xlu0 %v1651, 64
    %v1833 = vpop.permute.xlu0 %1832
    %1834 = vrot.lane.b32.xlu0 %v1652, 64
    %v1835 = vpop.permute.xlu0 %1834
    %1836 = vrot.lane.b32.xlu0 %v1653, 64
    %v1837 = vpop.permute.xlu0 %1836
    %1838 = vrot.lane.b32.xlu0 %v1657, 64
    %v1839 = vpop.permute.xlu0 %1838
    %1840 = vrot.lane.b32.xlu0 %v1658, 64
    %v1841 = vpop.permute.xlu0 %1840
    %1842 = vrot.lane.b32.xlu0 %v1659, 64
    %v1843 = vpop.permute.xlu0 %1842
    %1844 = vrot.lane.b32.xlu0 %v1660, 64
    %v1845 = vpop.permute.xlu0 %1844
    %1846 = vrot.lane.b32.xlu0 %v1664, 64
    %v1847 = vpop.permute.xlu0 %1846
    %1848 = vrot.lane.b32.xlu0 %v1665, 64
    %v1849 = vpop.permute.xlu0 %1848
    %1850 = vrot.lane.b32.xlu0 %v1666, 64
    %v1851 = vpop.permute.xlu0 %1850
    %1852 = vrot.lane.b32.xlu0 %v1667, 64
    %v1853 = vpop.permute.xlu0 %1852
    %1854 = vrot.lane.b32.xlu0 %v1671, 64
    %v1855 = vpop.permute.xlu0 %1854
    %1856 = vrot.lane.b32.xlu0 %v1672, 64
    %v1857 = vpop.permute.xlu0 %1856
    %1858 = vrot.lane.b32.xlu0 %v1673, 64
    %v1859 = vpop.permute.xlu0 %1858
    %1860 = vrot.lane.b32.xlu0 %v1674, 64
    %v1861 = vpop.permute.xlu0 %1860
    %1862 = vrot.lane.b32.xlu0 %v1678, 64
    %v1863 = vpop.permute.xlu0 %1862
    %1864 = vrot.lane.b32.xlu0 %v1679, 64
    %v1865 = vpop.permute.xlu0 %1864
    %1866 = vrot.lane.b32.xlu0 %v1680, 64
    %v1867 = vpop.permute.xlu0 %1866
    %1868 = vrot.lane.b32.xlu0 %v1681, 64
    %v1869 = vpop.permute.xlu0 %1868
    %1870 = vrot.lane.b32.xlu0 %v1685, 64
    %v1871 = vpop.permute.xlu0 %1870
    %1872 = vrot.lane.b32.xlu0 %v1686, 64
    %v1873 = vpop.permute.xlu0 %1872
    %1874 = vrot.lane.b32.xlu0 %v1687, 64
    %v1875 = vpop.permute.xlu0 %1874
    %1876 = vrot.lane.b32.xlu0 %v1688, 64
    %v1877 = vpop.permute.xlu0 %1876
    %1878 = vrot.lane.b32.xlu0 %v1692, 64
    %v1879 = vpop.permute.xlu0 %1878
    %1880 = vrot.lane.b32.xlu0 %v1693, 64
    %v1881 = vpop.permute.xlu0 %1880
    %1882 = vrot.lane.b32.xlu0 %v1694, 64
    %v1883 = vpop.permute.xlu0 %1882
    %1884 = vrot.lane.b32.xlu0 %v1695, 64
    %v1885 = vpop.permute.xlu0 %1884
    %1886 = vrot.lane.b32.xlu0 %v1699, 64
    %v1887 = vpop.permute.xlu0 %1886
    %1888 = vrot.lane.b32.xlu0 %v1700, 64
    %v1889 = vpop.permute.xlu0 %1888
    %1890 = vrot.lane.b32.xlu0 %v1701, 64
    %v1891 = vpop.permute.xlu0 %1890
    %1892 = vrot.lane.b32.xlu0 %v1702, 64
    %v1893 = vpop.permute.xlu0 %1892
    %1894 = vrot.lane.b32.xlu0 %v1706, 64
    %v1895 = vpop.permute.xlu0 %1894
    %1896 = vrot.lane.b32.xlu0 %v1707, 64
    %v1897 = vpop.permute.xlu0 %1896
    %1898 = vrot.lane.b32.xlu0 %v1708, 64
    %v1899 = vpop.permute.xlu0 %1898
    %1900 = vrot.lane.b32.xlu0 %v1709, 64
    %v1901 = vpop.permute.xlu0 %1900
    %vm1902 = vcmask 523264
    %v1903 = vsel %vm1902, %v1775, %v1777
    %v1904 = vsel %vm1902, %v1777, %v1779
    %v1905 = vsel %vm1902, %v1779, %v1781
    %v1906 = vsel %vm1902, %v1783, %v1785
    %v1907 = vsel %vm1902, %v1785, %v1787
    %v1908 = vsel %vm1902, %v1787, %v1789
    %v1909 = vsel %vm1902, %v1791, %v1793
    %v1910 = vsel %vm1902, %v1793, %v1795
    %v1911 = vsel %vm1902, %v1795, %v1797
    %v1912 = vsel %vm1902, %v1799, %v1801
    %v1913 = vsel %vm1902, %v1801, %v1803
    %v1914 = vsel %vm1902, %v1803, %v1805
    %v1915 = vsel %vm1902, %v1807, %v1809
    %v1916 = vsel %vm1902, %v1809, %v1811
    %v1917 = vsel %vm1902, %v1811, %v1813
    %v1918 = vsel %vm1902, %v1815, %v1817
    %v1919 = vsel %vm1902, %v1817, %v1819
    %v1920 = vsel %vm1902, %v1819, %v1821
    %v1921 = vsel %vm1902, %v1823, %v1825
    %v1922 = vsel %vm1902, %v1825, %v1827
    %v1923 = vsel %vm1902, %v1827, %v1829
    %v1924 = vsel %vm1902, %v1831, %v1833
    %v1925 = vsel %vm1902, %v1833, %v1835
    %v1926 = vsel %vm1902, %v1835, %v1837
    %v1927 = vsel %vm1902, %v1839, %v1841
    %v1928 = vsel %vm1902, %v1841, %v1843
    %v1929 = vsel %vm1902, %v1843, %v1845
    %v1930 = vsel %vm1902, %v1847, %v1849
    %v1931 = vsel %vm1902, %v1849, %v1851
    %v1932 = vsel %vm1902, %v1851, %v1853
    %v1933 = vsel %vm1902, %v1855, %v1857
    %v1934 = vsel %vm1902, %v1857, %v1859
    %v1935 = vsel %vm1902, %v1859, %v1861
    %v1936 = vsel %vm1902, %v1863, %v1865
    %v1937 = vsel %vm1902, %v1865, %v1867
    %v1938 = vsel %vm1902, %v1867, %v1869
    %v1939 = vsel %vm1902, %v1871, %v1873
    %v1940 = vsel %vm1902, %v1873, %v1875
    %v1941 = vsel %vm1902, %v1875, %v1877
    %v1942 = vsel %vm1902, %v1879, %v1881
    %v1943 = vsel %vm1902, %v1881, %v1883
    %v1944 = vsel %vm1902, %v1883, %v1885
    %v1945 = vsel %vm1902, %v1887, %v1889
    %v1946 = vsel %vm1902, %v1889, %v1891
    %v1947 = vsel %vm1902, %v1891, %v1893
    %v1948 = vsel %vm1902, %v1895, %v1897
    %v1949 = vsel %vm1902, %v1897, %v1899
    %v1950 = vsel %vm1902, %v1899, %v1901
    %v2015 = vmax.f32 %v1598, %v1903
    %v2016 = vmax.f32 %v1599, %v1904
    %v2017 = vmax.f32 %v1600, %v1905
    %v2018 = vmax.f32 %v1601, %v1781
    %v2019 = vmax.f32 %v1605, %v1906
    %v2020 = vmax.f32 %v1606, %v1907
    %v2021 = vmax.f32 %v1607, %v1908
    %v2022 = vmax.f32 %v1608, %v1789
    %v2023 = vmax.f32 %v1612, %v1909
    %v2024 = vmax.f32 %v1613, %v1910
    %v2025 = vmax.f32 %v1614, %v1911
    %v2026 = vmax.f32 %v1615, %v1797
    %v2027 = vmax.f32 %v1619, %v1912
    %v2028 = vmax.f32 %v1620, %v1913
    %v2029 = vmax.f32 %v1621, %v1914
    %v2030 = vmax.f32 %v1622, %v1805
    %v2031 = vmax.f32 %v1626, %v1915
    %v2032 = vmax.f32 %v1627, %v1916
    %v2033 = vmax.f32 %v1628, %v1917
    %v2034 = vmax.f32 %v1629, %v1813
    %v2035 = vmax.f32 %v1633, %v1918
    %v2036 = vmax.f32 %v1634, %v1919
    %v2037 = vmax.f32 %v1635, %v1920
    %v2038 = vmax.f32 %v1636, %v1821
    %v2039 = vmax.f32 %v1640, %v1921
    %v2040 = vmax.f32 %v1641, %v1922
    %v2041 = vmax.f32 %v1642, %v1923
    %v2042 = vmax.f32 %v1643, %v1829
    %v2043 = vmax.f32 %v1647, %v1924
    %v2044 = vmax.f32 %v1648, %v1925
    %v2045 = vmax.f32 %v1649, %v1926
    %v2046 = vmax.f32 %v1650, %v1837
    %v2047 = vmax.f32 %v1654, %v1927
    %v2048 = vmax.f32 %v1655, %v1928
    %v2049 = vmax.f32 %v1656, %v1929
    %v2050 = vmax.f32 %v1657, %v1845
    %v2051 = vmax.f32 %v1661, %v1930
    %v2052 = vmax.f32 %v1662, %v1931
    %v2053 = vmax.f32 %v1663, %v1932
    %v2054 = vmax.f32 %v1664, %v1853
    %v2055 = vmax.f32 %v1668, %v1933
    %v2056 = vmax.f32 %v1669, %v1934
    %v2057 = vmax.f32 %v1670, %v1935
    %v2058 = vmax.f32 %v1671, %v1861
    %v2059 = vmax.f32 %v1675, %v1936
    %v2060 = vmax.f32 %v1676, %v1937
    %v2061 = vmax.f32 %v1677, %v1938
    %v2062 = vmax.f32 %v1678, %v1869
    %v2063 = vmax.f32 %v1682, %v1939
    %v2064 = vmax.f32 %v1683, %v1940
    %v2065 = vmax.f32 %v1684, %v1941
    %v2066 = vmax.f32 %v1685, %v1877
    %v2067 = vmax.f32 %v1689, %v1942
    %v2068 = vmax.f32 %v1690, %v1943
    %v2069 = vmax.f32 %v1691, %v1944
    %v2070 = vmax.f32 %v1692, %v1885
    %v2071 = vmax.f32 %v1696, %v1945
    %v2072 = vmax.f32 %v1697, %v1946
    %v2073 = vmax.f32 %v1698, %v1947
    %v2074 = vmax.f32 %v1699, %v1893
    %v2075 = vmax.f32 %v1703, %v1948
    %v2076 = vmax.f32 %v1704, %v1949
    %v2077 = vmax.f32 %v1705, %v1950
    %v2078 = vmax.f32 %v1706, %v1901
    %2143 = vrot.lane.b32.xlu0 %v2015, 32
    %v2144 = vpop.permute.xlu0 %2143
    %2145 = vrot.lane.b32.xlu0 %v2016, 32
    %v2146 = vpop.permute.xlu0 %2145
    %2147 = vrot.lane.b32.xlu0 %v2017, 32
    %v2148 = vpop.permute.xlu0 %2147
    %2149 = vrot.lane.b32.xlu0 %v2018, 32
    %v2150 = vpop.permute.xlu0 %2149
    %2151 = vrot.lane.b32.xlu0 %v2019, 32
    %v2152 = vpop.permute.xlu0 %2151
    %2153 = vrot.lane.b32.xlu0 %v2020, 32
    %v2154 = vpop.permute.xlu0 %2153
    %2155 = vrot.lane.b32.xlu0 %v2021, 32
    %v2156 = vpop.permute.xlu0 %2155
    %2157 = vrot.lane.b32.xlu0 %v2022, 32
    %v2158 = vpop.permute.xlu0 %2157
    %2159 = vrot.lane.b32.xlu0 %v2023, 32
    %v2160 = vpop.permute.xlu0 %2159
    %2161 = vrot.lane.b32.xlu0 %v2024, 32
    %v2162 = vpop.permute.xlu0 %2161
    %2163 = vrot.lane.b32.xlu0 %v2025, 32
    %v2164 = vpop.permute.xlu0 %2163
    %2165 = vrot.lane.b32.xlu0 %v2026, 32
    %v2166 = vpop.permute.xlu0 %2165
    %2167 = vrot.lane.b32.xlu0 %v2027, 32
    %v2168 = vpop.permute.xlu0 %2167
    %2169 = vrot.lane.b32.xlu0 %v2028, 32
    %v2170 = vpop.permute.xlu0 %2169
    %2171 = vrot.lane.b32.xlu0 %v2029, 32
    %v2172 = vpop.permute.xlu0 %2171
    %2173 = vrot.lane.b32.xlu0 %v2030, 32
    %v2174 = vpop.permute.xlu0 %2173
    %2175 = vrot.lane.b32.xlu0 %v2031, 32
    %v2176 = vpop.permute.xlu0 %2175
    %2177 = vrot.lane.b32.xlu0 %v2032, 32
    %v2178 = vpop.permute.xlu0 %2177
    %2179 = vrot.lane.b32.xlu0 %v2033, 32
    %v2180 = vpop.permute.xlu0 %2179
    %2181 = vrot.lane.b32.xlu0 %v2034, 32
    %v2182 = vpop.permute.xlu0 %2181
    %2183 = vrot.lane.b32.xlu0 %v2035, 32
    %v2184 = vpop.permute.xlu0 %2183
    %2185 = vrot.lane.b32.xlu0 %v2036, 32
    %v2186 = vpop.permute.xlu0 %2185
    %2187 = vrot.lane.b32.xlu0 %v2037, 32
    %v2188 = vpop.permute.xlu0 %2187
    %2189 = vrot.lane.b32.xlu0 %v2038, 32
    %v2190 = vpop.permute.xlu0 %2189
    %2191 = vrot.lane.b32.xlu0 %v2039, 32
    %v2192 = vpop.permute.xlu0 %2191
    %2193 = vrot.lane.b32.xlu0 %v2040, 32
    %v2194 = vpop.permute.xlu0 %2193
    %2195 = vrot.lane.b32.xlu0 %v2041, 32
    %v2196 = vpop.permute.xlu0 %2195
    %2197 = vrot.lane.b32.xlu0 %v2042, 32
    %v2198 = vpop.permute.xlu0 %2197
    %2199 = vrot.lane.b32.xlu0 %v2043, 32
    %v2200 = vpop.permute.xlu0 %2199
    %2201 = vrot.lane.b32.xlu0 %v2044, 32
    %v2202 = vpop.permute.xlu0 %2201
    %2203 = vrot.lane.b32.xlu0 %v2045, 32
    %v2204 = vpop.permute.xlu0 %2203
    %2205 = vrot.lane.b32.xlu0 %v2046, 32
    %v2206 = vpop.permute.xlu0 %2205
    %2207 = vrot.lane.b32.xlu0 %v2047, 32
    %v2208 = vpop.permute.xlu0 %2207
    %2209 = vrot.lane.b32.xlu0 %v2048, 32
    %v2210 = vpop.permute.xlu0 %2209
    %2211 = vrot.lane.b32.xlu0 %v2049, 32
    %v2212 = vpop.permute.xlu0 %2211
    %2213 = vrot.lane.b32.xlu0 %v2050, 32
    %v2214 = vpop.permute.xlu0 %2213
    %2215 = vrot.lane.b32.xlu0 %v2051, 32
    %v2216 = vpop.permute.xlu0 %2215
    %2217 = vrot.lane.b32.xlu0 %v2052, 32
    %v2218 = vpop.permute.xlu0 %2217
    %2219 = vrot.lane.b32.xlu0 %v2053, 32
    %v2220 = vpop.permute.xlu0 %2219
    %2221 = vrot.lane.b32.xlu0 %v2054, 32
    %v2222 = vpop.permute.xlu0 %2221
    %2223 = vrot.lane.b32.xlu0 %v2055, 32
    %v2224 = vpop.permute.xlu0 %2223
    %2225 = vrot.lane.b32.xlu0 %v2056, 32
    %v2226 = vpop.permute.xlu0 %2225
    %2227 = vrot.lane.b32.xlu0 %v2057, 32
    %v2228 = vpop.permute.xlu0 %2227
    %2229 = vrot.lane.b32.xlu0 %v2058, 32
    %v2230 = vpop.permute.xlu0 %2229
    %2231 = vrot.lane.b32.xlu0 %v2059, 32
    %v2232 = vpop.permute.xlu0 %2231
    %2233 = vrot.lane.b32.xlu0 %v2060, 32
    %v2234 = vpop.permute.xlu0 %2233
    %2235 = vrot.lane.b32.xlu0 %v2061, 32
    %v2236 = vpop.permute.xlu0 %2235
    %2237 = vrot.lane.b32.xlu0 %v2062, 32
    %v2238 = vpop.permute.xlu0 %2237
    %2239 = vrot.lane.b32.xlu0 %v2063, 32
    %v2240 = vpop.permute.xlu0 %2239
    %2241 = vrot.lane.b32.xlu0 %v2064, 32
    %v2242 = vpop.permute.xlu0 %2241
    %2243 = vrot.lane.b32.xlu0 %v2065, 32
    %v2244 = vpop.permute.xlu0 %2243
    %2245 = vrot.lane.b32.xlu0 %v2066, 32
    %v2246 = vpop.permute.xlu0 %2245
    %2247 = vrot.lane.b32.xlu0 %v2067, 32
    %v2248 = vpop.permute.xlu0 %2247
    %2249 = vrot.lane.b32.xlu0 %v2068, 32
    %v2250 = vpop.permute.xlu0 %2249
    %2251 = vrot.lane.b32.xlu0 %v2069, 32
    %v2252 = vpop.permute.xlu0 %2251
    %2253 = vrot.lane.b32.xlu0 %v2070, 32
    %v2254 = vpop.permute.xlu0 %2253
    %2255 = vrot.lane.b32.xlu0 %v2071, 32
    %v2256 = vpop.permute.xlu0 %2255
    %2257 = vrot.lane.b32.xlu0 %v2072, 32
    %v2258 = vpop.permute.xlu0 %2257
    %2259 = vrot.lane.b32.xlu0 %v2073, 32
    %v2260 = vpop.permute.xlu0 %2259
    %2261 = vrot.lane.b32.xlu0 %v2074, 32
    %v2262 = vpop.permute.xlu0 %2261
    %2263 = vrot.lane.b32.xlu0 %v2075, 32
    %v2264 = vpop.permute.xlu0 %2263
    %2265 = vrot.lane.b32.xlu0 %v2076, 32
    %v2266 = vpop.permute.xlu0 %2265
    %2267 = vrot.lane.b32.xlu0 %v2077, 32
    %v2268 = vpop.permute.xlu0 %2267
    %2269 = vrot.lane.b32.xlu0 %v2078, 32
    %v2270 = vpop.permute.xlu0 %2269
    %vm2271 = vcmask 261120
    %v2272 = vsel %vm2271, %v2144, %v2146
    %v2273 = vsel %vm2271, %v2146, %v2148
    %v2274 = vsel %vm2271, %v2148, %v2150
    %v2275 = vsel %vm2271, %v2152, %v2154
    %v2276 = vsel %vm2271, %v2154, %v2156
    %v2277 = vsel %vm2271, %v2156, %v2158
    %v2278 = vsel %vm2271, %v2160, %v2162
    %v2279 = vsel %vm2271, %v2162, %v2164
    %v2280 = vsel %vm2271, %v2164, %v2166
    %v2281 = vsel %vm2271, %v2168, %v2170
    %v2282 = vsel %vm2271, %v2170, %v2172
    %v2283 = vsel %vm2271, %v2172, %v2174
    %v2284 = vsel %vm2271, %v2176, %v2178
    %v2285 = vsel %vm2271, %v2178, %v2180
    %v2286 = vsel %vm2271, %v2180, %v2182
    %v2287 = vsel %vm2271, %v2184, %v2186
    %v2288 = vsel %vm2271, %v2186, %v2188
    %v2289 = vsel %vm2271, %v2188, %v2190
    %v2290 = vsel %vm2271, %v2192, %v2194
    %v2291 = vsel %vm2271, %v2194, %v2196
    %v2292 = vsel %vm2271, %v2196, %v2198
    %v2293 = vsel %vm2271, %v2200, %v2202
    %v2294 = vsel %vm2271, %v2202, %v2204
    %v2295 = vsel %vm2271, %v2204, %v2206
    %v2296 = vsel %vm2271, %v2208, %v2210
    %v2297 = vsel %vm2271, %v2210, %v2212
    %v2298 = vsel %vm2271, %v2212, %v2214
    %v2299 = vsel %vm2271, %v2216, %v2218
    %v2300 = vsel %vm2271, %v2218, %v2220
    %v2301 = vsel %vm2271, %v2220, %v2222
    %v2302 = vsel %vm2271, %v2224, %v2226
    %v2303 = vsel %vm2271, %v2226, %v2228
    %v2304 = vsel %vm2271, %v2228, %v2230
    %v2305 = vsel %vm2271, %v2232, %v2234
    %v2306 = vsel %vm2271, %v2234, %v2236
    %v2307 = vsel %vm2271, %v2236, %v2238
    %v2308 = vsel %vm2271, %v2240, %v2242
    %v2309 = vsel %vm2271, %v2242, %v2244
    %v2310 = vsel %vm2271, %v2244, %v2246
    %v2311 = vsel %vm2271, %v2248, %v2250
    %v2312 = vsel %vm2271, %v2250, %v2252
    %v2313 = vsel %vm2271, %v2252, %v2254
    %v2314 = vsel %vm2271, %v2256, %v2258
    %v2315 = vsel %vm2271, %v2258, %v2260
    %v2316 = vsel %vm2271, %v2260, %v2262
    %v2317 = vsel %vm2271, %v2264, %v2266
    %v2318 = vsel %vm2271, %v2266, %v2268
    %v2319 = vsel %vm2271, %v2268, %v2270
    %v2384 = vsel %vm2271, 0.0, %v2144
    %v2385 = vsel %vm2271, 0.0, %v2152
    %v2386 = vsel %vm2271, 0.0, %v2160
    %v2387 = vsel %vm2271, 0.0, %v2168
    %v2388 = vsel %vm2271, 0.0, %v2176
    %v2389 = vsel %vm2271, 0.0, %v2184
    %v2390 = vsel %vm2271, 0.0, %v2192
    %v2391 = vsel %vm2271, 0.0, %v2200
    %v2392 = vsel %vm2271, 0.0, %v2208
    %v2393 = vsel %vm2271, 0.0, %v2216
    %v2394 = vsel %vm2271, 0.0, %v2224
    %v2395 = vsel %vm2271, 0.0, %v2232
    %v2396 = vsel %vm2271, 0.0, %v2240
    %v2397 = vsel %vm2271, 0.0, %v2248
    %v2398 = vsel %vm2271, 0.0, %v2256
    %v2399 = vsel %vm2271, 0.0, %v2264
    %vm2400 = vcmask 785408
    %v2401 = vsel %vm2400, %v2274, 0.0
    %v2402 = vsel %vm2400, %v2277, 0.0
    %v2403 = vsel %vm2400, %v2280, 0.0
    %v2404 = vsel %vm2400, %v2283, 0.0
    %v2405 = vsel %vm2400, %v2286, 0.0
    %v2406 = vsel %vm2400, %v2289, 0.0
    %v2407 = vsel %vm2400, %v2292, 0.0
    %v2408 = vsel %vm2400, %v2295, 0.0
    %v2409 = vsel %vm2400, %v2298, 0.0
    %v2410 = vsel %vm2400, %v2301, 0.0
    %v2411 = vsel %vm2400, %v2304, 0.0
    %v2412 = vsel %vm2400, %v2307, 0.0
    %v2413 = vsel %vm2400, %v2310, 0.0
    %v2414 = vsel %vm2400, %v2313, 0.0
    %v2415 = vsel %vm2400, %v2316, 0.0
    %v2416 = vsel %vm2400, %v2319, 0.0
    %v2449 = vrot.slane %v2384, 7
    %v2450 = vrot.slane %v2272, 7
    %v2451 = vrot.slane %v2273, 7
    %v2452 = vrot.slane %v2401, 7
    %v2453 = vrot.slane %v2385, 7
    %v2454 = vsel %vm421, %v2449, %v2453
    %v2455 = vrot.slane %v2275, 7
    %v2456 = vsel %vm421, %v2450, %v2455
    %v2457 = vrot.slane %v2276, 7
    %v2458 = vsel %vm421, %v2451, %v2457
    %v2459 = vrot.slane %v2402, 7
    %v2460 = vsel %vm421, %v2452, %v2459
    %v2461 = vrot.slane %v2386, 7
    %v2462 = vsel %vm421, %v2453, %v2461
    %v2463 = vrot.slane %v2278, 7
    %v2464 = vsel %vm421, %v2455, %v2463
    %v2465 = vrot.slane %v2279, 7
    %v2466 = vsel %vm421, %v2457, %v2465
    %v2467 = vrot.slane %v2403, 7
    %v2468 = vsel %vm421, %v2459, %v2467
    %v2469 = vrot.slane %v2387, 7
    %v2470 = vsel %vm421, %v2461, %v2469
    %v2471 = vrot.slane %v2281, 7
    %v2472 = vsel %vm421, %v2463, %v2471
    %v2473 = vrot.slane %v2282, 7
    %v2474 = vsel %vm421, %v2465, %v2473
    %v2475 = vrot.slane %v2404, 7
    %v2476 = vsel %vm421, %v2467, %v2475
    %v2477 = vrot.slane %v2388, 7
    %v2478 = vsel %vm421, %v2469, %v2477
    %v2479 = vrot.slane %v2284, 7
    %v2480 = vsel %vm421, %v2471, %v2479
    %v2481 = vrot.slane %v2285, 7
    %v2482 = vsel %vm421, %v2473, %v2481
    %v2483 = vrot.slane %v2405, 7
    %v2484 = vsel %vm421, %v2475, %v2483
    %v2485 = vrot.slane %v2389, 7
    %v2486 = vsel %vm421, %v2477, %v2485
    %v2487 = vrot.slane %v2287, 7
    %v2488 = vsel %vm421, %v2479, %v2487
    %v2489 = vrot.slane %v2288, 7
    %v2490 = vsel %vm421, %v2481, %v2489
    %v2491 = vrot.slane %v2406, 7
    %v2492 = vsel %vm421, %v2483, %v2491
    %v2493 = vrot.slane %v2390, 7
    %v2494 = vsel %vm421, %v2485, %v2493
    %v2495 = vrot.slane %v2290, 7
    %v2496 = vsel %vm421, %v2487, %v2495
    %v2497 = vrot.slane %v2291, 7
    %v2498 = vsel %vm421, %v2489, %v2497
    %v2499 = vrot.slane %v2407, 7
    %v2500 = vsel %vm421, %v2491, %v2499
    %v2501 = vrot.slane %v2391, 7
    %v2502 = vsel %vm421, %v2493, %v2501
    %v2503 = vrot.slane %v2293, 7
    %v2504 = vsel %vm421, %v2495, %v2503
    %v2505 = vrot.slane %v2294, 7
    %v2506 = vsel %vm421, %v2497, %v2505
    %v2507 = vrot.slane %v2408, 7
    %v2508 = vsel %vm421, %v2499, %v2507
    %v2509 = vrot.slane %v2392, 7
    %v2510 = vsel %vm421, %v2501, %v2509
    %v2511 = vrot.slane %v2296, 7
    %v2512 = vsel %vm421, %v2503, %v2511
    %v2513 = vrot.slane %v2297, 7
    %v2514 = vsel %vm421, %v2505, %v2513
    %v2515 = vrot.slane %v2409, 7
    %v2516 = vsel %vm421, %v2507, %v2515
    %v2517 = vrot.slane %v2393, 7
    %v2518 = vsel %vm421, %v2509, %v2517
    %v2519 = vrot.slane %v2299, 7
    %v2520 = vsel %vm421, %v2511, %v2519
    %v2521 = vrot.slane %v2300, 7
    %v2522 = vsel %vm421, %v2513, %v2521
    %v2523 = vrot.slane %v2410, 7
    %v2524 = vsel %vm421, %v2515, %v2523
    %v2525 = vrot.slane %v2394, 7
    %v2526 = vsel %vm421, %v2517, %v2525
    %v2527 = vrot.slane %v2302, 7
    %v2528 = vsel %vm421, %v2519, %v2527
    %v2529 = vrot.slane %v2303, 7
    %v2530 = vsel %vm421, %v2521, %v2529
    %v2531 = vrot.slane %v2411, 7
    %v2532 = vsel %vm421, %v2523, %v2531
    %v2533 = vrot.slane %v2395, 7
    %v2534 = vsel %vm421, %v2525, %v2533
    %v2535 = vrot.slane %v2305, 7
    %v2536 = vsel %vm421, %v2527, %v2535
    %v2537 = vrot.slane %v2306, 7
    %v2538 = vsel %vm421, %v2529, %v2537
    %v2539 = vrot.slane %v2412, 7
    %v2540 = vsel %vm421, %v2531, %v2539
    %v2541 = vrot.slane %v2396, 7
    %v2542 = vsel %vm421, %v2533, %v2541
    %v2543 = vrot.slane %v2308, 7
    %v2544 = vsel %vm421, %v2535, %v2543
    %v2545 = vrot.slane %v2309, 7
    %v2546 = vsel %vm421, %v2537, %v2545
    %v2547 = vrot.slane %v2413, 7
    %v2548 = vsel %vm421, %v2539, %v2547
    %v2549 = vrot.slane %v2397, 7
    %v2550 = vsel %vm421, %v2541, %v2549
    %v2551 = vrot.slane %v2311, 7
    %v2552 = vsel %vm421, %v2543, %v2551
    %v2553 = vrot.slane %v2312, 7
    %v2554 = vsel %vm421, %v2545, %v2553
    %v2555 = vrot.slane %v2414, 7
    %v2556 = vsel %vm421, %v2547, %v2555
    %v2557 = vrot.slane %v2398, 7
    %v2558 = vsel %vm421, %v2549, %v2557
    %v2559 = vrot.slane %v2314, 7
    %v2560 = vsel %vm421, %v2551, %v2559
    %v2561 = vrot.slane %v2315, 7
    %v2562 = vsel %vm421, %v2553, %v2561
    %v2563 = vrot.slane %v2415, 7
    %v2564 = vsel %vm421, %v2555, %v2563
    %v2565 = vrot.slane %v2399, 7
    %v2566 = vsel %vm421, %v2557, %v2565
    %v2567 = vrot.slane %v2317, 7
    %v2568 = vsel %vm421, %v2559, %v2567
    %v2569 = vrot.slane %v2318, 7
    %v2570 = vsel %vm421, %v2561, %v2569
    %v2571 = vrot.slane %v2416, 7
    %v2572 = vsel %vm421, %v2563, %v2571
    %v2637 = vsel %vm421, 0.0, %v2449
    %v2638 = vsel %vm421, 0.0, %v2450
    %v2639 = vsel %vm421, 0.0, %v2451
    %v2640 = vsel %vm421, 0.0, %v2452
    %vm2641 = vcmask 1046528
    %v2642 = vrot.slane %v2384, 1
    %v2643 = vrot.slane %v2385, 1
    %v2644 = vsel %vm2641, %v2642, %v2643
    %v2645 = vrot.slane %v2272, 1
    %v2646 = vrot.slane %v2275, 1
    %v2647 = vsel %vm2641, %v2645, %v2646
    %v2648 = vrot.slane %v2273, 1
    %v2649 = vrot.slane %v2276, 1
    %v2650 = vsel %vm2641, %v2648, %v2649
    %v2651 = vrot.slane %v2401, 1
    %v2652 = vrot.slane %v2402, 1
    %v2653 = vsel %vm2641, %v2651, %v2652
    %v2654 = vrot.slane %v2386, 1
    %v2655 = vsel %vm2641, %v2643, %v2654
    %v2656 = vrot.slane %v2278, 1
    %v2657 = vsel %vm2641, %v2646, %v2656
    %v2658 = vrot.slane %v2279, 1
    %v2659 = vsel %vm2641, %v2649, %v2658
    %v2660 = vrot.slane %v2403, 1
    %v2661 = vsel %vm2641, %v2652, %v2660
    %v2662 = vrot.slane %v2387, 1
    %v2663 = vsel %vm2641, %v2654, %v2662
    %v2664 = vrot.slane %v2281, 1
    %v2665 = vsel %vm2641, %v2656, %v2664
    %v2666 = vrot.slane %v2282, 1
    %v2667 = vsel %vm2641, %v2658, %v2666
    %v2668 = vrot.slane %v2404, 1
    %v2669 = vsel %vm2641, %v2660, %v2668
    %v2670 = vrot.slane %v2388, 1
    %v2671 = vsel %vm2641, %v2662, %v2670
    %v2672 = vrot.slane %v2284, 1
    %v2673 = vsel %vm2641, %v2664, %v2672
    %v2674 = vrot.slane %v2285, 1
    %v2675 = vsel %vm2641, %v2666, %v2674
    %v2676 = vrot.slane %v2405, 1
    %v2677 = vsel %vm2641, %v2668, %v2676
    %v2678 = vrot.slane %v2389, 1
    %v2679 = vsel %vm2641, %v2670, %v2678
    %v2680 = vrot.slane %v2287, 1
    %v2681 = vsel %vm2641, %v2672, %v2680
    %v2682 = vrot.slane %v2288, 1
    %v2683 = vsel %vm2641, %v2674, %v2682
    %v2684 = vrot.slane %v2406, 1
    %v2685 = vsel %vm2641, %v2676, %v2684
    %v2686 = vrot.slane %v2390, 1
    %v2687 = vsel %vm2641, %v2678, %v2686
    %v2688 = vrot.slane %v2290, 1
    %v2689 = vsel %vm2641, %v2680, %v2688
    %v2690 = vrot.slane %v2291, 1
    %v2691 = vsel %vm2641, %v2682, %v2690
    %v2692 = vrot.slane %v2407, 1
    %v2693 = vsel %vm2641, %v2684, %v2692
    %v2694 = vrot.slane %v2391, 1
    %v2695 = vsel %vm2641, %v2686, %v2694
    %v2696 = vrot.slane %v2293, 1
    %v2697 = vsel %vm2641, %v2688, %v2696
    %v2698 = vrot.slane %v2294, 1
    %v2699 = vsel %vm2641, %v2690, %v2698
    %v2700 = vrot.slane %v2408, 1
    %v2701 = vsel %vm2641, %v2692, %v2700
    %v2702 = vrot.slane %v2392, 1
    %v2703 = vsel %vm2641, %v2694, %v2702
    %v2704 = vrot.slane %v2296, 1
    %v2705 = vsel %vm2641, %v2696, %v2704
    %v2706 = vrot.slane %v2297, 1
    %v2707 = vsel %vm2641, %v2698, %v2706
    %v2708 = vrot.slane %v2409, 1
    %v2709 = vsel %vm2641, %v2700, %v2708
    %v2710 = vrot.slane %v2393, 1
    %v2711 = vsel %vm2641, %v2702, %v2710
    %v2712 = vrot.slane %v2299, 1
    %v2713 = vsel %vm2641, %v2704, %v2712
    %v2714 = vrot.slane %v2300, 1
    %v2715 = vsel %vm2641, %v2706, %v2714
    %v2716 = vrot.slane %v2410, 1
    %v2717 = vsel %vm2641, %v2708, %v2716
    %v2718 = vrot.slane %v2394, 1
    %v2719 = vsel %vm2641, %v2710, %v2718
    %v2720 = vrot.slane %v2302, 1
    %v2721 = vsel %vm2641, %v2712, %v2720
    %v2722 = vrot.slane %v2303, 1
    %v2723 = vsel %vm2641, %v2714, %v2722
    %v2724 = vrot.slane %v2411, 1
    %v2725 = vsel %vm2641, %v2716, %v2724
    %v2726 = vrot.slane %v2395, 1
    %v2727 = vsel %vm2641, %v2718, %v2726
    %v2728 = vrot.slane %v2305, 1
    %v2729 = vsel %vm2641, %v2720, %v2728
    %v2730 = vrot.slane %v2306, 1
    %v2731 = vsel %vm2641, %v2722, %v2730
    %v2732 = vrot.slane %v2412, 1
    %v2733 = vsel %vm2641, %v2724, %v2732
    %v2734 = vrot.slane %v2396, 1
    %v2735 = vsel %vm2641, %v2726, %v2734
    %v2736 = vrot.slane %v2308, 1
    %v2737 = vsel %vm2641, %v2728, %v2736
    %v2738 = vrot.slane %v2309, 1
    %v2739 = vsel %vm2641, %v2730, %v2738
    %v2740 = vrot.slane %v2413, 1
    %v2741 = vsel %vm2641, %v2732, %v2740
    %v2742 = vrot.slane %v2397, 1
    %v2743 = vsel %vm2641, %v2734, %v2742
    %v2744 = vrot.slane %v2311, 1
    %v2745 = vsel %vm2641, %v2736, %v2744
    %v2746 = vrot.slane %v2312, 1
    %v2747 = vsel %vm2641, %v2738, %v2746
    %v2748 = vrot.slane %v2414, 1
    %v2749 = vsel %vm2641, %v2740, %v2748
    %v2750 = vrot.slane %v2398, 1
    %v2751 = vsel %vm2641, %v2742, %v2750
    %v2752 = vrot.slane %v2314, 1
    %v2753 = vsel %vm2641, %v2744, %v2752
    %v2754 = vrot.slane %v2315, 1
    %v2755 = vsel %vm2641, %v2746, %v2754
    %v2756 = vrot.slane %v2415, 1
    %v2757 = vsel %vm2641, %v2748, %v2756
    %v2758 = vrot.slane %v2399, 1
    %v2759 = vsel %vm2641, %v2750, %v2758
    %v2760 = vrot.slane %v2317, 1
    %v2761 = vsel %vm2641, %v2752, %v2760
    %v2762 = vrot.slane %v2318, 1
    %v2763 = vsel %vm2641, %v2754, %v2762
    %v2764 = vrot.slane %v2416, 1
    %v2765 = vsel %vm2641, %v2756, %v2764
    %v2830 = vsel %vm2641, %v2758, 0.0
    %v2831 = vsel %vm2641, %v2760, 0.0
    %v2832 = vsel %vm2641, %v2762, 0.0
    %v2833 = vsel %vm2641, %v2764, 0.0
    %v2834 = vld [vmem:[#allocation4] sm:$0xff]
    %v2835 = vld [vmem:[#allocation4 + $0x8] sm:$0xff]
    %v2836 = vld [vmem:[#allocation4 + $0x10] sm:$0xff]
    %v2837 = vld [vmem:[#allocation4 + $0x18] sm:$0xff]
    %v2838 = vld [vmem:[#allocation4 + $0x20] sm:$0xff]
    %v2839 = vld [vmem:[#allocation4 + $0x28] sm:$0xff]
    %v2840 = vld [vmem:[#allocation4 + $0x30] sm:$0xff]
    %v2841 = vld [vmem:[#allocation4 + $0x38] sm:$0xff]
    %v2842 = vld [vmem:[#allocation4 + $0x40] sm:$0xff]
    %v2843 = vld [vmem:[#allocation4 + $0x48] sm:$0xff]
    %v2844 = vld [vmem:[#allocation4 + $0x50] sm:$0xff]
    %v2845 = vld [vmem:[#allocation4 + $0x58] sm:$0xff]
    %v2846 = vld [vmem:[#allocation4 + $0x60] sm:$0xff]
    %v2847 = vld [vmem:[#allocation4 + $0x68] sm:$0xff]
    %v2848 = vld [vmem:[#allocation4 + $0x70] sm:$0xff]
    %v2849 = vld [vmem:[#allocation4 + $0x78] sm:$0xff]
    %v2850 = vld [vmem:[#allocation4 + $0x80] sm:$0xff]
    %v2851 = vld [vmem:[#allocation4 + $0x88] sm:$0xff]
    %v2852 = vld [vmem:[#allocation4 + $0x90] sm:$0xff]
    %v2853 = vld [vmem:[#allocation4 + $0x98] sm:$0xff]
    %v2854 = vld [vmem:[#allocation4 + $0xa0] sm:$0xff]
    %v2855 = vld [vmem:[#allocation4 + $0xa8] sm:$0xff]
    %v2856 = vld [vmem:[#allocation4 + $0xb0] sm:$0xff]
    %v2857 = vld [vmem:[#allocation4 + $0xb8] sm:$0xff]
    %v2858 = vld [vmem:[#allocation4 + $0xc0] sm:$0xff]
    %v2859 = vld [vmem:[#allocation4 + $0xc8] sm:$0xff]
    %v2860 = vld [vmem:[#allocation4 + $0xd0] sm:$0xff]
    %v2861 = vld [vmem:[#allocation4 + $0xd8] sm:$0xff]
    %v2862 = vld [vmem:[#allocation4 + $0xe0] sm:$0xff]
    %v2863 = vld [vmem:[#allocation4 + $0xe8] sm:$0xff]
    %v2864 = vld [vmem:[#allocation4 + $0xf0] sm:$0xff]
    %v2865 = vld [vmem:[#allocation4 + $0xf8] sm:$0xff]
    %v2866 = vld [vmem:[#allocation4 + $0x100] sm:$0xff]
    %v2867 = vld [vmem:[#allocation4 + $0x108] sm:$0xff]
    %v2868 = vld [vmem:[#allocation4 + $0x110] sm:$0xff]
    %v2869 = vld [vmem:[#allocation4 + $0x118] sm:$0xff]
    %v2870 = vld [vmem:[#allocation4 + $0x120] sm:$0xff]
    %v2871 = vld [vmem:[#allocation4 + $0x128] sm:$0xff]
    %v2872 = vld [vmem:[#allocation4 + $0x130] sm:$0xff]
    %v2873 = vld [vmem:[#allocation4 + $0x138] sm:$0xff]
    %v2874 = vld [vmem:[#allocation4 + $0x140] sm:$0xff]
    %v2875 = vld [vmem:[#allocation4 + $0x148] sm:$0xff]
    %v2876 = vld [vmem:[#allocation4 + $0x150] sm:$0xff]
    %v2877 = vld [vmem:[#allocation4 + $0x158] sm:$0xff]
    %v2878 = vld [vmem:[#allocation4 + $0x160] sm:$0xff]
    %v2879 = vld [vmem:[#allocation4 + $0x168] sm:$0xff]
    %v2880 = vld [vmem:[#allocation4 + $0x170] sm:$0xff]
    %v2881 = vld [vmem:[#allocation4 + $0x178] sm:$0xff]
    %v2882 = vld [vmem:[#allocation4 + $0x180] sm:$0xff]
    %v2883 = vld [vmem:[#allocation4 + $0x188] sm:$0xff]
    %v2884 = vld [vmem:[#allocation4 + $0x190] sm:$0xff]
    %v2885 = vld [vmem:[#allocation4 + $0x198] sm:$0xff]
    %v2886 = vld [vmem:[#allocation4 + $0x1a0] sm:$0xff]
    %v2887 = vld [vmem:[#allocation4 + $0x1a8] sm:$0xff]
    %v2888 = vld [vmem:[#allocation4 + $0x1b0] sm:$0xff]
    %v2889 = vld [vmem:[#allocation4 + $0x1b8] sm:$0xff]
    %v2890 = vld [vmem:[#allocation4 + $0x1c0] sm:$0xff]
    %v2891 = vld [vmem:[#allocation4 + $0x1c8] sm:$0xff]
    %v2892 = vld [vmem:[#allocation4 + $0x1d0] sm:$0xff]
    %v2893 = vld [vmem:[#allocation4 + $0x1d8] sm:$0xff]
    %v2894 = vld [vmem:[#allocation4 + $0x1e0] sm:$0xff]
    %v2895 = vld [vmem:[#allocation4 + $0x1e8] sm:$0xff]
    %v2896 = vld [vmem:[#allocation4 + $0x1f0] sm:$0xff]
    %v2897 = vld [vmem:[#allocation4 + $0x1f8] sm:$0xff]
    %v2898 = vld [vmem:[#allocation4 + $0x200] sm:$0xff]
    %v2899 = vld [vmem:[#allocation4 + $0x208] sm:$0xff]
    %v2900 = vld [vmem:[#allocation4 + $0x210] sm:$0xff]
    %v2901 = vld [vmem:[#allocation4 + $0x218] sm:$0xff]
    %v2902 = vld [vmem:[#allocation4 + $0x220] sm:$0xff]
    %v2903 = vld [vmem:[#allocation4 + $0x228] sm:$0xff]
    %v2904 = vld [vmem:[#allocation4 + $0x230] sm:$0xff]
    %v2905 = vld [vmem:[#allocation4 + $0x238] sm:$0xff]
    %v2906 = vld [vmem:[#allocation4 + $0x240] sm:$0xff]
    %v2907 = vld [vmem:[#allocation4 + $0x248] sm:$0xff]
    %v2908 = vld [vmem:[#allocation4 + $0x250] sm:$0xff]
    %v2909 = vld [vmem:[#allocation4 + $0x258] sm:$0xff]
    %v2910 = vld [vmem:[#allocation4 + $0x260] sm:$0xff]
    %v2911 = vld [vmem:[#allocation4 + $0x268] sm:$0xff]
    %v2912 = vld [vmem:[#allocation4 + $0x270] sm:$0xff]
    %v2913 = vld [vmem:[#allocation4 + $0x278] sm:$0xff]
    %v2914 = vld [vmem:[#allocation4 + $0x280] sm:$0xff]
    %v2915 = vld [vmem:[#allocation4 + $0x288] sm:$0xff]
    %v2916 = vld [vmem:[#allocation4 + $0x290] sm:$0xff]
    %v2917 = vld [vmem:[#allocation4 + $0x298] sm:$0xff]
    %v2918 = vld [vmem:[#allocation4 + $0x2a0] sm:$0xff]
    %v2919 = vld [vmem:[#allocation4 + $0x2a8] sm:$0xff]
    %v2920 = vld [vmem:[#allocation4 + $0x2b0] sm:$0xff]
    %v2921 = vld [vmem:[#allocation4 + $0x2b8] sm:$0xff]
    %v2922 = vld [vmem:[#allocation4 + $0x2c0] sm:$0xff]
    %v2923 = vld [vmem:[#allocation4 + $0x2c8] sm:$0xff]
    %v2924 = vld [vmem:[#allocation4 + $0x2d0] sm:$0xff]
    %v2925 = vld [vmem:[#allocation4 + $0x2d8] sm:$0xff]
    %v2926 = vld [vmem:[#allocation4 + $0x2e0] sm:$0xff]
    %v2927 = vld [vmem:[#allocation4 + $0x2e8] sm:$0xff]
    %v2928 = vld [vmem:[#allocation4 + $0x2f0] sm:$0xff]
    %v2929 = vld [vmem:[#allocation4 + $0x2f8] sm:$0xff]
    %v2930 = vld [vmem:[#allocation4 + $0x300] sm:$0xff]
    %v2931 = vld [vmem:[#allocation4 + $0x308] sm:$0xff]
    %v2932 = vld [vmem:[#allocation4 + $0x310] sm:$0xff]
    %v2933 = vld [vmem:[#allocation4 + $0x318] sm:$0xff]
    %v2934 = vld [vmem:[#allocation4 + $0x320] sm:$0xff]
    %v2935 = vld [vmem:[#allocation4 + $0x328] sm:$0xff]
    %v2936 = vld [vmem:[#allocation4 + $0x330] sm:$0xff]
    %v2937 = vld [vmem:[#allocation4 + $0x338] sm:$0xff]
    %v2938 = vld [vmem:[#allocation4 + $0x340] sm:$0xff]
    %v2939 = vld [vmem:[#allocation4 + $0x348] sm:$0xff]
    %v2940 = vld [vmem:[#allocation4 + $0x350] sm:$0xff]
    %v2941 = vld [vmem:[#allocation4 + $0x358] sm:$0xff]
    %v2942 = vld [vmem:[#allocation4 + $0x360] sm:$0xff]
    %v2943 = vld [vmem:[#allocation4 + $0x368] sm:$0xff]
    %v2944 = vld [vmem:[#allocation4 + $0x370] sm:$0xff]
    %v2945 = vld [vmem:[#allocation4 + $0x378] sm:$0xff]
    %v2946 = vld [vmem:[#allocation4 + $0x380] sm:$0xff]
    %v2947 = vld [vmem:[#allocation4 + $0x388] sm:$0xff]
    %v2948 = vld [vmem:[#allocation4 + $0x390] sm:$0xff]
    %v2949 = vld [vmem:[#allocation4 + $0x398] sm:$0xff]
    %v2950 = vld [vmem:[#allocation4 + $0x3a0] sm:$0xff]
    %v2951 = vld [vmem:[#allocation4 + $0x3a8] sm:$0xff]
    %v2952 = vld [vmem:[#allocation4 + $0x3b0] sm:$0xff]
    %v2953 = vld [vmem:[#allocation4 + $0x3b8] sm:$0xff]
    %v2954 = vld [vmem:[#allocation4 + $0x3c0] sm:$0xff]
    %v2955 = vld [vmem:[#allocation4 + $0x3c8] sm:$0xff]
    %v2956 = vld [vmem:[#allocation4 + $0x3d0] sm:$0xff]
    %v2957 = vld [vmem:[#allocation4 + $0x3d8] sm:$0xff]
    %v2958 = vld [vmem:[#allocation4 + $0x3e0] sm:$0xff]
    %v2959 = vld [vmem:[#allocation4 + $0x3e8] sm:$0xff]
    %v2960 = vld [vmem:[#allocation4 + $0x3f0] sm:$0xff]
    %v2961 = vld [vmem:[#allocation4 + $0x3f8] sm:$0xff]
    %v2962 = vld [vmem:[#allocation4 + $0x400] sm:$0xff]
    %v2963 = vld [vmem:[#allocation4 + $0x408] sm:$0xff]
    %v2964 = vld [vmem:[#allocation4 + $0x410] sm:$0xff]
    %v2965 = vld [vmem:[#allocation4 + $0x418] sm:$0xff]
    %v2966 = vld [vmem:[#allocation4 + $0x420] sm:$0xff]
    %v2967 = vld [vmem:[#allocation4 + $0x428] sm:$0xff]
    %v2968 = vld [vmem:[#allocation4 + $0x430] sm:$0xff]
    %v2969 = vld [vmem:[#allocation4 + $0x438] sm:$0xff]
    %v2970 = vld [vmem:[#allocation4 + $0x440] sm:$0xff]
    %v2971 = vld [vmem:[#allocation4 + $0x448] sm:$0xff]
    %v2972 = vld [vmem:[#allocation4 + $0x450] sm:$0xff]
    %v2973 = vld [vmem:[#allocation4 + $0x458] sm:$0xff]
    %v2974 = vld [vmem:[#allocation4 + $0x460] sm:$0xff]
    %v2975 = vld [vmem:[#allocation4 + $0x468] sm:$0xff]
    %v2976 = vld [vmem:[#allocation4 + $0x470] sm:$0xff]
    %v2977 = vld [vmem:[#allocation4 + $0x478] sm:$0xff]
    %v2978 = vld [vmem:[#allocation4 + $0x480] sm:$0xff]
    %v2979 = vld [vmem:[#allocation4 + $0x488] sm:$0xff]
    %v2980 = vld [vmem:[#allocation4 + $0x490] sm:$0xff]
    %v2981 = vld [vmem:[#allocation4 + $0x498] sm:$0xff]
    %v2982 = vld [vmem:[#allocation4 + $0x4a0] sm:$0xff]
    %v2983 = vld [vmem:[#allocation4 + $0x4a8] sm:$0xff]
    %v2984 = vld [vmem:[#allocation4 + $0x4b0] sm:$0xff]
    %v2985 = vld [vmem:[#allocation4 + $0x4b8] sm:$0xff]
    %v2986 = vld [vmem:[#allocation4 + $0x4c0] sm:$0xff]
    %v2987 = vld [vmem:[#allocation4 + $0x4c8] sm:$0xff]
    %v2988 = vld [vmem:[#allocation4 + $0x4d0] sm:$0xff]
    %v2989 = vld [vmem:[#allocation4 + $0x4d8] sm:$0xff]
    %v2990 = vld [vmem:[#allocation4 + $0x4e0] sm:$0xff]
    %v2991 = vld [vmem:[#allocation4 + $0x4e8] sm:$0xff]
    %v2992 = vld [vmem:[#allocation4 + $0x4f0] sm:$0xff]
    %v2993 = vld [vmem:[#allocation4 + $0x4f8] sm:$0xff]
    %v2994 = vld [vmem:[#allocation4 + $0x500] sm:$0xff]
    %v2995 = vld [vmem:[#allocation4 + $0x508] sm:$0xff]
    %v2996 = vld [vmem:[#allocation4 + $0x510] sm:$0xff]
    %v2997 = vld [vmem:[#allocation4 + $0x518] sm:$0xff]
    %v2998 = vld [vmem:[#allocation4 + $0x520] sm:$0xff]
    %v2999 = vld [vmem:[#allocation4 + $0x528] sm:$0xff]
    %v3000 = vld [vmem:[#allocation4 + $0x530] sm:$0xff]
    %v3001 = vld [vmem:[#allocation4 + $0x538] sm:$0xff]
    %v3002 = vld [vmem:[#allocation4 + $0x540] sm:$0xff]
    %v3003 = vld [vmem:[#allocation4 + $0x548] sm:$0xff]
    %v3004 = vld [vmem:[#allocation4 + $0x550] sm:$0xff]
    %v3005 = vld [vmem:[#allocation4 + $0x558] sm:$0xff]
    %v3006 = vld [vmem:[#allocation4 + $0x560] sm:$0xff]
    %v3007 = vld [vmem:[#allocation4 + $0x568] sm:$0xff]
    %v3008 = vld [vmem:[#allocation4 + $0x570] sm:$0xff]
    %v3009 = vld [vmem:[#allocation4 + $0x578] sm:$0xff]
    %v3010 = vld [vmem:[#allocation4 + $0x580] sm:$0xff]
    %v3011 = vld [vmem:[#allocation4 + $0x588] sm:$0xff]
    %v3012 = vld [vmem:[#allocation4 + $0x590] sm:$0xff]
    %v3013 = vld [vmem:[#allocation4 + $0x598] sm:$0xff]
    %v3014 = vld [vmem:[#allocation4 + $0x5a0] sm:$0xff]
    %v3015 = vld [vmem:[#allocation4 + $0x5a8] sm:$0xff]
    %v3016 = vld [vmem:[#allocation4 + $0x5b0] sm:$0xff]
    %v3017 = vld [vmem:[#allocation4 + $0x5b8] sm:$0xff]
    %v3018 = vld [vmem:[#allocation4 + $0x5c0] sm:$0xff]
    %v3019 = vld [vmem:[#allocation4 + $0x5c8] sm:$0xff]
    %v3020 = vld [vmem:[#allocation4 + $0x5d0] sm:$0xff]
    %v3021 = vld [vmem:[#allocation4 + $0x5d8] sm:$0xff]
    %v3022 = vld [vmem:[#allocation4 + $0x5e0] sm:$0xff]
    %v3023 = vld [vmem:[#allocation4 + $0x5e8] sm:$0xff]
    %v3024 = vld [vmem:[#allocation4 + $0x5f0] sm:$0xff]
    %v3025 = vld [vmem:[#allocation4 + $0x5f8] sm:$0xff]
    %v3026 = vld [vmem:[#allocation4 + $0x600] sm:$0xff]
    %v3027 = vld [vmem:[#allocation4 + $0x608] sm:$0xff]
    %v3028 = vld [vmem:[#allocation4 + $0x610] sm:$0xff]
    %v3029 = vld [vmem:[#allocation4 + $0x618] sm:$0xff]
    %v3030 = vld [vmem:[#allocation4 + $0x620] sm:$0xff]
    %v3031 = vld [vmem:[#allocation4 + $0x628] sm:$0xff]
    %v3032 = vld [vmem:[#allocation4 + $0x630] sm:$0xff]
    %v3033 = vld [vmem:[#allocation4 + $0x638] sm:$0xff]
    %v3034 = vld [vmem:[#allocation4 + $0x640] sm:$0xff]
    %v3035 = vld [vmem:[#allocation4 + $0x648] sm:$0xff]
    %v3036 = vld [vmem:[#allocation4 + $0x650] sm:$0xff]
    %v3037 = vld [vmem:[#allocation4 + $0x658] sm:$0xff]
    %v3038 = vld [vmem:[#allocation4 + $0x660] sm:$0xff]
    %v3039 = vld [vmem:[#allocation4 + $0x668] sm:$0xff]
    %v3040 = vld [vmem:[#allocation4 + $0x670] sm:$0xff]
    %v3041 = vld [vmem:[#allocation4 + $0x678] sm:$0xff]
    %v3042 = vld [vmem:[#allocation4 + $0x680] sm:$0xff]
    %v3043 = vld [vmem:[#allocation4 + $0x688] sm:$0xff]
    %v3044 = vld [vmem:[#allocation4 + $0x690] sm:$0xff]
    %v3045 = vld [vmem:[#allocation4 + $0x698] sm:$0xff]
    %v3046 = vld [vmem:[#allocation4 + $0x6a0] sm:$0xff]
    %v3047 = vld [vmem:[#allocation4 + $0x6a8] sm:$0xff]
    %v3048 = vld [vmem:[#allocation4 + $0x6b0] sm:$0xff]
    %v3049 = vld [vmem:[#allocation4 + $0x6b8] sm:$0xff]
    %v3050 = vld [vmem:[#allocation4 + $0x6c0] sm:$0xff]
    %v3051 = vld [vmem:[#allocation4 + $0x6c8] sm:$0xff]
    %v3052 = vld [vmem:[#allocation4 + $0x6d0] sm:$0xff]
    %v3053 = vld [vmem:[#allocation4 + $0x6d8] sm:$0xff]
    %v3054 = vld [vmem:[#allocation4 + $0x6e0] sm:$0xff]
    %v3055 = vld [vmem:[#allocation4 + $0x6e8] sm:$0xff]
    %v3056 = vld [vmem:[#allocation4 + $0x6f0] sm:$0xff]
    %v3057 = vld [vmem:[#allocation4 + $0x6f8] sm:$0xff]
    %v3058 = vld [vmem:[#allocation4 + $0x700] sm:$0xff]
    %v3059 = vld [vmem:[#allocation4 + $0x708] sm:$0xff]
    %v3060 = vld [vmem:[#allocation4 + $0x710] sm:$0xff]
    %v3061 = vld [vmem:[#allocation4 + $0x718] sm:$0xff]
    %v3062 = vld [vmem:[#allocation4 + $0x720] sm:$0xff]
    %v3063 = vld [vmem:[#allocation4 + $0x728] sm:$0xff]
    %v3064 = vld [vmem:[#allocation4 + $0x730] sm:$0xff]
    %v3065 = vld [vmem:[#allocation4 + $0x738] sm:$0xff]
    %v3066 = vld [vmem:[#allocation4 + $0x740] sm:$0xff]
    %v3067 = vld [vmem:[#allocation4 + $0x748] sm:$0xff]
    %v3068 = vld [vmem:[#allocation4 + $0x750] sm:$0xff]
    %v3069 = vld [vmem:[#allocation4 + $0x758] sm:$0xff]
    %v3070 = vld [vmem:[#allocation4 + $0x760] sm:$0xff]
    %v3071 = vld [vmem:[#allocation4 + $0x768] sm:$0xff]
    %v3072 = vld [vmem:[#allocation4 + $0x770] sm:$0xff]
    %v3073 = vld [vmem:[#allocation4 + $0x778] sm:$0xff]
    %v3074 = vld [vmem:[#allocation4 + $0x780] sm:$0xff]
    %v3075 = vld [vmem:[#allocation4 + $0x788] sm:$0xff]
    %v3076 = vld [vmem:[#allocation4 + $0x790] sm:$0xff]
    %v3077 = vld [vmem:[#allocation4 + $0x798] sm:$0xff]
    %v3078 = vld [vmem:[#allocation4 + $0x7a0] sm:$0xff]
    %v3079 = vld [vmem:[#allocation4 + $0x7a8] sm:$0xff]
    %v3080 = vld [vmem:[#allocation4 + $0x7b0] sm:$0xff]
    %v3081 = vld [vmem:[#allocation4 + $0x7b8] sm:$0xff]
    %v3082 = vld [vmem:[#allocation4 + $0x7c0] sm:$0xff]
    %v3083 = vld [vmem:[#allocation4 + $0x7c8] sm:$0xff]
    %v3084 = vld [vmem:[#allocation4 + $0x7d0] sm:$0xff]
    %v3085 = vld [vmem:[#allocation4 + $0x7d8] sm:$0xff]
    %v3086 = vld [vmem:[#allocation4 + $0x7e0] sm:$0xff]
    %v3087 = vld [vmem:[#allocation4 + $0x7e8] sm:$0xff]
    %v3088 = vld [vmem:[#allocation4 + $0x7f0] sm:$0xff]
    %v3089 = vld [vmem:[#allocation4 + $0x7f8] sm:$0xff]
    %v3090 = vld [vmem:[#allocation4 + $0x800] sm:$0xff]
    %v3091 = vld [vmem:[#allocation4 + $0x808] sm:$0xff]
    %v3092 = vld [vmem:[#allocation4 + $0x810] sm:$0xff]
    %v3093 = vld [vmem:[#allocation4 + $0x818] sm:$0xff]
    %v3094 = vld [vmem:[#allocation4 + $0x820] sm:$0xff]
    %v3095 = vld [vmem:[#allocation4 + $0x828] sm:$0xff]
    %v3096 = vld [vmem:[#allocation4 + $0x830] sm:$0xff]
    %v3097 = vld [vmem:[#allocation4 + $0x838] sm:$0xff]
    %v3098 = vld [vmem:[#allocation4 + $0x840] sm:$0xff]
    %v3099 = vld [vmem:[#allocation4 + $0x848] sm:$0xff]
    %v3100 = vld [vmem:[#allocation4 + $0x850] sm:$0xff]
    %v3101 = vld [vmem:[#allocation4 + $0x858] sm:$0xff]
    %v3102 = vld [vmem:[#allocation4 + $0x860] sm:$0xff]
    %v3103 = vld [vmem:[#allocation4 + $0x868] sm:$0xff]
    %v3104 = vld [vmem:[#allocation4 + $0x870] sm:$0xff]
    %v3105 = vld [vmem:[#allocation4 + $0x878] sm:$0xff]
    %v3106 = vld [vmem:[#allocation4 + $0x880] sm:$0xff]
    %v3107 = vld [vmem:[#allocation4 + $0x888] sm:$0xff]
    %v3108 = vld [vmem:[#allocation4 + $0x890] sm:$0xff]
    %v3109 = vld [vmem:[#allocation4 + $0x898] sm:$0xff]
    %v3110 = vld [vmem:[#allocation4 + $0x8a0] sm:$0xff]
    %v3111 = vld [vmem:[#allocation4 + $0x8a8] sm:$0xff]
    %v3112 = vld [vmem:[#allocation4 + $0x8b0] sm:$0xff]
    %v3113 = vld [vmem:[#allocation4 + $0x8b8] sm:$0xff]
    %v3114 = vld [vmem:[#allocation4 + $0x8c0] sm:$0xff]
    %v3115 = vld [vmem:[#allocation4 + $0x8c8] sm:$0xff]
    %v3116 = vld [vmem:[#allocation4 + $0x8d0] sm:$0xff]
    %v3117 = vld [vmem:[#allocation4 + $0x8d8] sm:$0xff]
    %v3118 = vld [vmem:[#allocation4 + $0x8e0] sm:$0xff]
    %v3119 = vld [vmem:[#allocation4 + $0x8e8] sm:$0xff]
    %v3120 = vld [vmem:[#allocation4 + $0x8f0] sm:$0xff]
    %v3121 = vld [vmem:[#allocation4 + $0x8f8] sm:$0xff]
    %v3122 = vld [vmem:[#allocation4 + $0x900] sm:$0xff]
    %v3123 = vld [vmem:[#allocation4 + $0x908] sm:$0xff]
    %v3124 = vld [vmem:[#allocation4 + $0x910] sm:$0xff]
    %v3125 = vld [vmem:[#allocation4 + $0x918] sm:$0xff]
    %v3126 = vld [vmem:[#allocation4 + $0x920] sm:$0xff]
    %v3127 = vld [vmem:[#allocation4 + $0x928] sm:$0xff]
    %v3128 = vld [vmem:[#allocation4 + $0x930] sm:$0xff]
    %v3129 = vld [vmem:[#allocation4 + $0x938] sm:$0xff]
    %v3130 = vld [vmem:[#allocation4 + $0x940] sm:$0xff]
    %v3131 = vld [vmem:[#allocation4 + $0x948] sm:$0xff]
    %v3132 = vld [vmem:[#allocation4 + $0x950] sm:$0xff]
    %v3133 = vld [vmem:[#allocation4 + $0x958] sm:$0xff]
    %v3134 = vld [vmem:[#allocation4 + $0x960] sm:$0xff]
    %v3135 = vld [vmem:[#allocation4 + $0x968] sm:$0xff]
    %v3136 = vld [vmem:[#allocation4 + $0x970] sm:$0xff]
    %v3137 = vld [vmem:[#allocation4 + $0x978] sm:$0xff]
    %v3138 = vld [vmem:[#allocation4 + $0x980] sm:$0xff]
    %v3139 = vld [vmem:[#allocation4 + $0x988] sm:$0xff]
    %v3140 = vld [vmem:[#allocation4 + $0x990] sm:$0xff]
    %v3141 = vld [vmem:[#allocation4 + $0x998] sm:$0xff]
    %v3142 = vld [vmem:[#allocation4 + $0x9a0] sm:$0xff]
    %v3143 = vld [vmem:[#allocation4 + $0x9a8] sm:$0xff]
    %v3144 = vld [vmem:[#allocation4 + $0x9b0] sm:$0xff]
    %v3145 = vld [vmem:[#allocation4 + $0x9b8] sm:$0xff]
    %v3146 = vld [vmem:[#allocation4 + $0x9c0] sm:$0xff]
    %v3147 = vld [vmem:[#allocation4 + $0x9c8] sm:$0xff]
    %v3148 = vld [vmem:[#allocation4 + $0x9d0] sm:$0xff]
    %v3149 = vld [vmem:[#allocation4 + $0x9d8] sm:$0xff]
    %v3150 = vld [vmem:[#allocation4 + $0x9e0] sm:$0xff]
    %v3151 = vld [vmem:[#allocation4 + $0x9e8] sm:$0xff]
    %v3152 = vld [vmem:[#allocation4 + $0x9f0] sm:$0xff]
    %v3153 = vld [vmem:[#allocation4 + $0x9f8] sm:$0xff]
    %v3154 = vld [vmem:[#allocation4 + $0xa00] sm:$0xff]
    %v3155 = vld [vmem:[#allocation4 + $0xa08] sm:$0xff]
    %v3156 = vld [vmem:[#allocation4 + $0xa10] sm:$0xff]
    %v3157 = vld [vmem:[#allocation4 + $0xa18] sm:$0xff]
    %v3158 = vld [vmem:[#allocation4 + $0xa20] sm:$0xff]
    %v3159 = vld [vmem:[#allocation4 + $0xa28] sm:$0xff]
    %v3160 = vld [vmem:[#allocation4 + $0xa30] sm:$0xff]
    %v3161 = vld [vmem:[#allocation4 + $0xa38] sm:$0xff]
    %v3162 = vld [vmem:[#allocation4 + $0xa40] sm:$0xff]
    %v3163 = vld [vmem:[#allocation4 + $0xa48] sm:$0xff]
    %v3164 = vld [vmem:[#allocation4 + $0xa50] sm:$0xff]
    %v3165 = vld [vmem:[#allocation4 + $0xa58] sm:$0xff]
    %v3166 = vld [vmem:[#allocation4 + $0xa60] sm:$0xff]
    %v3167 = vld [vmem:[#allocation4 + $0xa68] sm:$0xff]
    %v3168 = vld [vmem:[#allocation4 + $0xa70] sm:$0xff]
    %v3169 = vld [vmem:[#allocation4 + $0xa78] sm:$0xff]
    %v3170 = vld [vmem:[#allocation4 + $0xa80] sm:$0xff]
    %v3171 = vld [vmem:[#allocation4 + $0xa88] sm:$0xff]
    %v3172 = vld [vmem:[#allocation4 + $0xa90] sm:$0xff]
    %v3173 = vld [vmem:[#allocation4 + $0xa98] sm:$0xff]
    %v3174 = vld [vmem:[#allocation4 + $0xaa0] sm:$0xff]
    %v3175 = vld [vmem:[#allocation4 + $0xaa8] sm:$0xff]
    %v3176 = vld [vmem:[#allocation4 + $0xab0] sm:$0xff]
    %v3177 = vld [vmem:[#allocation4 + $0xab8] sm:$0xff]
    %v3178 = vld [vmem:[#allocation4 + $0xac0] sm:$0xff]
    %v3179 = vld [vmem:[#allocation4 + $0xac8] sm:$0xff]
    %v3180 = vld [vmem:[#allocation4 + $0xad0] sm:$0xff]
    %v3181 = vld [vmem:[#allocation4 + $0xad8] sm:$0xff]
    %v3182 = vld [vmem:[#allocation4 + $0xae0] sm:$0xff]
    %v3183 = vld [vmem:[#allocation4 + $0xae8] sm:$0xff]
    %v3184 = vld [vmem:[#allocation4 + $0xaf0] sm:$0xff]
    %v3185 = vld [vmem:[#allocation4 + $0xaf8] sm:$0xff]
    %v3186 = vld [vmem:[#allocation4 + $0xb00] sm:$0xff]
    %v3187 = vld [vmem:[#allocation4 + $0xb08] sm:$0xff]
    %v3188 = vld [vmem:[#allocation4 + $0xb10] sm:$0xff]
    %v3189 = vld [vmem:[#allocation4 + $0xb18] sm:$0xff]
    %v3190 = vld [vmem:[#allocation4 + $0xb20] sm:$0xff]
    %v3191 = vld [vmem:[#allocation4 + $0xb28] sm:$0xff]
    %v3192 = vld [vmem:[#allocation4 + $0xb30] sm:$0xff]
    %v3193 = vld [vmem:[#allocation4 + $0xb38] sm:$0xff]
    %v3194 = vld [vmem:[#allocation4 + $0xb40] sm:$0xff]
    %v3195 = vld [vmem:[#allocation4 + $0xb48] sm:$0xff]
    %v3196 = vld [vmem:[#allocation4 + $0xb50] sm:$0xff]
    %v3197 = vld [vmem:[#allocation4 + $0xb58] sm:$0xff]
    %v3198 = vld [vmem:[#allocation4 + $0xb60] sm:$0xff]
    %v3199 = vld [vmem:[#allocation4 + $0xb68] sm:$0xff]
    %v3200 = vld [vmem:[#allocation4 + $0xb70] sm:$0xff]
    %v3201 = vld [vmem:[#allocation4 + $0xb78] sm:$0xff]
    %v3202 = vld [vmem:[#allocation4 + $0xb80] sm:$0xff]
    %v3203 = vld [vmem:[#allocation4 + $0xb88] sm:$0xff]
    %v3204 = vld [vmem:[#allocation4 + $0xb90] sm:$0xff]
    %v3205 = vld [vmem:[#allocation4 + $0xb98] sm:$0xff]
    %v3206 = vld [vmem:[#allocation4 + $0xba0] sm:$0xff]
    %v3207 = vld [vmem:[#allocation4 + $0xba8] sm:$0xff]
    %v3208 = vld [vmem:[#allocation4 + $0xbb0] sm:$0xff]
    %v3209 = vld [vmem:[#allocation4 + $0xbb8] sm:$0xff]
    %v3210 = vld [vmem:[#allocation4 + $0xbc0] sm:$0xff]
    %v3211 = vld [vmem:[#allocation4 + $0xbc8] sm:$0xff]
    %v3212 = vld [vmem:[#allocation4 + $0xbd0] sm:$0xff]
    %v3213 = vld [vmem:[#allocation4 + $0xbd8] sm:$0xff]
    %v3214 = vld [vmem:[#allocation4 + $0xbe0] sm:$0xff]
    %v3215 = vld [vmem:[#allocation4 + $0xbe8] sm:$0xff]
    %v3216 = vld [vmem:[#allocation4 + $0xbf0] sm:$0xff]
    %v3217 = vld [vmem:[#allocation4 + $0xbf8] sm:$0xff]
    %v3218 = vld [vmem:[#allocation4 + $0xc00] sm:$0xff]
    %v3219 = vld [vmem:[#allocation4 + $0xc08] sm:$0xff]
    %v3220 = vld [vmem:[#allocation4 + $0xc10] sm:$0xff]
    %v3221 = vld [vmem:[#allocation4 + $0xc18] sm:$0xff]
    %v3222 = vld [vmem:[#allocation4 + $0xc20] sm:$0xff]
    %v3223 = vld [vmem:[#allocation4 + $0xc28] sm:$0xff]
    %v3224 = vld [vmem:[#allocation4 + $0xc30] sm:$0xff]
    %v3225 = vld [vmem:[#allocation4 + $0xc38] sm:$0xff]
    %v3226 = vld [vmem:[#allocation4 + $0xc40] sm:$0xff]
    %v3227 = vld [vmem:[#allocation4 + $0xc48] sm:$0xff]
    %v3228 = vld [vmem:[#allocation4 + $0xc50] sm:$0xff]
    %v3229 = vld [vmem:[#allocation4 + $0xc58] sm:$0xff]
    %v3230 = vld [vmem:[#allocation4 + $0xc60] sm:$0xff]
    %v3231 = vld [vmem:[#allocation4 + $0xc68] sm:$0xff]
    %v3232 = vld [vmem:[#allocation4 + $0xc70] sm:$0xff]
    %v3233 = vld [vmem:[#allocation4 + $0xc78] sm:$0xff]
    %v3234 = vld [vmem:[#allocation4 + $0xc80] sm:$0xff]
    %v3235 = vld [vmem:[#allocation4 + $0xc88] sm:$0xff]
    %v3236 = vld [vmem:[#allocation4 + $0xc90] sm:$0xff]
    %v3237 = vld [vmem:[#allocation4 + $0xc98] sm:$0xff]
    %v3238 = vld [vmem:[#allocation4 + $0xca0] sm:$0xff]
    %v3239 = vld [vmem:[#allocation4 + $0xca8] sm:$0xff]
    %v3240 = vld [vmem:[#allocation4 + $0xcb0] sm:$0xff]
    %v3241 = vld [vmem:[#allocation4 + $0xcb8] sm:$0xff]
    %v3242 = vld [vmem:[#allocation4 + $0xcc0] sm:$0xff]
    %v3243 = vld [vmem:[#allocation4 + $0xcc8] sm:$0xff]
    %v3244 = vld [vmem:[#allocation4 + $0xcd0] sm:$0xff]
    %v3245 = vld [vmem:[#allocation4 + $0xcd8] sm:$0xff]
    %v3246 = vld [vmem:[#allocation4 + $0xce0] sm:$0xff]
    %v3247 = vld [vmem:[#allocation4 + $0xce8] sm:$0xff]
    %v3248 = vld [vmem:[#allocation4 + $0xcf0] sm:$0xff]
    %v3249 = vld [vmem:[#allocation4 + $0xcf8] sm:$0xff]
    %v3250 = vld [vmem:[#allocation4 + $0xd00] sm:$0xff]
    %v3251 = vld [vmem:[#allocation4 + $0xd08] sm:$0xff]
    %v3252 = vld [vmem:[#allocation4 + $0xd10] sm:$0xff]
    %v3253 = vld [vmem:[#allocation4 + $0xd18] sm:$0xff]
    %v3254 = vld [vmem:[#allocation4 + $0xd20] sm:$0xff]
    %v3255 = vld [vmem:[#allocation4 + $0xd28] sm:$0xff]
    %v3256 = vld [vmem:[#allocation4 + $0xd30] sm:$0xff]
    %v3257 = vld [vmem:[#allocation4 + $0xd38] sm:$0xff]
    %v3258 = vld [vmem:[#allocation4 + $0xd40] sm:$0xff]
    %v3259 = vld [vmem:[#allocation4 + $0xd48] sm:$0xff]
    %v3260 = vld [vmem:[#allocation4 + $0xd50] sm:$0xff]
    %v3261 = vld [vmem:[#allocation4 + $0xd58] sm:$0xff]
    %v3262 = vld [vmem:[#allocation4 + $0xd60] sm:$0xff]
    %v3263 = vld [vmem:[#allocation4 + $0xd68] sm:$0xff]
    %v3264 = vld [vmem:[#allocation4 + $0xd70] sm:$0xff]
    %v3265 = vld [vmem:[#allocation4 + $0xd78] sm:$0xff]
    %v3266 = vld [vmem:[#allocation4 + $0xd80] sm:$0xff]
    %v3267 = vld [vmem:[#allocation4 + $0xd88] sm:$0xff]
    %v3268 = vld [vmem:[#allocation4 + $0xd90] sm:$0xff]
    %v3269 = vld [vmem:[#allocation4 + $0xd98] sm:$0xff]
    %v3270 = vld [vmem:[#allocation4 + $0xda0] sm:$0xff]
    %v3271 = vld [vmem:[#allocation4 + $0xda8] sm:$0xff]
    %v3272 = vld [vmem:[#allocation4 + $0xdb0] sm:$0xff]
    %v3273 = vld [vmem:[#allocation4 + $0xdb8] sm:$0xff]
    %v3274 = vld [vmem:[#allocation4 + $0xdc0] sm:$0xff]
    %v3275 = vld [vmem:[#allocation4 + $0xdc8] sm:$0xff]
    %v3276 = vld [vmem:[#allocation4 + $0xdd0] sm:$0xff]
    %v3277 = vld [vmem:[#allocation4 + $0xdd8] sm:$0xff]
    %v3278 = vld [vmem:[#allocation4 + $0xde0] sm:$0xff]
    %v3279 = vld [vmem:[#allocation4 + $0xde8] sm:$0xff]
    %v3280 = vld [vmem:[#allocation4 + $0xdf0] sm:$0xff]
    %v3281 = vld [vmem:[#allocation4 + $0xdf8] sm:$0xff]
    %v3282 = vld [vmem:[#allocation4 + $0xe00] sm:$0xff]
    %v3283 = vld [vmem:[#allocation4 + $0xe08] sm:$0xff]
    %v3284 = vld [vmem:[#allocation4 + $0xe10] sm:$0xff]
    %v3285 = vld [vmem:[#allocation4 + $0xe18] sm:$0xff]
    %v3286 = vld [vmem:[#allocation4 + $0xe20] sm:$0xff]
    %v3287 = vld [vmem:[#allocation4 + $0xe28] sm:$0xff]
    %v3288 = vld [vmem:[#allocation4 + $0xe30] sm:$0xff]
    %v3289 = vld [vmem:[#allocation4 + $0xe38] sm:$0xff]
    %v3290 = vld [vmem:[#allocation4 + $0xe40] sm:$0xff]
    %v3291 = vld [vmem:[#allocation4 + $0xe48] sm:$0xff]
    %v3292 = vld [vmem:[#allocation4 + $0xe50] sm:$0xff]
    %v3293 = vld [vmem:[#allocation4 + $0xe58] sm:$0xff]
    %v3294 = vld [vmem:[#allocation4 + $0xe60] sm:$0xff]
    %v3295 = vld [vmem:[#allocation4 + $0xe68] sm:$0xff]
    %v3296 = vld [vmem:[#allocation4 + $0xe70] sm:$0xff]
    %v3297 = vld [vmem:[#allocation4 + $0xe78] sm:$0xff]
    %v3298 = vld [vmem:[#allocation4 + $0xe80] sm:$0xff]
    %v3299 = vld [vmem:[#allocation4 + $0xe88] sm:$0xff]
    %v3300 = vld [vmem:[#allocation4 + $0xe90] sm:$0xff]
    %v3301 = vld [vmem:[#allocation4 + $0xe98] sm:$0xff]
    %v3302 = vld [vmem:[#allocation4 + $0xea0] sm:$0xff]
    %v3303 = vld [vmem:[#allocation4 + $0xea8] sm:$0xff]
    %v3304 = vld [vmem:[#allocation4 + $0xeb0] sm:$0xff]
    %v3305 = vld [vmem:[#allocation4 + $0xeb8] sm:$0xff]
    %v3306 = vld [vmem:[#allocation4 + $0xec0] sm:$0xff]
    %v3307 = vld [vmem:[#allocation4 + $0xec8] sm:$0xff]
    %v3308 = vld [vmem:[#allocation4 + $0xed0] sm:$0xff]
    %v3309 = vld [vmem:[#allocation4 + $0xed8] sm:$0xff]
    %v3310 = vld [vmem:[#allocation4 + $0xee0] sm:$0xff]
    %v3311 = vld [vmem:[#allocation4 + $0xee8] sm:$0xff]
    %v3312 = vld [vmem:[#allocation4 + $0xef0] sm:$0xff]
    %v3313 = vld [vmem:[#allocation4 + $0xef8] sm:$0xff]
    %v3314 = vld [vmem:[#allocation4 + $0xf00] sm:$0xff]
    %v3315 = vld [vmem:[#allocation4 + $0xf08] sm:$0xff]
    %v3316 = vld [vmem:[#allocation4 + $0xf10] sm:$0xff]
    %v3317 = vld [vmem:[#allocation4 + $0xf18] sm:$0xff]
    %v3318 = vld [vmem:[#allocation4 + $0xf20] sm:$0xff]
    %v3319 = vld [vmem:[#allocation4 + $0xf28] sm:$0xff]
    %v3320 = vld [vmem:[#allocation4 + $0xf30] sm:$0xff]
    %v3321 = vld [vmem:[#allocation4 + $0xf38] sm:$0xff]
    %v3322 = vld [vmem:[#allocation4 + $0xf40] sm:$0xff]
    %v3323 = vld [vmem:[#allocation4 + $0xf48] sm:$0xff]
    %v3324 = vld [vmem:[#allocation4 + $0xf50] sm:$0xff]
    %v3325 = vld [vmem:[#allocation4 + $0xf58] sm:$0xff]
    %v3326 = vld [vmem:[#allocation4 + $0xf60] sm:$0xff]
    %v3327 = vld [vmem:[#allocation4 + $0xf68] sm:$0xff]
    %v3328 = vld [vmem:[#allocation4 + $0xf70] sm:$0xff]
    %v3329 = vld [vmem:[#allocation4 + $0xf78] sm:$0xff]
    %v3330 = vld [vmem:[#allocation4 + $0xf80] sm:$0xff]
    %v3331 = vld [vmem:[#allocation4 + $0xf88] sm:$0xff]
    %v3332 = vld [vmem:[#allocation4 + $0xf90] sm:$0xff]
    %v3333 = vld [vmem:[#allocation4 + $0xf98] sm:$0xff]
    %v3334 = vld [vmem:[#allocation4 + $0xfa0] sm:$0xff]
    %v3335 = vld [vmem:[#allocation4 + $0xfa8] sm:$0xff]
    %v3336 = vld [vmem:[#allocation4 + $0xfb0] sm:$0xff]
    %v3337 = vld [vmem:[#allocation4 + $0xfb8] sm:$0xff]
    %v3338 = vld [vmem:[#allocation4 + $0xfc0] sm:$0xff]
    %v3339 = vld [vmem:[#allocation4 + $0xfc8] sm:$0xff]
    %v3340 = vld [vmem:[#allocation4 + $0xfd0] sm:$0xff]
    %v3341 = vld [vmem:[#allocation4 + $0xfd8] sm:$0xff]
    %v3342 = vld [vmem:[#allocation4 + $0xfe0] sm:$0xff]
    %v3343 = vld [vmem:[#allocation4 + $0xfe8] sm:$0xff]
    %v3344 = vld [vmem:[#allocation4 + $0xff0] sm:$0xff]
    %v3345 = vld [vmem:[#allocation4 + $0xff8] sm:$0xff]
    %v3346 = vld [vmem:[#allocation4 + $0x1000] sm:$0xff]
    %v3347 = vld [vmem:[#allocation4 + $0x1008] sm:$0xff]
    %v3348 = vld [vmem:[#allocation4 + $0x1010] sm:$0xff]
    %v3349 = vld [vmem:[#allocation4 + $0x1018] sm:$0xff]
    %v3350 = vld [vmem:[#allocation4 + $0x1020] sm:$0xff]
    %v3351 = vld [vmem:[#allocation4 + $0x1028] sm:$0xff]
    %v3352 = vld [vmem:[#allocation4 + $0x1030] sm:$0xff]
    %v3353 = vld [vmem:[#allocation4 + $0x1038] sm:$0xff]
    %v3354 = vld [vmem:[#allocation4 + $0x1040] sm:$0xff]
    %v3355 = vld [vmem:[#allocation4 + $0x1048] sm:$0xff]
    %v3356 = vld [vmem:[#allocation4 + $0x1050] sm:$0xff]
    %v3357 = vld [vmem:[#allocation4 + $0x1058] sm:$0xff]
    %v3358 = vld [vmem:[#allocation4 + $0x1060] sm:$0xff]
    %v3359 = vld [vmem:[#allocation4 + $0x1068] sm:$0xff]
    %v3360 = vld [vmem:[#allocation4 + $0x1070] sm:$0xff]
    %v3361 = vld [vmem:[#allocation4 + $0x1078] sm:$0xff]
    %v3362 = vld [vmem:[#allocation4 + $0x1080] sm:$0xff]
    %v3363 = vld [vmem:[#allocation4 + $0x1088] sm:$0xff]
    %v3364 = vld [vmem:[#allocation4 + $0x1090] sm:$0xff]
    %v3365 = vld [vmem:[#allocation4 + $0x1098] sm:$0xff]
    %v3366 = vld [vmem:[#allocation4 + $0x10a0] sm:$0xff]
    %v3367 = vld [vmem:[#allocation4 + $0x10a8] sm:$0xff]
    %v3368 = vld [vmem:[#allocation4 + $0x10b0] sm:$0xff]
    %v3369 = vld [vmem:[#allocation4 + $0x10b8] sm:$0xff]
    %v3370 = vld [vmem:[#allocation4 + $0x10c0] sm:$0xff]
    %v3371 = vld [vmem:[#allocation4 + $0x10c8] sm:$0xff]
    %v3372 = vld [vmem:[#allocation4 + $0x10d0] sm:$0xff]
    %v3373 = vld [vmem:[#allocation4 + $0x10d8] sm:$0xff]
    %v3374 = vld [vmem:[#allocation4 + $0x10e0] sm:$0xff]
    %v3375 = vld [vmem:[#allocation4 + $0x10e8] sm:$0xff]
    %v3376 = vld [vmem:[#allocation4 + $0x10f0] sm:$0xff]
    %v3377 = vld [vmem:[#allocation4 + $0x10f8] sm:$0xff]
    %v3378 = vld [vmem:[#allocation4 + $0x1100] sm:$0xff]
    %v3379 = vld [vmem:[#allocation4 + $0x1108] sm:$0xff]
    %v3380 = vld [vmem:[#allocation4 + $0x1110] sm:$0xff]
    %v3381 = vld [vmem:[#allocation4 + $0x1118] sm:$0xff]
    %v3382 = vld [vmem:[#allocation4 + $0x1120] sm:$0xff]
    %v3383 = vld [vmem:[#allocation4 + $0x1128] sm:$0xff]
    %v3384 = vld [vmem:[#allocation4 + $0x1130] sm:$0xff]
    %v3385 = vld [vmem:[#allocation4 + $0x1138] sm:$0xff]
    %v3386 = vld [vmem:[#allocation4 + $0x1140] sm:$0xff]
    %v3387 = vld [vmem:[#allocation4 + $0x1148] sm:$0xff]
    %v3388 = vld [vmem:[#allocation4 + $0x1150] sm:$0xff]
    %v3389 = vld [vmem:[#allocation4 + $0x1158] sm:$0xff]
    %v3390 = vld [vmem:[#allocation4 + $0x1160] sm:$0xff]
    %v3391 = vld [vmem:[#allocation4 + $0x1168] sm:$0xff]
    %v3392 = vld [vmem:[#allocation4 + $0x1170] sm:$0xff]
    %v3393 = vld [vmem:[#allocation4 + $0x1178] sm:$0xff]
    %v3394 = vld [vmem:[#allocation4 + $0x1180] sm:$0xff]
    %v3395 = vld [vmem:[#allocation4 + $0x1188] sm:$0xff]
    %v3396 = vld [vmem:[#allocation4 + $0x1190] sm:$0xff]
    %v3397 = vld [vmem:[#allocation4 + $0x1198] sm:$0xff]
    %v3398 = vld [vmem:[#allocation4 + $0x11a0] sm:$0xff]
    %v3399 = vld [vmem:[#allocation4 + $0x11a8] sm:$0xff]
    %v3400 = vld [vmem:[#allocation4 + $0x11b0] sm:$0xff]
    %v3401 = vld [vmem:[#allocation4 + $0x11b8] sm:$0xff]
    %v3402 = vld [vmem:[#allocation4 + $0x11c0] sm:$0xff]
    %v3403 = vld [vmem:[#allocation4 + $0x11c8] sm:$0xff]
    %v3404 = vld [vmem:[#allocation4 + $0x11d0] sm:$0xff]
    %v3405 = vld [vmem:[#allocation4 + $0x11d8] sm:$0xff]
    %v3406 = vld [vmem:[#allocation4 + $0x11e0] sm:$0xff]
    %v3407 = vld [vmem:[#allocation4 + $0x11e8] sm:$0xff]
    %v3408 = vld [vmem:[#allocation4 + $0x11f0] sm:$0xff]
    %v3409 = vld [vmem:[#allocation4 + $0x11f8] sm:$0xff]
    %v3410 = vld [vmem:[#allocation4 + $0x1200] sm:$0xff]
    %v3411 = vld [vmem:[#allocation4 + $0x1208] sm:$0xff]
    %v3412 = vld [vmem:[#allocation4 + $0x1210] sm:$0xff]
    %v3413 = vld [vmem:[#allocation4 + $0x1218] sm:$0xff]
    %v3414 = vld [vmem:[#allocation4 + $0x1220] sm:$0xff]
    %v3415 = vld [vmem:[#allocation4 + $0x1228] sm:$0xff]
    %v3416 = vld [vmem:[#allocation4 + $0x1230] sm:$0xff]
    %v3417 = vld [vmem:[#allocation4 + $0x1238] sm:$0xff]
    %v3418 = vld [vmem:[#allocation4 + $0x1240] sm:$0xff]
    %v3419 = vld [vmem:[#allocation4 + $0x1248] sm:$0xff]
    %v3420 = vld [vmem:[#allocation4 + $0x1250] sm:$0xff]
    %v3421 = vld [vmem:[#allocation4 + $0x1258] sm:$0xff]
    %v3422 = vld [vmem:[#allocation4 + $0x1260] sm:$0xff]
    %v3423 = vld [vmem:[#allocation4 + $0x1268] sm:$0xff]
    %v3424 = vld [vmem:[#allocation4 + $0x1270] sm:$0xff]
    %v3425 = vld [vmem:[#allocation4 + $0x1278] sm:$0xff]
    %v3426 = vld [vmem:[#allocation4 + $0x1280] sm:$0xff]
    %v3427 = vld [vmem:[#allocation4 + $0x1288] sm:$0xff]
    %v3428 = vld [vmem:[#allocation4 + $0x1290] sm:$0xff]
    %v3429 = vld [vmem:[#allocation4 + $0x1298] sm:$0xff]
    %v3430 = vld [vmem:[#allocation4 + $0x12a0] sm:$0xff]
    %v3431 = vld [vmem:[#allocation4 + $0x12a8] sm:$0xff]
    %v3432 = vld [vmem:[#allocation4 + $0x12b0] sm:$0xff]
    %v3433 = vld [vmem:[#allocation4 + $0x12b8] sm:$0xff]
    %v3434 = vld [vmem:[#allocation4 + $0x12c0] sm:$0xff]
    %v3435 = vld [vmem:[#allocation4 + $0x12c8] sm:$0xff]
    %v3436 = vld [vmem:[#allocation4 + $0x12d0] sm:$0xff]
    %v3437 = vld [vmem:[#allocation4 + $0x12d8] sm:$0xff]
    %v3438 = vld [vmem:[#allocation4 + $0x12e0] sm:$0xff]
    %v3439 = vld [vmem:[#allocation4 + $0x12e8] sm:$0xff]
    %v3440 = vld [vmem:[#allocation4 + $0x12f0] sm:$0xff]
    %v3441 = vld [vmem:[#allocation4 + $0x12f8] sm:$0xff]
    %v3442 = vld [vmem:[#allocation4 + $0x1300] sm:$0xff]
    %v3443 = vld [vmem:[#allocation4 + $0x1308] sm:$0xff]
    %v3444 = vld [vmem:[#allocation4 + $0x1310] sm:$0xff]
    %v3445 = vld [vmem:[#allocation4 + $0x1318] sm:$0xff]
    %v3446 = vld [vmem:[#allocation4 + $0x1320] sm:$0xff]
    %v3447 = vld [vmem:[#allocation4 + $0x1328] sm:$0xff]
    %v3448 = vld [vmem:[#allocation4 + $0x1330] sm:$0xff]
    %v3449 = vld [vmem:[#allocation4 + $0x1338] sm:$0xff]
    %v3450 = vld [vmem:[#allocation4 + $0x1340] sm:$0xff]
    %v3451 = vld [vmem:[#allocation4 + $0x1348] sm:$0xff]
    %v3452 = vld [vmem:[#allocation4 + $0x1350] sm:$0xff]
    %v3453 = vld [vmem:[#allocation4 + $0x1358] sm:$0xff]
    %v3454 = vld [vmem:[#allocation4 + $0x1360] sm:$0xff]
    %v3455 = vld [vmem:[#allocation4 + $0x1368] sm:$0xff]
    %v3456 = vld [vmem:[#allocation4 + $0x1370] sm:$0xff]
    %v3457 = vld [vmem:[#allocation4 + $0x1378] sm:$0xff]
    %v3458 = vld [vmem:[#allocation4 + $0x1380] sm:$0xff]
    %v3459 = vld [vmem:[#allocation4 + $0x1388] sm:$0xff]
    %v3460 = vld [vmem:[#allocation4 + $0x1390] sm:$0xff]
    %v3461 = vld [vmem:[#allocation4 + $0x1398] sm:$0xff]
    %v3462 = vld [vmem:[#allocation4 + $0x13a0] sm:$0xff]
    %v3463 = vld [vmem:[#allocation4 + $0x13a8] sm:$0xff]
    %v3464 = vld [vmem:[#allocation4 + $0x13b0] sm:$0xff]
    %v3465 = vld [vmem:[#allocation4 + $0x13b8] sm:$0xff]
    %v3466 = vld [vmem:[#allocation4 + $0x13c0] sm:$0xff]
    %v3467 = vld [vmem:[#allocation4 + $0x13c8] sm:$0xff]
    %v3468 = vld [vmem:[#allocation4 + $0x13d0] sm:$0xff]
    %v3469 = vld [vmem:[#allocation4 + $0x13d8] sm:$0xff]
    %v3470 = vld [vmem:[#allocation4 + $0x13e0] sm:$0xff]
    %v3471 = vld [vmem:[#allocation4 + $0x13e8] sm:$0xff]
    %v3472 = vld [vmem:[#allocation4 + $0x13f0] sm:$0xff]
    %v3473 = vld [vmem:[#allocation4 + $0x13f8] sm:$0xff]
    %v3474 = vld [vmem:[#allocation4 + $0x1400] sm:$0xff]
    %v3475 = vld [vmem:[#allocation4 + $0x1408] sm:$0xff]
    %v3476 = vld [vmem:[#allocation4 + $0x1410] sm:$0xff]
    %v3477 = vld [vmem:[#allocation4 + $0x1418] sm:$0xff]
    %v3478 = vld [vmem:[#allocation4 + $0x1420] sm:$0xff]
    %v3479 = vld [vmem:[#allocation4 + $0x1428] sm:$0xff]
    %v3480 = vld [vmem:[#allocation4 + $0x1430] sm:$0xff]
    %v3481 = vld [vmem:[#allocation4 + $0x1438] sm:$0xff]
    %v3482 = vld [vmem:[#allocation4 + $0x1440] sm:$0xff]
    %v3483 = vld [vmem:[#allocation4 + $0x1448] sm:$0xff]
    %v3484 = vld [vmem:[#allocation4 + $0x1450] sm:$0xff]
    %v3485 = vld [vmem:[#allocation4 + $0x1458] sm:$0xff]
    %v3486 = vld [vmem:[#allocation4 + $0x1460] sm:$0xff]
    %v3487 = vld [vmem:[#allocation4 + $0x1468] sm:$0xff]
    %v3488 = vld [vmem:[#allocation4 + $0x1470] sm:$0xff]
    %v3489 = vld [vmem:[#allocation4 + $0x1478] sm:$0xff]
    %v3490 = vld [vmem:[#allocation4 + $0x1480] sm:$0xff]
    %v3491 = vld [vmem:[#allocation4 + $0x1488] sm:$0xff]
    %v3492 = vld [vmem:[#allocation4 + $0x1490] sm:$0xff]
    %v3493 = vld [vmem:[#allocation4 + $0x1498] sm:$0xff]
    %v3494 = vld [vmem:[#allocation4 + $0x14a0] sm:$0xff]
    %v3495 = vld [vmem:[#allocation4 + $0x14a8] sm:$0xff]
    %v3496 = vld [vmem:[#allocation4 + $0x14b0] sm:$0xff]
    %v3497 = vld [vmem:[#allocation4 + $0x14b8] sm:$0xff]
    %v3498 = vld [vmem:[#allocation4 + $0x14c0] sm:$0xff]
    %v3499 = vld [vmem:[#allocation4 + $0x14c8] sm:$0xff]
    %v3500 = vld [vmem:[#allocation4 + $0x14d0] sm:$0xff]
    %v3501 = vld [vmem:[#allocation4 + $0x14d8] sm:$0xff]
    %v3502 = vld [vmem:[#allocation4 + $0x14e0] sm:$0xff]
    %v3503 = vld [vmem:[#allocation4 + $0x14e8] sm:$0xff]
    %v3504 = vld [vmem:[#allocation4 + $0x14f0] sm:$0xff]
    %v3505 = vld [vmem:[#allocation4 + $0x14f8] sm:$0xff]
    %v3506 = vld [vmem:[#allocation4 + $0x1500] sm:$0xff]
    %v3507 = vld [vmem:[#allocation4 + $0x1508] sm:$0xff]
    %v3508 = vld [vmem:[#allocation4 + $0x1510] sm:$0xff]
    %v3509 = vld [vmem:[#allocation4 + $0x1518] sm:$0xff]
    %v3510 = vld [vmem:[#allocation4 + $0x1520] sm:$0xff]
    %v3511 = vld [vmem:[#allocation4 + $0x1528] sm:$0xff]
    %v3512 = vld [vmem:[#allocation4 + $0x1530] sm:$0xff]
    %v3513 = vld [vmem:[#allocation4 + $0x1538] sm:$0xff]
    %v3514 = vld [vmem:[#allocation4 + $0x1540] sm:$0xff]
    %v3515 = vld [vmem:[#allocation4 + $0x1548] sm:$0xff]
    %v3516 = vld [vmem:[#allocation4 + $0x1550] sm:$0xff]
    %v3517 = vld [vmem:[#allocation4 + $0x1558] sm:$0xff]
    %v3518 = vld [vmem:[#allocation4 + $0x1560] sm:$0xff]
    %v3519 = vld [vmem:[#allocation4 + $0x1568] sm:$0xff]
    %v3520 = vld [vmem:[#allocation4 + $0x1570] sm:$0xff]
    %v3521 = vld [vmem:[#allocation4 + $0x1578] sm:$0xff]
    %v3522 = vld [vmem:[#allocation4 + $0x1580] sm:$0xff]
    %v3523 = vld [vmem:[#allocation4 + $0x1588] sm:$0xff]
    %v3524 = vld [vmem:[#allocation4 + $0x1590] sm:$0xff]
    %v3525 = vld [vmem:[#allocation4 + $0x1598] sm:$0xff]
    %v3526 = vld [vmem:[#allocation4 + $0x15a0] sm:$0xff]
    %v3527 = vld [vmem:[#allocation4 + $0x15a8] sm:$0xff]
    %v3528 = vld [vmem:[#allocation4 + $0x15b0] sm:$0xff]
    %v3529 = vld [vmem:[#allocation4 + $0x15b8] sm:$0xff]
    %v3530 = vld [vmem:[#allocation4 + $0x15c0] sm:$0xff]
    %v3531 = vld [vmem:[#allocation4 + $0x15c8] sm:$0xff]
    %v3532 = vld [vmem:[#allocation4 + $0x15d0] sm:$0xff]
    %v3533 = vld [vmem:[#allocation4 + $0x15d8] sm:$0xff]
    %v3534 = vld [vmem:[#allocation4 + $0x15e0] sm:$0xff]
    %v3535 = vld [vmem:[#allocation4 + $0x15e8] sm:$0xff]
    %v3536 = vld [vmem:[#allocation4 + $0x15f0] sm:$0xff]
    %v3537 = vld [vmem:[#allocation4 + $0x15f8] sm:$0xff]
    %v3538 = vld [vmem:[#allocation4 + $0x1600] sm:$0xff]
    %v3539 = vld [vmem:[#allocation4 + $0x1608] sm:$0xff]
    %v3540 = vld [vmem:[#allocation4 + $0x1610] sm:$0xff]
    %v3541 = vld [vmem:[#allocation4 + $0x1618] sm:$0xff]
    %v3542 = vld [vmem:[#allocation4 + $0x1620] sm:$0xff]
    %v3543 = vld [vmem:[#allocation4 + $0x1628] sm:$0xff]
    %v3544 = vld [vmem:[#allocation4 + $0x1630] sm:$0xff]
    %v3545 = vld [vmem:[#allocation4 + $0x1638] sm:$0xff]
    %v3546 = vld [vmem:[#allocation4 + $0x1640] sm:$0xff]
    %v3547 = vld [vmem:[#allocation4 + $0x1648] sm:$0xff]
    %v3548 = vld [vmem:[#allocation4 + $0x1650] sm:$0xff]
    %v3549 = vld [vmem:[#allocation4 + $0x1658] sm:$0xff]
    %v3550 = vld [vmem:[#allocation4 + $0x1660] sm:$0xff]
    %v3551 = vld [vmem:[#allocation4 + $0x1668] sm:$0xff]
    %v3552 = vld [vmem:[#allocation4 + $0x1670] sm:$0xff]
    %v3553 = vld [vmem:[#allocation4 + $0x1678] sm:$0xff]
    %v3554 = vld [vmem:[#allocation4 + $0x1680] sm:$0xff]
    %v3555 = vld [vmem:[#allocation4 + $0x1688] sm:$0xff]
    %v3556 = vld [vmem:[#allocation4 + $0x1690] sm:$0xff]
    %v3557 = vld [vmem:[#allocation4 + $0x1698] sm:$0xff]
    %v3558 = vld [vmem:[#allocation4 + $0x16a0] sm:$0xff]
    %v3559 = vld [vmem:[#allocation4 + $0x16a8] sm:$0xff]
    %v3560 = vld [vmem:[#allocation4 + $0x16b0] sm:$0xff]
    %v3561 = vld [vmem:[#allocation4 + $0x16b8] sm:$0xff]
    %v3562 = vld [vmem:[#allocation4 + $0x16c0] sm:$0xff]
    %v3563 = vld [vmem:[#allocation4 + $0x16c8] sm:$0xff]
    %v3564 = vld [vmem:[#allocation4 + $0x16d0] sm:$0xff]
    %v3565 = vld [vmem:[#allocation4 + $0x16d8] sm:$0xff]
    %v3566 = vld [vmem:[#allocation4 + $0x16e0] sm:$0xff]
    %v3567 = vld [vmem:[#allocation4 + $0x16e8] sm:$0xff]
    %v3568 = vld [vmem:[#allocation4 + $0x16f0] sm:$0xff]
    %v3569 = vld [vmem:[#allocation4 + $0x16f8] sm:$0xff]
    %v3570 = vld [vmem:[#allocation4 + $0x1700] sm:$0xff]
    %v3571 = vld [vmem:[#allocation4 + $0x1708] sm:$0xff]
    %v3572 = vld [vmem:[#allocation4 + $0x1710] sm:$0xff]
    %v3573 = vld [vmem:[#allocation4 + $0x1718] sm:$0xff]
    %v3574 = vld [vmem:[#allocation4 + $0x1720] sm:$0xff]
    %v3575 = vld [vmem:[#allocation4 + $0x1728] sm:$0xff]
    %v3576 = vld [vmem:[#allocation4 + $0x1730] sm:$0xff]
    %v3577 = vld [vmem:[#allocation4 + $0x1738] sm:$0xff]
    %v3578 = vld [vmem:[#allocation4 + $0x1740] sm:$0xff]
    %v3579 = vld [vmem:[#allocation4 + $0x1748] sm:$0xff]
    %v3580 = vld [vmem:[#allocation4 + $0x1750] sm:$0xff]
    %v3581 = vld [vmem:[#allocation4 + $0x1758] sm:$0xff]
    %v3582 = vld [vmem:[#allocation4 + $0x1760] sm:$0xff]
    %v3583 = vld [vmem:[#allocation4 + $0x1768] sm:$0xff]
    %v3584 = vld [vmem:[#allocation4 + $0x1770] sm:$0xff]
    %v3585 = vld [vmem:[#allocation4 + $0x1778] sm:$0xff]
    %v3586 = vld [vmem:[#allocation4 + $0x1780] sm:$0xff]
    %v3587 = vld [vmem:[#allocation4 + $0x1788] sm:$0xff]
    %v3588 = vld [vmem:[#allocation4 + $0x1790] sm:$0xff]
    %v3589 = vld [vmem:[#allocation4 + $0x1798] sm:$0xff]
    %v3590 = vld [vmem:[#allocation4 + $0x17a0] sm:$0xff]
    %v3591 = vld [vmem:[#allocation4 + $0x17a8] sm:$0xff]
    %v3592 = vld [vmem:[#allocation4 + $0x17b0] sm:$0xff]
    %v3593 = vld [vmem:[#allocation4 + $0x17b8] sm:$0xff]
    %v3594 = vld [vmem:[#allocation4 + $0x17c0] sm:$0xff]
    %v3595 = vld [vmem:[#allocation4 + $0x17c8] sm:$0xff]
    %v3596 = vld [vmem:[#allocation4 + $0x17d0] sm:$0xff]
    %v3597 = vld [vmem:[#allocation4 + $0x17d8] sm:$0xff]
    %v3598 = vld [vmem:[#allocation4 + $0x17e0] sm:$0xff]
    %v3599 = vld [vmem:[#allocation4 + $0x17e8] sm:$0xff]
    %v3600 = vld [vmem:[#allocation4 + $0x17f0] sm:$0xff]
    %v3601 = vld [vmem:[#allocation4 + $0x17f8] sm:$0xff]
    %v3602 = vld [vmem:[#allocation4 + $0x1800] sm:$0xff]
    %v3603 = vld [vmem:[#allocation4 + $0x1808] sm:$0xff]
    %v3604 = vld [vmem:[#allocation4 + $0x1810] sm:$0xff]
    %v3605 = vld [vmem:[#allocation4 + $0x1818] sm:$0xff]
    %v3606 = vld [vmem:[#allocation4 + $0x1820] sm:$0xff]
    %v3607 = vld [vmem:[#allocation4 + $0x1828] sm:$0xff]
    %v3608 = vld [vmem:[#allocation4 + $0x1830] sm:$0xff]
    %v3609 = vld [vmem:[#allocation4 + $0x1838] sm:$0xff]
    %v3610 = vld [vmem:[#allocation4 + $0x1840] sm:$0xff]
    %v3611 = vld [vmem:[#allocation4 + $0x1848] sm:$0xff]
    %v3612 = vld [vmem:[#allocation4 + $0x1850] sm:$0xff]
    %v3613 = vld [vmem:[#allocation4 + $0x1858] sm:$0xff]
    %v3614 = vld [vmem:[#allocation4 + $0x1860] sm:$0xff]
    %v3615 = vld [vmem:[#allocation4 + $0x1868] sm:$0xff]
    %v3616 = vld [vmem:[#allocation4 + $0x1870] sm:$0xff]
    %v3617 = vld [vmem:[#allocation4 + $0x1878] sm:$0xff]
    %v3618 = vld [vmem:[#allocation4 + $0x1880] sm:$0xff]
    %v3619 = vld [vmem:[#allocation4 + $0x1888] sm:$0xff]
    %v3620 = vld [vmem:[#allocation4 + $0x1890] sm:$0xff]
    %v3621 = vld [vmem:[#allocation4 + $0x1898] sm:$0xff]
    %v3622 = vld [vmem:[#allocation4 + $0x18a0] sm:$0xff]
    %v3623 = vld [vmem:[#allocation4 + $0x18a8] sm:$0xff]
    %v3624 = vld [vmem:[#allocation4 + $0x18b0] sm:$0xff]
    %v3625 = vld [vmem:[#allocation4 + $0x18b8] sm:$0xff]
    %v3626 = vld [vmem:[#allocation4 + $0x18c0] sm:$0xff]
    %v3627 = vld [vmem:[#allocation4 + $0x18c8] sm:$0xff]
    %v3628 = vld [vmem:[#allocation4 + $0x18d0] sm:$0xff]
    %v3629 = vld [vmem:[#allocation4 + $0x18d8] sm:$0xff]
    %v3630 = vld [vmem:[#allocation4 + $0x18e0] sm:$0xff]
    %v3631 = vld [vmem:[#allocation4 + $0x18e8] sm:$0xff]
    %v3632 = vld [vmem:[#allocation4 + $0x18f0] sm:$0xff]
    %v3633 = vld [vmem:[#allocation4 + $0x18f8] sm:$0xff]
    %v3634 = vld [vmem:[#allocation4 + $0x1900] sm:$0xff]
    %v3635 = vld [vmem:[#allocation4 + $0x1908] sm:$0xff]
    %v3636 = vld [vmem:[#allocation4 + $0x1910] sm:$0xff]
    %v3637 = vld [vmem:[#allocation4 + $0x1918] sm:$0xff]
    %v3638 = vld [vmem:[#allocation4 + $0x1920] sm:$0xff]
    %v3639 = vld [vmem:[#allocation4 + $0x1928] sm:$0xff]
    %v3640 = vld [vmem:[#allocation4 + $0x1930] sm:$0xff]
    %v3641 = vld [vmem:[#allocation4 + $0x1938] sm:$0xff]
    %v3642 = vld [vmem:[#allocation4 + $0x1940] sm:$0xff]
    %v3643 = vld [vmem:[#allocation4 + $0x1948] sm:$0xff]
    %v3644 = vld [vmem:[#allocation4 + $0x1950] sm:$0xff]
    %v3645 = vld [vmem:[#allocation4 + $0x1958] sm:$0xff]
    %v3646 = vld [vmem:[#allocation4 + $0x1960] sm:$0xff]
    %v3647 = vld [vmem:[#allocation4 + $0x1968] sm:$0xff]
    %v3648 = vld [vmem:[#allocation4 + $0x1970] sm:$0xff]
    %v3649 = vld [vmem:[#allocation4 + $0x1978] sm:$0xff]
    %v3650 = vld [vmem:[#allocation4 + $0x1980] sm:$0xff]
    %v3651 = vld [vmem:[#allocation4 + $0x1988] sm:$0xff]
    %v3652 = vld [vmem:[#allocation4 + $0x1990] sm:$0xff]
    %v3653 = vld [vmem:[#allocation4 + $0x1998] sm:$0xff]
    %v3654 = vld [vmem:[#allocation4 + $0x19a0] sm:$0xff]
    %v3655 = vld [vmem:[#allocation4 + $0x19a8] sm:$0xff]
    %v3656 = vld [vmem:[#allocation4 + $0x19b0] sm:$0xff]
    %v3657 = vld [vmem:[#allocation4 + $0x19b8] sm:$0xff]
    %v3658 = vld [vmem:[#allocation4 + $0x19c0] sm:$0xff]
    %v3659 = vld [vmem:[#allocation4 + $0x19c8] sm:$0xff]
    %v3660 = vld [vmem:[#allocation4 + $0x19d0] sm:$0xff]
    %v3661 = vld [vmem:[#allocation4 + $0x19d8] sm:$0xff]
    %v3662 = vld [vmem:[#allocation4 + $0x19e0] sm:$0xff]
    %v3663 = vld [vmem:[#allocation4 + $0x19e8] sm:$0xff]
    %v3664 = vld [vmem:[#allocation4 + $0x19f0] sm:$0xff]
    %v3665 = vld [vmem:[#allocation4 + $0x19f8] sm:$0xff]
    %v3666 = vld [vmem:[#allocation4 + $0x1a00] sm:$0xff]
    %v3667 = vld [vmem:[#allocation4 + $0x1a08] sm:$0xff]
    %v3668 = vld [vmem:[#allocation4 + $0x1a10] sm:$0xff]
    %v3669 = vld [vmem:[#allocation4 + $0x1a18] sm:$0xff]
    %v3670 = vld [vmem:[#allocation4 + $0x1a20] sm:$0xff]
    %v3671 = vld [vmem:[#allocation4 + $0x1a28] sm:$0xff]
    %v3672 = vld [vmem:[#allocation4 + $0x1a30] sm:$0xff]
    %v3673 = vld [vmem:[#allocation4 + $0x1a38] sm:$0xff]
    %v3674 = vld [vmem:[#allocation4 + $0x1a40] sm:$0xff]
    %v3675 = vld [vmem:[#allocation4 + $0x1a48] sm:$0xff]
    %v3676 = vld [vmem:[#allocation4 + $0x1a50] sm:$0xff]
    %v3677 = vld [vmem:[#allocation4 + $0x1a58] sm:$0xff]
    %v3678 = vld [vmem:[#allocation4 + $0x1a60] sm:$0xff]
    %v3679 = vld [vmem:[#allocation4 + $0x1a68] sm:$0xff]
    %v3680 = vld [vmem:[#allocation4 + $0x1a70] sm:$0xff]
    %v3681 = vld [vmem:[#allocation4 + $0x1a78] sm:$0xff]
    %v3682 = vld [vmem:[#allocation4 + $0x1a80] sm:$0xff]
    %v3683 = vld [vmem:[#allocation4 + $0x1a88] sm:$0xff]
    %v3684 = vld [vmem:[#allocation4 + $0x1a90] sm:$0xff]
    %v3685 = vld [vmem:[#allocation4 + $0x1a98] sm:$0xff]
    %v3686 = vld [vmem:[#allocation4 + $0x1aa0] sm:$0xff]
    %v3687 = vld [vmem:[#allocation4 + $0x1aa8] sm:$0xff]
    %v3688 = vld [vmem:[#allocation4 + $0x1ab0] sm:$0xff]
    %v3689 = vld [vmem:[#allocation4 + $0x1ab8] sm:$0xff]
    %v3690 = vld [vmem:[#allocation4 + $0x1ac0] sm:$0xff]
    %v3691 = vld [vmem:[#allocation4 + $0x1ac8] sm:$0xff]
    %v3692 = vld [vmem:[#allocation4 + $0x1ad0] sm:$0xff]
    %v3693 = vld [vmem:[#allocation4 + $0x1ad8] sm:$0xff]
    %v3694 = vld [vmem:[#allocation4 + $0x1ae0] sm:$0xff]
    %v3695 = vld [vmem:[#allocation4 + $0x1ae8] sm:$0xff]
    %v3696 = vld [vmem:[#allocation4 + $0x1af0] sm:$0xff]
    %v3697 = vld [vmem:[#allocation4 + $0x1af8] sm:$0xff]
    %v3698 = vld [vmem:[#allocation4 + $0x1b00] sm:$0xff]
    %v3699 = vld [vmem:[#allocation4 + $0x1b08] sm:$0xff]
    %v3700 = vld [vmem:[#allocation4 + $0x1b10] sm:$0xff]
    %v3701 = vld [vmem:[#allocation4 + $0x1b18] sm:$0xff]
    %v3702 = vld [vmem:[#allocation4 + $0x1b20] sm:$0xff]
    %v3703 = vld [vmem:[#allocation4 + $0x1b28] sm:$0xff]
    %v3704 = vld [vmem:[#allocation4 + $0x1b30] sm:$0xff]
    %v3705 = vld [vmem:[#allocation4 + $0x1b38] sm:$0xff]
    %v3706 = vld [vmem:[#allocation4 + $0x1b40] sm:$0xff]
    %v3707 = vld [vmem:[#allocation4 + $0x1b48] sm:$0xff]
    %v3708 = vld [vmem:[#allocation4 + $0x1b50] sm:$0xff]
    %v3709 = vld [vmem:[#allocation4 + $0x1b58] sm:$0xff]
    %v3710 = vld [vmem:[#allocation4 + $0x1b60] sm:$0xff]
    %v3711 = vld [vmem:[#allocation4 + $0x1b68] sm:$0xff]
    %v3712 = vld [vmem:[#allocation4 + $0x1b70] sm:$0xff]
    %v3713 = vld [vmem:[#allocation4 + $0x1b78] sm:$0xff]
    %v3714 = vld [vmem:[#allocation4 + $0x1b80] sm:$0xff]
    %v3715 = vld [vmem:[#allocation4 + $0x1b88] sm:$0xff]
    %v3716 = vld [vmem:[#allocation4 + $0x1b90] sm:$0xff]
    %v3717 = vld [vmem:[#allocation4 + $0x1b98] sm:$0xff]
    %v3718 = vld [vmem:[#allocation4 + $0x1ba0] sm:$0xff]
    %v3719 = vld [vmem:[#allocation4 + $0x1ba8] sm:$0xff]
    %v3720 = vld [vmem:[#allocation4 + $0x1bb0] sm:$0xff]
    %v3721 = vld [vmem:[#allocation4 + $0x1bb8] sm:$0xff]
    %v3722 = vld [vmem:[#allocation4 + $0x1bc0] sm:$0xff]
    %v3723 = vld [vmem:[#allocation4 + $0x1bc8] sm:$0xff]
    %v3724 = vld [vmem:[#allocation4 + $0x1bd0] sm:$0xff]
    %v3725 = vld [vmem:[#allocation4 + $0x1bd8] sm:$0xff]
    %v3726 = vld [vmem:[#allocation4 + $0x1be0] sm:$0xff]
    %v3727 = vld [vmem:[#allocation4 + $0x1be8] sm:$0xff]
    %v3728 = vld [vmem:[#allocation4 + $0x1bf0] sm:$0xff]
    %v3729 = vld [vmem:[#allocation4 + $0x1bf8] sm:$0xff]
    %v3730 = vld [vmem:[#allocation4 + $0x1c00] sm:$0xff]
    %v3731 = vld [vmem:[#allocation4 + $0x1c08] sm:$0xff]
    %v3732 = vld [vmem:[#allocation4 + $0x1c10] sm:$0xff]
    %v3733 = vld [vmem:[#allocation4 + $0x1c18] sm:$0xff]
    %v3734 = vld [vmem:[#allocation4 + $0x1c20] sm:$0xff]
    %v3735 = vld [vmem:[#allocation4 + $0x1c28] sm:$0xff]
    %v3736 = vld [vmem:[#allocation4 + $0x1c30] sm:$0xff]
    %v3737 = vld [vmem:[#allocation4 + $0x1c38] sm:$0xff]
    %v3738 = vld [vmem:[#allocation4 + $0x1c40] sm:$0xff]
    %v3739 = vld [vmem:[#allocation4 + $0x1c48] sm:$0xff]
    %v3740 = vld [vmem:[#allocation4 + $0x1c50] sm:$0xff]
    %v3741 = vld [vmem:[#allocation4 + $0x1c58] sm:$0xff]
    %v3742 = vld [vmem:[#allocation4 + $0x1c60] sm:$0xff]
    %v3743 = vld [vmem:[#allocation4 + $0x1c68] sm:$0xff]
    %v3744 = vld [vmem:[#allocation4 + $0x1c70] sm:$0xff]
    %v3745 = vld [vmem:[#allocation4 + $0x1c78] sm:$0xff]
    %v3746 = vld [vmem:[#allocation4 + $0x1c80] sm:$0xff]
    %v3747 = vld [vmem:[#allocation4 + $0x1c88] sm:$0xff]
    %v3748 = vld [vmem:[#allocation4 + $0x1c90] sm:$0xff]
    %v3749 = vld [vmem:[#allocation4 + $0x1c98] sm:$0xff]
    %v3750 = vld [vmem:[#allocation4 + $0x1ca0] sm:$0xff]
    %v3751 = vld [vmem:[#allocation4 + $0x1ca8] sm:$0xff]
    %v3752 = vld [vmem:[#allocation4 + $0x1cb0] sm:$0xff]
    %v3753 = vld [vmem:[#allocation4 + $0x1cb8] sm:$0xff]
    %v3754 = vld [vmem:[#allocation4 + $0x1cc0] sm:$0xff]
    %v3755 = vld [vmem:[#allocation4 + $0x1cc8] sm:$0xff]
    %v3756 = vld [vmem:[#allocation4 + $0x1cd0] sm:$0xff]
    %v3757 = vld [vmem:[#allocation4 + $0x1cd8] sm:$0xff]
    %v3758 = vld [vmem:[#allocation4 + $0x1ce0] sm:$0xff]
    %v3759 = vld [vmem:[#allocation4 + $0x1ce8] sm:$0xff]
    %v3760 = vld [vmem:[#allocation4 + $0x1cf0] sm:$0xff]
    %v3761 = vld [vmem:[#allocation4 + $0x1cf8] sm:$0xff]
    %v3762 = vld [vmem:[#allocation4 + $0x1d00] sm:$0xff]
    %v3763 = vld [vmem:[#allocation4 + $0x1d08] sm:$0xff]
    %v3764 = vld [vmem:[#allocation4 + $0x1d10] sm:$0xff]
    %v3765 = vld [vmem:[#allocation4 + $0x1d18] sm:$0xff]
    %v3766 = vld [vmem:[#allocation4 + $0x1d20] sm:$0xff]
    %v3767 = vld [vmem:[#allocation4 + $0x1d28] sm:$0xff]
    %v3768 = vld [vmem:[#allocation4 + $0x1d30] sm:$0xff]
    %v3769 = vld [vmem:[#allocation4 + $0x1d38] sm:$0xff]
    %v3770 = vld [vmem:[#allocation4 + $0x1d40] sm:$0xff]
    %v3771 = vld [vmem:[#allocation4 + $0x1d48] sm:$0xff]
    %v3772 = vld [vmem:[#allocation4 + $0x1d50] sm:$0xff]
    %v3773 = vld [vmem:[#allocation4 + $0x1d58] sm:$0xff]
    %v3774 = vld [vmem:[#allocation4 + $0x1d60] sm:$0xff]
    %v3775 = vld [vmem:[#allocation4 + $0x1d68] sm:$0xff]
    %v3776 = vld [vmem:[#allocation4 + $0x1d70] sm:$0xff]
    %v3777 = vld [vmem:[#allocation4 + $0x1d78] sm:$0xff]
    %v3778 = vld [vmem:[#allocation4 + $0x1d80] sm:$0xff]
    %v3779 = vld [vmem:[#allocation4 + $0x1d88] sm:$0xff]
    %v3780 = vld [vmem:[#allocation4 + $0x1d90] sm:$0xff]
    %v3781 = vld [vmem:[#allocation4 + $0x1d98] sm:$0xff]
    %v3782 = vld [vmem:[#allocation4 + $0x1da0] sm:$0xff]
    %v3783 = vld [vmem:[#allocation4 + $0x1da8] sm:$0xff]
    %v3784 = vld [vmem:[#allocation4 + $0x1db0] sm:$0xff]
    %v3785 = vld [vmem:[#allocation4 + $0x1db8] sm:$0xff]
    %v3786 = vld [vmem:[#allocation4 + $0x1dc0] sm:$0xff]
    %v3787 = vld [vmem:[#allocation4 + $0x1dc8] sm:$0xff]
    %v3788 = vld [vmem:[#allocation4 + $0x1dd0] sm:$0xff]
    %v3789 = vld [vmem:[#allocation4 + $0x1dd8] sm:$0xff]
    %v3790 = vld [vmem:[#allocation4 + $0x1de0] sm:$0xff]
    %v3791 = vld [vmem:[#allocation4 + $0x1de8] sm:$0xff]
    %v3792 = vld [vmem:[#allocation4 + $0x1df0] sm:$0xff]
    %v3793 = vld [vmem:[#allocation4 + $0x1df8] sm:$0xff]
    %v3794 = vld [vmem:[#allocation4 + $0x1e00] sm:$0xff]
    %v3795 = vld [vmem:[#allocation4 + $0x1e08] sm:$0xff]
    %v3796 = vld [vmem:[#allocation4 + $0x1e10] sm:$0xff]
    %v3797 = vld [vmem:[#allocation4 + $0x1e18] sm:$0xff]
    %v3798 = vld [vmem:[#allocation4 + $0x1e20] sm:$0xff]
    %v3799 = vld [vmem:[#allocation4 + $0x1e28] sm:$0xff]
    %v3800 = vld [vmem:[#allocation4 + $0x1e30] sm:$0xff]
    %v3801 = vld [vmem:[#allocation4 + $0x1e38] sm:$0xff]
    %v3802 = vld [vmem:[#allocation4 + $0x1e40] sm:$0xff]
    %v3803 = vld [vmem:[#allocation4 + $0x1e48] sm:$0xff]
    %v3804 = vld [vmem:[#allocation4 + $0x1e50] sm:$0xff]
    %v3805 = vld [vmem:[#allocation4 + $0x1e58] sm:$0xff]
    %v3806 = vld [vmem:[#allocation4 + $0x1e60] sm:$0xff]
    %v3807 = vld [vmem:[#allocation4 + $0x1e68] sm:$0xff]
    %v3808 = vld [vmem:[#allocation4 + $0x1e70] sm:$0xff]
    %v3809 = vld [vmem:[#allocation4 + $0x1e78] sm:$0xff]
    %v3810 = vld [vmem:[#allocation4 + $0x1e80] sm:$0xff]
    %v3811 = vld [vmem:[#allocation4 + $0x1e88] sm:$0xff]
    %v3812 = vld [vmem:[#allocation4 + $0x1e90] sm:$0xff]
    %v3813 = vld [vmem:[#allocation4 + $0x1e98] sm:$0xff]
    %v3814 = vld [vmem:[#allocation4 + $0x1ea0] sm:$0xff]
    %v3815 = vld [vmem:[#allocation4 + $0x1ea8] sm:$0xff]
    %v3816 = vld [vmem:[#allocation4 + $0x1eb0] sm:$0xff]
    %v3817 = vld [vmem:[#allocation4 + $0x1eb8] sm:$0xff]
    %v3818 = vld [vmem:[#allocation4 + $0x1ec0] sm:$0xff]
    %v3819 = vld [vmem:[#allocation4 + $0x1ec8] sm:$0xff]
    %v3820 = vld [vmem:[#allocation4 + $0x1ed0] sm:$0xff]
    %v3821 = vld [vmem:[#allocation4 + $0x1ed8] sm:$0xff]
    %v3822 = vld [vmem:[#allocation4 + $0x1ee0] sm:$0xff]
    %v3823 = vld [vmem:[#allocation4 + $0x1ee8] sm:$0xff]
    %v3824 = vld [vmem:[#allocation4 + $0x1ef0] sm:$0xff]
    %v3825 = vld [vmem:[#allocation4 + $0x1ef8] sm:$0xff]
    %v3826 = vld [vmem:[#allocation4 + $0x1f00] sm:$0xff]
    %v3827 = vld [vmem:[#allocation4 + $0x1f08] sm:$0xff]
    %v3828 = vld [vmem:[#allocation4 + $0x1f10] sm:$0xff]
    %v3829 = vld [vmem:[#allocation4 + $0x1f18] sm:$0xff]
    %v3830 = vld [vmem:[#allocation4 + $0x1f20] sm:$0xff]
    %v3831 = vld [vmem:[#allocation4 + $0x1f28] sm:$0xff]
    %v3832 = vld [vmem:[#allocation4 + $0x1f30] sm:$0xff]
    %v3833 = vld [vmem:[#allocation4 + $0x1f38] sm:$0xff]
    %v3834 = vld [vmem:[#allocation4 + $0x1f40] sm:$0xff]
    %v3835 = vld [vmem:[#allocation4 + $0x1f48] sm:$0xff]
    %v3836 = vld [vmem:[#allocation4 + $0x1f50] sm:$0xff]
    %v3837 = vld [vmem:[#allocation4 + $0x1f58] sm:$0xff]
    %v3838 = vld [vmem:[#allocation4 + $0x1f60] sm:$0xff]
    %v3839 = vld [vmem:[#allocation4 + $0x1f68] sm:$0xff]
    %v3840 = vld [vmem:[#allocation4 + $0x1f70] sm:$0xff]
    %v3841 = vld [vmem:[#allocation4 + $0x1f78] sm:$0xff]
    %v3842 = vld [vmem:[#allocation4 + $0x1f80] sm:$0xff]
    %v3843 = vld [vmem:[#allocation4 + $0x1f88] sm:$0xff]
    %v3844 = vld [vmem:[#allocation4 + $0x1f90] sm:$0xff]
    %v3845 = vld [vmem:[#allocation4 + $0x1f98] sm:$0xff]
    %v3846 = vld [vmem:[#allocation4 + $0x1fa0] sm:$0xff]
    %v3847 = vld [vmem:[#allocation4 + $0x1fa8] sm:$0xff]
    %v3848 = vld [vmem:[#allocation4 + $0x1fb0] sm:$0xff]
    %v3849 = vld [vmem:[#allocation4 + $0x1fb8] sm:$0xff]
    %v3850 = vld [vmem:[#allocation4 + $0x1fc0] sm:$0xff]
    %v3851 = vld [vmem:[#allocation4 + $0x1fc8] sm:$0xff]
    %v3852 = vld [vmem:[#allocation4 + $0x1fd0] sm:$0xff]
    %v3853 = vld [vmem:[#allocation4 + $0x1fd8] sm:$0xff]
    %v3854 = vld [vmem:[#allocation4 + $0x1fe0] sm:$0xff]
    %v3855 = vld [vmem:[#allocation4 + $0x1fe8] sm:$0xff]
    %v3856 = vld [vmem:[#allocation4 + $0x1ff0] sm:$0xff]
    %v3857 = vld [vmem:[#allocation4 + $0x1ff8] sm:$0xff]
    %v3858 = vld [vmem:[#allocation4 + $0x2000] sm:$0xff]
    %v3859 = vld [vmem:[#allocation4 + $0x2008] sm:$0xff]
    %v3860 = vld [vmem:[#allocation4 + $0x2010] sm:$0xff]
    %v3861 = vld [vmem:[#allocation4 + $0x2018] sm:$0xff]
    %v3862 = vld [vmem:[#allocation4 + $0x2020] sm:$0xff]
    %v3863 = vld [vmem:[#allocation4 + $0x2028] sm:$0xff]
    %v3864 = vld [vmem:[#allocation4 + $0x2030] sm:$0xff]
    %v3865 = vld [vmem:[#allocation4 + $0x2038] sm:$0xff]
    %v3866 = vld [vmem:[#allocation4 + $0x2040] sm:$0xff]
    %v3867 = vld [vmem:[#allocation4 + $0x2048] sm:$0xff]
    %v3868 = vld [vmem:[#allocation4 + $0x2050] sm:$0xff]
    %v3869 = vld [vmem:[#allocation4 + $0x2058] sm:$0xff]
    %v3870 = vld [vmem:[#allocation4 + $0x2060] sm:$0xff]
    %v3871 = vld [vmem:[#allocation4 + $0x2068] sm:$0xff]
    %v3872 = vld [vmem:[#allocation4 + $0x2070] sm:$0xff]
    %v3873 = vld [vmem:[#allocation4 + $0x2078] sm:$0xff]
    %v3874 = vld [vmem:[#allocation4 + $0x2080] sm:$0xff]
    %v3875 = vld [vmem:[#allocation4 + $0x2088] sm:$0xff]
    %v3876 = vld [vmem:[#allocation4 + $0x2090] sm:$0xff]
    %v3877 = vld [vmem:[#allocation4 + $0x2098] sm:$0xff]
    %v3878 = vld [vmem:[#allocation4 + $0x20a0] sm:$0xff]
    %v3879 = vld [vmem:[#allocation4 + $0x20a8] sm:$0xff]
    %v3880 = vld [vmem:[#allocation4 + $0x20b0] sm:$0xff]
    %v3881 = vld [vmem:[#allocation4 + $0x20b8] sm:$0xff]
    %v3882 = vld [vmem:[#allocation4 + $0x20c0] sm:$0xff]
    %v3883 = vld [vmem:[#allocation4 + $0x20c8] sm:$0xff]
    %v3884 = vld [vmem:[#allocation4 + $0x20d0] sm:$0xff]
    %v3885 = vld [vmem:[#allocation4 + $0x20d8] sm:$0xff]
    %v3886 = vld [vmem:[#allocation4 + $0x20e0] sm:$0xff]
    %v3887 = vld [vmem:[#allocation4 + $0x20e8] sm:$0xff]
    %v3888 = vld [vmem:[#allocation4 + $0x20f0] sm:$0xff]
    %v3889 = vld [vmem:[#allocation4 + $0x20f8] sm:$0xff]
    %v3890 = vld [vmem:[#allocation4 + $0x2100] sm:$0xff]
    %v3891 = vld [vmem:[#allocation4 + $0x2108] sm:$0xff]
    %v3892 = vld [vmem:[#allocation4 + $0x2110] sm:$0xff]
    %v3893 = vld [vmem:[#allocation4 + $0x2118] sm:$0xff]
    %v3894 = vld [vmem:[#allocation4 + $0x2120] sm:$0xff]
    %v3895 = vld [vmem:[#allocation4 + $0x2128] sm:$0xff]
    %v3896 = vld [vmem:[#allocation4 + $0x2130] sm:$0xff]
    %v3897 = vld [vmem:[#allocation4 + $0x2138] sm:$0xff]
    %v3898 = vld [vmem:[#allocation4 + $0x2140] sm:$0xff]
    %v3899 = vld [vmem:[#allocation4 + $0x2148] sm:$0xff]
    %v3900 = vld [vmem:[#allocation4 + $0x2150] sm:$0xff]
    %v3901 = vld [vmem:[#allocation4 + $0x2158] sm:$0xff]
    %v3902 = vld [vmem:[#allocation4 + $0x2160] sm:$0xff]
    %v3903 = vld [vmem:[#allocation4 + $0x2168] sm:$0xff]
    %v3904 = vld [vmem:[#allocation4 + $0x2170] sm:$0xff]
    %v3905 = vld [vmem:[#allocation4 + $0x2178] sm:$0xff]
    %v3906 = vld [vmem:[#allocation4 + $0x2180] sm:$0xff]
    %v3907 = vld [vmem:[#allocation4 + $0x2188] sm:$0xff]
    %v3908 = vld [vmem:[#allocation4 + $0x2190] sm:$0xff]
    %v3909 = vld [vmem:[#allocation4 + $0x2198] sm:$0xff]
    %v3910 = vld [vmem:[#allocation4 + $0x21a0] sm:$0xff]
    %v3911 = vld [vmem:[#allocation4 + $0x21a8] sm:$0xff]
    %v3912 = vld [vmem:[#allocation4 + $0x21b0] sm:$0xff]
    %v3913 = vld [vmem:[#allocation4 + $0x21b8] sm:$0xff]
    %v3914 = vld [vmem:[#allocation4 + $0x21c0] sm:$0xff]
    %v3915 = vld [vmem:[#allocation4 + $0x21c8] sm:$0xff]
    %v3916 = vld [vmem:[#allocation4 + $0x21d0] sm:$0xff]
    %v3917 = vld [vmem:[#allocation4 + $0x21d8] sm:$0xff]
    %v3918 = vld [vmem:[#allocation4 + $0x21e0] sm:$0xff]
    %v3919 = vld [vmem:[#allocation4 + $0x21e8] sm:$0xff]
    %v3920 = vld [vmem:[#allocation4 + $0x21f0] sm:$0xff]
    %v3921 = vld [vmem:[#allocation4 + $0x21f8] sm:$0xff]
    %v3922 = vld [vmem:[#allocation4 + $0x2200] sm:$0xff]
    %v3923 = vld [vmem:[#allocation4 + $0x2208] sm:$0xff]
    %v3924 = vld [vmem:[#allocation4 + $0x2210] sm:$0xff]
    %v3925 = vld [vmem:[#allocation4 + $0x2218] sm:$0xff]
    %v3926 = vld [vmem:[#allocation4 + $0x2220] sm:$0xff]
    %v3927 = vld [vmem:[#allocation4 + $0x2228] sm:$0xff]
    %v3928 = vld [vmem:[#allocation4 + $0x2230] sm:$0xff]
    %v3929 = vld [vmem:[#allocation4 + $0x2238] sm:$0xff]
    %v3930 = vld [vmem:[#allocation4 + $0x2240] sm:$0xff]
    %v3931 = vld [vmem:[#allocation4 + $0x2248] sm:$0xff]
    %v3932 = vld [vmem:[#allocation4 + $0x2250] sm:$0xff]
    %v3933 = vld [vmem:[#allocation4 + $0x2258] sm:$0xff]
    %v3934 = vld [vmem:[#allocation4 + $0x2260] sm:$0xff]
    %v3935 = vld [vmem:[#allocation4 + $0x2268] sm:$0xff]
    %v3936 = vld [vmem:[#allocation4 + $0x2270] sm:$0xff]
    %v3937 = vld [vmem:[#allocation4 + $0x2278] sm:$0xff]
    %v3938 = vld [vmem:[#allocation4 + $0x2280] sm:$0xff]
    %v3939 = vld [vmem:[#allocation4 + $0x2288] sm:$0xff]
    %v3940 = vld [vmem:[#allocation4 + $0x2290] sm:$0xff]
    %v3941 = vld [vmem:[#allocation4 + $0x2298] sm:$0xff]
    %v3942 = vld [vmem:[#allocation4 + $0x22a0] sm:$0xff]
    %v3943 = vld [vmem:[#allocation4 + $0x22a8] sm:$0xff]
    %v3944 = vld [vmem:[#allocation4 + $0x22b0] sm:$0xff]
    %v3945 = vld [vmem:[#allocation4 + $0x22b8] sm:$0xff]
    %v3946 = vld [vmem:[#allocation4 + $0x22c0] sm:$0xff]
    %v3947 = vld [vmem:[#allocation4 + $0x22c8] sm:$0xff]
    %v3948 = vld [vmem:[#allocation4 + $0x22d0] sm:$0xff]
    %v3949 = vld [vmem:[#allocation4 + $0x22d8] sm:$0xff]
    %v3950 = vld [vmem:[#allocation4 + $0x22e0] sm:$0xff]
    %v3951 = vld [vmem:[#allocation4 + $0x22e8] sm:$0xff]
    %v3952 = vld [vmem:[#allocation4 + $0x22f0] sm:$0xff]
    %v3953 = vld [vmem:[#allocation4 + $0x22f8] sm:$0xff]
    %v3954 = vld [vmem:[#allocation4 + $0x2300] sm:$0xff]
    %v3955 = vld [vmem:[#allocation4 + $0x2308] sm:$0xff]
    %v3956 = vld [vmem:[#allocation4 + $0x2310] sm:$0xff]
    %v3957 = vld [vmem:[#allocation4 + $0x2318] sm:$0xff]
    %v3958 = vld [vmem:[#allocation4 + $0x2320] sm:$0xff]
    %v3959 = vld [vmem:[#allocation4 + $0x2328] sm:$0xff]
    %v3960 = vld [vmem:[#allocation4 + $0x2330] sm:$0xff]
    %v3961 = vld [vmem:[#allocation4 + $0x2338] sm:$0xff]
    %v3962 = vld [vmem:[#allocation4 + $0x2340] sm:$0xff]
    %v3963 = vld [vmem:[#allocation4 + $0x2348] sm:$0xff]
    %v3964 = vld [vmem:[#allocation4 + $0x2350] sm:$0xff]
    %v3965 = vld [vmem:[#allocation4 + $0x2358] sm:$0xff]
    %v3966 = vld [vmem:[#allocation4 + $0x2360] sm:$0xff]
    %v3967 = vld [vmem:[#allocation4 + $0x2368] sm:$0xff]
    %v3968 = vld [vmem:[#allocation4 + $0x2370] sm:$0xff]
    %v3969 = vld [vmem:[#allocation4 + $0x2378] sm:$0xff]
    %v3970 = vld [vmem:[#allocation4 + $0x2380] sm:$0xff]
    %v3971 = vld [vmem:[#allocation4 + $0x2388] sm:$0xff]
    %v3972 = vld [vmem:[#allocation4 + $0x2390] sm:$0xff]
    %v3973 = vld [vmem:[#allocation4 + $0x2398] sm:$0xff]
    %v3974 = vld [vmem:[#allocation4 + $0x23a0] sm:$0xff]
    %v3975 = vld [vmem:[#allocation4 + $0x23a8] sm:$0xff]
    %v3976 = vld [vmem:[#allocation4 + $0x23b0] sm:$0xff]
    %v3977 = vld [vmem:[#allocation4 + $0x23b8] sm:$0xff]
    %v3978 = vld [vmem:[#allocation4 + $0x23c0] sm:$0xff]
    %v3979 = vld [vmem:[#allocation4 + $0x23c8] sm:$0xff]
    %v3980 = vld [vmem:[#allocation4 + $0x23d0] sm:$0xff]
    %v3981 = vld [vmem:[#allocation4 + $0x23d8] sm:$0xff]
    %v3982 = vld [vmem:[#allocation4 + $0x23e0] sm:$0xff]
    %v3983 = vld [vmem:[#allocation4 + $0x23e8] sm:$0xff]
    %v3984 = vld [vmem:[#allocation4 + $0x23f0] sm:$0xff]
    %v3985 = vld [vmem:[#allocation4 + $0x23f8] sm:$0xff]
    %v3986 = vld [vmem:[#allocation4 + $0x2400] sm:$0xff]
    %v3987 = vld [vmem:[#allocation4 + $0x2408] sm:$0xff]
    %v3988 = vld [vmem:[#allocation4 + $0x2410] sm:$0xff]
    %v3989 = vld [vmem:[#allocation4 + $0x2418] sm:$0xff]
    %v3990 = vld [vmem:[#allocation4 + $0x2420] sm:$0xff]
    %v3991 = vld [vmem:[#allocation4 + $0x2428] sm:$0xff]
    %v3992 = vld [vmem:[#allocation4 + $0x2430] sm:$0xff]
    %v3993 = vld [vmem:[#allocation4 + $0x2438] sm:$0xff]
    %v3994 = vld [vmem:[#allocation4 + $0x2440] sm:$0xff]
    %v3995 = vld [vmem:[#allocation4 + $0x2448] sm:$0xff]
    %v3996 = vld [vmem:[#allocation4 + $0x2450] sm:$0xff]
    %v3997 = vld [vmem:[#allocation4 + $0x2458] sm:$0xff]
    %v3998 = vld [vmem:[#allocation4 + $0x2460] sm:$0xff]
    %v3999 = vld [vmem:[#allocation4 + $0x2468] sm:$0xff]
    %v4000 = vld [vmem:[#allocation4 + $0x2470] sm:$0xff]
    %v4001 = vld [vmem:[#allocation4 + $0x2478] sm:$0xff]
    %v4002 = vld [vmem:[#allocation4 + $0x2480] sm:$0xff]
    %v4003 = vld [vmem:[#allocation4 + $0x2488] sm:$0xff]
    %v4004 = vld [vmem:[#allocation4 + $0x2490] sm:$0xff]
    %v4005 = vld [vmem:[#allocation4 + $0x2498] sm:$0xff]
    %v4006 = vld [vmem:[#allocation4 + $0x24a0] sm:$0xff]
    %v4007 = vld [vmem:[#allocation4 + $0x24a8] sm:$0xff]
    %v4008 = vld [vmem:[#allocation4 + $0x24b0] sm:$0xff]
    %v4009 = vld [vmem:[#allocation4 + $0x24b8] sm:$0xff]
    %v4010 = vld [vmem:[#allocation4 + $0x24c0] sm:$0xff]
    %v4011 = vld [vmem:[#allocation4 + $0x24c8] sm:$0xff]
    %v4012 = vld [vmem:[#allocation4 + $0x24d0] sm:$0xff]
    %v4013 = vld [vmem:[#allocation4 + $0x24d8] sm:$0xff]
    %v4014 = vld [vmem:[#allocation4 + $0x24e0] sm:$0xff]
    %v4015 = vld [vmem:[#allocation4 + $0x24e8] sm:$0xff]
    %v4016 = vld [vmem:[#allocation4 + $0x24f0] sm:$0xff]
    %v4017 = vld [vmem:[#allocation4 + $0x24f8] sm:$0xff]
    %v4018 = vld [vmem:[#allocation4 + $0x2500] sm:$0xff]
    %v4019 = vld [vmem:[#allocation4 + $0x2508] sm:$0xff]
    %v4020 = vld [vmem:[#allocation4 + $0x2510] sm:$0xff]
    %v4021 = vld [vmem:[#allocation4 + $0x2518] sm:$0xff]
    %v4022 = vld [vmem:[#allocation4 + $0x2520] sm:$0xff]
    %v4023 = vld [vmem:[#allocation4 + $0x2528] sm:$0xff]
    %v4024 = vld [vmem:[#allocation4 + $0x2530] sm:$0xff]
    %v4025 = vld [vmem:[#allocation4 + $0x2538] sm:$0xff]
    %v4026 = vld [vmem:[#allocation4 + $0x2540] sm:$0xff]
    %v4027 = vld [vmem:[#allocation4 + $0x2548] sm:$0xff]
    %v4028 = vld [vmem:[#allocation4 + $0x2550] sm:$0xff]
    %v4029 = vld [vmem:[#allocation4 + $0x2558] sm:$0xff]
    %v4030 = vld [vmem:[#allocation4 + $0x2560] sm:$0xff]
    %v4031 = vld [vmem:[#allocation4 + $0x2568] sm:$0xff]
    %v4032 = vld [vmem:[#allocation4 + $0x2570] sm:$0xff]
    %v4033 = vld [vmem:[#allocation4 + $0x2578] sm:$0xff]
    %v4034 = vld [vmem:[#allocation4 + $0x2580] sm:$0xff]
    %v4035 = vld [vmem:[#allocation4 + $0x2588] sm:$0xff]
    %v4036 = vld [vmem:[#allocation4 + $0x2590] sm:$0xff]
    %v4037 = vld [vmem:[#allocation4 + $0x2598] sm:$0xff]
    %v4038 = vld [vmem:[#allocation4 + $0x25a0] sm:$0xff]
    %v4039 = vld [vmem:[#allocation4 + $0x25a8] sm:$0xff]
    %v4040 = vld [vmem:[#allocation4 + $0x25b0] sm:$0xff]
    %v4041 = vld [vmem:[#allocation4 + $0x25b8] sm:$0xff]
    %v4042 = vld [vmem:[#allocation4 + $0x25c0] sm:$0xff]
    %v4043 = vld [vmem:[#allocation4 + $0x25c8] sm:$0xff]
    %v4044 = vld [vmem:[#allocation4 + $0x25d0] sm:$0xff]
    %v4045 = vld [vmem:[#allocation4 + $0x25d8] sm:$0xff]
    %v4046 = vld [vmem:[#allocation4 + $0x25e0] sm:$0xff]
    %v4047 = vld [vmem:[#allocation4 + $0x25e8] sm:$0xff]
    %v4048 = vld [vmem:[#allocation4 + $0x25f0] sm:$0xff]
    %v4049 = vld [vmem:[#allocation4 + $0x25f8] sm:$0xff]
    %v4050 = vld [vmem:[#allocation4 + $0x2600] sm:$0xff]
    %v4051 = vld [vmem:[#allocation4 + $0x2608] sm:$0xff]
    %v4052 = vld [vmem:[#allocation4 + $0x2610] sm:$0xff]
    %v4053 = vld [vmem:[#allocation4 + $0x2618] sm:$0xff]
    %v4054 = vld [vmem:[#allocation4 + $0x2620] sm:$0xff]
    %v4055 = vld [vmem:[#allocation4 + $0x2628] sm:$0xff]
    %v4056 = vld [vmem:[#allocation4 + $0x2630] sm:$0xff]
    %v4057 = vld [vmem:[#allocation4 + $0x2638] sm:$0xff]
    %v4058 = vld [vmem:[#allocation4 + $0x2640] sm:$0xff]
    %v4059 = vld [vmem:[#allocation4 + $0x2648] sm:$0xff]
    %v4060 = vld [vmem:[#allocation4 + $0x2650] sm:$0xff]
    %v4061 = vld [vmem:[#allocation4 + $0x2658] sm:$0xff]
    %v4062 = vld [vmem:[#allocation4 + $0x2660] sm:$0xff]
    %v4063 = vld [vmem:[#allocation4 + $0x2668] sm:$0xff]
    %v4064 = vld [vmem:[#allocation4 + $0x2670] sm:$0xff]
    %v4065 = vld [vmem:[#allocation4 + $0x2678] sm:$0xff]
    %v4066 = vld [vmem:[#allocation4 + $0x2680] sm:$0xff]
    %v4067 = vld [vmem:[#allocation4 + $0x2688] sm:$0xff]
    %v4068 = vld [vmem:[#allocation4 + $0x2690] sm:$0xff]
    %v4069 = vld [vmem:[#allocation4 + $0x2698] sm:$0xff]
    %v4070 = vld [vmem:[#allocation4 + $0x26a0] sm:$0xff]
    %v4071 = vld [vmem:[#allocation4 + $0x26a8] sm:$0xff]
    %v4072 = vld [vmem:[#allocation4 + $0x26b0] sm:$0xff]
    %v4073 = vld [vmem:[#allocation4 + $0x26b8] sm:$0xff]
    %v4074 = vld [vmem:[#allocation4 + $0x26c0] sm:$0xff]
    %v4075 = vld [vmem:[#allocation4 + $0x26c8] sm:$0xff]
    %v4076 = vld [vmem:[#allocation4 + $0x26d0] sm:$0xff]
    %v4077 = vld [vmem:[#allocation4 + $0x26d8] sm:$0xff]
    %v4078 = vld [vmem:[#allocation4 + $0x26e0] sm:$0xff]
    %v4079 = vld [vmem:[#allocation4 + $0x26e8] sm:$0xff]
    %v4080 = vld [vmem:[#allocation4 + $0x26f0] sm:$0xff]
    %v4081 = vld [vmem:[#allocation4 + $0x26f8] sm:$0xff]
    %v4082 = vld [vmem:[#allocation4 + $0x2700] sm:$0xff]
    %v4083 = vld [vmem:[#allocation4 + $0x2708] sm:$0xff]
    %v4084 = vld [vmem:[#allocation4 + $0x2710] sm:$0xff]
    %v4085 = vld [vmem:[#allocation4 + $0x2718] sm:$0xff]
    %v4086 = vld [vmem:[#allocation4 + $0x2720] sm:$0xff]
    %v4087 = vld [vmem:[#allocation4 + $0x2728] sm:$0xff]
    %v4088 = vld [vmem:[#allocation4 + $0x2730] sm:$0xff]
    %v4089 = vld [vmem:[#allocation4 + $0x2738] sm:$0xff]
    %v4090 = vld [vmem:[#allocation4 + $0x2740] sm:$0xff]
    %v4091 = vld [vmem:[#allocation4 + $0x2748] sm:$0xff]
    %v4092 = vld [vmem:[#allocation4 + $0x2750] sm:$0xff]
    %v4093 = vld [vmem:[#allocation4 + $0x2758] sm:$0xff]
    %v4094 = vld [vmem:[#allocation4 + $0x2760] sm:$0xff]
    %v4095 = vld [vmem:[#allocation4 + $0x2768] sm:$0xff]
    %v4096 = vld [vmem:[#allocation4 + $0x2770] sm:$0xff]
    %v4097 = vld [vmem:[#allocation4 + $0x2778] sm:$0xff]
    %v4098 = vld [vmem:[#allocation4 + $0x2780] sm:$0xff]
    %v4099 = vld [vmem:[#allocation4 + $0x2788] sm:$0xff]
    %v4100 = vld [vmem:[#allocation4 + $0x2790] sm:$0xff]
    %v4101 = vld [vmem:[#allocation4 + $0x2798] sm:$0xff]
    %v4102 = vld [vmem:[#allocation4 + $0x27a0] sm:$0xff]
    %v4103 = vld [vmem:[#allocation4 + $0x27a8] sm:$0xff]
    %v4104 = vld [vmem:[#allocation4 + $0x27b0] sm:$0xff]
    %v4105 = vld [vmem:[#allocation4 + $0x27b8] sm:$0xff]
    %v4106 = vld [vmem:[#allocation4 + $0x27c0] sm:$0xff]
    %v4107 = vld [vmem:[#allocation4 + $0x27c8] sm:$0xff]
    %v4108 = vld [vmem:[#allocation4 + $0x27d0] sm:$0xff]
    %v4109 = vld [vmem:[#allocation4 + $0x27d8] sm:$0xff]
    %v4110 = vld [vmem:[#allocation4 + $0x27e0] sm:$0xff]
    %v4111 = vld [vmem:[#allocation4 + $0x27e8] sm:$0xff]
    %v4112 = vld [vmem:[#allocation4 + $0x27f0] sm:$0xff]
    %v4113 = vld [vmem:[#allocation4 + $0x27f8] sm:$0xff]
    %v4114 = vld [vmem:[#allocation4 + $0x2800] sm:$0xff]
    %v4115 = vld [vmem:[#allocation4 + $0x2808] sm:$0xff]
    %v4116 = vld [vmem:[#allocation4 + $0x2810] sm:$0xff]
    %v4117 = vld [vmem:[#allocation4 + $0x2818] sm:$0xff]
    %v4118 = vld [vmem:[#allocation4 + $0x2820] sm:$0xff]
    %v4119 = vld [vmem:[#allocation4 + $0x2828] sm:$0xff]
    %v4120 = vld [vmem:[#allocation4 + $0x2830] sm:$0xff]
    %v4121 = vld [vmem:[#allocation4 + $0x2838] sm:$0xff]
    %v4122 = vld [vmem:[#allocation4 + $0x2840] sm:$0xff]
    %v4123 = vld [vmem:[#allocation4 + $0x2848] sm:$0xff]
    %v4124 = vld [vmem:[#allocation4 + $0x2850] sm:$0xff]
    %v4125 = vld [vmem:[#allocation4 + $0x2858] sm:$0xff]
    %v4126 = vld [vmem:[#allocation4 + $0x2860] sm:$0xff]
    %v4127 = vld [vmem:[#allocation4 + $0x2868] sm:$0xff]
    %v4128 = vld [vmem:[#allocation4 + $0x2870] sm:$0xff]
    %v4129 = vld [vmem:[#allocation4 + $0x2878] sm:$0xff]
    %v4130 = vld [vmem:[#allocation4 + $0x2880] sm:$0xff]
    %v4131 = vld [vmem:[#allocation4 + $0x2888] sm:$0xff]
    %v4132 = vld [vmem:[#allocation4 + $0x2890] sm:$0xff]
    %v4133 = vld [vmem:[#allocation4 + $0x2898] sm:$0xff]
    %v4134 = vld [vmem:[#allocation4 + $0x28a0] sm:$0xff]
    %v4135 = vld [vmem:[#allocation4 + $0x28a8] sm:$0xff]
    %v4136 = vld [vmem:[#allocation4 + $0x28b0] sm:$0xff]
    %v4137 = vld [vmem:[#allocation4 + $0x28b8] sm:$0xff]
    %v4138 = vld [vmem:[#allocation4 + $0x28c0] sm:$0xff]
    %v4139 = vld [vmem:[#allocation4 + $0x28c8] sm:$0xff]
    %v4140 = vld [vmem:[#allocation4 + $0x28d0] sm:$0xff]
    %v4141 = vld [vmem:[#allocation4 + $0x28d8] sm:$0xff]
    %v4142 = vld [vmem:[#allocation4 + $0x28e0] sm:$0xff]
    %v4143 = vld [vmem:[#allocation4 + $0x28e8] sm:$0xff]
    %v4144 = vld [vmem:[#allocation4 + $0x28f0] sm:$0xff]
    %v4145 = vld [vmem:[#allocation4 + $0x28f8] sm:$0xff]
    %v4146 = vld [vmem:[#allocation4 + $0x2900] sm:$0xff]
    %v4147 = vld [vmem:[#allocation4 + $0x2908] sm:$0xff]
    %v4148 = vld [vmem:[#allocation4 + $0x2910] sm:$0xff]
    %v4149 = vld [vmem:[#allocation4 + $0x2918] sm:$0xff]
    %v4150 = vld [vmem:[#allocation4 + $0x2920] sm:$0xff]
    %v4151 = vld [vmem:[#allocation4 + $0x2928] sm:$0xff]
    %v4152 = vld [vmem:[#allocation4 + $0x2930] sm:$0xff]
    %v4153 = vld [vmem:[#allocation4 + $0x2938] sm:$0xff]
    %v4154 = vld [vmem:[#allocation4 + $0x2940] sm:$0xff]
    %v4155 = vld [vmem:[#allocation4 + $0x2948] sm:$0xff]
    %v4156 = vld [vmem:[#allocation4 + $0x2950] sm:$0xff]
    %v4157 = vld [vmem:[#allocation4 + $0x2958] sm:$0xff]
    %v4158 = vld [vmem:[#allocation4 + $0x2960] sm:$0xff]
    %v4159 = vld [vmem:[#allocation4 + $0x2968] sm:$0xff]
    %v4160 = vld [vmem:[#allocation4 + $0x2970] sm:$0xff]
    %v4161 = vld [vmem:[#allocation4 + $0x2978] sm:$0xff]
    %v4162 = vld [vmem:[#allocation4 + $0x2980] sm:$0xff]
    %v4163 = vld [vmem:[#allocation4 + $0x2988] sm:$0xff]
    %v4164 = vld [vmem:[#allocation4 + $0x2990] sm:$0xff]
    %v4165 = vld [vmem:[#allocation4 + $0x2998] sm:$0xff]
    %v4166 = vld [vmem:[#allocation4 + $0x29a0] sm:$0xff]
    %v4167 = vld [vmem:[#allocation4 + $0x29a8] sm:$0xff]
    %v4168 = vld [vmem:[#allocation4 + $0x29b0] sm:$0xff]
    %v4169 = vld [vmem:[#allocation4 + $0x29b8] sm:$0xff]
    %v4170 = vld [vmem:[#allocation4 + $0x29c0] sm:$0xff]
    %v4171 = vld [vmem:[#allocation4 + $0x29c8] sm:$0xff]
    %v4172 = vld [vmem:[#allocation4 + $0x29d0] sm:$0xff]
    %v4173 = vld [vmem:[#allocation4 + $0x29d8] sm:$0xff]
    %v4174 = vld [vmem:[#allocation4 + $0x29e0] sm:$0xff]
    %v4175 = vld [vmem:[#allocation4 + $0x29e8] sm:$0xff]
    %v4176 = vld [vmem:[#allocation4 + $0x29f0] sm:$0xff]
    %v4177 = vld [vmem:[#allocation4 + $0x29f8] sm:$0xff]
    %v4178 = vld [vmem:[#allocation6] sm:$0xff]
    %v4180 = vperm.slane %v4178, 0
    %v4181 = vperm.slane %v4178, 1
    %v4182 = vperm.slane %v4178, 2
    %v4183 = vperm.slane %v4178, 3
    %v4184 = vperm.slane %v4178, 4
    %v4185 = vperm.slane %v4178, 5
    %v4186 = vperm.slane %v4178, 6
    %4194 = vmatpush.msra.mxu0 %v2939
    %4195 = vmatpush.msra.mxu0 %v2932
    %4196 = vmatpush.msra.mxu0 %v2925
    %4197 = vmatpush.msra.mxu0 %v2918
    %4198 = vmatpush.msra.mxu0 %v2911
    %4199 = vmatpush.msra.mxu0 %v2904
    %4200 = vmatpush.msra.mxu0 %v2897
    %4201 = vmatpush.msra.mxu0 %v2890
    %4202 = vmatpush.msra.mxu0 %v2883
    %4203 = vmatpush.msra.mxu0 %v2876
    %4204 = vmatpush.msra.mxu0 %v2869
    %4205 = vmatpush.msra.mxu0 %v2862
    %4206 = vmatpush.msra.mxu0 %v2855
    %4207 = vmatpush.msra.mxu0 %v2848
    %4208 = vmatpush.msra.mxu0 %v2841
    %4209 = vmatpush.msra.mxu0 %v2834
    %4210 = vmatmul.f32.gmra.mxu0 %v2637
    %v4211 = vpop.f32.mrf.mxu0
    %v4212 = vadd.f32 %v4180, %v4211
    %4213 = vmatmul.f32.gmra.mxu0 %v2454
    %v4214 = vpop.f32.mrf.mxu0
    %v4215 = vadd.f32 %v4180, %v4214
    %4216 = vmatmul.f32.gmra.mxu0 %v2462
    %v4217 = vpop.f32.mrf.mxu0
    %v4218 = vadd.f32 %v4180, %v4217
    %4219 = vmatmul.f32.gmra.mxu0 %v2470
    %v4220 = vpop.f32.mrf.mxu0
    %v4221 = vadd.f32 %v4180, %v4220
    %4222 = vmatmul.f32.gmra.mxu0 %v2478
    %v4223 = vpop.f32.mrf.mxu0
    %v4224 = vadd.f32 %v4180, %v4223
    %4225 = vmatmul.f32.gmra.mxu0 %v2486
    %v4226 = vpop.f32.mrf.mxu0
    %v4227 = vadd.f32 %v4180, %v4226
    %4228 = vmatmul.f32.gmra.mxu0 %v2494
    %v4229 = vpop.f32.mrf.mxu0
    %v4230 = vadd.f32 %v4180, %v4229
    %4231 = vmatmul.f32.gmra.mxu0 %v2502
    %v4232 = vpop.f32.mrf.mxu0
    %v4233 = vadd.f32 %v4180, %v4232
    %4234 = vmatmul.f32.gmra.mxu0 %v2510
    %v4235 = vpop.f32.mrf.mxu0
    %v4236 = vadd.f32 %v4180, %v4235
    %4237 = vmatmul.f32.gmra.mxu0 %v2518
    %v4238 = vpop.f32.mrf.mxu0
    %v4239 = vadd.f32 %v4180, %v4238
    %4240 = vmatmul.f32.gmra.mxu0 %v2526
    %v4241 = vpop.f32.mrf.mxu0
    %v4242 = vadd.f32 %v4180, %v4241
    %4243 = vmatmul.f32.gmra.mxu0 %v2534
    %v4244 = vpop.f32.mrf.mxu0
    %v4245 = vadd.f32 %v4180, %v4244
    %4246 = vmatmul.f32.gmra.mxu0 %v2542
    %v4247 = vpop.f32.mrf.mxu0
    %v4248 = vadd.f32 %v4180, %v4247
    %4249 = vmatmul.f32.gmra.mxu0 %v2550
    %v4250 = vpop.f32.mrf.mxu0
    %v4251 = vadd.f32 %v4180, %v4250
    %4252 = vmatmul.f32.gmra.mxu0 %v2558
    %v4253 = vpop.f32.mrf.mxu0
    %v4254 = vadd.f32 %v4180, %v4253
    %4255 = vmatmul.f32.gmra.mxu0 %v2566
    %v4256 = vpop.f32.mrf.mxu0
    %v4257 = vadd.f32 %v4180, %v4256
    %4258 = vdwg.mxu0
    %4259 = vmatpush.msra.mxu0 %v3051
    %4260 = vmatpush.msra.mxu0 %v3044
    %4261 = vmatpush.msra.mxu0 %v3037
    %4262 = vmatpush.msra.mxu0 %v3030
    %4263 = vmatpush.msra.mxu0 %v3023
    %4264 = vmatpush.msra.mxu0 %v3016
    %4265 = vmatpush.msra.mxu0 %v3009
    %4266 = vmatpush.msra.mxu0 %v3002
    %4267 = vmatpush.msra.mxu0 %v2995
    %4268 = vmatpush.msra.mxu0 %v2988
    %4269 = vmatpush.msra.mxu0 %v2981
    %4270 = vmatpush.msra.mxu0 %v2974
    %4271 = vmatpush.msra.mxu0 %v2967
    %4272 = vmatpush.msra.mxu0 %v2960
    %4273 = vmatpush.msra.mxu0 %v2953
    %4274 = vmatpush.msra.mxu0 %v2946
    %4275 = vmatmul.f32.gmra.mxu0 %v2638
    %v4276 = vpop.f32.mrf.mxu0
    %v4277 = vadd.f32 %v4212, %v4276
    %4278 = vmatmul.f32.gmra.mxu0 %v2456
    %v4279 = vpop.f32.mrf.mxu0
    %v4280 = vadd.f32 %v4215, %v4279
    %4281 = vmatmul.f32.gmra.mxu0 %v2464
    %v4282 = vpop.f32.mrf.mxu0
    %v4283 = vadd.f32 %v4218, %v4282
    %4284 = vmatmul.f32.gmra.mxu0 %v2472
    %v4285 = vpop.f32.mrf.mxu0
    %v4286 = vadd.f32 %v4221, %v4285
    %4287 = vmatmul.f32.gmra.mxu0 %v2480
    %v4288 = vpop.f32.mrf.mxu0
    %v4289 = vadd.f32 %v4224, %v4288
    %4290 = vmatmul.f32.gmra.mxu0 %v2488
    %v4291 = vpop.f32.mrf.mxu0
    %v4292 = vadd.f32 %v4227, %v4291
    %4293 = vmatmul.f32.gmra.mxu0 %v2496
    %v4294 = vpop.f32.mrf.mxu0
    %v4295 = vadd.f32 %v4230, %v4294
    %4296 = vmatmul.f32.gmra.mxu0 %v2504
    %v4297 = vpop.f32.mrf.mxu0
    %v4298 = vadd.f32 %v4233, %v4297
    %4299 = vmatmul.f32.gmra.mxu0 %v2512
    %v4300 = vpop.f32.mrf.mxu0
    %v4301 = vadd.f32 %v4236, %v4300
    %4302 = vmatmul.f32.gmra.mxu0 %v2520
    %v4303 = vpop.f32.mrf.mxu0
    %v4304 = vadd.f32 %v4239, %v4303
    %4305 = vmatmul.f32.gmra.mxu0 %v2528
    %v4306 = vpop.f32.mrf.mxu0
    %v4307 = vadd.f32 %v4242, %v4306
    %4308 = vmatmul.f32.gmra.mxu0 %v2536
    %v4309 = vpop.f32.mrf.mxu0
    %v4310 = vadd.f32 %v4245, %v4309
    %4311 = vmatmul.f32.gmra.mxu0 %v2544
    %v4312 = vpop.f32.mrf.mxu0
    %v4313 = vadd.f32 %v4248, %v4312
    %4314 = vmatmul.f32.gmra.mxu0 %v2552
    %v4315 = vpop.f32.mrf.mxu0
    %v4316 = vadd.f32 %v4251, %v4315
    %4317 = vmatmul.f32.gmra.mxu0 %v2560
    %v4318 = vpop.f32.mrf.mxu0
    %v4319 = vadd.f32 %v4254, %v4318
    %4320 = vmatmul.f32.gmra.mxu0 %v2568
    %v4321 = vpop.f32.mrf.mxu0
    %v4322 = vadd.f32 %v4257, %v4321
    %4323 = vdwg.mxu0
    %4324 = vmatpush.msra.mxu0 %v3163
    %4325 = vmatpush.msra.mxu0 %v3156
    %4326 = vmatpush.msra.mxu0 %v3149
    %4327 = vmatpush.msra.mxu0 %v3142
    %4328 = vmatpush.msra.mxu0 %v3135
    %4329 = vmatpush.msra.mxu0 %v3128
    %4330 = vmatpush.msra.mxu0 %v3121
    %4331 = vmatpush.msra.mxu0 %v3114
    %4332 = vmatpush.msra.mxu0 %v3107
    %4333 = vmatpush.msra.mxu0 %v3100
    %4334 = vmatpush.msra.mxu0 %v3093
    %4335 = vmatpush.msra.mxu0 %v3086
    %4336 = vmatpush.msra.mxu0 %v3079
    %4337 = vmatpush.msra.mxu0 %v3072
    %4338 = vmatpush.msra.mxu0 %v3065
    %4339 = vmatpush.msra.mxu0 %v3058
    %4340 = vmatmul.f32.gmra.mxu0 %v2639
    %v4341 = vpop.f32.mrf.mxu0
    %v4342 = vadd.f32 %v4277, %v4341
    %4343 = vmatmul.f32.gmra.mxu0 %v2458
    %v4344 = vpop.f32.mrf.mxu0
    %v4345 = vadd.f32 %v4280, %v4344
    %4346 = vmatmul.f32.gmra.mxu0 %v2466
    %v4347 = vpop.f32.mrf.mxu0
    %v4348 = vadd.f32 %v4283, %v4347
    %4349 = vmatmul.f32.gmra.mxu0 %v2474
    %v4350 = vpop.f32.mrf.mxu0
    %v4351 = vadd.f32 %v4286, %v4350
    %4352 = vmatmul.f32.gmra.mxu0 %v2482
    %v4353 = vpop.f32.mrf.mxu0
    %v4354 = vadd.f32 %v4289, %v4353
    %4355 = vmatmul.f32.gmra.mxu0 %v2490
    %v4356 = vpop.f32.mrf.mxu0
    %v4357 = vadd.f32 %v4292, %v4356
    %4358 = vmatmul.f32.gmra.mxu0 %v2498
    %v4359 = vpop.f32.mrf.mxu0
    %v4360 = vadd.f32 %v4295, %v4359
    %4361 = vmatmul.f32.gmra.mxu0 %v2506
    %v4362 = vpop.f32.mrf.mxu0
    %v4363 = vadd.f32 %v4298, %v4362
    %4364 = vmatmul.f32.gmra.mxu0 %v2514
    %v4365 = vpop.f32.mrf.mxu0
    %v4366 = vadd.f32 %v4301, %v4365
    %4367 = vmatmul.f32.gmra.mxu0 %v2522
    %v4368 = vpop.f32.mrf.mxu0
    %v4369 = vadd.f32 %v4304, %v4368
    %4370 = vmatmul.f32.gmra.mxu0 %v2530
    %v4371 = vpop.f32.mrf.mxu0
    %v4372 = vadd.f32 %v4307, %v4371
    %4373 = vmatmul.f32.gmra.mxu0 %v2538
    %v4374 = vpop.f32.mrf.mxu0
    %v4375 = vadd.f32 %v4310, %v4374
    %4376 = vmatmul.f32.gmra.mxu0 %v2546
    %v4377 = vpop.f32.mrf.mxu0
    %v4378 = vadd.f32 %v4313, %v4377
    %4379 = vmatmul.f32.gmra.mxu0 %v2554
    %v4380 = vpop.f32.mrf.mxu0
    %v4381 = vadd.f32 %v4316, %v4380
    %4382 = vmatmul.f32.gmra.mxu0 %v2562
    %v4383 = vpop.f32.mrf.mxu0
    %v4384 = vadd.f32 %v4319, %v4383
    %4385 = vmatmul.f32.gmra.mxu0 %v2570
    %v4386 = vpop.f32.mrf.mxu0
    %v4387 = vadd.f32 %v4322, %v4386
    %4388 = vdwg.mxu0
    %4389 = vmatpush.msra.mxu0 %v3275
    %4390 = vmatpush.msra.mxu0 %v3268
    %4391 = vmatpush.msra.mxu0 %v3261
    %4392 = vmatpush.msra.mxu0 %v3254
    %4393 = vmatpush.msra.mxu0 %v3247
    %4394 = vmatpush.msra.mxu0 %v3240
    %4395 = vmatpush.msra.mxu0 %v3233
    %4396 = vmatpush.msra.mxu0 %v3226
    %4397 = vmatpush.msra.mxu0 %v3219
    %4398 = vmatpush.msra.mxu0 %v3212
    %4399 = vmatpush.msra.mxu0 %v3205
    %4400 = vmatpush.msra.mxu0 %v3198
    %4401 = vmatpush.msra.mxu0 %v3191
    %4402 = vmatpush.msra.mxu0 %v3184
    %4403 = vmatpush.msra.mxu0 %v3177
    %4404 = vmatpush.msra.mxu0 %v3170
    %4405 = vmatmul.f32.gmra.mxu0 %v2640
    %v4406 = vpop.f32.mrf.mxu0
    %v4407 = vadd.f32 %v4342, %v4406
    %4408 = vmatmul.f32.gmra.mxu0 %v2460
    %v4409 = vpop.f32.mrf.mxu0
    %v4410 = vadd.f32 %v4345, %v4409
    %4411 = vmatmul.f32.gmra.mxu0 %v2468
    %v4412 = vpop.f32.mrf.mxu0
    %v4413 = vadd.f32 %v4348, %v4412
    %4414 = vmatmul.f32.gmra.mxu0 %v2476
    %v4415 = vpop.f32.mrf.mxu0
    %v4416 = vadd.f32 %v4351, %v4415
    %4417 = vmatmul.f32.gmra.mxu0 %v2484
    %v4418 = vpop.f32.mrf.mxu0
    %v4419 = vadd.f32 %v4354, %v4418
    %4420 = vmatmul.f32.gmra.mxu0 %v2492
    %v4421 = vpop.f32.mrf.mxu0
    %v4422 = vadd.f32 %v4357, %v4421
    %4423 = vmatmul.f32.gmra.mxu0 %v2500
    %v4424 = vpop.f32.mrf.mxu0
    %v4425 = vadd.f32 %v4360, %v4424
    %4426 = vmatmul.f32.gmra.mxu0 %v2508
    %v4427 = vpop.f32.mrf.mxu0
    %v4428 = vadd.f32 %v4363, %v4427
    %4429 = vmatmul.f32.gmra.mxu0 %v2516
    %v4430 = vpop.f32.mrf.mxu0
    %v4431 = vadd.f32 %v4366, %v4430
    %4432 = vmatmul.f32.gmra.mxu0 %v2524
    %v4433 = vpop.f32.mrf.mxu0
    %v4434 = vadd.f32 %v4369, %v4433
    %4435 = vmatmul.f32.gmra.mxu0 %v2532
    %v4436 = vpop.f32.mrf.mxu0
    %v4437 = vadd.f32 %v4372, %v4436
    %4438 = vmatmul.f32.gmra.mxu0 %v2540
    %v4439 = vpop.f32.mrf.mxu0
    %v4440 = vadd.f32 %v4375, %v4439
    %4441 = vmatmul.f32.gmra.mxu0 %v2548
    %v4442 = vpop.f32.mrf.mxu0
    %v4443 = vadd.f32 %v4378, %v4442
    %4444 = vmatmul.f32.gmra.mxu0 %v2556
    %v4445 = vpop.f32.mrf.mxu0
    %v4446 = vadd.f32 %v4381, %v4445
    %4447 = vmatmul.f32.gmra.mxu0 %v2564
    %v4448 = vpop.f32.mrf.mxu0
    %v4449 = vadd.f32 %v4384, %v4448
    %4450 = vmatmul.f32.gmra.mxu0 %v2572
    %v4451 = vpop.f32.mrf.mxu0
    %v4452 = vadd.f32 %v4387, %v4451
    %4453 = vdwg.mxu0
    %4454 = vmatpush.msra.mxu0 %v3387
    %4455 = vmatpush.msra.mxu0 %v3380
    %4456 = vmatpush.msra.mxu0 %v3373
    %4457 = vmatpush.msra.mxu0 %v3366
    %4458 = vmatpush.msra.mxu0 %v3359
    %4459 = vmatpush.msra.mxu0 %v3352
    %4460 = vmatpush.msra.mxu0 %v3345
    %4461 = vmatpush.msra.mxu0 %v3338
    %4462 = vmatpush.msra.mxu0 %v3331
    %4463 = vmatpush.msra.mxu0 %v3324
    %4464 = vmatpush.msra.mxu0 %v3317
    %4465 = vmatpush.msra.mxu0 %v3310
    %4466 = vmatpush.msra.mxu0 %v3303
    %4467 = vmatpush.msra.mxu0 %v3296
    %4468 = vmatpush.msra.mxu0 %v3289
    %4469 = vmatpush.msra.mxu0 %v3282
    %4470 = vmatmul.f32.gmra.mxu0 %v2384
    %v4471 = vpop.f32.mrf.mxu0
    %v4472 = vadd.f32 %v4407, %v4471
    %4473 = vmatmul.f32.gmra.mxu0 %v2385
    %v4474 = vpop.f32.mrf.mxu0
    %v4475 = vadd.f32 %v4410, %v4474
    %4476 = vmatmul.f32.gmra.mxu0 %v2386
    %v4477 = vpop.f32.mrf.mxu0
    %v4478 = vadd.f32 %v4413, %v4477
    %4479 = vmatmul.f32.gmra.mxu0 %v2387
    %v4480 = vpop.f32.mrf.mxu0
    %v4481 = vadd.f32 %v4416, %v4480
    %4482 = vmatmul.f32.gmra.mxu0 %v2388
    %v4483 = vpop.f32.mrf.mxu0
    %v4484 = vadd.f32 %v4419, %v4483
    %4485 = vmatmul.f32.gmra.mxu0 %v2389
    %v4486 = vpop.f32.mrf.mxu0
    %v4487 = vadd.f32 %v4422, %v4486
    %4488 = vmatmul.f32.gmra.mxu0 %v2390
    %v4489 = vpop.f32.mrf.mxu0
    %v4490 = vadd.f32 %v4425, %v4489
    %4491 = vmatmul.f32.gmra.mxu0 %v2391
    %v4492 = vpop.f32.mrf.mxu0
    %v4493 = vadd.f32 %v4428, %v4492
    %4494 = vmatmul.f32.gmra.mxu0 %v2392
    %v4495 = vpop.f32.mrf.mxu0
    %v4496 = vadd.f32 %v4431, %v4495
    %4497 = vmatmul.f32.gmra.mxu0 %v2393
    %v4498 = vpop.f32.mrf.mxu0
    %v4499 = vadd.f32 %v4434, %v4498
    %4500 = vmatmul.f32.gmra.mxu0 %v2394
    %v4501 = vpop.f32.mrf.mxu0
    %v4502 = vadd.f32 %v4437, %v4501
    %4503 = vmatmul.f32.gmra.mxu0 %v2395
    %v4504 = vpop.f32.mrf.mxu0
    %v4505 = vadd.f32 %v4440, %v4504
    %4506 = vmatmul.f32.gmra.mxu0 %v2396
    %v4507 = vpop.f32.mrf.mxu0
    %v4508 = vadd.f32 %v4443, %v4507
    %4509 = vmatmul.f32.gmra.mxu0 %v2397
    %v4510 = vpop.f32.mrf.mxu0
    %v4511 = vadd.f32 %v4446, %v4510
    %4512 = vmatmul.f32.gmra.mxu0 %v2398
    %v4513 = vpop.f32.mrf.mxu0
    %v4514 = vadd.f32 %v4449, %v4513
    %4515 = vmatmul.f32.gmra.mxu0 %v2399
    %v4516 = vpop.f32.mrf.mxu0
    %v4517 = vadd.f32 %v4452, %v4516
    %4518 = vdwg.mxu0
    %4519 = vmatpush.msra.mxu0 %v3499
    %4520 = vmatpush.msra.mxu0 %v3492
    %4521 = vmatpush.msra.mxu0 %v3485
    %4522 = vmatpush.msra.mxu0 %v3478
    %4523 = vmatpush.msra.mxu0 %v3471
    %4524 = vmatpush.msra.mxu0 %v3464
    %4525 = vmatpush.msra.mxu0 %v3457
    %4526 = vmatpush.msra.mxu0 %v3450
    %4527 = vmatpush.msra.mxu0 %v3443
    %4528 = vmatpush.msra.mxu0 %v3436
    %4529 = vmatpush.msra.mxu0 %v3429
    %4530 = vmatpush.msra.mxu0 %v3422
    %4531 = vmatpush.msra.mxu0 %v3415
    %4532 = vmatpush.msra.mxu0 %v3408
    %4533 = vmatpush.msra.mxu0 %v3401
    %4534 = vmatpush.msra.mxu0 %v3394
    %4535 = vmatmul.f32.gmra.mxu0 %v2272
    %v4536 = vpop.f32.mrf.mxu0
    %v4537 = vadd.f32 %v4472, %v4536
    %4538 = vmatmul.f32.gmra.mxu0 %v2275
    %v4539 = vpop.f32.mrf.mxu0
    %v4540 = vadd.f32 %v4475, %v4539
    %4541 = vmatmul.f32.gmra.mxu0 %v2278
    %v4542 = vpop.f32.mrf.mxu0
    %v4543 = vadd.f32 %v4478, %v4542
    %4544 = vmatmul.f32.gmra.mxu0 %v2281
    %v4545 = vpop.f32.mrf.mxu0
    %v4546 = vadd.f32 %v4481, %v4545
    %4547 = vmatmul.f32.gmra.mxu0 %v2284
    %v4548 = vpop.f32.mrf.mxu0
    %v4549 = vadd.f32 %v4484, %v4548
    %4550 = vmatmul.f32.gmra.mxu0 %v2287
    %v4551 = vpop.f32.mrf.mxu0
    %v4552 = vadd.f32 %v4487, %v4551
    %4553 = vmatmul.f32.gmra.mxu0 %v2290
    %v4554 = vpop.f32.mrf.mxu0
    %v4555 = vadd.f32 %v4490, %v4554
    %4556 = vmatmul.f32.gmra.mxu0 %v2293
    %v4557 = vpop.f32.mrf.mxu0
    %v4558 = vadd.f32 %v4493, %v4557
    %4559 = vmatmul.f32.gmra.mxu0 %v2296
    %v4560 = vpop.f32.mrf.mxu0
    %v4561 = vadd.f32 %v4496, %v4560
    %4562 = vmatmul.f32.gmra.mxu0 %v2299
    %v4563 = vpop.f32.mrf.mxu0
    %v4564 = vadd.f32 %v4499, %v4563
    %4565 = vmatmul.f32.gmra.mxu0 %v2302
    %v4566 = vpop.f32.mrf.mxu0
    %v4567 = vadd.f32 %v4502, %v4566
    %4568 = vmatmul.f32.gmra.mxu0 %v2305
    %v4569 = vpop.f32.mrf.mxu0
    %v4570 = vadd.f32 %v4505, %v4569
    %4571 = vmatmul.f32.gmra.mxu0 %v2308
    %v4572 = vpop.f32.mrf.mxu0
    %v4573 = vadd.f32 %v4508, %v4572
    %4574 = vmatmul.f32.gmra.mxu0 %v2311
    %v4575 = vpop.f32.mrf.mxu0
    %v4576 = vadd.f32 %v4511, %v4575
    %4577 = vmatmul.f32.gmra.mxu0 %v2314
    %v4578 = vpop.f32.mrf.mxu0
    %v4579 = vadd.f32 %v4514, %v4578
    %4580 = vmatmul.f32.gmra.mxu0 %v2317
    %v4581 = vpop.f32.mrf.mxu0
    %v4582 = vadd.f32 %v4517, %v4581
    %4583 = vdwg.mxu0
    %4584 = vmatpush.msra.mxu0 %v3611
    %4585 = vmatpush.msra.mxu0 %v3604
    %4586 = vmatpush.msra.mxu0 %v3597
    %4587 = vmatpush.msra.mxu0 %v3590
    %4588 = vmatpush.msra.mxu0 %v3583
    %4589 = vmatpush.msra.mxu0 %v3576
    %4590 = vmatpush.msra.mxu0 %v3569
    %4591 = vmatpush.msra.mxu0 %v3562
    %4592 = vmatpush.msra.mxu0 %v3555
    %4593 = vmatpush.msra.mxu0 %v3548
    %4594 = vmatpush.msra.mxu0 %v3541
    %4595 = vmatpush.msra.mxu0 %v3534
    %4596 = vmatpush.msra.mxu0 %v3527
    %4597 = vmatpush.msra.mxu0 %v3520
    %4598 = vmatpush.msra.mxu0 %v3513
    %4599 = vmatpush.msra.mxu0 %v3506
    %4600 = vmatmul.f32.gmra.mxu0 %v2273
    %v4601 = vpop.f32.mrf.mxu0
    %v4602 = vadd.f32 %v4537, %v4601
    %4603 = vmatmul.f32.gmra.mxu0 %v2276
    %v4604 = vpop.f32.mrf.mxu0
    %v4605 = vadd.f32 %v4540, %v4604
    %4606 = vmatmul.f32.gmra.mxu0 %v2279
    %v4607 = vpop.f32.mrf.mxu0
    %v4608 = vadd.f32 %v4543, %v4607
    %4609 = vmatmul.f32.gmra.mxu0 %v2282
    %v4610 = vpop.f32.mrf.mxu0
    %v4611 = vadd.f32 %v4546, %v4610
    %4612 = vmatmul.f32.gmra.mxu0 %v2285
    %v4613 = vpop.f32.mrf.mxu0
    %v4614 = vadd.f32 %v4549, %v4613
    %4615 = vmatmul.f32.gmra.mxu0 %v2288
    %v4616 = vpop.f32.mrf.mxu0
    %v4617 = vadd.f32 %v4552, %v4616
    %4618 = vmatmul.f32.gmra.mxu0 %v2291
    %v4619 = vpop.f32.mrf.mxu0
    %v4620 = vadd.f32 %v4555, %v4619
    %4621 = vmatmul.f32.gmra.mxu0 %v2294
    %v4622 = vpop.f32.mrf.mxu0
    %v4623 = vadd.f32 %v4558, %v4622
    %4624 = vmatmul.f32.gmra.mxu0 %v2297
    %v4625 = vpop.f32.mrf.mxu0
    %v4626 = vadd.f32 %v4561, %v4625
    %4627 = vmatmul.f32.gmra.mxu0 %v2300
    %v4628 = vpop.f32.mrf.mxu0
    %v4629 = vadd.f32 %v4564, %v4628
    %4630 = vmatmul.f32.gmra.mxu0 %v2303
    %v4631 = vpop.f32.mrf.mxu0
    %v4632 = vadd.f32 %v4567, %v4631
    %4633 = vmatmul.f32.gmra.mxu0 %v2306
    %v4634 = vpop.f32.mrf.mxu0
    %v4635 = vadd.f32 %v4570, %v4634
    %4636 = vmatmul.f32.gmra.mxu0 %v2309
    %v4637 = vpop.f32.mrf.mxu0
    %v4638 = vadd.f32 %v4573, %v4637
    %4639 = vmatmul.f32.gmra.mxu0 %v2312
    %v4640 = vpop.f32.mrf.mxu0
    %v4641 = vadd.f32 %v4576, %v4640
    %4642 = vmatmul.f32.gmra.mxu0 %v2315
    %v4643 = vpop.f32.mrf.mxu0
    %v4644 = vadd.f32 %v4579, %v4643
    %4645 = vmatmul.f32.gmra.mxu0 %v2318
    %v4646 = vpop.f32.mrf.mxu0
    %v4647 = vadd.f32 %v4582, %v4646
    %4648 = vdwg.mxu0
    %4649 = vmatpush.msra.mxu0 %v3723
    %4650 = vmatpush.msra.mxu0 %v3716
    %4651 = vmatpush.msra.mxu0 %v3709
    %4652 = vmatpush.msra.mxu0 %v3702
    %4653 = vmatpush.msra.mxu0 %v3695
    %4654 = vmatpush.msra.mxu0 %v3688
    %4655 = vmatpush.msra.mxu0 %v3681
    %4656 = vmatpush.msra.mxu0 %v3674
    %4657 = vmatpush.msra.mxu0 %v3667
    %4658 = vmatpush.msra.mxu0 %v3660
    %4659 = vmatpush.msra.mxu0 %v3653
    %4660 = vmatpush.msra.mxu0 %v3646
    %4661 = vmatpush.msra.mxu0 %v3639
    %4662 = vmatpush.msra.mxu0 %v3632
    %4663 = vmatpush.msra.mxu0 %v3625
    %4664 = vmatpush.msra.mxu0 %v3618
    %4665 = vmatmul.f32.gmra.mxu0 %v2401
    %v4666 = vpop.f32.mrf.mxu0
    %v4667 = vadd.f32 %v4602, %v4666
    %4668 = vmatmul.f32.gmra.mxu0 %v2402
    %v4669 = vpop.f32.mrf.mxu0
    %v4670 = vadd.f32 %v4605, %v4669
    %4671 = vmatmul.f32.gmra.mxu0 %v2403
    %v4672 = vpop.f32.mrf.mxu0
    %v4673 = vadd.f32 %v4608, %v4672
    %4674 = vmatmul.f32.gmra.mxu0 %v2404
    %v4675 = vpop.f32.mrf.mxu0
    %v4676 = vadd.f32 %v4611, %v4675
    %4677 = vmatmul.f32.gmra.mxu0 %v2405
    %v4678 = vpop.f32.mrf.mxu0
    %v4679 = vadd.f32 %v4614, %v4678
    %4680 = vmatmul.f32.gmra.mxu0 %v2406
    %v4681 = vpop.f32.mrf.mxu0
    %v4682 = vadd.f32 %v4617, %v4681
    %4683 = vmatmul.f32.gmra.mxu0 %v2407
    %v4684 = vpop.f32.mrf.mxu0
    %v4685 = vadd.f32 %v4620, %v4684
    %4686 = vmatmul.f32.gmra.mxu0 %v2408
    %v4687 = vpop.f32.mrf.mxu0
    %v4688 = vadd.f32 %v4623, %v4687
    %4689 = vmatmul.f32.gmra.mxu0 %v2409
    %v4690 = vpop.f32.mrf.mxu0
    %v4691 = vadd.f32 %v4626, %v4690
    %4692 = vmatmul.f32.gmra.mxu0 %v2410
    %v4693 = vpop.f32.mrf.mxu0
    %v4694 = vadd.f32 %v4629, %v4693
    %4695 = vmatmul.f32.gmra.mxu0 %v2411
    %v4696 = vpop.f32.mrf.mxu0
    %v4697 = vadd.f32 %v4632, %v4696
    %4698 = vmatmul.f32.gmra.mxu0 %v2412
    %v4699 = vpop.f32.mrf.mxu0
    %v4700 = vadd.f32 %v4635, %v4699
    %4701 = vmatmul.f32.gmra.mxu0 %v2413
    %v4702 = vpop.f32.mrf.mxu0
    %v4703 = vadd.f32 %v4638, %v4702
    %4704 = vmatmul.f32.gmra.mxu0 %v2414
    %v4705 = vpop.f32.mrf.mxu0
    %v4706 = vadd.f32 %v4641, %v4705
    %4707 = vmatmul.f32.gmra.mxu0 %v2415
    %v4708 = vpop.f32.mrf.mxu0
    %v4709 = vadd.f32 %v4644, %v4708
    %4710 = vmatmul.f32.gmra.mxu0 %v2416
    %v4711 = vpop.f32.mrf.mxu0
    %v4712 = vadd.f32 %v4647, %v4711
    %4713 = vdwg.mxu0
    %4714 = vmatpush.msra.mxu0 %v3835
    %4715 = vmatpush.msra.mxu0 %v3828
    %4716 = vmatpush.msra.mxu0 %v3821
    %4717 = vmatpush.msra.mxu0 %v3814
    %4718 = vmatpush.msra.mxu0 %v3807
    %4719 = vmatpush.msra.mxu0 %v3800
    %4720 = vmatpush.msra.mxu0 %v3793
    %4721 = vmatpush.msra.mxu0 %v3786
    %4722 = vmatpush.msra.mxu0 %v3779
    %4723 = vmatpush.msra.mxu0 %v3772
    %4724 = vmatpush.msra.mxu0 %v3765
    %4725 = vmatpush.msra.mxu0 %v3758
    %4726 = vmatpush.msra.mxu0 %v3751
    %4727 = vmatpush.msra.mxu0 %v3744
    %4728 = vmatpush.msra.mxu0 %v3737
    %4729 = vmatpush.msra.mxu0 %v3730
    %4730 = vmatmul.f32.gmra.mxu0 %v2644
    %v4731 = vpop.f32.mrf.mxu0
    %v4732 = vadd.f32 %v4667, %v4731
    %4733 = vmatmul.f32.gmra.mxu0 %v2655
    %v4734 = vpop.f32.mrf.mxu0
    %v4735 = vadd.f32 %v4670, %v4734
    %4736 = vmatmul.f32.gmra.mxu0 %v2663
    %v4737 = vpop.f32.mrf.mxu0
    %v4738 = vadd.f32 %v4673, %v4737
    %4739 = vmatmul.f32.gmra.mxu0 %v2671
    %v4740 = vpop.f32.mrf.mxu0
    %v4741 = vadd.f32 %v4676, %v4740
    %4742 = vmatmul.f32.gmra.mxu0 %v2679
    %v4743 = vpop.f32.mrf.mxu0
    %v4744 = vadd.f32 %v4679, %v4743
    %4745 = vmatmul.f32.gmra.mxu0 %v2687
    %v4746 = vpop.f32.mrf.mxu0
    %v4747 = vadd.f32 %v4682, %v4746
    %4748 = vmatmul.f32.gmra.mxu0 %v2695
    %v4749 = vpop.f32.mrf.mxu0
    %v4750 = vadd.f32 %v4685, %v4749
    %4751 = vmatmul.f32.gmra.mxu0 %v2703
    %v4752 = vpop.f32.mrf.mxu0
    %v4753 = vadd.f32 %v4688, %v4752
    %4754 = vmatmul.f32.gmra.mxu0 %v2711
    %v4755 = vpop.f32.mrf.mxu0
    %v4756 = vadd.f32 %v4691, %v4755
    %4757 = vmatmul.f32.gmra.mxu0 %v2719
    %v4758 = vpop.f32.mrf.mxu0
    %v4759 = vadd.f32 %v4694, %v4758
    %4760 = vmatmul.f32.gmra.mxu0 %v2727
    %v4761 = vpop.f32.mrf.mxu0
    %v4762 = vadd.f32 %v4697, %v4761
    %4763 = vmatmul.f32.gmra.mxu0 %v2735
    %v4764 = vpop.f32.mrf.mxu0
    %v4765 = vadd.f32 %v4700, %v4764
    %4766 = vmatmul.f32.gmra.mxu0 %v2743
    %v4767 = vpop.f32.mrf.mxu0
    %v4768 = vadd.f32 %v4703, %v4767
    %4769 = vmatmul.f32.gmra.mxu0 %v2751
    %v4770 = vpop.f32.mrf.mxu0
    %v4771 = vadd.f32 %v4706, %v4770
    %4772 = vmatmul.f32.gmra.mxu0 %v2759
    %v4773 = vpop.f32.mrf.mxu0
    %v4774 = vadd.f32 %v4709, %v4773
    %4775 = vmatmul.f32.gmra.mxu0 %v2830
    %v4776 = vpop.f32.mrf.mxu0
    %v4777 = vadd.f32 %v4712, %v4776
    %4778 = vdwg.mxu0
    %4779 = vmatpush.msra.mxu0 %v3947
    %4780 = vmatpush.msra.mxu0 %v3940
    %4781 = vmatpush.msra.mxu0 %v3933
    %4782 = vmatpush.msra.mxu0 %v3926
    %4783 = vmatpush.msra.mxu0 %v3919
    %4784 = vmatpush.msra.mxu0 %v3912
    %4785 = vmatpush.msra.mxu0 %v3905
    %4786 = vmatpush.msra.mxu0 %v3898
    %4787 = vmatpush.msra.mxu0 %v3891
    %4788 = vmatpush.msra.mxu0 %v3884
    %4789 = vmatpush.msra.mxu0 %v3877
    %4790 = vmatpush.msra.mxu0 %v3870
    %4791 = vmatpush.msra.mxu0 %v3863
    %4792 = vmatpush.msra.mxu0 %v3856
    %4793 = vmatpush.msra.mxu0 %v3849
    %4794 = vmatpush.msra.mxu0 %v3842
    %4795 = vmatmul.f32.gmra.mxu0 %v2647
    %v4796 = vpop.f32.mrf.mxu0
    %v4797 = vadd.f32 %v4732, %v4796
    %4798 = vmatmul.f32.gmra.mxu0 %v2657
    %v4799 = vpop.f32.mrf.mxu0
    %v4800 = vadd.f32 %v4735, %v4799
    %4801 = vmatmul.f32.gmra.mxu0 %v2665
    %v4802 = vpop.f32.mrf.mxu0
    %v4803 = vadd.f32 %v4738, %v4802
    %4804 = vmatmul.f32.gmra.mxu0 %v2673
    %v4805 = vpop.f32.mrf.mxu0
    %v4806 = vadd.f32 %v4741, %v4805
    %4807 = vmatmul.f32.gmra.mxu0 %v2681
    %v4808 = vpop.f32.mrf.mxu0
    %v4809 = vadd.f32 %v4744, %v4808
    %4810 = vmatmul.f32.gmra.mxu0 %v2689
    %v4811 = vpop.f32.mrf.mxu0
    %v4812 = vadd.f32 %v4747, %v4811
    %4813 = vmatmul.f32.gmra.mxu0 %v2697
    %v4814 = vpop.f32.mrf.mxu0
    %v4815 = vadd.f32 %v4750, %v4814
    %4816 = vmatmul.f32.gmra.mxu0 %v2705
    %v4817 = vpop.f32.mrf.mxu0
    %v4818 = vadd.f32 %v4753, %v4817
    %4819 = vmatmul.f32.gmra.mxu0 %v2713
    %v4820 = vpop.f32.mrf.mxu0
    %v4821 = vadd.f32 %v4756, %v4820
    %4822 = vmatmul.f32.gmra.mxu0 %v2721
    %v4823 = vpop.f32.mrf.mxu0
    %v4824 = vadd.f32 %v4759, %v4823
    %4825 = vmatmul.f32.gmra.mxu0 %v2729
    %v4826 = vpop.f32.mrf.mxu0
    %v4827 = vadd.f32 %v4762, %v4826
    %4828 = vmatmul.f32.gmra.mxu0 %v2737
    %v4829 = vpop.f32.mrf.mxu0
    %v4830 = vadd.f32 %v4765, %v4829
    %4831 = vmatmul.f32.gmra.mxu0 %v2745
    %v4832 = vpop.f32.mrf.mxu0
    %v4833 = vadd.f32 %v4768, %v4832
    %4834 = vmatmul.f32.gmra.mxu0 %v2753
    %v4835 = vpop.f32.mrf.mxu0
    %v4836 = vadd.f32 %v4771, %v4835
    %4837 = vmatmul.f32.gmra.mxu0 %v2761
    %v4838 = vpop.f32.mrf.mxu0
    %v4839 = vadd.f32 %v4774, %v4838
    %4840 = vmatmul.f32.gmra.mxu0 %v2831
    %v4841 = vpop.f32.mrf.mxu0
    %v4842 = vadd.f32 %v4777, %v4841
    %4843 = vdwg.mxu0
    %4844 = vmatpush.msra.mxu0 %v4059
    %4845 = vmatpush.msra.mxu0 %v4052
    %4846 = vmatpush.msra.mxu0 %v4045
    %4847 = vmatpush.msra.mxu0 %v4038
    %4848 = vmatpush.msra.mxu0 %v4031
    %4849 = vmatpush.msra.mxu0 %v4024
    %4850 = vmatpush.msra.mxu0 %v4017
    %4851 = vmatpush.msra.mxu0 %v4010
    %4852 = vmatpush.msra.mxu0 %v4003
    %4853 = vmatpush.msra.mxu0 %v3996
    %4854 = vmatpush.msra.mxu0 %v3989
    %4855 = vmatpush.msra.mxu0 %v3982
    %4856 = vmatpush.msra.mxu0 %v3975
    %4857 = vmatpush.msra.mxu0 %v3968
    %4858 = vmatpush.msra.mxu0 %v3961
    %4859 = vmatpush.msra.mxu0 %v3954
    %4860 = vmatmul.f32.gmra.mxu0 %v2650
    %v4861 = vpop.f32.mrf.mxu0
    %v4862 = vadd.f32 %v4797, %v4861
    %4863 = vmatmul.f32.gmra.mxu0 %v2659
    %v4864 = vpop.f32.mrf.mxu0
    %v4865 = vadd.f32 %v4800, %v4864
    %4866 = vmatmul.f32.gmra.mxu0 %v2667
    %v4867 = vpop.f32.mrf.mxu0
    %v4868 = vadd.f32 %v4803, %v4867
    %4869 = vmatmul.f32.gmra.mxu0 %v2675
    %v4870 = vpop.f32.mrf.mxu0
    %v4871 = vadd.f32 %v4806, %v4870
    %4872 = vmatmul.f32.gmra.mxu0 %v2683
    %v4873 = vpop.f32.mrf.mxu0
    %v4874 = vadd.f32 %v4809, %v4873
    %4875 = vmatmul.f32.gmra.mxu0 %v2691
    %v4876 = vpop.f32.mrf.mxu0
    %v4877 = vadd.f32 %v4812, %v4876
    %4878 = vmatmul.f32.gmra.mxu0 %v2699
    %v4879 = vpop.f32.mrf.mxu0
    %v4880 = vadd.f32 %v4815, %v4879
    %4881 = vmatmul.f32.gmra.mxu0 %v2707
    %v4882 = vpop.f32.mrf.mxu0
    %v4883 = vadd.f32 %v4818, %v4882
    %4884 = vmatmul.f32.gmra.mxu0 %v2715
    %v4885 = vpop.f32.mrf.mxu0
    %v4886 = vadd.f32 %v4821, %v4885
    %4887 = vmatmul.f32.gmra.mxu0 %v2723
    %v4888 = vpop.f32.mrf.mxu0
    %v4889 = vadd.f32 %v4824, %v4888
    %4890 = vmatmul.f32.gmra.mxu0 %v2731
    %v4891 = vpop.f32.mrf.mxu0
    %v4892 = vadd.f32 %v4827, %v4891
    %4893 = vmatmul.f32.gmra.mxu0 %v2739
    %v4894 = vpop.f32.mrf.mxu0
    %v4895 = vadd.f32 %v4830, %v4894
    %4896 = vmatmul.f32.gmra.mxu0 %v2747
    %v4897 = vpop.f32.mrf.mxu0
    %v4898 = vadd.f32 %v4833, %v4897
    %4899 = vmatmul.f32.gmra.mxu0 %v2755
    %v4900 = vpop.f32.mrf.mxu0
    %v4901 = vadd.f32 %v4836, %v4900
    %4902 = vmatmul.f32.gmra.mxu0 %v2763
    %v4903 = vpop.f32.mrf.mxu0
    %v4904 = vadd.f32 %v4839, %v4903
    %4905 = vmatmul.f32.gmra.mxu0 %v2832
    %v4906 = vpop.f32.mrf.mxu0
    %v4907 = vadd.f32 %v4842, %v4906
    %4908 = vdwg.mxu0
    %4909 = vmatpush.msra.mxu0 %v4171
    %4910 = vmatpush.msra.mxu0 %v4164
    %4911 = vmatpush.msra.mxu0 %v4157
    %4912 = vmatpush.msra.mxu0 %v4150
    %4913 = vmatpush.msra.mxu0 %v4143
    %4914 = vmatpush.msra.mxu0 %v4136
    %4915 = vmatpush.msra.mxu0 %v4129
    %4916 = vmatpush.msra.mxu0 %v4122
    %4917 = vmatpush.msra.mxu0 %v4115
    %4918 = vmatpush.msra.mxu0 %v4108
    %4919 = vmatpush.msra.mxu0 %v4101
    %4920 = vmatpush.msra.mxu0 %v4094
    %4921 = vmatpush.msra.mxu0 %v4087
    %4922 = vmatpush.msra.mxu0 %v4080
    %4923 = vmatpush.msra.mxu0 %v4073
    %4924 = vmatpush.msra.mxu0 %v4066
    %4925 = vmatmul.f32.gmra.mxu0 %v2653
    %v4926 = vpop.f32.mrf.mxu0
    %v4927 = vadd.f32 %v4862, %v4926
    %4928 = vmatmul.f32.gmra.mxu0 %v2661
    %v4929 = vpop.f32.mrf.mxu0
    %v4930 = vadd.f32 %v4865, %v4929
    %4931 = vmatmul.f32.gmra.mxu0 %v2669
    %v4932 = vpop.f32.mrf.mxu0
    %v4933 = vadd.f32 %v4868, %v4932
    %4934 = vmatmul.f32.gmra.mxu0 %v2677
    %v4935 = vpop.f32.mrf.mxu0
    %v4936 = vadd.f32 %v4871, %v4935
    %4937 = vmatmul.f32.gmra.mxu0 %v2685
    %v4938 = vpop.f32.mrf.mxu0
    %v4939 = vadd.f32 %v4874, %v4938
    %4940 = vmatmul.f32.gmra.mxu0 %v2693
    %v4941 = vpop.f32.mrf.mxu0
    %v4942 = vadd.f32 %v4877, %v4941
    %4943 = vmatmul.f32.gmra.mxu0 %v2701
    %v4944 = vpop.f32.mrf.mxu0
    %v4945 = vadd.f32 %v4880, %v4944
    %4946 = vmatmul.f32.gmra.mxu0 %v2709
    %v4947 = vpop.f32.mrf.mxu0
    %v4948 = vadd.f32 %v4883, %v4947
    %4949 = vmatmul.f32.gmra.mxu0 %v2717
    %v4950 = vpop.f32.mrf.mxu0
    %v4951 = vadd.f32 %v4886, %v4950
    %4952 = vmatmul.f32.gmra.mxu0 %v2725
    %v4953 = vpop.f32.mrf.mxu0
    %v4954 = vadd.f32 %v4889, %v4953
    %4955 = vmatmul.f32.gmra.mxu0 %v2733
    %v4956 = vpop.f32.mrf.mxu0
    %v4957 = vadd.f32 %v4892, %v4956
    %4958 = vmatmul.f32.gmra.mxu0 %v2741
    %v4959 = vpop.f32.mrf.mxu0
    %v4960 = vadd.f32 %v4895, %v4959
    %4961 = vmatmul.f32.gmra.mxu0 %v2749
    %v4962 = vpop.f32.mrf.mxu0
    %v4963 = vadd.f32 %v4898, %v4962
    %4964 = vmatmul.f32.gmra.mxu0 %v2757
    %v4965 = vpop.f32.mrf.mxu0
    %v4966 = vadd.f32 %v4901, %v4965
    %4967 = vmatmul.f32.gmra.mxu0 %v2765
    %v4968 = vpop.f32.mrf.mxu0
    %v4969 = vadd.f32 %v4904, %v4968
    %4970 = vmatmul.f32.gmra.mxu0 %v2833
    %v4971 = vpop.f32.mrf.mxu0
    %v4972 = vadd.f32 %v4907, %v4971
    %4973 = vdwg.mxu0
    %4974 = vmatpush.msra.mxu0 %v2940
    %4975 = vmatpush.msra.mxu0 %v2933
    %4976 = vmatpush.msra.mxu0 %v2926
    %4977 = vmatpush.msra.mxu0 %v2919
    %4978 = vmatpush.msra.mxu0 %v2912
    %4979 = vmatpush.msra.mxu0 %v2905
    %4980 = vmatpush.msra.mxu0 %v2898
    %4981 = vmatpush.msra.mxu0 %v2891
    %4982 = vmatpush.msra.mxu0 %v2884
    %4983 = vmatpush.msra.mxu0 %v2877
    %4984 = vmatpush.msra.mxu0 %v2870
    %4985 = vmatpush.msra.mxu0 %v2863
    %4986 = vmatpush.msra.mxu0 %v2856
    %4987 = vmatpush.msra.mxu0 %v2849
    %4988 = vmatpush.msra.mxu0 %v2842
    %4989 = vmatpush.msra.mxu0 %v2835
    %4990 = vmatmul.f32.gmra.mxu0 %v2637
    %v4991 = vpop.f32.mrf.mxu0
    %v4992 = vadd.f32 %v4181, %v4991
    %4993 = vmatmul.f32.gmra.mxu0 %v2454
    %v4994 = vpop.f32.mrf.mxu0
    %v4995 = vadd.f32 %v4181, %v4994
    %4996 = vmatmul.f32.gmra.mxu0 %v2462
    %v4997 = vpop.f32.mrf.mxu0
    %v4998 = vadd.f32 %v4181, %v4997
    %4999 = vmatmul.f32.gmra.mxu0 %v2470
    %v5000 = vpop.f32.mrf.mxu0
    %v5001 = vadd.f32 %v4181, %v5000
    %5002 = vmatmul.f32.gmra.mxu0 %v2478
    %v5003 = vpop.f32.mrf.mxu0
    %v5004 = vadd.f32 %v4181, %v5003
    %5005 = vmatmul.f32.gmra.mxu0 %v2486
    %v5006 = vpop.f32.mrf.mxu0
    %v5007 = vadd.f32 %v4181, %v5006
    %5008 = vmatmul.f32.gmra.mxu0 %v2494
    %v5009 = vpop.f32.mrf.mxu0
    %v5010 = vadd.f32 %v4181, %v5009
    %5011 = vmatmul.f32.gmra.mxu0 %v2502
    %v5012 = vpop.f32.mrf.mxu0
    %v5013 = vadd.f32 %v4181, %v5012
    %5014 = vmatmul.f32.gmra.mxu0 %v2510
    %v5015 = vpop.f32.mrf.mxu0
    %v5016 = vadd.f32 %v4181, %v5015
    %5017 = vmatmul.f32.gmra.mxu0 %v2518
    %v5018 = vpop.f32.mrf.mxu0
    %v5019 = vadd.f32 %v4181, %v5018
    %5020 = vmatmul.f32.gmra.mxu0 %v2526
    %v5021 = vpop.f32.mrf.mxu0
    %v5022 = vadd.f32 %v4181, %v5021
    %5023 = vmatmul.f32.gmra.mxu0 %v2534
    %v5024 = vpop.f32.mrf.mxu0
    %v5025 = vadd.f32 %v4181, %v5024
    %5026 = vmatmul.f32.gmra.mxu0 %v2542
    %v5027 = vpop.f32.mrf.mxu0
    %v5028 = vadd.f32 %v4181, %v5027
    %5029 = vmatmul.f32.gmra.mxu0 %v2550
    %v5030 = vpop.f32.mrf.mxu0
    %v5031 = vadd.f32 %v4181, %v5030
    %5032 = vmatmul.f32.gmra.mxu0 %v2558
    %v5033 = vpop.f32.mrf.mxu0
    %v5034 = vadd.f32 %v4181, %v5033
    %5035 = vmatmul.f32.gmra.mxu0 %v2566
    %v5036 = vpop.f32.mrf.mxu0
    %v5037 = vadd.f32 %v4181, %v5036
    %5038 = vdwg.mxu0
    %5039 = vmatpush.msra.mxu0 %v3052
    %5040 = vmatpush.msra.mxu0 %v3045
    %5041 = vmatpush.msra.mxu0 %v3038
    %5042 = vmatpush.msra.mxu0 %v3031
    %5043 = vmatpush.msra.mxu0 %v3024
    %5044 = vmatpush.msra.mxu0 %v3017
    %5045 = vmatpush.msra.mxu0 %v3010
    %5046 = vmatpush.msra.mxu0 %v3003
    %5047 = vmatpush.msra.mxu0 %v2996
    %5048 = vmatpush.msra.mxu0 %v2989
    %5049 = vmatpush.msra.mxu0 %v2982
    %5050 = vmatpush.msra.mxu0 %v2975
    %5051 = vmatpush.msra.mxu0 %v2968
    %5052 = vmatpush.msra.mxu0 %v2961
    %5053 = vmatpush.msra.mxu0 %v2954
    %5054 = vmatpush.msra.mxu0 %v2947
    %5055 = vmatmul.f32.gmra.mxu0 %v2638
    %v5056 = vpop.f32.mrf.mxu0
    %v5057 = vadd.f32 %v4992, %v5056
    %5058 = vmatmul.f32.gmra.mxu0 %v2456
    %v5059 = vpop.f32.mrf.mxu0
    %v5060 = vadd.f32 %v4995, %v5059
    %5061 = vmatmul.f32.gmra.mxu0 %v2464
    %v5062 = vpop.f32.mrf.mxu0
    %v5063 = vadd.f32 %v4998, %v5062
    %5064 = vmatmul.f32.gmra.mxu0 %v2472
    %v5065 = vpop.f32.mrf.mxu0
    %v5066 = vadd.f32 %v5001, %v5065
    %5067 = vmatmul.f32.gmra.mxu0 %v2480
    %v5068 = vpop.f32.mrf.mxu0
    %v5069 = vadd.f32 %v5004, %v5068
    %5070 = vmatmul.f32.gmra.mxu0 %v2488
    %v5071 = vpop.f32.mrf.mxu0
    %v5072 = vadd.f32 %v5007, %v5071
    %5073 = vmatmul.f32.gmra.mxu0 %v2496
    %v5074 = vpop.f32.mrf.mxu0
    %v5075 = vadd.f32 %v5010, %v5074
    %5076 = vmatmul.f32.gmra.mxu0 %v2504
    %v5077 = vpop.f32.mrf.mxu0
    %v5078 = vadd.f32 %v5013, %v5077
    %5079 = vmatmul.f32.gmra.mxu0 %v2512
    %v5080 = vpop.f32.mrf.mxu0
    %v5081 = vadd.f32 %v5016, %v5080
    %5082 = vmatmul.f32.gmra.mxu0 %v2520
    %v5083 = vpop.f32.mrf.mxu0
    %v5084 = vadd.f32 %v5019, %v5083
    %5085 = vmatmul.f32.gmra.mxu0 %v2528
    %v5086 = vpop.f32.mrf.mxu0
    %v5087 = vadd.f32 %v5022, %v5086
    %5088 = vmatmul.f32.gmra.mxu0 %v2536
    %v5089 = vpop.f32.mrf.mxu0
    %v5090 = vadd.f32 %v5025, %v5089
    %5091 = vmatmul.f32.gmra.mxu0 %v2544
    %v5092 = vpop.f32.mrf.mxu0
    %v5093 = vadd.f32 %v5028, %v5092
    %5094 = vmatmul.f32.gmra.mxu0 %v2552
    %v5095 = vpop.f32.mrf.mxu0
    %v5096 = vadd.f32 %v5031, %v5095
    %5097 = vmatmul.f32.gmra.mxu0 %v2560
    %v5098 = vpop.f32.mrf.mxu0
    %v5099 = vadd.f32 %v5034, %v5098
    %5100 = vmatmul.f32.gmra.mxu0 %v2568
    %v5101 = vpop.f32.mrf.mxu0
    %v5102 = vadd.f32 %v5037, %v5101
    %5103 = vdwg.mxu0
    %5104 = vmatpush.msra.mxu0 %v3164
    %5105 = vmatpush.msra.mxu0 %v3157
    %5106 = vmatpush.msra.mxu0 %v3150
    %5107 = vmatpush.msra.mxu0 %v3143
    %5108 = vmatpush.msra.mxu0 %v3136
    %5109 = vmatpush.msra.mxu0 %v3129
    %5110 = vmatpush.msra.mxu0 %v3122
    %5111 = vmatpush.msra.mxu0 %v3115
    %5112 = vmatpush.msra.mxu0 %v3108
    %5113 = vmatpush.msra.mxu0 %v3101
    %5114 = vmatpush.msra.mxu0 %v3094
    %5115 = vmatpush.msra.mxu0 %v3087
    %5116 = vmatpush.msra.mxu0 %v3080
    %5117 = vmatpush.msra.mxu0 %v3073
    %5118 = vmatpush.msra.mxu0 %v3066
    %5119 = vmatpush.msra.mxu0 %v3059
    %5120 = vmatmul.f32.gmra.mxu0 %v2639
    %v5121 = vpop.f32.mrf.mxu0
    %v5122 = vadd.f32 %v5057, %v5121
    %5123 = vmatmul.f32.gmra.mxu0 %v2458
    %v5124 = vpop.f32.mrf.mxu0
    %v5125 = vadd.f32 %v5060, %v5124
    %5126 = vmatmul.f32.gmra.mxu0 %v2466
    %v5127 = vpop.f32.mrf.mxu0
    %v5128 = vadd.f32 %v5063, %v5127
    %5129 = vmatmul.f32.gmra.mxu0 %v2474
    %v5130 = vpop.f32.mrf.mxu0
    %v5131 = vadd.f32 %v5066, %v5130
    %5132 = vmatmul.f32.gmra.mxu0 %v2482
    %v5133 = vpop.f32.mrf.mxu0
    %v5134 = vadd.f32 %v5069, %v5133
    %5135 = vmatmul.f32.gmra.mxu0 %v2490
    %v5136 = vpop.f32.mrf.mxu0
    %v5137 = vadd.f32 %v5072, %v5136
    %5138 = vmatmul.f32.gmra.mxu0 %v2498
    %v5139 = vpop.f32.mrf.mxu0
    %v5140 = vadd.f32 %v5075, %v5139
    %5141 = vmatmul.f32.gmra.mxu0 %v2506
    %v5142 = vpop.f32.mrf.mxu0
    %v5143 = vadd.f32 %v5078, %v5142
    %5144 = vmatmul.f32.gmra.mxu0 %v2514
    %v5145 = vpop.f32.mrf.mxu0
    %v5146 = vadd.f32 %v5081, %v5145
    %5147 = vmatmul.f32.gmra.mxu0 %v2522
    %v5148 = vpop.f32.mrf.mxu0
    %v5149 = vadd.f32 %v5084, %v5148
    %5150 = vmatmul.f32.gmra.mxu0 %v2530
    %v5151 = vpop.f32.mrf.mxu0
    %v5152 = vadd.f32 %v5087, %v5151
    %5153 = vmatmul.f32.gmra.mxu0 %v2538
    %v5154 = vpop.f32.mrf.mxu0
    %v5155 = vadd.f32 %v5090, %v5154
    %5156 = vmatmul.f32.gmra.mxu0 %v2546
    %v5157 = vpop.f32.mrf.mxu0
    %v5158 = vadd.f32 %v5093, %v5157
    %5159 = vmatmul.f32.gmra.mxu0 %v2554
    %v5160 = vpop.f32.mrf.mxu0
    %v5161 = vadd.f32 %v5096, %v5160
    %5162 = vmatmul.f32.gmra.mxu0 %v2562
    %v5163 = vpop.f32.mrf.mxu0
    %v5164 = vadd.f32 %v5099, %v5163
    %5165 = vmatmul.f32.gmra.mxu0 %v2570
    %v5166 = vpop.f32.mrf.mxu0
    %v5167 = vadd.f32 %v5102, %v5166
    %5168 = vdwg.mxu0
    %5169 = vmatpush.msra.mxu0 %v3276
    %5170 = vmatpush.msra.mxu0 %v3269
    %5171 = vmatpush.msra.mxu0 %v3262
    %5172 = vmatpush.msra.mxu0 %v3255
    %5173 = vmatpush.msra.mxu0 %v3248
    %5174 = vmatpush.msra.mxu0 %v3241
    %5175 = vmatpush.msra.mxu0 %v3234
    %5176 = vmatpush.msra.mxu0 %v3227
    %5177 = vmatpush.msra.mxu0 %v3220
    %5178 = vmatpush.msra.mxu0 %v3213
    %5179 = vmatpush.msra.mxu0 %v3206
    %5180 = vmatpush.msra.mxu0 %v3199
    %5181 = vmatpush.msra.mxu0 %v3192
    %5182 = vmatpush.msra.mxu0 %v3185
    %5183 = vmatpush.msra.mxu0 %v3178
    %5184 = vmatpush.msra.mxu0 %v3171
    %5185 = vmatmul.f32.gmra.mxu0 %v2640
    %v5186 = vpop.f32.mrf.mxu0
    %v5187 = vadd.f32 %v5122, %v5186
    %5188 = vmatmul.f32.gmra.mxu0 %v2460
    %v5189 = vpop.f32.mrf.mxu0
    %v5190 = vadd.f32 %v5125, %v5189
    %5191 = vmatmul.f32.gmra.mxu0 %v2468
    %v5192 = vpop.f32.mrf.mxu0
    %v5193 = vadd.f32 %v5128, %v5192
    %5194 = vmatmul.f32.gmra.mxu0 %v2476
    %v5195 = vpop.f32.mrf.mxu0
    %v5196 = vadd.f32 %v5131, %v5195
    %5197 = vmatmul.f32.gmra.mxu0 %v2484
    %v5198 = vpop.f32.mrf.mxu0
    %v5199 = vadd.f32 %v5134, %v5198
    %5200 = vmatmul.f32.gmra.mxu0 %v2492
    %v5201 = vpop.f32.mrf.mxu0
    %v5202 = vadd.f32 %v5137, %v5201
    %5203 = vmatmul.f32.gmra.mxu0 %v2500
    %v5204 = vpop.f32.mrf.mxu0
    %v5205 = vadd.f32 %v5140, %v5204
    %5206 = vmatmul.f32.gmra.mxu0 %v2508
    %v5207 = vpop.f32.mrf.mxu0
    %v5208 = vadd.f32 %v5143, %v5207
    %5209 = vmatmul.f32.gmra.mxu0 %v2516
    %v5210 = vpop.f32.mrf.mxu0
    %v5211 = vadd.f32 %v5146, %v5210
    %5212 = vmatmul.f32.gmra.mxu0 %v2524
    %v5213 = vpop.f32.mrf.mxu0
    %v5214 = vadd.f32 %v5149, %v5213
    %5215 = vmatmul.f32.gmra.mxu0 %v2532
    %v5216 = vpop.f32.mrf.mxu0
    %v5217 = vadd.f32 %v5152, %v5216
    %5218 = vmatmul.f32.gmra.mxu0 %v2540
    %v5219 = vpop.f32.mrf.mxu0
    %v5220 = vadd.f32 %v5155, %v5219
    %5221 = vmatmul.f32.gmra.mxu0 %v2548
    %v5222 = vpop.f32.mrf.mxu0
    %v5223 = vadd.f32 %v5158, %v5222
    %5224 = vmatmul.f32.gmra.mxu0 %v2556
    %v5225 = vpop.f32.mrf.mxu0
    %v5226 = vadd.f32 %v5161, %v5225
    %5227 = vmatmul.f32.gmra.mxu0 %v2564
    %v5228 = vpop.f32.mrf.mxu0
    %v5229 = vadd.f32 %v5164, %v5228
    %5230 = vmatmul.f32.gmra.mxu0 %v2572
    %v5231 = vpop.f32.mrf.mxu0
    %v5232 = vadd.f32 %v5167, %v5231
    %5233 = vdwg.mxu0
    %5234 = vmatpush.msra.mxu0 %v3388
    %5235 = vmatpush.msra.mxu0 %v3381
    %5236 = vmatpush.msra.mxu0 %v3374
    %5237 = vmatpush.msra.mxu0 %v3367
    %5238 = vmatpush.msra.mxu0 %v3360
    %5239 = vmatpush.msra.mxu0 %v3353
    %5240 = vmatpush.msra.mxu0 %v3346
    %5241 = vmatpush.msra.mxu0 %v3339
    %5242 = vmatpush.msra.mxu0 %v3332
    %5243 = vmatpush.msra.mxu0 %v3325
    %5244 = vmatpush.msra.mxu0 %v3318
    %5245 = vmatpush.msra.mxu0 %v3311
    %5246 = vmatpush.msra.mxu0 %v3304
    %5247 = vmatpush.msra.mxu0 %v3297
    %5248 = vmatpush.msra.mxu0 %v3290
    %5249 = vmatpush.msra.mxu0 %v3283
    %5250 = vmatmul.f32.gmra.mxu0 %v2384
    %v5251 = vpop.f32.mrf.mxu0
    %v5252 = vadd.f32 %v5187, %v5251
    %5253 = vmatmul.f32.gmra.mxu0 %v2385
    %v5254 = vpop.f32.mrf.mxu0
    %v5255 = vadd.f32 %v5190, %v5254
    %5256 = vmatmul.f32.gmra.mxu0 %v2386
    %v5257 = vpop.f32.mrf.mxu0
    %v5258 = vadd.f32 %v5193, %v5257
    %5259 = vmatmul.f32.gmra.mxu0 %v2387
    %v5260 = vpop.f32.mrf.mxu0
    %v5261 = vadd.f32 %v5196, %v5260
    %5262 = vmatmul.f32.gmra.mxu0 %v2388
    %v5263 = vpop.f32.mrf.mxu0
    %v5264 = vadd.f32 %v5199, %v5263
    %5265 = vmatmul.f32.gmra.mxu0 %v2389
    %v5266 = vpop.f32.mrf.mxu0
    %v5267 = vadd.f32 %v5202, %v5266
    %5268 = vmatmul.f32.gmra.mxu0 %v2390
    %v5269 = vpop.f32.mrf.mxu0
    %v5270 = vadd.f32 %v5205, %v5269
    %5271 = vmatmul.f32.gmra.mxu0 %v2391
    %v5272 = vpop.f32.mrf.mxu0
    %v5273 = vadd.f32 %v5208, %v5272
    %5274 = vmatmul.f32.gmra.mxu0 %v2392
    %v5275 = vpop.f32.mrf.mxu0
    %v5276 = vadd.f32 %v5211, %v5275
    %5277 = vmatmul.f32.gmra.mxu0 %v2393
    %v5278 = vpop.f32.mrf.mxu0
    %v5279 = vadd.f32 %v5214, %v5278
    %5280 = vmatmul.f32.gmra.mxu0 %v2394
    %v5281 = vpop.f32.mrf.mxu0
    %v5282 = vadd.f32 %v5217, %v5281
    %5283 = vmatmul.f32.gmra.mxu0 %v2395
    %v5284 = vpop.f32.mrf.mxu0
    %v5285 = vadd.f32 %v5220, %v5284
    %5286 = vmatmul.f32.gmra.mxu0 %v2396
    %v5287 = vpop.f32.mrf.mxu0
    %v5288 = vadd.f32 %v5223, %v5287
    %5289 = vmatmul.f32.gmra.mxu0 %v2397
    %v5290 = vpop.f32.mrf.mxu0
    %v5291 = vadd.f32 %v5226, %v5290
    %5292 = vmatmul.f32.gmra.mxu0 %v2398
    %v5293 = vpop.f32.mrf.mxu0
    %v5294 = vadd.f32 %v5229, %v5293
    %5295 = vmatmul.f32.gmra.mxu0 %v2399
    %v5296 = vpop.f32.mrf.mxu0
    %v5297 = vadd.f32 %v5232, %v5296
    %5298 = vdwg.mxu0
    %5299 = vmatpush.msra.mxu0 %v3500
    %5300 = vmatpush.msra.mxu0 %v3493
    %5301 = vmatpush.msra.mxu0 %v3486
    %5302 = vmatpush.msra.mxu0 %v3479
    %5303 = vmatpush.msra.mxu0 %v3472
    %5304 = vmatpush.msra.mxu0 %v3465
    %5305 = vmatpush.msra.mxu0 %v3458
    %5306 = vmatpush.msra.mxu0 %v3451
    %5307 = vmatpush.msra.mxu0 %v3444
    %5308 = vmatpush.msra.mxu0 %v3437
    %5309 = vmatpush.msra.mxu0 %v3430
    %5310 = vmatpush.msra.mxu0 %v3423
    %5311 = vmatpush.msra.mxu0 %v3416
    %5312 = vmatpush.msra.mxu0 %v3409
    %5313 = vmatpush.msra.mxu0 %v3402
    %5314 = vmatpush.msra.mxu0 %v3395
    %5315 = vmatmul.f32.gmra.mxu0 %v2272
    %v5316 = vpop.f32.mrf.mxu0
    %v5317 = vadd.f32 %v5252, %v5316
    %5318 = vmatmul.f32.gmra.mxu0 %v2275
    %v5319 = vpop.f32.mrf.mxu0
    %v5320 = vadd.f32 %v5255, %v5319
    %5321 = vmatmul.f32.gmra.mxu0 %v2278
    %v5322 = vpop.f32.mrf.mxu0
    %v5323 = vadd.f32 %v5258, %v5322
    %5324 = vmatmul.f32.gmra.mxu0 %v2281
    %v5325 = vpop.f32.mrf.mxu0
    %v5326 = vadd.f32 %v5261, %v5325
    %5327 = vmatmul.f32.gmra.mxu0 %v2284
    %v5328 = vpop.f32.mrf.mxu0
    %v5329 = vadd.f32 %v5264, %v5328
    %5330 = vmatmul.f32.gmra.mxu0 %v2287
    %v5331 = vpop.f32.mrf.mxu0
    %v5332 = vadd.f32 %v5267, %v5331
    %5333 = vmatmul.f32.gmra.mxu0 %v2290
    %v5334 = vpop.f32.mrf.mxu0
    %v5335 = vadd.f32 %v5270, %v5334
    %5336 = vmatmul.f32.gmra.mxu0 %v2293
    %v5337 = vpop.f32.mrf.mxu0
    %v5338 = vadd.f32 %v5273, %v5337
    %5339 = vmatmul.f32.gmra.mxu0 %v2296
    %v5340 = vpop.f32.mrf.mxu0
    %v5341 = vadd.f32 %v5276, %v5340
    %5342 = vmatmul.f32.gmra.mxu0 %v2299
    %v5343 = vpop.f32.mrf.mxu0
    %v5344 = vadd.f32 %v5279, %v5343
    %5345 = vmatmul.f32.gmra.mxu0 %v2302
    %v5346 = vpop.f32.mrf.mxu0
    %v5347 = vadd.f32 %v5282, %v5346
    %5348 = vmatmul.f32.gmra.mxu0 %v2305
    %v5349 = vpop.f32.mrf.mxu0
    %v5350 = vadd.f32 %v5285, %v5349
    %5351 = vmatmul.f32.gmra.mxu0 %v2308
    %v5352 = vpop.f32.mrf.mxu0
    %v5353 = vadd.f32 %v5288, %v5352
    %5354 = vmatmul.f32.gmra.mxu0 %v2311
    %v5355 = vpop.f32.mrf.mxu0
    %v5356 = vadd.f32 %v5291, %v5355
    %5357 = vmatmul.f32.gmra.mxu0 %v2314
    %v5358 = vpop.f32.mrf.mxu0
    %v5359 = vadd.f32 %v5294, %v5358
    %5360 = vmatmul.f32.gmra.mxu0 %v2317
    %v5361 = vpop.f32.mrf.mxu0
    %v5362 = vadd.f32 %v5297, %v5361
    %5363 = vdwg.mxu0
    %5364 = vmatpush.msra.mxu0 %v3612
    %5365 = vmatpush.msra.mxu0 %v3605
    %5366 = vmatpush.msra.mxu0 %v3598
    %5367 = vmatpush.msra.mxu0 %v3591
    %5368 = vmatpush.msra.mxu0 %v3584
    %5369 = vmatpush.msra.mxu0 %v3577
    %5370 = vmatpush.msra.mxu0 %v3570
    %5371 = vmatpush.msra.mxu0 %v3563
    %5372 = vmatpush.msra.mxu0 %v3556
    %5373 = vmatpush.msra.mxu0 %v3549
    %5374 = vmatpush.msra.mxu0 %v3542
    %5375 = vmatpush.msra.mxu0 %v3535
    %5376 = vmatpush.msra.mxu0 %v3528
    %5377 = vmatpush.msra.mxu0 %v3521
    %5378 = vmatpush.msra.mxu0 %v3514
    %5379 = vmatpush.msra.mxu0 %v3507
    %5380 = vmatmul.f32.gmra.mxu0 %v2273
    %v5381 = vpop.f32.mrf.mxu0
    %v5382 = vadd.f32 %v5317, %v5381
    %5383 = vmatmul.f32.gmra.mxu0 %v2276
    %v5384 = vpop.f32.mrf.mxu0
    %v5385 = vadd.f32 %v5320, %v5384
    %5386 = vmatmul.f32.gmra.mxu0 %v2279
    %v5387 = vpop.f32.mrf.mxu0
    %v5388 = vadd.f32 %v5323, %v5387
    %5389 = vmatmul.f32.gmra.mxu0 %v2282
    %v5390 = vpop.f32.mrf.mxu0
    %v5391 = vadd.f32 %v5326, %v5390
    %5392 = vmatmul.f32.gmra.mxu0 %v2285
    %v5393 = vpop.f32.mrf.mxu0
    %v5394 = vadd.f32 %v5329, %v5393
    %5395 = vmatmul.f32.gmra.mxu0 %v2288
    %v5396 = vpop.f32.mrf.mxu0
    %v5397 = vadd.f32 %v5332, %v5396
    %5398 = vmatmul.f32.gmra.mxu0 %v2291
    %v5399 = vpop.f32.mrf.mxu0
    %v5400 = vadd.f32 %v5335, %v5399
    %5401 = vmatmul.f32.gmra.mxu0 %v2294
    %v5402 = vpop.f32.mrf.mxu0
    %v5403 = vadd.f32 %v5338, %v5402
    %5404 = vmatmul.f32.gmra.mxu0 %v2297
    %v5405 = vpop.f32.mrf.mxu0
    %v5406 = vadd.f32 %v5341, %v5405
    %5407 = vmatmul.f32.gmra.mxu0 %v2300
    %v5408 = vpop.f32.mrf.mxu0
    %v5409 = vadd.f32 %v5344, %v5408
    %5410 = vmatmul.f32.gmra.mxu0 %v2303
    %v5411 = vpop.f32.mrf.mxu0
    %v5412 = vadd.f32 %v5347, %v5411
    %5413 = vmatmul.f32.gmra.mxu0 %v2306
    %v5414 = vpop.f32.mrf.mxu0
    %v5415 = vadd.f32 %v5350, %v5414
    %5416 = vmatmul.f32.gmra.mxu0 %v2309
    %v5417 = vpop.f32.mrf.mxu0
    %v5418 = vadd.f32 %v5353, %v5417
    %5419 = vmatmul.f32.gmra.mxu0 %v2312
    %v5420 = vpop.f32.mrf.mxu0
    %v5421 = vadd.f32 %v5356, %v5420
    %5422 = vmatmul.f32.gmra.mxu0 %v2315
    %v5423 = vpop.f32.mrf.mxu0
    %v5424 = vadd.f32 %v5359, %v5423
    %5425 = vmatmul.f32.gmra.mxu0 %v2318
    %v5426 = vpop.f32.mrf.mxu0
    %v5427 = vadd.f32 %v5362, %v5426
    %5428 = vdwg.mxu0
    %5429 = vmatpush.msra.mxu0 %v3724
    %5430 = vmatpush.msra.mxu0 %v3717
    %5431 = vmatpush.msra.mxu0 %v3710
    %5432 = vmatpush.msra.mxu0 %v3703
    %5433 = vmatpush.msra.mxu0 %v3696
    %5434 = vmatpush.msra.mxu0 %v3689
    %5435 = vmatpush.msra.mxu0 %v3682
    %5436 = vmatpush.msra.mxu0 %v3675
    %5437 = vmatpush.msra.mxu0 %v3668
    %5438 = vmatpush.msra.mxu0 %v3661
    %5439 = vmatpush.msra.mxu0 %v3654
    %5440 = vmatpush.msra.mxu0 %v3647
    %5441 = vmatpush.msra.mxu0 %v3640
    %5442 = vmatpush.msra.mxu0 %v3633
    %5443 = vmatpush.msra.mxu0 %v3626
    %5444 = vmatpush.msra.mxu0 %v3619
    %5445 = vmatmul.f32.gmra.mxu0 %v2401
    %v5446 = vpop.f32.mrf.mxu0
    %v5447 = vadd.f32 %v5382, %v5446
    %5448 = vmatmul.f32.gmra.mxu0 %v2402
    %v5449 = vpop.f32.mrf.mxu0
    %v5450 = vadd.f32 %v5385, %v5449
    %5451 = vmatmul.f32.gmra.mxu0 %v2403
    %v5452 = vpop.f32.mrf.mxu0
    %v5453 = vadd.f32 %v5388, %v5452
    %5454 = vmatmul.f32.gmra.mxu0 %v2404
    %v5455 = vpop.f32.mrf.mxu0
    %v5456 = vadd.f32 %v5391, %v5455
    %5457 = vmatmul.f32.gmra.mxu0 %v2405
    %v5458 = vpop.f32.mrf.mxu0
    %v5459 = vadd.f32 %v5394, %v5458
    %5460 = vmatmul.f32.gmra.mxu0 %v2406
    %v5461 = vpop.f32.mrf.mxu0
    %v5462 = vadd.f32 %v5397, %v5461
    %5463 = vmatmul.f32.gmra.mxu0 %v2407
    %v5464 = vpop.f32.mrf.mxu0
    %v5465 = vadd.f32 %v5400, %v5464
    %5466 = vmatmul.f32.gmra.mxu0 %v2408
    %v5467 = vpop.f32.mrf.mxu0
    %v5468 = vadd.f32 %v5403, %v5467
    %5469 = vmatmul.f32.gmra.mxu0 %v2409
    %v5470 = vpop.f32.mrf.mxu0
    %v5471 = vadd.f32 %v5406, %v5470
    %5472 = vmatmul.f32.gmra.mxu0 %v2410
    %v5473 = vpop.f32.mrf.mxu0
    %v5474 = vadd.f32 %v5409, %v5473
    %5475 = vmatmul.f32.gmra.mxu0 %v2411
    %v5476 = vpop.f32.mrf.mxu0
    %v5477 = vadd.f32 %v5412, %v5476
    %5478 = vmatmul.f32.gmra.mxu0 %v2412
    %v5479 = vpop.f32.mrf.mxu0
    %v5480 = vadd.f32 %v5415, %v5479
    %5481 = vmatmul.f32.gmra.mxu0 %v2413
    %v5482 = vpop.f32.mrf.mxu0
    %v5483 = vadd.f32 %v5418, %v5482
    %5484 = vmatmul.f32.gmra.mxu0 %v2414
    %v5485 = vpop.f32.mrf.mxu0
    %v5486 = vadd.f32 %v5421, %v5485
    %5487 = vmatmul.f32.gmra.mxu0 %v2415
    %v5488 = vpop.f32.mrf.mxu0
    %v5489 = vadd.f32 %v5424, %v5488
    %5490 = vmatmul.f32.gmra.mxu0 %v2416
    %v5491 = vpop.f32.mrf.mxu0
    %v5492 = vadd.f32 %v5427, %v5491
    %5493 = vdwg.mxu0
    %5494 = vmatpush.msra.mxu0 %v3836
    %5495 = vmatpush.msra.mxu0 %v3829
    %5496 = vmatpush.msra.mxu0 %v3822
    %5497 = vmatpush.msra.mxu0 %v3815
    %5498 = vmatpush.msra.mxu0 %v3808
    %5499 = vmatpush.msra.mxu0 %v3801
    %5500 = vmatpush.msra.mxu0 %v3794
    %5501 = vmatpush.msra.mxu0 %v3787
    %5502 = vmatpush.msra.mxu0 %v3780
    %5503 = vmatpush.msra.mxu0 %v3773
    %5504 = vmatpush.msra.mxu0 %v3766
    %5505 = vmatpush.msra.mxu0 %v3759
    %5506 = vmatpush.msra.mxu0 %v3752
    %5507 = vmatpush.msra.mxu0 %v3745
    %5508 = vmatpush.msra.mxu0 %v3738
    %5509 = vmatpush.msra.mxu0 %v3731
    %5510 = vmatmul.f32.gmra.mxu0 %v2644
    %v5511 = vpop.f32.mrf.mxu0
    %v5512 = vadd.f32 %v5447, %v5511
    %5513 = vmatmul.f32.gmra.mxu0 %v2655
    %v5514 = vpop.f32.mrf.mxu0
    %v5515 = vadd.f32 %v5450, %v5514
    %5516 = vmatmul.f32.gmra.mxu0 %v2663
    %v5517 = vpop.f32.mrf.mxu0
    %v5518 = vadd.f32 %v5453, %v5517
    %5519 = vmatmul.f32.gmra.mxu0 %v2671
    %v5520 = vpop.f32.mrf.mxu0
    %v5521 = vadd.f32 %v5456, %v5520
    %5522 = vmatmul.f32.gmra.mxu0 %v2679
    %v5523 = vpop.f32.mrf.mxu0
    %v5524 = vadd.f32 %v5459, %v5523
    %5525 = vmatmul.f32.gmra.mxu0 %v2687
    %v5526 = vpop.f32.mrf.mxu0
    %v5527 = vadd.f32 %v5462, %v5526
    %5528 = vmatmul.f32.gmra.mxu0 %v2695
    %v5529 = vpop.f32.mrf.mxu0
    %v5530 = vadd.f32 %v5465, %v5529
    %5531 = vmatmul.f32.gmra.mxu0 %v2703
    %v5532 = vpop.f32.mrf.mxu0
    %v5533 = vadd.f32 %v5468, %v5532
    %5534 = vmatmul.f32.gmra.mxu0 %v2711
    %v5535 = vpop.f32.mrf.mxu0
    %v5536 = vadd.f32 %v5471, %v5535
    %5537 = vmatmul.f32.gmra.mxu0 %v2719
    %v5538 = vpop.f32.mrf.mxu0
    %v5539 = vadd.f32 %v5474, %v5538
    %5540 = vmatmul.f32.gmra.mxu0 %v2727
    %v5541 = vpop.f32.mrf.mxu0
    %v5542 = vadd.f32 %v5477, %v5541
    %5543 = vmatmul.f32.gmra.mxu0 %v2735
    %v5544 = vpop.f32.mrf.mxu0
    %v5545 = vadd.f32 %v5480, %v5544
    %5546 = vmatmul.f32.gmra.mxu0 %v2743
    %v5547 = vpop.f32.mrf.mxu0
    %v5548 = vadd.f32 %v5483, %v5547
    %5549 = vmatmul.f32.gmra.mxu0 %v2751
    %v5550 = vpop.f32.mrf.mxu0
    %v5551 = vadd.f32 %v5486, %v5550
    %5552 = vmatmul.f32.gmra.mxu0 %v2759
    %v5553 = vpop.f32.mrf.mxu0
    %v5554 = vadd.f32 %v5489, %v5553
    %5555 = vmatmul.f32.gmra.mxu0 %v2830
    %v5556 = vpop.f32.mrf.mxu0
    %v5557 = vadd.f32 %v5492, %v5556
    %5558 = vdwg.mxu0
    %5559 = vmatpush.msra.mxu0 %v3948
    %5560 = vmatpush.msra.mxu0 %v3941
    %5561 = vmatpush.msra.mxu0 %v3934
    %5562 = vmatpush.msra.mxu0 %v3927
    %5563 = vmatpush.msra.mxu0 %v3920
    %5564 = vmatpush.msra.mxu0 %v3913
    %5565 = vmatpush.msra.mxu0 %v3906
    %5566 = vmatpush.msra.mxu0 %v3899
    %5567 = vmatpush.msra.mxu0 %v3892
    %5568 = vmatpush.msra.mxu0 %v3885
    %5569 = vmatpush.msra.mxu0 %v3878
    %5570 = vmatpush.msra.mxu0 %v3871
    %5571 = vmatpush.msra.mxu0 %v3864
    %5572 = vmatpush.msra.mxu0 %v3857
    %5573 = vmatpush.msra.mxu0 %v3850
    %5574 = vmatpush.msra.mxu0 %v3843
    %5575 = vmatmul.f32.gmra.mxu0 %v2647
    %v5576 = vpop.f32.mrf.mxu0
    %v5577 = vadd.f32 %v5512, %v5576
    %5578 = vmatmul.f32.gmra.mxu0 %v2657
    %v5579 = vpop.f32.mrf.mxu0
    %v5580 = vadd.f32 %v5515, %v5579
    %5581 = vmatmul.f32.gmra.mxu0 %v2665
    %v5582 = vpop.f32.mrf.mxu0
    %v5583 = vadd.f32 %v5518, %v5582
    %5584 = vmatmul.f32.gmra.mxu0 %v2673
    %v5585 = vpop.f32.mrf.mxu0
    %v5586 = vadd.f32 %v5521, %v5585
    %5587 = vmatmul.f32.gmra.mxu0 %v2681
    %v5588 = vpop.f32.mrf.mxu0
    %v5589 = vadd.f32 %v5524, %v5588
    %5590 = vmatmul.f32.gmra.mxu0 %v2689
    %v5591 = vpop.f32.mrf.mxu0
    %v5592 = vadd.f32 %v5527, %v5591
    %5593 = vmatmul.f32.gmra.mxu0 %v2697
    %v5594 = vpop.f32.mrf.mxu0
    %v5595 = vadd.f32 %v5530, %v5594
    %5596 = vmatmul.f32.gmra.mxu0 %v2705
    %v5597 = vpop.f32.mrf.mxu0
    %v5598 = vadd.f32 %v5533, %v5597
    %5599 = vmatmul.f32.gmra.mxu0 %v2713
    %v5600 = vpop.f32.mrf.mxu0
    %v5601 = vadd.f32 %v5536, %v5600
    %5602 = vmatmul.f32.gmra.mxu0 %v2721
    %v5603 = vpop.f32.mrf.mxu0
    %v5604 = vadd.f32 %v5539, %v5603
    %5605 = vmatmul.f32.gmra.mxu0 %v2729
    %v5606 = vpop.f32.mrf.mxu0
    %v5607 = vadd.f32 %v5542, %v5606
    %5608 = vmatmul.f32.gmra.mxu0 %v2737
    %v5609 = vpop.f32.mrf.mxu0
    %v5610 = vadd.f32 %v5545, %v5609
    %5611 = vmatmul.f32.gmra.mxu0 %v2745
    %v5612 = vpop.f32.mrf.mxu0
    %v5613 = vadd.f32 %v5548, %v5612
    %5614 = vmatmul.f32.gmra.mxu0 %v2753
    %v5615 = vpop.f32.mrf.mxu0
    %v5616 = vadd.f32 %v5551, %v5615
    %5617 = vmatmul.f32.gmra.mxu0 %v2761
    %v5618 = vpop.f32.mrf.mxu0
    %v5619 = vadd.f32 %v5554, %v5618
    %5620 = vmatmul.f32.gmra.mxu0 %v2831
    %v5621 = vpop.f32.mrf.mxu0
    %v5622 = vadd.f32 %v5557, %v5621
    %5623 = vdwg.mxu0
    %5624 = vmatpush.msra.mxu0 %v4060
    %5625 = vmatpush.msra.mxu0 %v4053
    %5626 = vmatpush.msra.mxu0 %v4046
    %5627 = vmatpush.msra.mxu0 %v4039
    %5628 = vmatpush.msra.mxu0 %v4032
    %5629 = vmatpush.msra.mxu0 %v4025
    %5630 = vmatpush.msra.mxu0 %v4018
    %5631 = vmatpush.msra.mxu0 %v4011
    %5632 = vmatpush.msra.mxu0 %v4004
    %5633 = vmatpush.msra.mxu0 %v3997
    %5634 = vmatpush.msra.mxu0 %v3990
    %5635 = vmatpush.msra.mxu0 %v3983
    %5636 = vmatpush.msra.mxu0 %v3976
    %5637 = vmatpush.msra.mxu0 %v3969
    %5638 = vmatpush.msra.mxu0 %v3962
    %5639 = vmatpush.msra.mxu0 %v3955
    %5640 = vmatmul.f32.gmra.mxu0 %v2650
    %v5641 = vpop.f32.mrf.mxu0
    %v5642 = vadd.f32 %v5577, %v5641
    %5643 = vmatmul.f32.gmra.mxu0 %v2659
    %v5644 = vpop.f32.mrf.mxu0
    %v5645 = vadd.f32 %v5580, %v5644
    %5646 = vmatmul.f32.gmra.mxu0 %v2667
    %v5647 = vpop.f32.mrf.mxu0
    %v5648 = vadd.f32 %v5583, %v5647
    %5649 = vmatmul.f32.gmra.mxu0 %v2675
    %v5650 = vpop.f32.mrf.mxu0
    %v5651 = vadd.f32 %v5586, %v5650
    %5652 = vmatmul.f32.gmra.mxu0 %v2683
    %v5653 = vpop.f32.mrf.mxu0
    %v5654 = vadd.f32 %v5589, %v5653
    %5655 = vmatmul.f32.gmra.mxu0 %v2691
    %v5656 = vpop.f32.mrf.mxu0
    %v5657 = vadd.f32 %v5592, %v5656
    %5658 = vmatmul.f32.gmra.mxu0 %v2699
    %v5659 = vpop.f32.mrf.mxu0
    %v5660 = vadd.f32 %v5595, %v5659
    %5661 = vmatmul.f32.gmra.mxu0 %v2707
    %v5662 = vpop.f32.mrf.mxu0
    %v5663 = vadd.f32 %v5598, %v5662
    %5664 = vmatmul.f32.gmra.mxu0 %v2715
    %v5665 = vpop.f32.mrf.mxu0
    %v5666 = vadd.f32 %v5601, %v5665
    %5667 = vmatmul.f32.gmra.mxu0 %v2723
    %v5668 = vpop.f32.mrf.mxu0
    %v5669 = vadd.f32 %v5604, %v5668
    %5670 = vmatmul.f32.gmra.mxu0 %v2731
    %v5671 = vpop.f32.mrf.mxu0
    %v5672 = vadd.f32 %v5607, %v5671
    %5673 = vmatmul.f32.gmra.mxu0 %v2739
    %v5674 = vpop.f32.mrf.mxu0
    %v5675 = vadd.f32 %v5610, %v5674
    %5676 = vmatmul.f32.gmra.mxu0 %v2747
    %v5677 = vpop.f32.mrf.mxu0
    %v5678 = vadd.f32 %v5613, %v5677
    %5679 = vmatmul.f32.gmra.mxu0 %v2755
    %v5680 = vpop.f32.mrf.mxu0
    %v5681 = vadd.f32 %v5616, %v5680
    %5682 = vmatmul.f32.gmra.mxu0 %v2763
    %v5683 = vpop.f32.mrf.mxu0
    %v5684 = vadd.f32 %v5619, %v5683
    %5685 = vmatmul.f32.gmra.mxu0 %v2832
    %v5686 = vpop.f32.mrf.mxu0
    %v5687 = vadd.f32 %v5622, %v5686
    %5688 = vdwg.mxu0
    %5689 = vmatpush.msra.mxu0 %v4172
    %5690 = vmatpush.msra.mxu0 %v4165
    %5691 = vmatpush.msra.mxu0 %v4158
    %5692 = vmatpush.msra.mxu0 %v4151
    %5693 = vmatpush.msra.mxu0 %v4144
    %5694 = vmatpush.msra.mxu0 %v4137
    %5695 = vmatpush.msra.mxu0 %v4130
    %5696 = vmatpush.msra.mxu0 %v4123
    %5697 = vmatpush.msra.mxu0 %v4116
    %5698 = vmatpush.msra.mxu0 %v4109
    %5699 = vmatpush.msra.mxu0 %v4102
    %5700 = vmatpush.msra.mxu0 %v4095
    %5701 = vmatpush.msra.mxu0 %v4088
    %5702 = vmatpush.msra.mxu0 %v4081
    %5703 = vmatpush.msra.mxu0 %v4074
    %5704 = vmatpush.msra.mxu0 %v4067
    %5705 = vmatmul.f32.gmra.mxu0 %v2653
    %v5706 = vpop.f32.mrf.mxu0
    %v5707 = vadd.f32 %v5642, %v5706
    %5708 = vmatmul.f32.gmra.mxu0 %v2661
    %v5709 = vpop.f32.mrf.mxu0
    %v5710 = vadd.f32 %v5645, %v5709
    %5711 = vmatmul.f32.gmra.mxu0 %v2669
    %v5712 = vpop.f32.mrf.mxu0
    %v5713 = vadd.f32 %v5648, %v5712
    %5714 = vmatmul.f32.gmra.mxu0 %v2677
    %v5715 = vpop.f32.mrf.mxu0
    %v5716 = vadd.f32 %v5651, %v5715
    %5717 = vmatmul.f32.gmra.mxu0 %v2685
    %v5718 = vpop.f32.mrf.mxu0
    %v5719 = vadd.f32 %v5654, %v5718
    %5720 = vmatmul.f32.gmra.mxu0 %v2693
    %v5721 = vpop.f32.mrf.mxu0
    %v5722 = vadd.f32 %v5657, %v5721
    %5723 = vmatmul.f32.gmra.mxu0 %v2701
    %v5724 = vpop.f32.mrf.mxu0
    %v5725 = vadd.f32 %v5660, %v5724
    %5726 = vmatmul.f32.gmra.mxu0 %v2709
    %v5727 = vpop.f32.mrf.mxu0
    %v5728 = vadd.f32 %v5663, %v5727
    %5729 = vmatmul.f32.gmra.mxu0 %v2717
    %v5730 = vpop.f32.mrf.mxu0
    %v5731 = vadd.f32 %v5666, %v5730
    %5732 = vmatmul.f32.gmra.mxu0 %v2725
    %v5733 = vpop.f32.mrf.mxu0
    %v5734 = vadd.f32 %v5669, %v5733
    %5735 = vmatmul.f32.gmra.mxu0 %v2733
    %v5736 = vpop.f32.mrf.mxu0
    %v5737 = vadd.f32 %v5672, %v5736
    %5738 = vmatmul.f32.gmra.mxu0 %v2741
    %v5739 = vpop.f32.mrf.mxu0
    %v5740 = vadd.f32 %v5675, %v5739
    %5741 = vmatmul.f32.gmra.mxu0 %v2749
    %v5742 = vpop.f32.mrf.mxu0
    %v5743 = vadd.f32 %v5678, %v5742
    %5744 = vmatmul.f32.gmra.mxu0 %v2757
    %v5745 = vpop.f32.mrf.mxu0
    %v5746 = vadd.f32 %v5681, %v5745
    %5747 = vmatmul.f32.gmra.mxu0 %v2765
    %v5748 = vpop.f32.mrf.mxu0
    %v5749 = vadd.f32 %v5684, %v5748
    %5750 = vmatmul.f32.gmra.mxu0 %v2833
    %v5751 = vpop.f32.mrf.mxu0
    %v5752 = vadd.f32 %v5687, %v5751
    %5753 = vdwg.mxu0
    %5754 = vmatpush.msra.mxu0 %v2941
    %5755 = vmatpush.msra.mxu0 %v2934
    %5756 = vmatpush.msra.mxu0 %v2927
    %5757 = vmatpush.msra.mxu0 %v2920
    %5758 = vmatpush.msra.mxu0 %v2913
    %5759 = vmatpush.msra.mxu0 %v2906
    %5760 = vmatpush.msra.mxu0 %v2899
    %5761 = vmatpush.msra.mxu0 %v2892
    %5762 = vmatpush.msra.mxu0 %v2885
    %5763 = vmatpush.msra.mxu0 %v2878
    %5764 = vmatpush.msra.mxu0 %v2871
    %5765 = vmatpush.msra.mxu0 %v2864
    %5766 = vmatpush.msra.mxu0 %v2857
    %5767 = vmatpush.msra.mxu0 %v2850
    %5768 = vmatpush.msra.mxu0 %v2843
    %5769 = vmatpush.msra.mxu0 %v2836
    %5770 = vmatmul.f32.gmra.mxu0 %v2637
    %v5771 = vpop.f32.mrf.mxu0
    %v5772 = vadd.f32 %v4182, %v5771
    %5773 = vmatmul.f32.gmra.mxu0 %v2454
    %v5774 = vpop.f32.mrf.mxu0
    %v5775 = vadd.f32 %v4182, %v5774
    %5776 = vmatmul.f32.gmra.mxu0 %v2462
    %v5777 = vpop.f32.mrf.mxu0
    %v5778 = vadd.f32 %v4182, %v5777
    %5779 = vmatmul.f32.gmra.mxu0 %v2470
    %v5780 = vpop.f32.mrf.mxu0
    %v5781 = vadd.f32 %v4182, %v5780
    %5782 = vmatmul.f32.gmra.mxu0 %v2478
    %v5783 = vpop.f32.mrf.mxu0
    %v5784 = vadd.f32 %v4182, %v5783
    %5785 = vmatmul.f32.gmra.mxu0 %v2486
    %v5786 = vpop.f32.mrf.mxu0
    %v5787 = vadd.f32 %v4182, %v5786
    %5788 = vmatmul.f32.gmra.mxu0 %v2494
    %v5789 = vpop.f32.mrf.mxu0
    %v5790 = vadd.f32 %v4182, %v5789
    %5791 = vmatmul.f32.gmra.mxu0 %v2502
    %v5792 = vpop.f32.mrf.mxu0
    %v5793 = vadd.f32 %v4182, %v5792
    %5794 = vmatmul.f32.gmra.mxu0 %v2510
    %v5795 = vpop.f32.mrf.mxu0
    %v5796 = vadd.f32 %v4182, %v5795
    %5797 = vmatmul.f32.gmra.mxu0 %v2518
    %v5798 = vpop.f32.mrf.mxu0
    %v5799 = vadd.f32 %v4182, %v5798
    %5800 = vmatmul.f32.gmra.mxu0 %v2526
    %v5801 = vpop.f32.mrf.mxu0
    %v5802 = vadd.f32 %v4182, %v5801
    %5803 = vmatmul.f32.gmra.mxu0 %v2534
    %v5804 = vpop.f32.mrf.mxu0
    %v5805 = vadd.f32 %v4182, %v5804
    %5806 = vmatmul.f32.gmra.mxu0 %v2542
    %v5807 = vpop.f32.mrf.mxu0
    %v5808 = vadd.f32 %v4182, %v5807
    %5809 = vmatmul.f32.gmra.mxu0 %v2550
    %v5810 = vpop.f32.mrf.mxu0
    %v5811 = vadd.f32 %v4182, %v5810
    %5812 = vmatmul.f32.gmra.mxu0 %v2558
    %v5813 = vpop.f32.mrf.mxu0
    %v5814 = vadd.f32 %v4182, %v5813
    %5815 = vmatmul.f32.gmra.mxu0 %v2566
    %v5816 = vpop.f32.mrf.mxu0
    %v5817 = vadd.f32 %v4182, %v5816
    %5818 = vdwg.mxu0
    %5819 = vmatpush.msra.mxu0 %v3053
    %5820 = vmatpush.msra.mxu0 %v3046
    %5821 = vmatpush.msra.mxu0 %v3039
    %5822 = vmatpush.msra.mxu0 %v3032
    %5823 = vmatpush.msra.mxu0 %v3025
    %5824 = vmatpush.msra.mxu0 %v3018
    %5825 = vmatpush.msra.mxu0 %v3011
    %5826 = vmatpush.msra.mxu0 %v3004
    %5827 = vmatpush.msra.mxu0 %v2997
    %5828 = vmatpush.msra.mxu0 %v2990
    %5829 = vmatpush.msra.mxu0 %v2983
    %5830 = vmatpush.msra.mxu0 %v2976
    %5831 = vmatpush.msra.mxu0 %v2969
    %5832 = vmatpush.msra.mxu0 %v2962
    %5833 = vmatpush.msra.mxu0 %v2955
    %5834 = vmatpush.msra.mxu0 %v2948
    %5835 = vmatmul.f32.gmra.mxu0 %v2638
    %v5836 = vpop.f32.mrf.mxu0
    %v5837 = vadd.f32 %v5772, %v5836
    %5838 = vmatmul.f32.gmra.mxu0 %v2456
    %v5839 = vpop.f32.mrf.mxu0
    %v5840 = vadd.f32 %v5775, %v5839
    %5841 = vmatmul.f32.gmra.mxu0 %v2464
    %v5842 = vpop.f32.mrf.mxu0
    %v5843 = vadd.f32 %v5778, %v5842
    %5844 = vmatmul.f32.gmra.mxu0 %v2472
    %v5845 = vpop.f32.mrf.mxu0
    %v5846 = vadd.f32 %v5781, %v5845
    %5847 = vmatmul.f32.gmra.mxu0 %v2480
    %v5848 = vpop.f32.mrf.mxu0
    %v5849 = vadd.f32 %v5784, %v5848
    %5850 = vmatmul.f32.gmra.mxu0 %v2488
    %v5851 = vpop.f32.mrf.mxu0
    %v5852 = vadd.f32 %v5787, %v5851
    %5853 = vmatmul.f32.gmra.mxu0 %v2496
    %v5854 = vpop.f32.mrf.mxu0
    %v5855 = vadd.f32 %v5790, %v5854
    %5856 = vmatmul.f32.gmra.mxu0 %v2504
    %v5857 = vpop.f32.mrf.mxu0
    %v5858 = vadd.f32 %v5793, %v5857
    %5859 = vmatmul.f32.gmra.mxu0 %v2512
    %v5860 = vpop.f32.mrf.mxu0
    %v5861 = vadd.f32 %v5796, %v5860
    %5862 = vmatmul.f32.gmra.mxu0 %v2520
    %v5863 = vpop.f32.mrf.mxu0
    %v5864 = vadd.f32 %v5799, %v5863
    %5865 = vmatmul.f32.gmra.mxu0 %v2528
    %v5866 = vpop.f32.mrf.mxu0
    %v5867 = vadd.f32 %v5802, %v5866
    %5868 = vmatmul.f32.gmra.mxu0 %v2536
    %v5869 = vpop.f32.mrf.mxu0
    %v5870 = vadd.f32 %v5805, %v5869
    %5871 = vmatmul.f32.gmra.mxu0 %v2544
    %v5872 = vpop.f32.mrf.mxu0
    %v5873 = vadd.f32 %v5808, %v5872
    %5874 = vmatmul.f32.gmra.mxu0 %v2552
    %v5875 = vpop.f32.mrf.mxu0
    %v5876 = vadd.f32 %v5811, %v5875
    %5877 = vmatmul.f32.gmra.mxu0 %v2560
    %v5878 = vpop.f32.mrf.mxu0
    %v5879 = vadd.f32 %v5814, %v5878
    %5880 = vmatmul.f32.gmra.mxu0 %v2568
    %v5881 = vpop.f32.mrf.mxu0
    %v5882 = vadd.f32 %v5817, %v5881
    %5883 = vdwg.mxu0
    %5884 = vmatpush.msra.mxu0 %v3165
    %5885 = vmatpush.msra.mxu0 %v3158
    %5886 = vmatpush.msra.mxu0 %v3151
    %5887 = vmatpush.msra.mxu0 %v3144
    %5888 = vmatpush.msra.mxu0 %v3137
    %5889 = vmatpush.msra.mxu0 %v3130
    %5890 = vmatpush.msra.mxu0 %v3123
    %5891 = vmatpush.msra.mxu0 %v3116
    %5892 = vmatpush.msra.mxu0 %v3109
    %5893 = vmatpush.msra.mxu0 %v3102
    %5894 = vmatpush.msra.mxu0 %v3095
    %5895 = vmatpush.msra.mxu0 %v3088
    %5896 = vmatpush.msra.mxu0 %v3081
    %5897 = vmatpush.msra.mxu0 %v3074
    %5898 = vmatpush.msra.mxu0 %v3067
    %5899 = vmatpush.msra.mxu0 %v3060
    %5900 = vmatmul.f32.gmra.mxu0 %v2639
    %v5901 = vpop.f32.mrf.mxu0
    %v5902 = vadd.f32 %v5837, %v5901
    %5903 = vmatmul.f32.gmra.mxu0 %v2458
    %v5904 = vpop.f32.mrf.mxu0
    %v5905 = vadd.f32 %v5840, %v5904
    %5906 = vmatmul.f32.gmra.mxu0 %v2466
    %v5907 = vpop.f32.mrf.mxu0
    %v5908 = vadd.f32 %v5843, %v5907
    %5909 = vmatmul.f32.gmra.mxu0 %v2474
    %v5910 = vpop.f32.mrf.mxu0
    %v5911 = vadd.f32 %v5846, %v5910
    %5912 = vmatmul.f32.gmra.mxu0 %v2482
    %v5913 = vpop.f32.mrf.mxu0
    %v5914 = vadd.f32 %v5849, %v5913
    %5915 = vmatmul.f32.gmra.mxu0 %v2490
    %v5916 = vpop.f32.mrf.mxu0
    %v5917 = vadd.f32 %v5852, %v5916
    %5918 = vmatmul.f32.gmra.mxu0 %v2498
    %v5919 = vpop.f32.mrf.mxu0
    %v5920 = vadd.f32 %v5855, %v5919
    %5921 = vmatmul.f32.gmra.mxu0 %v2506
    %v5922 = vpop.f32.mrf.mxu0
    %v5923 = vadd.f32 %v5858, %v5922
    %5924 = vmatmul.f32.gmra.mxu0 %v2514
    %v5925 = vpop.f32.mrf.mxu0
    %v5926 = vadd.f32 %v5861, %v5925
    %5927 = vmatmul.f32.gmra.mxu0 %v2522
    %v5928 = vpop.f32.mrf.mxu0
    %v5929 = vadd.f32 %v5864, %v5928
    %5930 = vmatmul.f32.gmra.mxu0 %v2530
    %v5931 = vpop.f32.mrf.mxu0
    %v5932 = vadd.f32 %v5867, %v5931
    %5933 = vmatmul.f32.gmra.mxu0 %v2538
    %v5934 = vpop.f32.mrf.mxu0
    %v5935 = vadd.f32 %v5870, %v5934
    %5936 = vmatmul.f32.gmra.mxu0 %v2546
    %v5937 = vpop.f32.mrf.mxu0
    %v5938 = vadd.f32 %v5873, %v5937
    %5939 = vmatmul.f32.gmra.mxu0 %v2554
    %v5940 = vpop.f32.mrf.mxu0
    %v5941 = vadd.f32 %v5876, %v5940
    %5942 = vmatmul.f32.gmra.mxu0 %v2562
    %v5943 = vpop.f32.mrf.mxu0
    %v5944 = vadd.f32 %v5879, %v5943
    %5945 = vmatmul.f32.gmra.mxu0 %v2570
    %v5946 = vpop.f32.mrf.mxu0
    %v5947 = vadd.f32 %v5882, %v5946
    %5948 = vdwg.mxu0
    %5949 = vmatpush.msra.mxu0 %v3277
    %5950 = vmatpush.msra.mxu0 %v3270
    %5951 = vmatpush.msra.mxu0 %v3263
    %5952 = vmatpush.msra.mxu0 %v3256
    %5953 = vmatpush.msra.mxu0 %v3249
    %5954 = vmatpush.msra.mxu0 %v3242
    %5955 = vmatpush.msra.mxu0 %v3235
    %5956 = vmatpush.msra.mxu0 %v3228
    %5957 = vmatpush.msra.mxu0 %v3221
    %5958 = vmatpush.msra.mxu0 %v3214
    %5959 = vmatpush.msra.mxu0 %v3207
    %5960 = vmatpush.msra.mxu0 %v3200
    %5961 = vmatpush.msra.mxu0 %v3193
    %5962 = vmatpush.msra.mxu0 %v3186
    %5963 = vmatpush.msra.mxu0 %v3179
    %5964 = vmatpush.msra.mxu0 %v3172
    %5965 = vmatmul.f32.gmra.mxu0 %v2640
    %v5966 = vpop.f32.mrf.mxu0
    %v5967 = vadd.f32 %v5902, %v5966
    %5968 = vmatmul.f32.gmra.mxu0 %v2460
    %v5969 = vpop.f32.mrf.mxu0
    %v5970 = vadd.f32 %v5905, %v5969
    %5971 = vmatmul.f32.gmra.mxu0 %v2468
    %v5972 = vpop.f32.mrf.mxu0
    %v5973 = vadd.f32 %v5908, %v5972
    %5974 = vmatmul.f32.gmra.mxu0 %v2476
    %v5975 = vpop.f32.mrf.mxu0
    %v5976 = vadd.f32 %v5911, %v5975
    %5977 = vmatmul.f32.gmra.mxu0 %v2484
    %v5978 = vpop.f32.mrf.mxu0
    %v5979 = vadd.f32 %v5914, %v5978
    %5980 = vmatmul.f32.gmra.mxu0 %v2492
    %v5981 = vpop.f32.mrf.mxu0
    %v5982 = vadd.f32 %v5917, %v5981
    %5983 = vmatmul.f32.gmra.mxu0 %v2500
    %v5984 = vpop.f32.mrf.mxu0
    %v5985 = vadd.f32 %v5920, %v5984
    %5986 = vmatmul.f32.gmra.mxu0 %v2508
    %v5987 = vpop.f32.mrf.mxu0
    %v5988 = vadd.f32 %v5923, %v5987
    %5989 = vmatmul.f32.gmra.mxu0 %v2516
    %v5990 = vpop.f32.mrf.mxu0
    %v5991 = vadd.f32 %v5926, %v5990
    %5992 = vmatmul.f32.gmra.mxu0 %v2524
    %v5993 = vpop.f32.mrf.mxu0
    %v5994 = vadd.f32 %v5929, %v5993
    %5995 = vmatmul.f32.gmra.mxu0 %v2532
    %v5996 = vpop.f32.mrf.mxu0
    %v5997 = vadd.f32 %v5932, %v5996
    %5998 = vmatmul.f32.gmra.mxu0 %v2540
    %v5999 = vpop.f32.mrf.mxu0
    %v6000 = vadd.f32 %v5935, %v5999
    %6001 = vmatmul.f32.gmra.mxu0 %v2548
    %v6002 = vpop.f32.mrf.mxu0
    %v6003 = vadd.f32 %v5938, %v6002
    %6004 = vmatmul.f32.gmra.mxu0 %v2556
    %v6005 = vpop.f32.mrf.mxu0
    %v6006 = vadd.f32 %v5941, %v6005
    %6007 = vmatmul.f32.gmra.mxu0 %v2564
    %v6008 = vpop.f32.mrf.mxu0
    %v6009 = vadd.f32 %v5944, %v6008
    %6010 = vmatmul.f32.gmra.mxu0 %v2572
    %v6011 = vpop.f32.mrf.mxu0
    %v6012 = vadd.f32 %v5947, %v6011
    %6013 = vdwg.mxu0
    %6014 = vmatpush.msra.mxu0 %v3389
    %6015 = vmatpush.msra.mxu0 %v3382
    %6016 = vmatpush.msra.mxu0 %v3375
    %6017 = vmatpush.msra.mxu0 %v3368
    %6018 = vmatpush.msra.mxu0 %v3361
    %6019 = vmatpush.msra.mxu0 %v3354
    %6020 = vmatpush.msra.mxu0 %v3347
    %6021 = vmatpush.msra.mxu0 %v3340
    %6022 = vmatpush.msra.mxu0 %v3333
    %6023 = vmatpush.msra.mxu0 %v3326
    %6024 = vmatpush.msra.mxu0 %v3319
    %6025 = vmatpush.msra.mxu0 %v3312
    %6026 = vmatpush.msra.mxu0 %v3305
    %6027 = vmatpush.msra.mxu0 %v3298
    %6028 = vmatpush.msra.mxu0 %v3291
    %6029 = vmatpush.msra.mxu0 %v3284
    %6030 = vmatmul.f32.gmra.mxu0 %v2384
    %v6031 = vpop.f32.mrf.mxu0
    %v6032 = vadd.f32 %v5967, %v6031
    %6033 = vmatmul.f32.gmra.mxu0 %v2385
    %v6034 = vpop.f32.mrf.mxu0
    %v6035 = vadd.f32 %v5970, %v6034
    %6036 = vmatmul.f32.gmra.mxu0 %v2386
    %v6037 = vpop.f32.mrf.mxu0
    %v6038 = vadd.f32 %v5973, %v6037
    %6039 = vmatmul.f32.gmra.mxu0 %v2387
    %v6040 = vpop.f32.mrf.mxu0
    %v6041 = vadd.f32 %v5976, %v6040
    %6042 = vmatmul.f32.gmra.mxu0 %v2388
    %v6043 = vpop.f32.mrf.mxu0
    %v6044 = vadd.f32 %v5979, %v6043
    %6045 = vmatmul.f32.gmra.mxu0 %v2389
    %v6046 = vpop.f32.mrf.mxu0
    %v6047 = vadd.f32 %v5982, %v6046
    %6048 = vmatmul.f32.gmra.mxu0 %v2390
    %v6049 = vpop.f32.mrf.mxu0
    %v6050 = vadd.f32 %v5985, %v6049
    %6051 = vmatmul.f32.gmra.mxu0 %v2391
    %v6052 = vpop.f32.mrf.mxu0
    %v6053 = vadd.f32 %v5988, %v6052
    %6054 = vmatmul.f32.gmra.mxu0 %v2392
    %v6055 = vpop.f32.mrf.mxu0
    %v6056 = vadd.f32 %v5991, %v6055
    %6057 = vmatmul.f32.gmra.mxu0 %v2393
    %v6058 = vpop.f32.mrf.mxu0
    %v6059 = vadd.f32 %v5994, %v6058
    %6060 = vmatmul.f32.gmra.mxu0 %v2394
    %v6061 = vpop.f32.mrf.mxu0
    %v6062 = vadd.f32 %v5997, %v6061
    %6063 = vmatmul.f32.gmra.mxu0 %v2395
    %v6064 = vpop.f32.mrf.mxu0
    %v6065 = vadd.f32 %v6000, %v6064
    %6066 = vmatmul.f32.gmra.mxu0 %v2396
    %v6067 = vpop.f32.mrf.mxu0
    %v6068 = vadd.f32 %v6003, %v6067
    %6069 = vmatmul.f32.gmra.mxu0 %v2397
    %v6070 = vpop.f32.mrf.mxu0
    %v6071 = vadd.f32 %v6006, %v6070
    %6072 = vmatmul.f32.gmra.mxu0 %v2398
    %v6073 = vpop.f32.mrf.mxu0
    %v6074 = vadd.f32 %v6009, %v6073
    %6075 = vmatmul.f32.gmra.mxu0 %v2399
    %v6076 = vpop.f32.mrf.mxu0
    %v6077 = vadd.f32 %v6012, %v6076
    %6078 = vdwg.mxu0
    %6079 = vmatpush.msra.mxu0 %v3501
    %6080 = vmatpush.msra.mxu0 %v3494
    %6081 = vmatpush.msra.mxu0 %v3487
    %6082 = vmatpush.msra.mxu0 %v3480
    %6083 = vmatpush.msra.mxu0 %v3473
    %6084 = vmatpush.msra.mxu0 %v3466
    %6085 = vmatpush.msra.mxu0 %v3459
    %6086 = vmatpush.msra.mxu0 %v3452
    %6087 = vmatpush.msra.mxu0 %v3445
    %6088 = vmatpush.msra.mxu0 %v3438
    %6089 = vmatpush.msra.mxu0 %v3431
    %6090 = vmatpush.msra.mxu0 %v3424
    %6091 = vmatpush.msra.mxu0 %v3417
    %6092 = vmatpush.msra.mxu0 %v3410
    %6093 = vmatpush.msra.mxu0 %v3403
    %6094 = vmatpush.msra.mxu0 %v3396
    %6095 = vmatmul.f32.gmra.mxu0 %v2272
    %v6096 = vpop.f32.mrf.mxu0
    %v6097 = vadd.f32 %v6032, %v6096
    %6098 = vmatmul.f32.gmra.mxu0 %v2275
    %v6099 = vpop.f32.mrf.mxu0
    %v6100 = vadd.f32 %v6035, %v6099
    %6101 = vmatmul.f32.gmra.mxu0 %v2278
    %v6102 = vpop.f32.mrf.mxu0
    %v6103 = vadd.f32 %v6038, %v6102
    %6104 = vmatmul.f32.gmra.mxu0 %v2281
    %v6105 = vpop.f32.mrf.mxu0
    %v6106 = vadd.f32 %v6041, %v6105
    %6107 = vmatmul.f32.gmra.mxu0 %v2284
    %v6108 = vpop.f32.mrf.mxu0
    %v6109 = vadd.f32 %v6044, %v6108
    %6110 = vmatmul.f32.gmra.mxu0 %v2287
    %v6111 = vpop.f32.mrf.mxu0
    %v6112 = vadd.f32 %v6047, %v6111
    %6113 = vmatmul.f32.gmra.mxu0 %v2290
    %v6114 = vpop.f32.mrf.mxu0
    %v6115 = vadd.f32 %v6050, %v6114
    %6116 = vmatmul.f32.gmra.mxu0 %v2293
    %v6117 = vpop.f32.mrf.mxu0
    %v6118 = vadd.f32 %v6053, %v6117
    %6119 = vmatmul.f32.gmra.mxu0 %v2296
    %v6120 = vpop.f32.mrf.mxu0
    %v6121 = vadd.f32 %v6056, %v6120
    %6122 = vmatmul.f32.gmra.mxu0 %v2299
    %v6123 = vpop.f32.mrf.mxu0
    %v6124 = vadd.f32 %v6059, %v6123
    %6125 = vmatmul.f32.gmra.mxu0 %v2302
    %v6126 = vpop.f32.mrf.mxu0
    %v6127 = vadd.f32 %v6062, %v6126
    %6128 = vmatmul.f32.gmra.mxu0 %v2305
    %v6129 = vpop.f32.mrf.mxu0
    %v6130 = vadd.f32 %v6065, %v6129
    %6131 = vmatmul.f32.gmra.mxu0 %v2308
    %v6132 = vpop.f32.mrf.mxu0
    %v6133 = vadd.f32 %v6068, %v6132
    %6134 = vmatmul.f32.gmra.mxu0 %v2311
    %v6135 = vpop.f32.mrf.mxu0
    %v6136 = vadd.f32 %v6071, %v6135
    %6137 = vmatmul.f32.gmra.mxu0 %v2314
    %v6138 = vpop.f32.mrf.mxu0
    %v6139 = vadd.f32 %v6074, %v6138
    %6140 = vmatmul.f32.gmra.mxu0 %v2317
    %v6141 = vpop.f32.mrf.mxu0
    %v6142 = vadd.f32 %v6077, %v6141
    %6143 = vdwg.mxu0
    %6144 = vmatpush.msra.mxu0 %v3613
    %6145 = vmatpush.msra.mxu0 %v3606
    %6146 = vmatpush.msra.mxu0 %v3599
    %6147 = vmatpush.msra.mxu0 %v3592
    %6148 = vmatpush.msra.mxu0 %v3585
    %6149 = vmatpush.msra.mxu0 %v3578
    %6150 = vmatpush.msra.mxu0 %v3571
    %6151 = vmatpush.msra.mxu0 %v3564
    %6152 = vmatpush.msra.mxu0 %v3557
    %6153 = vmatpush.msra.mxu0 %v3550
    %6154 = vmatpush.msra.mxu0 %v3543
    %6155 = vmatpush.msra.mxu0 %v3536
    %6156 = vmatpush.msra.mxu0 %v3529
    %6157 = vmatpush.msra.mxu0 %v3522
    %6158 = vmatpush.msra.mxu0 %v3515
    %6159 = vmatpush.msra.mxu0 %v3508
    %6160 = vmatmul.f32.gmra.mxu0 %v2273
    %v6161 = vpop.f32.mrf.mxu0
    %v6162 = vadd.f32 %v6097, %v6161
    %6163 = vmatmul.f32.gmra.mxu0 %v2276
    %v6164 = vpop.f32.mrf.mxu0
    %v6165 = vadd.f32 %v6100, %v6164
    %6166 = vmatmul.f32.gmra.mxu0 %v2279
    %v6167 = vpop.f32.mrf.mxu0
    %v6168 = vadd.f32 %v6103, %v6167
    %6169 = vmatmul.f32.gmra.mxu0 %v2282
    %v6170 = vpop.f32.mrf.mxu0
    %v6171 = vadd.f32 %v6106, %v6170
    %6172 = vmatmul.f32.gmra.mxu0 %v2285
    %v6173 = vpop.f32.mrf.mxu0
    %v6174 = vadd.f32 %v6109, %v6173
    %6175 = vmatmul.f32.gmra.mxu0 %v2288
    %v6176 = vpop.f32.mrf.mxu0
    %v6177 = vadd.f32 %v6112, %v6176
    %6178 = vmatmul.f32.gmra.mxu0 %v2291
    %v6179 = vpop.f32.mrf.mxu0
    %v6180 = vadd.f32 %v6115, %v6179
    %6181 = vmatmul.f32.gmra.mxu0 %v2294
    %v6182 = vpop.f32.mrf.mxu0
    %v6183 = vadd.f32 %v6118, %v6182
    %6184 = vmatmul.f32.gmra.mxu0 %v2297
    %v6185 = vpop.f32.mrf.mxu0
    %v6186 = vadd.f32 %v6121, %v6185
    %6187 = vmatmul.f32.gmra.mxu0 %v2300
    %v6188 = vpop.f32.mrf.mxu0
    %v6189 = vadd.f32 %v6124, %v6188
    %6190 = vmatmul.f32.gmra.mxu0 %v2303
    %v6191 = vpop.f32.mrf.mxu0
    %v6192 = vadd.f32 %v6127, %v6191
    %6193 = vmatmul.f32.gmra.mxu0 %v2306
    %v6194 = vpop.f32.mrf.mxu0
    %v6195 = vadd.f32 %v6130, %v6194
    %6196 = vmatmul.f32.gmra.mxu0 %v2309
    %v6197 = vpop.f32.mrf.mxu0
    %v6198 = vadd.f32 %v6133, %v6197
    %6199 = vmatmul.f32.gmra.mxu0 %v2312
    %v6200 = vpop.f32.mrf.mxu0
    %v6201 = vadd.f32 %v6136, %v6200
    %6202 = vmatmul.f32.gmra.mxu0 %v2315
    %v6203 = vpop.f32.mrf.mxu0
    %v6204 = vadd.f32 %v6139, %v6203
    %6205 = vmatmul.f32.gmra.mxu0 %v2318
    %v6206 = vpop.f32.mrf.mxu0
    %v6207 = vadd.f32 %v6142, %v6206
    %6208 = vdwg.mxu0
    %6209 = vmatpush.msra.mxu0 %v3725
    %6210 = vmatpush.msra.mxu0 %v3718
    %6211 = vmatpush.msra.mxu0 %v3711
    %6212 = vmatpush.msra.mxu0 %v3704
    %6213 = vmatpush.msra.mxu0 %v3697
    %6214 = vmatpush.msra.mxu0 %v3690
    %6215 = vmatpush.msra.mxu0 %v3683
    %6216 = vmatpush.msra.mxu0 %v3676
    %6217 = vmatpush.msra.mxu0 %v3669
    %6218 = vmatpush.msra.mxu0 %v3662
    %6219 = vmatpush.msra.mxu0 %v3655
    %6220 = vmatpush.msra.mxu0 %v3648
    %6221 = vmatpush.msra.mxu0 %v3641
    %6222 = vmatpush.msra.mxu0 %v3634
    %6223 = vmatpush.msra.mxu0 %v3627
    %6224 = vmatpush.msra.mxu0 %v3620
    %6225 = vmatmul.f32.gmra.mxu0 %v2401
    %v6226 = vpop.f32.mrf.mxu0
    %v6227 = vadd.f32 %v6162, %v6226
    %6228 = vmatmul.f32.gmra.mxu0 %v2402
    %v6229 = vpop.f32.mrf.mxu0
    %v6230 = vadd.f32 %v6165, %v6229
    %6231 = vmatmul.f32.gmra.mxu0 %v2403
    %v6232 = vpop.f32.mrf.mxu0
    %v6233 = vadd.f32 %v6168, %v6232
    %6234 = vmatmul.f32.gmra.mxu0 %v2404
    %v6235 = vpop.f32.mrf.mxu0
    %v6236 = vadd.f32 %v6171, %v6235
    %6237 = vmatmul.f32.gmra.mxu0 %v2405
    %v6238 = vpop.f32.mrf.mxu0
    %v6239 = vadd.f32 %v6174, %v6238
    %6240 = vmatmul.f32.gmra.mxu0 %v2406
    %v6241 = vpop.f32.mrf.mxu0
    %v6242 = vadd.f32 %v6177, %v6241
    %6243 = vmatmul.f32.gmra.mxu0 %v2407
    %v6244 = vpop.f32.mrf.mxu0
    %v6245 = vadd.f32 %v6180, %v6244
    %6246 = vmatmul.f32.gmra.mxu0 %v2408
    %v6247 = vpop.f32.mrf.mxu0
    %v6248 = vadd.f32 %v6183, %v6247
    %6249 = vmatmul.f32.gmra.mxu0 %v2409
    %v6250 = vpop.f32.mrf.mxu0
    %v6251 = vadd.f32 %v6186, %v6250
    %6252 = vmatmul.f32.gmra.mxu0 %v2410
    %v6253 = vpop.f32.mrf.mxu0
    %v6254 = vadd.f32 %v6189, %v6253
    %6255 = vmatmul.f32.gmra.mxu0 %v2411
    %v6256 = vpop.f32.mrf.mxu0
    %v6257 = vadd.f32 %v6192, %v6256
    %6258 = vmatmul.f32.gmra.mxu0 %v2412
    %v6259 = vpop.f32.mrf.mxu0
    %v6260 = vadd.f32 %v6195, %v6259
    %6261 = vmatmul.f32.gmra.mxu0 %v2413
    %v6262 = vpop.f32.mrf.mxu0
    %v6263 = vadd.f32 %v6198, %v6262
    %6264 = vmatmul.f32.gmra.mxu0 %v2414
    %v6265 = vpop.f32.mrf.mxu0
    %v6266 = vadd.f32 %v6201, %v6265
    %6267 = vmatmul.f32.gmra.mxu0 %v2415
    %v6268 = vpop.f32.mrf.mxu0
    %v6269 = vadd.f32 %v6204, %v6268
    %6270 = vmatmul.f32.gmra.mxu0 %v2416
    %v6271 = vpop.f32.mrf.mxu0
    %v6272 = vadd.f32 %v6207, %v6271
    %6273 = vdwg.mxu0
    %6274 = vmatpush.msra.mxu0 %v3837
    %6275 = vmatpush.msra.mxu0 %v3830
    %6276 = vmatpush.msra.mxu0 %v3823
    %6277 = vmatpush.msra.mxu0 %v3816
    %6278 = vmatpush.msra.mxu0 %v3809
    %6279 = vmatpush.msra.mxu0 %v3802
    %6280 = vmatpush.msra.mxu0 %v3795
    %6281 = vmatpush.msra.mxu0 %v3788
    %6282 = vmatpush.msra.mxu0 %v3781
    %6283 = vmatpush.msra.mxu0 %v3774
    %6284 = vmatpush.msra.mxu0 %v3767
    %6285 = vmatpush.msra.mxu0 %v3760
    %6286 = vmatpush.msra.mxu0 %v3753
    %6287 = vmatpush.msra.mxu0 %v3746
    %6288 = vmatpush.msra.mxu0 %v3739
    %6289 = vmatpush.msra.mxu0 %v3732
    %6290 = vmatmul.f32.gmra.mxu0 %v2644
    %v6291 = vpop.f32.mrf.mxu0
    %v6292 = vadd.f32 %v6227, %v6291
    %6293 = vmatmul.f32.gmra.mxu0 %v2655
    %v6294 = vpop.f32.mrf.mxu0
    %v6295 = vadd.f32 %v6230, %v6294
    %6296 = vmatmul.f32.gmra.mxu0 %v2663
    %v6297 = vpop.f32.mrf.mxu0
    %v6298 = vadd.f32 %v6233, %v6297
    %6299 = vmatmul.f32.gmra.mxu0 %v2671
    %v6300 = vpop.f32.mrf.mxu0
    %v6301 = vadd.f32 %v6236, %v6300
    %6302 = vmatmul.f32.gmra.mxu0 %v2679
    %v6303 = vpop.f32.mrf.mxu0
    %v6304 = vadd.f32 %v6239, %v6303
    %6305 = vmatmul.f32.gmra.mxu0 %v2687
    %v6306 = vpop.f32.mrf.mxu0
    %v6307 = vadd.f32 %v6242, %v6306
    %6308 = vmatmul.f32.gmra.mxu0 %v2695
    %v6309 = vpop.f32.mrf.mxu0
    %v6310 = vadd.f32 %v6245, %v6309
    %6311 = vmatmul.f32.gmra.mxu0 %v2703
    %v6312 = vpop.f32.mrf.mxu0
    %v6313 = vadd.f32 %v6248, %v6312
    %6314 = vmatmul.f32.gmra.mxu0 %v2711
    %v6315 = vpop.f32.mrf.mxu0
    %v6316 = vadd.f32 %v6251, %v6315
    %6317 = vmatmul.f32.gmra.mxu0 %v2719
    %v6318 = vpop.f32.mrf.mxu0
    %v6319 = vadd.f32 %v6254, %v6318
    %6320 = vmatmul.f32.gmra.mxu0 %v2727
    %v6321 = vpop.f32.mrf.mxu0
    %v6322 = vadd.f32 %v6257, %v6321
    %6323 = vmatmul.f32.gmra.mxu0 %v2735
    %v6324 = vpop.f32.mrf.mxu0
    %v6325 = vadd.f32 %v6260, %v6324
    %6326 = vmatmul.f32.gmra.mxu0 %v2743
    %v6327 = vpop.f32.mrf.mxu0
    %v6328 = vadd.f32 %v6263, %v6327
    %6329 = vmatmul.f32.gmra.mxu0 %v2751
    %v6330 = vpop.f32.mrf.mxu0
    %v6331 = vadd.f32 %v6266, %v6330
    %6332 = vmatmul.f32.gmra.mxu0 %v2759
    %v6333 = vpop.f32.mrf.mxu0
    %v6334 = vadd.f32 %v6269, %v6333
    %6335 = vmatmul.f32.gmra.mxu0 %v2830
    %v6336 = vpop.f32.mrf.mxu0
    %v6337 = vadd.f32 %v6272, %v6336
    %6338 = vdwg.mxu0
    %6339 = vmatpush.msra.mxu0 %v3949
    %6340 = vmatpush.msra.mxu0 %v3942
    %6341 = vmatpush.msra.mxu0 %v3935
    %6342 = vmatpush.msra.mxu0 %v3928
    %6343 = vmatpush.msra.mxu0 %v3921
    %6344 = vmatpush.msra.mxu0 %v3914
    %6345 = vmatpush.msra.mxu0 %v3907
    %6346 = vmatpush.msra.mxu0 %v3900
    %6347 = vmatpush.msra.mxu0 %v3893
    %6348 = vmatpush.msra.mxu0 %v3886
    %6349 = vmatpush.msra.mxu0 %v3879
    %6350 = vmatpush.msra.mxu0 %v3872
    %6351 = vmatpush.msra.mxu0 %v3865
    %6352 = vmatpush.msra.mxu0 %v3858
    %6353 = vmatpush.msra.mxu0 %v3851
    %6354 = vmatpush.msra.mxu0 %v3844
    %6355 = vmatmul.f32.gmra.mxu0 %v2647
    %v6356 = vpop.f32.mrf.mxu0
    %v6357 = vadd.f32 %v6292, %v6356
    %6358 = vmatmul.f32.gmra.mxu0 %v2657
    %v6359 = vpop.f32.mrf.mxu0
    %v6360 = vadd.f32 %v6295, %v6359
    %6361 = vmatmul.f32.gmra.mxu0 %v2665
    %v6362 = vpop.f32.mrf.mxu0
    %v6363 = vadd.f32 %v6298, %v6362
    %6364 = vmatmul.f32.gmra.mxu0 %v2673
    %v6365 = vpop.f32.mrf.mxu0
    %v6366 = vadd.f32 %v6301, %v6365
    %6367 = vmatmul.f32.gmra.mxu0 %v2681
    %v6368 = vpop.f32.mrf.mxu0
    %v6369 = vadd.f32 %v6304, %v6368
    %6370 = vmatmul.f32.gmra.mxu0 %v2689
    %v6371 = vpop.f32.mrf.mxu0
    %v6372 = vadd.f32 %v6307, %v6371
    %6373 = vmatmul.f32.gmra.mxu0 %v2697
    %v6374 = vpop.f32.mrf.mxu0
    %v6375 = vadd.f32 %v6310, %v6374
    %6376 = vmatmul.f32.gmra.mxu0 %v2705
    %v6377 = vpop.f32.mrf.mxu0
    %v6378 = vadd.f32 %v6313, %v6377
    %6379 = vmatmul.f32.gmra.mxu0 %v2713
    %v6380 = vpop.f32.mrf.mxu0
    %v6381 = vadd.f32 %v6316, %v6380
    %6382 = vmatmul.f32.gmra.mxu0 %v2721
    %v6383 = vpop.f32.mrf.mxu0
    %v6384 = vadd.f32 %v6319, %v6383
    %6385 = vmatmul.f32.gmra.mxu0 %v2729
    %v6386 = vpop.f32.mrf.mxu0
    %v6387 = vadd.f32 %v6322, %v6386
    %6388 = vmatmul.f32.gmra.mxu0 %v2737
    %v6389 = vpop.f32.mrf.mxu0
    %v6390 = vadd.f32 %v6325, %v6389
    %6391 = vmatmul.f32.gmra.mxu0 %v2745
    %v6392 = vpop.f32.mrf.mxu0
    %v6393 = vadd.f32 %v6328, %v6392
    %6394 = vmatmul.f32.gmra.mxu0 %v2753
    %v6395 = vpop.f32.mrf.mxu0
    %v6396 = vadd.f32 %v6331, %v6395
    %6397 = vmatmul.f32.gmra.mxu0 %v2761
    %v6398 = vpop.f32.mrf.mxu0
    %v6399 = vadd.f32 %v6334, %v6398
    %6400 = vmatmul.f32.gmra.mxu0 %v2831
    %v6401 = vpop.f32.mrf.mxu0
    %v6402 = vadd.f32 %v6337, %v6401
    %6403 = vdwg.mxu0
    %6404 = vmatpush.msra.mxu0 %v4061
    %6405 = vmatpush.msra.mxu0 %v4054
    %6406 = vmatpush.msra.mxu0 %v4047
    %6407 = vmatpush.msra.mxu0 %v4040
    %6408 = vmatpush.msra.mxu0 %v4033
    %6409 = vmatpush.msra.mxu0 %v4026
    %6410 = vmatpush.msra.mxu0 %v4019
    %6411 = vmatpush.msra.mxu0 %v4012
    %6412 = vmatpush.msra.mxu0 %v4005
    %6413 = vmatpush.msra.mxu0 %v3998
    %6414 = vmatpush.msra.mxu0 %v3991
    %6415 = vmatpush.msra.mxu0 %v3984
    %6416 = vmatpush.msra.mxu0 %v3977
    %6417 = vmatpush.msra.mxu0 %v3970
    %6418 = vmatpush.msra.mxu0 %v3963
    %6419 = vmatpush.msra.mxu0 %v3956
    %6420 = vmatmul.f32.gmra.mxu0 %v2650
    %v6421 = vpop.f32.mrf.mxu0
    %v6422 = vadd.f32 %v6357, %v6421
    %6423 = vmatmul.f32.gmra.mxu0 %v2659
    %v6424 = vpop.f32.mrf.mxu0
    %v6425 = vadd.f32 %v6360, %v6424
    %6426 = vmatmul.f32.gmra.mxu0 %v2667
    %v6427 = vpop.f32.mrf.mxu0
    %v6428 = vadd.f32 %v6363, %v6427
    %6429 = vmatmul.f32.gmra.mxu0 %v2675
    %v6430 = vpop.f32.mrf.mxu0
    %v6431 = vadd.f32 %v6366, %v6430
    %6432 = vmatmul.f32.gmra.mxu0 %v2683
    %v6433 = vpop.f32.mrf.mxu0
    %v6434 = vadd.f32 %v6369, %v6433
    %6435 = vmatmul.f32.gmra.mxu0 %v2691
    %v6436 = vpop.f32.mrf.mxu0
    %v6437 = vadd.f32 %v6372, %v6436
    %6438 = vmatmul.f32.gmra.mxu0 %v2699
    %v6439 = vpop.f32.mrf.mxu0
    %v6440 = vadd.f32 %v6375, %v6439
    %6441 = vmatmul.f32.gmra.mxu0 %v2707
    %v6442 = vpop.f32.mrf.mxu0
    %v6443 = vadd.f32 %v6378, %v6442
    %6444 = vmatmul.f32.gmra.mxu0 %v2715
    %v6445 = vpop.f32.mrf.mxu0
    %v6446 = vadd.f32 %v6381, %v6445
    %6447 = vmatmul.f32.gmra.mxu0 %v2723
    %v6448 = vpop.f32.mrf.mxu0
    %v6449 = vadd.f32 %v6384, %v6448
    %6450 = vmatmul.f32.gmra.mxu0 %v2731
    %v6451 = vpop.f32.mrf.mxu0
    %v6452 = vadd.f32 %v6387, %v6451
    %6453 = vmatmul.f32.gmra.mxu0 %v2739
    %v6454 = vpop.f32.mrf.mxu0
    %v6455 = vadd.f32 %v6390, %v6454
    %6456 = vmatmul.f32.gmra.mxu0 %v2747
    %v6457 = vpop.f32.mrf.mxu0
    %v6458 = vadd.f32 %v6393, %v6457
    %6459 = vmatmul.f32.gmra.mxu0 %v2755
    %v6460 = vpop.f32.mrf.mxu0
    %v6461 = vadd.f32 %v6396, %v6460
    %6462 = vmatmul.f32.gmra.mxu0 %v2763
    %v6463 = vpop.f32.mrf.mxu0
    %v6464 = vadd.f32 %v6399, %v6463
    %6465 = vmatmul.f32.gmra.mxu0 %v2832
    %v6466 = vpop.f32.mrf.mxu0
    %v6467 = vadd.f32 %v6402, %v6466
    %6468 = vdwg.mxu0
    %6469 = vmatpush.msra.mxu0 %v4173
    %6470 = vmatpush.msra.mxu0 %v4166
    %6471 = vmatpush.msra.mxu0 %v4159
    %6472 = vmatpush.msra.mxu0 %v4152
    %6473 = vmatpush.msra.mxu0 %v4145
    %6474 = vmatpush.msra.mxu0 %v4138
    %6475 = vmatpush.msra.mxu0 %v4131
    %6476 = vmatpush.msra.mxu0 %v4124
    %6477 = vmatpush.msra.mxu0 %v4117
    %6478 = vmatpush.msra.mxu0 %v4110
    %6479 = vmatpush.msra.mxu0 %v4103
    %6480 = vmatpush.msra.mxu0 %v4096
    %6481 = vmatpush.msra.mxu0 %v4089
    %6482 = vmatpush.msra.mxu0 %v4082
    %6483 = vmatpush.msra.mxu0 %v4075
    %6484 = vmatpush.msra.mxu0 %v4068
    %6485 = vmatmul.f32.gmra.mxu0 %v2653
    %v6486 = vpop.f32.mrf.mxu0
    %v6487 = vadd.f32 %v6422, %v6486
    %6488 = vmatmul.f32.gmra.mxu0 %v2661
    %v6489 = vpop.f32.mrf.mxu0
    %v6490 = vadd.f32 %v6425, %v6489
    %6491 = vmatmul.f32.gmra.mxu0 %v2669
    %v6492 = vpop.f32.mrf.mxu0
    %v6493 = vadd.f32 %v6428, %v6492
    %6494 = vmatmul.f32.gmra.mxu0 %v2677
    %v6495 = vpop.f32.mrf.mxu0
    %v6496 = vadd.f32 %v6431, %v6495
    %6497 = vmatmul.f32.gmra.mxu0 %v2685
    %v6498 = vpop.f32.mrf.mxu0
    %v6499 = vadd.f32 %v6434, %v6498
    %6500 = vmatmul.f32.gmra.mxu0 %v2693
    %v6501 = vpop.f32.mrf.mxu0
    %v6502 = vadd.f32 %v6437, %v6501
    %6503 = vmatmul.f32.gmra.mxu0 %v2701
    %v6504 = vpop.f32.mrf.mxu0
    %v6505 = vadd.f32 %v6440, %v6504
    %6506 = vmatmul.f32.gmra.mxu0 %v2709
    %v6507 = vpop.f32.mrf.mxu0
    %v6508 = vadd.f32 %v6443, %v6507
    %6509 = vmatmul.f32.gmra.mxu0 %v2717
    %v6510 = vpop.f32.mrf.mxu0
    %v6511 = vadd.f32 %v6446, %v6510
    %6512 = vmatmul.f32.gmra.mxu0 %v2725
    %v6513 = vpop.f32.mrf.mxu0
    %v6514 = vadd.f32 %v6449, %v6513
    %6515 = vmatmul.f32.gmra.mxu0 %v2733
    %v6516 = vpop.f32.mrf.mxu0
    %v6517 = vadd.f32 %v6452, %v6516
    %6518 = vmatmul.f32.gmra.mxu0 %v2741
    %v6519 = vpop.f32.mrf.mxu0
    %v6520 = vadd.f32 %v6455, %v6519
    %6521 = vmatmul.f32.gmra.mxu0 %v2749
    %v6522 = vpop.f32.mrf.mxu0
    %v6523 = vadd.f32 %v6458, %v6522
    %6524 = vmatmul.f32.gmra.mxu0 %v2757
    %v6525 = vpop.f32.mrf.mxu0
    %v6526 = vadd.f32 %v6461, %v6525
    %6527 = vmatmul.f32.gmra.mxu0 %v2765
    %v6528 = vpop.f32.mrf.mxu0
    %v6529 = vadd.f32 %v6464, %v6528
    %6530 = vmatmul.f32.gmra.mxu0 %v2833
    %v6531 = vpop.f32.mrf.mxu0
    %v6532 = vadd.f32 %v6467, %v6531
    %6533 = vdwg.mxu0
    %6534 = vmatpush.msra.mxu0 %v2942
    %6535 = vmatpush.msra.mxu0 %v2935
    %6536 = vmatpush.msra.mxu0 %v2928
    %6537 = vmatpush.msra.mxu0 %v2921
    %6538 = vmatpush.msra.mxu0 %v2914
    %6539 = vmatpush.msra.mxu0 %v2907
    %6540 = vmatpush.msra.mxu0 %v2900
    %6541 = vmatpush.msra.mxu0 %v2893
    %6542 = vmatpush.msra.mxu0 %v2886
    %6543 = vmatpush.msra.mxu0 %v2879
    %6544 = vmatpush.msra.mxu0 %v2872
    %6545 = vmatpush.msra.mxu0 %v2865
    %6546 = vmatpush.msra.mxu0 %v2858
    %6547 = vmatpush.msra.mxu0 %v2851
    %6548 = vmatpush.msra.mxu0 %v2844
    %6549 = vmatpush.msra.mxu0 %v2837
    %6550 = vmatmul.f32.gmra.mxu0 %v2637
    %v6551 = vpop.f32.mrf.mxu0
    %v6552 = vadd.f32 %v4183, %v6551
    %6553 = vmatmul.f32.gmra.mxu0 %v2454
    %v6554 = vpop.f32.mrf.mxu0
    %v6555 = vadd.f32 %v4183, %v6554
    %6556 = vmatmul.f32.gmra.mxu0 %v2462
    %v6557 = vpop.f32.mrf.mxu0
    %v6558 = vadd.f32 %v4183, %v6557
    %6559 = vmatmul.f32.gmra.mxu0 %v2470
    %v6560 = vpop.f32.mrf.mxu0
    %v6561 = vadd.f32 %v4183, %v6560
    %6562 = vmatmul.f32.gmra.mxu0 %v2478
    %v6563 = vpop.f32.mrf.mxu0
    %v6564 = vadd.f32 %v4183, %v6563
    %6565 = vmatmul.f32.gmra.mxu0 %v2486
    %v6566 = vpop.f32.mrf.mxu0
    %v6567 = vadd.f32 %v4183, %v6566
    %6568 = vmatmul.f32.gmra.mxu0 %v2494
    %v6569 = vpop.f32.mrf.mxu0
    %v6570 = vadd.f32 %v4183, %v6569
    %6571 = vmatmul.f32.gmra.mxu0 %v2502
    %v6572 = vpop.f32.mrf.mxu0
    %v6573 = vadd.f32 %v4183, %v6572
    %6574 = vmatmul.f32.gmra.mxu0 %v2510
    %v6575 = vpop.f32.mrf.mxu0
    %v6576 = vadd.f32 %v4183, %v6575
    %6577 = vmatmul.f32.gmra.mxu0 %v2518
    %v6578 = vpop.f32.mrf.mxu0
    %v6579 = vadd.f32 %v4183, %v6578
    %6580 = vmatmul.f32.gmra.mxu0 %v2526
    %v6581 = vpop.f32.mrf.mxu0
    %v6582 = vadd.f32 %v4183, %v6581
    %6583 = vmatmul.f32.gmra.mxu0 %v2534
    %v6584 = vpop.f32.mrf.mxu0
    %v6585 = vadd.f32 %v4183, %v6584
    %6586 = vmatmul.f32.gmra.mxu0 %v2542
    %v6587 = vpop.f32.mrf.mxu0
    %v6588 = vadd.f32 %v4183, %v6587
    %6589 = vmatmul.f32.gmra.mxu0 %v2550
    %v6590 = vpop.f32.mrf.mxu0
    %v6591 = vadd.f32 %v4183, %v6590
    %6592 = vmatmul.f32.gmra.mxu0 %v2558
    %v6593 = vpop.f32.mrf.mxu0
    %v6594 = vadd.f32 %v4183, %v6593
    %6595 = vmatmul.f32.gmra.mxu0 %v2566
    %v6596 = vpop.f32.mrf.mxu0
    %v6597 = vadd.f32 %v4183, %v6596
    %6598 = vdwg.mxu0
    %6599 = vmatpush.msra.mxu0 %v3054
    %6600 = vmatpush.msra.mxu0 %v3047
    %6601 = vmatpush.msra.mxu0 %v3040
    %6602 = vmatpush.msra.mxu0 %v3033
    %6603 = vmatpush.msra.mxu0 %v3026
    %6604 = vmatpush.msra.mxu0 %v3019
    %6605 = vmatpush.msra.mxu0 %v3012
    %6606 = vmatpush.msra.mxu0 %v3005
    %6607 = vmatpush.msra.mxu0 %v2998
    %6608 = vmatpush.msra.mxu0 %v2991
    %6609 = vmatpush.msra.mxu0 %v2984
    %6610 = vmatpush.msra.mxu0 %v2977
    %6611 = vmatpush.msra.mxu0 %v2970
    %6612 = vmatpush.msra.mxu0 %v2963
    %6613 = vmatpush.msra.mxu0 %v2956
    %6614 = vmatpush.msra.mxu0 %v2949
    %6615 = vmatmul.f32.gmra.mxu0 %v2638
    %v6616 = vpop.f32.mrf.mxu0
    %v6617 = vadd.f32 %v6552, %v6616
    %6618 = vmatmul.f32.gmra.mxu0 %v2456
    %v6619 = vpop.f32.mrf.mxu0
    %v6620 = vadd.f32 %v6555, %v6619
    %6621 = vmatmul.f32.gmra.mxu0 %v2464
    %v6622 = vpop.f32.mrf.mxu0
    %v6623 = vadd.f32 %v6558, %v6622
    %6624 = vmatmul.f32.gmra.mxu0 %v2472
    %v6625 = vpop.f32.mrf.mxu0
    %v6626 = vadd.f32 %v6561, %v6625
    %6627 = vmatmul.f32.gmra.mxu0 %v2480
    %v6628 = vpop.f32.mrf.mxu0
    %v6629 = vadd.f32 %v6564, %v6628
    %6630 = vmatmul.f32.gmra.mxu0 %v2488
    %v6631 = vpop.f32.mrf.mxu0
    %v6632 = vadd.f32 %v6567, %v6631
    %6633 = vmatmul.f32.gmra.mxu0 %v2496
    %v6634 = vpop.f32.mrf.mxu0
    %v6635 = vadd.f32 %v6570, %v6634
    %6636 = vmatmul.f32.gmra.mxu0 %v2504
    %v6637 = vpop.f32.mrf.mxu0
    %v6638 = vadd.f32 %v6573, %v6637
    %6639 = vmatmul.f32.gmra.mxu0 %v2512
    %v6640 = vpop.f32.mrf.mxu0
    %v6641 = vadd.f32 %v6576, %v6640
    %6642 = vmatmul.f32.gmra.mxu0 %v2520
    %v6643 = vpop.f32.mrf.mxu0
    %v6644 = vadd.f32 %v6579, %v6643
    %6645 = vmatmul.f32.gmra.mxu0 %v2528
    %v6646 = vpop.f32.mrf.mxu0
    %v6647 = vadd.f32 %v6582, %v6646
    %6648 = vmatmul.f32.gmra.mxu0 %v2536
    %v6649 = vpop.f32.mrf.mxu0
    %v6650 = vadd.f32 %v6585, %v6649
    %6651 = vmatmul.f32.gmra.mxu0 %v2544
    %v6652 = vpop.f32.mrf.mxu0
    %v6653 = vadd.f32 %v6588, %v6652
    %6654 = vmatmul.f32.gmra.mxu0 %v2552
    %v6655 = vpop.f32.mrf.mxu0
    %v6656 = vadd.f32 %v6591, %v6655
    %6657 = vmatmul.f32.gmra.mxu0 %v2560
    %v6658 = vpop.f32.mrf.mxu0
    %v6659 = vadd.f32 %v6594, %v6658
    %6660 = vmatmul.f32.gmra.mxu0 %v2568
    %v6661 = vpop.f32.mrf.mxu0
    %v6662 = vadd.f32 %v6597, %v6661
    %6663 = vdwg.mxu0
    %6664 = vmatpush.msra.mxu0 %v3166
    %6665 = vmatpush.msra.mxu0 %v3159
    %6666 = vmatpush.msra.mxu0 %v3152
    %6667 = vmatpush.msra.mxu0 %v3145
    %6668 = vmatpush.msra.mxu0 %v3138
    %6669 = vmatpush.msra.mxu0 %v3131
    %6670 = vmatpush.msra.mxu0 %v3124
    %6671 = vmatpush.msra.mxu0 %v3117
    %6672 = vmatpush.msra.mxu0 %v3110
    %6673 = vmatpush.msra.mxu0 %v3103
    %6674 = vmatpush.msra.mxu0 %v3096
    %6675 = vmatpush.msra.mxu0 %v3089
    %6676 = vmatpush.msra.mxu0 %v3082
    %6677 = vmatpush.msra.mxu0 %v3075
    %6678 = vmatpush.msra.mxu0 %v3068
    %6679 = vmatpush.msra.mxu0 %v3061
    %6680 = vmatmul.f32.gmra.mxu0 %v2639
    %v6681 = vpop.f32.mrf.mxu0
    %v6682 = vadd.f32 %v6617, %v6681
    %6683 = vmatmul.f32.gmra.mxu0 %v2458
    %v6684 = vpop.f32.mrf.mxu0
    %v6685 = vadd.f32 %v6620, %v6684
    %6686 = vmatmul.f32.gmra.mxu0 %v2466
    %v6687 = vpop.f32.mrf.mxu0
    %v6688 = vadd.f32 %v6623, %v6687
    %6689 = vmatmul.f32.gmra.mxu0 %v2474
    %v6690 = vpop.f32.mrf.mxu0
    %v6691 = vadd.f32 %v6626, %v6690
    %6692 = vmatmul.f32.gmra.mxu0 %v2482
    %v6693 = vpop.f32.mrf.mxu0
    %v6694 = vadd.f32 %v6629, %v6693
    %6695 = vmatmul.f32.gmra.mxu0 %v2490
    %v6696 = vpop.f32.mrf.mxu0
    %v6697 = vadd.f32 %v6632, %v6696
    %6698 = vmatmul.f32.gmra.mxu0 %v2498
    %v6699 = vpop.f32.mrf.mxu0
    %v6700 = vadd.f32 %v6635, %v6699
    %6701 = vmatmul.f32.gmra.mxu0 %v2506
    %v6702 = vpop.f32.mrf.mxu0
    %v6703 = vadd.f32 %v6638, %v6702
    %6704 = vmatmul.f32.gmra.mxu0 %v2514
    %v6705 = vpop.f32.mrf.mxu0
    %v6706 = vadd.f32 %v6641, %v6705
    %6707 = vmatmul.f32.gmra.mxu0 %v2522
    %v6708 = vpop.f32.mrf.mxu0
    %v6709 = vadd.f32 %v6644, %v6708
    %6710 = vmatmul.f32.gmra.mxu0 %v2530
    %v6711 = vpop.f32.mrf.mxu0
    %v6712 = vadd.f32 %v6647, %v6711
    %6713 = vmatmul.f32.gmra.mxu0 %v2538
    %v6714 = vpop.f32.mrf.mxu0
    %v6715 = vadd.f32 %v6650, %v6714
    %6716 = vmatmul.f32.gmra.mxu0 %v2546
    %v6717 = vpop.f32.mrf.mxu0
    %v6718 = vadd.f32 %v6653, %v6717
    %6719 = vmatmul.f32.gmra.mxu0 %v2554
    %v6720 = vpop.f32.mrf.mxu0
    %v6721 = vadd.f32 %v6656, %v6720
    %6722 = vmatmul.f32.gmra.mxu0 %v2562
    %v6723 = vpop.f32.mrf.mxu0
    %v6724 = vadd.f32 %v6659, %v6723
    %6725 = vmatmul.f32.gmra.mxu0 %v2570
    %v6726 = vpop.f32.mrf.mxu0
    %v6727 = vadd.f32 %v6662, %v6726
    %6728 = vdwg.mxu0
    %6729 = vmatpush.msra.mxu0 %v3278
    %6730 = vmatpush.msra.mxu0 %v3271
    %6731 = vmatpush.msra.mxu0 %v3264
    %6732 = vmatpush.msra.mxu0 %v3257
    %6733 = vmatpush.msra.mxu0 %v3250
    %6734 = vmatpush.msra.mxu0 %v3243
    %6735 = vmatpush.msra.mxu0 %v3236
    %6736 = vmatpush.msra.mxu0 %v3229
    %6737 = vmatpush.msra.mxu0 %v3222
    %6738 = vmatpush.msra.mxu0 %v3215
    %6739 = vmatpush.msra.mxu0 %v3208
    %6740 = vmatpush.msra.mxu0 %v3201
    %6741 = vmatpush.msra.mxu0 %v3194
    %6742 = vmatpush.msra.mxu0 %v3187
    %6743 = vmatpush.msra.mxu0 %v3180
    %6744 = vmatpush.msra.mxu0 %v3173
    %6745 = vmatmul.f32.gmra.mxu0 %v2640
    %v6746 = vpop.f32.mrf.mxu0
    %v6747 = vadd.f32 %v6682, %v6746
    %6748 = vmatmul.f32.gmra.mxu0 %v2460
    %v6749 = vpop.f32.mrf.mxu0
    %v6750 = vadd.f32 %v6685, %v6749
    %6751 = vmatmul.f32.gmra.mxu0 %v2468
    %v6752 = vpop.f32.mrf.mxu0
    %v6753 = vadd.f32 %v6688, %v6752
    %6754 = vmatmul.f32.gmra.mxu0 %v2476
    %v6755 = vpop.f32.mrf.mxu0
    %v6756 = vadd.f32 %v6691, %v6755
    %6757 = vmatmul.f32.gmra.mxu0 %v2484
    %v6758 = vpop.f32.mrf.mxu0
    %v6759 = vadd.f32 %v6694, %v6758
    %6760 = vmatmul.f32.gmra.mxu0 %v2492
    %v6761 = vpop.f32.mrf.mxu0
    %v6762 = vadd.f32 %v6697, %v6761
    %6763 = vmatmul.f32.gmra.mxu0 %v2500
    %v6764 = vpop.f32.mrf.mxu0
    %v6765 = vadd.f32 %v6700, %v6764
    %6766 = vmatmul.f32.gmra.mxu0 %v2508
    %v6767 = vpop.f32.mrf.mxu0
    %v6768 = vadd.f32 %v6703, %v6767
    %6769 = vmatmul.f32.gmra.mxu0 %v2516
    %v6770 = vpop.f32.mrf.mxu0
    %v6771 = vadd.f32 %v6706, %v6770
    %6772 = vmatmul.f32.gmra.mxu0 %v2524
    %v6773 = vpop.f32.mrf.mxu0
    %v6774 = vadd.f32 %v6709, %v6773
    %6775 = vmatmul.f32.gmra.mxu0 %v2532
    %v6776 = vpop.f32.mrf.mxu0
    %v6777 = vadd.f32 %v6712, %v6776
    %6778 = vmatmul.f32.gmra.mxu0 %v2540
    %v6779 = vpop.f32.mrf.mxu0
    %v6780 = vadd.f32 %v6715, %v6779
    %6781 = vmatmul.f32.gmra.mxu0 %v2548
    %v6782 = vpop.f32.mrf.mxu0
    %v6783 = vadd.f32 %v6718, %v6782
    %6784 = vmatmul.f32.gmra.mxu0 %v2556
    %v6785 = vpop.f32.mrf.mxu0
    %v6786 = vadd.f32 %v6721, %v6785
    %6787 = vmatmul.f32.gmra.mxu0 %v2564
    %v6788 = vpop.f32.mrf.mxu0
    %v6789 = vadd.f32 %v6724, %v6788
    %6790 = vmatmul.f32.gmra.mxu0 %v2572
    %v6791 = vpop.f32.mrf.mxu0
    %v6792 = vadd.f32 %v6727, %v6791
    %6793 = vdwg.mxu0
    %6794 = vmatpush.msra.mxu0 %v3390
    %6795 = vmatpush.msra.mxu0 %v3383
    %6796 = vmatpush.msra.mxu0 %v3376
    %6797 = vmatpush.msra.mxu0 %v3369
    %6798 = vmatpush.msra.mxu0 %v3362
    %6799 = vmatpush.msra.mxu0 %v3355
    %6800 = vmatpush.msra.mxu0 %v3348
    %6801 = vmatpush.msra.mxu0 %v3341
    %6802 = vmatpush.msra.mxu0 %v3334
    %6803 = vmatpush.msra.mxu0 %v3327
    %6804 = vmatpush.msra.mxu0 %v3320
    %6805 = vmatpush.msra.mxu0 %v3313
    %6806 = vmatpush.msra.mxu0 %v3306
    %6807 = vmatpush.msra.mxu0 %v3299
    %6808 = vmatpush.msra.mxu0 %v3292
    %6809 = vmatpush.msra.mxu0 %v3285
    %6810 = vmatmul.f32.gmra.mxu0 %v2384
    %v6811 = vpop.f32.mrf.mxu0
    %v6812 = vadd.f32 %v6747, %v6811
    %6813 = vmatmul.f32.gmra.mxu0 %v2385
    %v6814 = vpop.f32.mrf.mxu0
    %v6815 = vadd.f32 %v6750, %v6814
    %6816 = vmatmul.f32.gmra.mxu0 %v2386
    %v6817 = vpop.f32.mrf.mxu0
    %v6818 = vadd.f32 %v6753, %v6817
    %6819 = vmatmul.f32.gmra.mxu0 %v2387
    %v6820 = vpop.f32.mrf.mxu0
    %v6821 = vadd.f32 %v6756, %v6820
    %6822 = vmatmul.f32.gmra.mxu0 %v2388
    %v6823 = vpop.f32.mrf.mxu0
    %v6824 = vadd.f32 %v6759, %v6823
    %6825 = vmatmul.f32.gmra.mxu0 %v2389
    %v6826 = vpop.f32.mrf.mxu0
    %v6827 = vadd.f32 %v6762, %v6826
    %6828 = vmatmul.f32.gmra.mxu0 %v2390
    %v6829 = vpop.f32.mrf.mxu0
    %v6830 = vadd.f32 %v6765, %v6829
    %6831 = vmatmul.f32.gmra.mxu0 %v2391
    %v6832 = vpop.f32.mrf.mxu0
    %v6833 = vadd.f32 %v6768, %v6832
    %6834 = vmatmul.f32.gmra.mxu0 %v2392
    %v6835 = vpop.f32.mrf.mxu0
    %v6836 = vadd.f32 %v6771, %v6835
    %6837 = vmatmul.f32.gmra.mxu0 %v2393
    %v6838 = vpop.f32.mrf.mxu0
    %v6839 = vadd.f32 %v6774, %v6838
    %6840 = vmatmul.f32.gmra.mxu0 %v2394
    %v6841 = vpop.f32.mrf.mxu0
    %v6842 = vadd.f32 %v6777, %v6841
    %6843 = vmatmul.f32.gmra.mxu0 %v2395
    %v6844 = vpop.f32.mrf.mxu0
    %v6845 = vadd.f32 %v6780, %v6844
    %6846 = vmatmul.f32.gmra.mxu0 %v2396
    %v6847 = vpop.f32.mrf.mxu0
    %v6848 = vadd.f32 %v6783, %v6847
    %6849 = vmatmul.f32.gmra.mxu0 %v2397
    %v6850 = vpop.f32.mrf.mxu0
    %v6851 = vadd.f32 %v6786, %v6850
    %6852 = vmatmul.f32.gmra.mxu0 %v2398
    %v6853 = vpop.f32.mrf.mxu0
    %v6854 = vadd.f32 %v6789, %v6853
    %6855 = vmatmul.f32.gmra.mxu0 %v2399
    %v6856 = vpop.f32.mrf.mxu0
    %v6857 = vadd.f32 %v6792, %v6856
    %6858 = vdwg.mxu0
    %6859 = vmatpush.msra.mxu0 %v3502
    %6860 = vmatpush.msra.mxu0 %v3495
    %6861 = vmatpush.msra.mxu0 %v3488
    %6862 = vmatpush.msra.mxu0 %v3481
    %6863 = vmatpush.msra.mxu0 %v3474
    %6864 = vmatpush.msra.mxu0 %v3467
    %6865 = vmatpush.msra.mxu0 %v3460
    %6866 = vmatpush.msra.mxu0 %v3453
    %6867 = vmatpush.msra.mxu0 %v3446
    %6868 = vmatpush.msra.mxu0 %v3439
    %6869 = vmatpush.msra.mxu0 %v3432
    %6870 = vmatpush.msra.mxu0 %v3425
    %6871 = vmatpush.msra.mxu0 %v3418
    %6872 = vmatpush.msra.mxu0 %v3411
    %6873 = vmatpush.msra.mxu0 %v3404
    %6874 = vmatpush.msra.mxu0 %v3397
    %6875 = vmatmul.f32.gmra.mxu0 %v2272
    %v6876 = vpop.f32.mrf.mxu0
    %v6877 = vadd.f32 %v6812, %v6876
    %6878 = vmatmul.f32.gmra.mxu0 %v2275
    %v6879 = vpop.f32.mrf.mxu0
    %v6880 = vadd.f32 %v6815, %v6879
    %6881 = vmatmul.f32.gmra.mxu0 %v2278
    %v6882 = vpop.f32.mrf.mxu0
    %v6883 = vadd.f32 %v6818, %v6882
    %6884 = vmatmul.f32.gmra.mxu0 %v2281
    %v6885 = vpop.f32.mrf.mxu0
    %v6886 = vadd.f32 %v6821, %v6885
    %6887 = vmatmul.f32.gmra.mxu0 %v2284
    %v6888 = vpop.f32.mrf.mxu0
    %v6889 = vadd.f32 %v6824, %v6888
    %6890 = vmatmul.f32.gmra.mxu0 %v2287
    %v6891 = vpop.f32.mrf.mxu0
    %v6892 = vadd.f32 %v6827, %v6891
    %6893 = vmatmul.f32.gmra.mxu0 %v2290
    %v6894 = vpop.f32.mrf.mxu0
    %v6895 = vadd.f32 %v6830, %v6894
    %6896 = vmatmul.f32.gmra.mxu0 %v2293
    %v6897 = vpop.f32.mrf.mxu0
    %v6898 = vadd.f32 %v6833, %v6897
    %6899 = vmatmul.f32.gmra.mxu0 %v2296
    %v6900 = vpop.f32.mrf.mxu0
    %v6901 = vadd.f32 %v6836, %v6900
    %6902 = vmatmul.f32.gmra.mxu0 %v2299
    %v6903 = vpop.f32.mrf.mxu0
    %v6904 = vadd.f32 %v6839, %v6903
    %6905 = vmatmul.f32.gmra.mxu0 %v2302
    %v6906 = vpop.f32.mrf.mxu0
    %v6907 = vadd.f32 %v6842, %v6906
    %6908 = vmatmul.f32.gmra.mxu0 %v2305
    %v6909 = vpop.f32.mrf.mxu0
    %v6910 = vadd.f32 %v6845, %v6909
    %6911 = vmatmul.f32.gmra.mxu0 %v2308
    %v6912 = vpop.f32.mrf.mxu0
    %v6913 = vadd.f32 %v6848, %v6912
    %6914 = vmatmul.f32.gmra.mxu0 %v2311
    %v6915 = vpop.f32.mrf.mxu0
    %v6916 = vadd.f32 %v6851, %v6915
    %6917 = vmatmul.f32.gmra.mxu0 %v2314
    %v6918 = vpop.f32.mrf.mxu0
    %v6919 = vadd.f32 %v6854, %v6918
    %6920 = vmatmul.f32.gmra.mxu0 %v2317
    %v6921 = vpop.f32.mrf.mxu0
    %v6922 = vadd.f32 %v6857, %v6921
    %6923 = vdwg.mxu0
    %6924 = vmatpush.msra.mxu0 %v3614
    %6925 = vmatpush.msra.mxu0 %v3607
    %6926 = vmatpush.msra.mxu0 %v3600
    %6927 = vmatpush.msra.mxu0 %v3593
    %6928 = vmatpush.msra.mxu0 %v3586
    %6929 = vmatpush.msra.mxu0 %v3579
    %6930 = vmatpush.msra.mxu0 %v3572
    %6931 = vmatpush.msra.mxu0 %v3565
    %6932 = vmatpush.msra.mxu0 %v3558
    %6933 = vmatpush.msra.mxu0 %v3551
    %6934 = vmatpush.msra.mxu0 %v3544
    %6935 = vmatpush.msra.mxu0 %v3537
    %6936 = vmatpush.msra.mxu0 %v3530
    %6937 = vmatpush.msra.mxu0 %v3523
    %6938 = vmatpush.msra.mxu0 %v3516
    %6939 = vmatpush.msra.mxu0 %v3509
    %6940 = vmatmul.f32.gmra.mxu0 %v2273
    %v6941 = vpop.f32.mrf.mxu0
    %v6942 = vadd.f32 %v6877, %v6941
    %6943 = vmatmul.f32.gmra.mxu0 %v2276
    %v6944 = vpop.f32.mrf.mxu0
    %v6945 = vadd.f32 %v6880, %v6944
    %6946 = vmatmul.f32.gmra.mxu0 %v2279
    %v6947 = vpop.f32.mrf.mxu0
    %v6948 = vadd.f32 %v6883, %v6947
    %6949 = vmatmul.f32.gmra.mxu0 %v2282
    %v6950 = vpop.f32.mrf.mxu0
    %v6951 = vadd.f32 %v6886, %v6950
    %6952 = vmatmul.f32.gmra.mxu0 %v2285
    %v6953 = vpop.f32.mrf.mxu0
    %v6954 = vadd.f32 %v6889, %v6953
    %6955 = vmatmul.f32.gmra.mxu0 %v2288
    %v6956 = vpop.f32.mrf.mxu0
    %v6957 = vadd.f32 %v6892, %v6956
    %6958 = vmatmul.f32.gmra.mxu0 %v2291
    %v6959 = vpop.f32.mrf.mxu0
    %v6960 = vadd.f32 %v6895, %v6959
    %6961 = vmatmul.f32.gmra.mxu0 %v2294
    %v6962 = vpop.f32.mrf.mxu0
    %v6963 = vadd.f32 %v6898, %v6962
    %6964 = vmatmul.f32.gmra.mxu0 %v2297
    %v6965 = vpop.f32.mrf.mxu0
    %v6966 = vadd.f32 %v6901, %v6965
    %6967 = vmatmul.f32.gmra.mxu0 %v2300
    %v6968 = vpop.f32.mrf.mxu0
    %v6969 = vadd.f32 %v6904, %v6968
    %6970 = vmatmul.f32.gmra.mxu0 %v2303
    %v6971 = vpop.f32.mrf.mxu0
    %v6972 = vadd.f32 %v6907, %v6971
    %6973 = vmatmul.f32.gmra.mxu0 %v2306
    %v6974 = vpop.f32.mrf.mxu0
    %v6975 = vadd.f32 %v6910, %v6974
    %6976 = vmatmul.f32.gmra.mxu0 %v2309
    %v6977 = vpop.f32.mrf.mxu0
    %v6978 = vadd.f32 %v6913, %v6977
    %6979 = vmatmul.f32.gmra.mxu0 %v2312
    %v6980 = vpop.f32.mrf.mxu0
    %v6981 = vadd.f32 %v6916, %v6980
    %6982 = vmatmul.f32.gmra.mxu0 %v2315
    %v6983 = vpop.f32.mrf.mxu0
    %v6984 = vadd.f32 %v6919, %v6983
    %6985 = vmatmul.f32.gmra.mxu0 %v2318
    %v6986 = vpop.f32.mrf.mxu0
    %v6987 = vadd.f32 %v6922, %v6986
    %6988 = vdwg.mxu0
    %6989 = vmatpush.msra.mxu0 %v3726
    %6990 = vmatpush.msra.mxu0 %v3719
    %6991 = vmatpush.msra.mxu0 %v3712
    %6992 = vmatpush.msra.mxu0 %v3705
    %6993 = vmatpush.msra.mxu0 %v3698
    %6994 = vmatpush.msra.mxu0 %v3691
    %6995 = vmatpush.msra.mxu0 %v3684
    %6996 = vmatpush.msra.mxu0 %v3677
    %6997 = vmatpush.msra.mxu0 %v3670
    %6998 = vmatpush.msra.mxu0 %v3663
    %6999 = vmatpush.msra.mxu0 %v3656
    %7000 = vmatpush.msra.mxu0 %v3649
    %7001 = vmatpush.msra.mxu0 %v3642
    %7002 = vmatpush.msra.mxu0 %v3635
    %7003 = vmatpush.msra.mxu0 %v3628
    %7004 = vmatpush.msra.mxu0 %v3621
    %7005 = vmatmul.f32.gmra.mxu0 %v2401
    %v7006 = vpop.f32.mrf.mxu0
    %v7007 = vadd.f32 %v6942, %v7006
    %7008 = vmatmul.f32.gmra.mxu0 %v2402
    %v7009 = vpop.f32.mrf.mxu0
    %v7010 = vadd.f32 %v6945, %v7009
    %7011 = vmatmul.f32.gmra.mxu0 %v2403
    %v7012 = vpop.f32.mrf.mxu0
    %v7013 = vadd.f32 %v6948, %v7012
    %7014 = vmatmul.f32.gmra.mxu0 %v2404
    %v7015 = vpop.f32.mrf.mxu0
    %v7016 = vadd.f32 %v6951, %v7015
    %7017 = vmatmul.f32.gmra.mxu0 %v2405
    %v7018 = vpop.f32.mrf.mxu0
    %v7019 = vadd.f32 %v6954, %v7018
    %7020 = vmatmul.f32.gmra.mxu0 %v2406
    %v7021 = vpop.f32.mrf.mxu0
    %v7022 = vadd.f32 %v6957, %v7021
    %7023 = vmatmul.f32.gmra.mxu0 %v2407
    %v7024 = vpop.f32.mrf.mxu0
    %v7025 = vadd.f32 %v6960, %v7024
    %7026 = vmatmul.f32.gmra.mxu0 %v2408
    %v7027 = vpop.f32.mrf.mxu0
    %v7028 = vadd.f32 %v6963, %v7027
    %7029 = vmatmul.f32.gmra.mxu0 %v2409
    %v7030 = vpop.f32.mrf.mxu0
    %v7031 = vadd.f32 %v6966, %v7030
    %7032 = vmatmul.f32.gmra.mxu0 %v2410
    %v7033 = vpop.f32.mrf.mxu0
    %v7034 = vadd.f32 %v6969, %v7033
    %7035 = vmatmul.f32.gmra.mxu0 %v2411
    %v7036 = vpop.f32.mrf.mxu0
    %v7037 = vadd.f32 %v6972, %v7036
    %7038 = vmatmul.f32.gmra.mxu0 %v2412
    %v7039 = vpop.f32.mrf.mxu0
    %v7040 = vadd.f32 %v6975, %v7039
    %7041 = vmatmul.f32.gmra.mxu0 %v2413
    %v7042 = vpop.f32.mrf.mxu0
    %v7043 = vadd.f32 %v6978, %v7042
    %7044 = vmatmul.f32.gmra.mxu0 %v2414
    %v7045 = vpop.f32.mrf.mxu0
    %v7046 = vadd.f32 %v6981, %v7045
    %7047 = vmatmul.f32.gmra.mxu0 %v2415
    %v7048 = vpop.f32.mrf.mxu0
    %v7049 = vadd.f32 %v6984, %v7048
    %7050 = vmatmul.f32.gmra.mxu0 %v2416
    %v7051 = vpop.f32.mrf.mxu0
    %v7052 = vadd.f32 %v6987, %v7051
    %7053 = vdwg.mxu0
    %7054 = vmatpush.msra.mxu0 %v3838
    %7055 = vmatpush.msra.mxu0 %v3831
    %7056 = vmatpush.msra.mxu0 %v3824
    %7057 = vmatpush.msra.mxu0 %v3817
    %7058 = vmatpush.msra.mxu0 %v3810
    %7059 = vmatpush.msra.mxu0 %v3803
    %7060 = vmatpush.msra.mxu0 %v3796
    %7061 = vmatpush.msra.mxu0 %v3789
    %7062 = vmatpush.msra.mxu0 %v3782
    %7063 = vmatpush.msra.mxu0 %v3775
    %7064 = vmatpush.msra.mxu0 %v3768
    %7065 = vmatpush.msra.mxu0 %v3761
    %7066 = vmatpush.msra.mxu0 %v3754
    %7067 = vmatpush.msra.mxu0 %v3747
    %7068 = vmatpush.msra.mxu0 %v3740
    %7069 = vmatpush.msra.mxu0 %v3733
    %7070 = vmatmul.f32.gmra.mxu0 %v2644
    %v7071 = vpop.f32.mrf.mxu0
    %v7072 = vadd.f32 %v7007, %v7071
    %7073 = vmatmul.f32.gmra.mxu0 %v2655
    %v7074 = vpop.f32.mrf.mxu0
    %v7075 = vadd.f32 %v7010, %v7074
    %7076 = vmatmul.f32.gmra.mxu0 %v2663
    %v7077 = vpop.f32.mrf.mxu0
    %v7078 = vadd.f32 %v7013, %v7077
    %7079 = vmatmul.f32.gmra.mxu0 %v2671
    %v7080 = vpop.f32.mrf.mxu0
    %v7081 = vadd.f32 %v7016, %v7080
    %7082 = vmatmul.f32.gmra.mxu0 %v2679
    %v7083 = vpop.f32.mrf.mxu0
    %v7084 = vadd.f32 %v7019, %v7083
    %7085 = vmatmul.f32.gmra.mxu0 %v2687
    %v7086 = vpop.f32.mrf.mxu0
    %v7087 = vadd.f32 %v7022, %v7086
    %7088 = vmatmul.f32.gmra.mxu0 %v2695
    %v7089 = vpop.f32.mrf.mxu0
    %v7090 = vadd.f32 %v7025, %v7089
    %7091 = vmatmul.f32.gmra.mxu0 %v2703
    %v7092 = vpop.f32.mrf.mxu0
    %v7093 = vadd.f32 %v7028, %v7092
    %7094 = vmatmul.f32.gmra.mxu0 %v2711
    %v7095 = vpop.f32.mrf.mxu0
    %v7096 = vadd.f32 %v7031, %v7095
    %7097 = vmatmul.f32.gmra.mxu0 %v2719
    %v7098 = vpop.f32.mrf.mxu0
    %v7099 = vadd.f32 %v7034, %v7098
    %7100 = vmatmul.f32.gmra.mxu0 %v2727
    %v7101 = vpop.f32.mrf.mxu0
    %v7102 = vadd.f32 %v7037, %v7101
    %7103 = vmatmul.f32.gmra.mxu0 %v2735
    %v7104 = vpop.f32.mrf.mxu0
    %v7105 = vadd.f32 %v7040, %v7104
    %7106 = vmatmul.f32.gmra.mxu0 %v2743
    %v7107 = vpop.f32.mrf.mxu0
    %v7108 = vadd.f32 %v7043, %v7107
    %7109 = vmatmul.f32.gmra.mxu0 %v2751
    %v7110 = vpop.f32.mrf.mxu0
    %v7111 = vadd.f32 %v7046, %v7110
    %7112 = vmatmul.f32.gmra.mxu0 %v2759
    %v7113 = vpop.f32.mrf.mxu0
    %v7114 = vadd.f32 %v7049, %v7113
    %7115 = vmatmul.f32.gmra.mxu0 %v2830
    %v7116 = vpop.f32.mrf.mxu0
    %v7117 = vadd.f32 %v7052, %v7116
    %7118 = vdwg.mxu0
    %7119 = vmatpush.msra.mxu0 %v3950
    %7120 = vmatpush.msra.mxu0 %v3943
    %7121 = vmatpush.msra.mxu0 %v3936
    %7122 = vmatpush.msra.mxu0 %v3929
    %7123 = vmatpush.msra.mxu0 %v3922
    %7124 = vmatpush.msra.mxu0 %v3915
    %7125 = vmatpush.msra.mxu0 %v3908
    %7126 = vmatpush.msra.mxu0 %v3901
    %7127 = vmatpush.msra.mxu0 %v3894
    %7128 = vmatpush.msra.mxu0 %v3887
    %7129 = vmatpush.msra.mxu0 %v3880
    %7130 = vmatpush.msra.mxu0 %v3873
    %7131 = vmatpush.msra.mxu0 %v3866
    %7132 = vmatpush.msra.mxu0 %v3859
    %7133 = vmatpush.msra.mxu0 %v3852
    %7134 = vmatpush.msra.mxu0 %v3845
    %7135 = vmatmul.f32.gmra.mxu0 %v2647
    %v7136 = vpop.f32.mrf.mxu0
    %v7137 = vadd.f32 %v7072, %v7136
    %7138 = vmatmul.f32.gmra.mxu0 %v2657
    %v7139 = vpop.f32.mrf.mxu0
    %v7140 = vadd.f32 %v7075, %v7139
    %7141 = vmatmul.f32.gmra.mxu0 %v2665
    %v7142 = vpop.f32.mrf.mxu0
    %v7143 = vadd.f32 %v7078, %v7142
    %7144 = vmatmul.f32.gmra.mxu0 %v2673
    %v7145 = vpop.f32.mrf.mxu0
    %v7146 = vadd.f32 %v7081, %v7145
    %7147 = vmatmul.f32.gmra.mxu0 %v2681
    %v7148 = vpop.f32.mrf.mxu0
    %v7149 = vadd.f32 %v7084, %v7148
    %7150 = vmatmul.f32.gmra.mxu0 %v2689
    %v7151 = vpop.f32.mrf.mxu0
    %v7152 = vadd.f32 %v7087, %v7151
    %7153 = vmatmul.f32.gmra.mxu0 %v2697
    %v7154 = vpop.f32.mrf.mxu0
    %v7155 = vadd.f32 %v7090, %v7154
    %7156 = vmatmul.f32.gmra.mxu0 %v2705
    %v7157 = vpop.f32.mrf.mxu0
    %v7158 = vadd.f32 %v7093, %v7157
    %7159 = vmatmul.f32.gmra.mxu0 %v2713
    %v7160 = vpop.f32.mrf.mxu0
    %v7161 = vadd.f32 %v7096, %v7160
    %7162 = vmatmul.f32.gmra.mxu0 %v2721
    %v7163 = vpop.f32.mrf.mxu0
    %v7164 = vadd.f32 %v7099, %v7163
    %7165 = vmatmul.f32.gmra.mxu0 %v2729
    %v7166 = vpop.f32.mrf.mxu0
    %v7167 = vadd.f32 %v7102, %v7166
    %7168 = vmatmul.f32.gmra.mxu0 %v2737
    %v7169 = vpop.f32.mrf.mxu0
    %v7170 = vadd.f32 %v7105, %v7169
    %7171 = vmatmul.f32.gmra.mxu0 %v2745
    %v7172 = vpop.f32.mrf.mxu0
    %v7173 = vadd.f32 %v7108, %v7172
    %7174 = vmatmul.f32.gmra.mxu0 %v2753
    %v7175 = vpop.f32.mrf.mxu0
    %v7176 = vadd.f32 %v7111, %v7175
    %7177 = vmatmul.f32.gmra.mxu0 %v2761
    %v7178 = vpop.f32.mrf.mxu0
    %v7179 = vadd.f32 %v7114, %v7178
    %7180 = vmatmul.f32.gmra.mxu0 %v2831
    %v7181 = vpop.f32.mrf.mxu0
    %v7182 = vadd.f32 %v7117, %v7181
    %7183 = vdwg.mxu0
    %7184 = vmatpush.msra.mxu0 %v4062
    %7185 = vmatpush.msra.mxu0 %v4055
    %7186 = vmatpush.msra.mxu0 %v4048
    %7187 = vmatpush.msra.mxu0 %v4041
    %7188 = vmatpush.msra.mxu0 %v4034
    %7189 = vmatpush.msra.mxu0 %v4027
    %7190 = vmatpush.msra.mxu0 %v4020
    %7191 = vmatpush.msra.mxu0 %v4013
    %7192 = vmatpush.msra.mxu0 %v4006
    %7193 = vmatpush.msra.mxu0 %v3999
    %7194 = vmatpush.msra.mxu0 %v3992
    %7195 = vmatpush.msra.mxu0 %v3985
    %7196 = vmatpush.msra.mxu0 %v3978
    %7197 = vmatpush.msra.mxu0 %v3971
    %7198 = vmatpush.msra.mxu0 %v3964
    %7199 = vmatpush.msra.mxu0 %v3957
    %7200 = vmatmul.f32.gmra.mxu0 %v2650
    %v7201 = vpop.f32.mrf.mxu0
    %v7202 = vadd.f32 %v7137, %v7201
    %7203 = vmatmul.f32.gmra.mxu0 %v2659
    %v7204 = vpop.f32.mrf.mxu0
    %v7205 = vadd.f32 %v7140, %v7204
    %7206 = vmatmul.f32.gmra.mxu0 %v2667
    %v7207 = vpop.f32.mrf.mxu0
    %v7208 = vadd.f32 %v7143, %v7207
    %7209 = vmatmul.f32.gmra.mxu0 %v2675
    %v7210 = vpop.f32.mrf.mxu0
    %v7211 = vadd.f32 %v7146, %v7210
    %7212 = vmatmul.f32.gmra.mxu0 %v2683
    %v7213 = vpop.f32.mrf.mxu0
    %v7214 = vadd.f32 %v7149, %v7213
    %7215 = vmatmul.f32.gmra.mxu0 %v2691
    %v7216 = vpop.f32.mrf.mxu0
    %v7217 = vadd.f32 %v7152, %v7216
    %7218 = vmatmul.f32.gmra.mxu0 %v2699
    %v7219 = vpop.f32.mrf.mxu0
    %v7220 = vadd.f32 %v7155, %v7219
    %7221 = vmatmul.f32.gmra.mxu0 %v2707
    %v7222 = vpop.f32.mrf.mxu0
    %v7223 = vadd.f32 %v7158, %v7222
    %7224 = vmatmul.f32.gmra.mxu0 %v2715
    %v7225 = vpop.f32.mrf.mxu0
    %v7226 = vadd.f32 %v7161, %v7225
    %7227 = vmatmul.f32.gmra.mxu0 %v2723
    %v7228 = vpop.f32.mrf.mxu0
    %v7229 = vadd.f32 %v7164, %v7228
    %7230 = vmatmul.f32.gmra.mxu0 %v2731
    %v7231 = vpop.f32.mrf.mxu0
    %v7232 = vadd.f32 %v7167, %v7231
    %7233 = vmatmul.f32.gmra.mxu0 %v2739
    %v7234 = vpop.f32.mrf.mxu0
    %v7235 = vadd.f32 %v7170, %v7234
    %7236 = vmatmul.f32.gmra.mxu0 %v2747
    %v7237 = vpop.f32.mrf.mxu0
    %v7238 = vadd.f32 %v7173, %v7237
    %7239 = vmatmul.f32.gmra.mxu0 %v2755
    %v7240 = vpop.f32.mrf.mxu0
    %v7241 = vadd.f32 %v7176, %v7240
    %7242 = vmatmul.f32.gmra.mxu0 %v2763
    %v7243 = vpop.f32.mrf.mxu0
    %v7244 = vadd.f32 %v7179, %v7243
    %7245 = vmatmul.f32.gmra.mxu0 %v2832
    %v7246 = vpop.f32.mrf.mxu0
    %v7247 = vadd.f32 %v7182, %v7246
    %7248 = vdwg.mxu0
    %7249 = vmatpush.msra.mxu0 %v4174
    %7250 = vmatpush.msra.mxu0 %v4167
    %7251 = vmatpush.msra.mxu0 %v4160
    %7252 = vmatpush.msra.mxu0 %v4153
    %7253 = vmatpush.msra.mxu0 %v4146
    %7254 = vmatpush.msra.mxu0 %v4139
    %7255 = vmatpush.msra.mxu0 %v4132
    %7256 = vmatpush.msra.mxu0 %v4125
    %7257 = vmatpush.msra.mxu0 %v4118
    %7258 = vmatpush.msra.mxu0 %v4111
    %7259 = vmatpush.msra.mxu0 %v4104
    %7260 = vmatpush.msra.mxu0 %v4097
    %7261 = vmatpush.msra.mxu0 %v4090
    %7262 = vmatpush.msra.mxu0 %v4083
    %7263 = vmatpush.msra.mxu0 %v4076
    %7264 = vmatpush.msra.mxu0 %v4069
    %7265 = vmatmul.f32.gmra.mxu0 %v2653
    %v7266 = vpop.f32.mrf.mxu0
    %v7267 = vadd.f32 %v7202, %v7266
    %7268 = vmatmul.f32.gmra.mxu0 %v2661
    %v7269 = vpop.f32.mrf.mxu0
    %v7270 = vadd.f32 %v7205, %v7269
    %7271 = vmatmul.f32.gmra.mxu0 %v2669
    %v7272 = vpop.f32.mrf.mxu0
    %v7273 = vadd.f32 %v7208, %v7272
    %7274 = vmatmul.f32.gmra.mxu0 %v2677
    %v7275 = vpop.f32.mrf.mxu0
    %v7276 = vadd.f32 %v7211, %v7275
    %7277 = vmatmul.f32.gmra.mxu0 %v2685
    %v7278 = vpop.f32.mrf.mxu0
    %v7279 = vadd.f32 %v7214, %v7278
    %7280 = vmatmul.f32.gmra.mxu0 %v2693
    %v7281 = vpop.f32.mrf.mxu0
    %v7282 = vadd.f32 %v7217, %v7281
    %7283 = vmatmul.f32.gmra.mxu0 %v2701
    %v7284 = vpop.f32.mrf.mxu0
    %v7285 = vadd.f32 %v7220, %v7284
    %7286 = vmatmul.f32.gmra.mxu0 %v2709
    %v7287 = vpop.f32.mrf.mxu0
    %v7288 = vadd.f32 %v7223, %v7287
    %7289 = vmatmul.f32.gmra.mxu0 %v2717
    %v7290 = vpop.f32.mrf.mxu0
    %v7291 = vadd.f32 %v7226, %v7290
    %7292 = vmatmul.f32.gmra.mxu0 %v2725
    %v7293 = vpop.f32.mrf.mxu0
    %v7294 = vadd.f32 %v7229, %v7293
    %7295 = vmatmul.f32.gmra.mxu0 %v2733
    %v7296 = vpop.f32.mrf.mxu0
    %v7297 = vadd.f32 %v7232, %v7296
    %7298 = vmatmul.f32.gmra.mxu0 %v2741
    %v7299 = vpop.f32.mrf.mxu0
    %v7300 = vadd.f32 %v7235, %v7299
    %7301 = vmatmul.f32.gmra.mxu0 %v2749
    %v7302 = vpop.f32.mrf.mxu0
    %v7303 = vadd.f32 %v7238, %v7302
    %7304 = vmatmul.f32.gmra.mxu0 %v2757
    %v7305 = vpop.f32.mrf.mxu0
    %v7306 = vadd.f32 %v7241, %v7305
    %7307 = vmatmul.f32.gmra.mxu0 %v2765
    %v7308 = vpop.f32.mrf.mxu0
    %v7309 = vadd.f32 %v7244, %v7308
    %7310 = vmatmul.f32.gmra.mxu0 %v2833
    %v7311 = vpop.f32.mrf.mxu0
    %v7312 = vadd.f32 %v7247, %v7311
    %7313 = vdwg.mxu0
    %7314 = vmatpush.msra.mxu0 %v2943
    %7315 = vmatpush.msra.mxu0 %v2936
    %7316 = vmatpush.msra.mxu0 %v2929
    %7317 = vmatpush.msra.mxu0 %v2922
    %7318 = vmatpush.msra.mxu0 %v2915
    %7319 = vmatpush.msra.mxu0 %v2908
    %7320 = vmatpush.msra.mxu0 %v2901
    %7321 = vmatpush.msra.mxu0 %v2894
    %7322 = vmatpush.msra.mxu0 %v2887
    %7323 = vmatpush.msra.mxu0 %v2880
    %7324 = vmatpush.msra.mxu0 %v2873
    %7325 = vmatpush.msra.mxu0 %v2866
    %7326 = vmatpush.msra.mxu0 %v2859
    %7327 = vmatpush.msra.mxu0 %v2852
    %7328 = vmatpush.msra.mxu0 %v2845
    %7329 = vmatpush.msra.mxu0 %v2838
    %7330 = vmatmul.f32.gmra.mxu0 %v2637
    %v7331 = vpop.f32.mrf.mxu0
    %v7332 = vadd.f32 %v4184, %v7331
    %7333 = vmatmul.f32.gmra.mxu0 %v2454
    %v7334 = vpop.f32.mrf.mxu0
    %v7335 = vadd.f32 %v4184, %v7334
    %7336 = vmatmul.f32.gmra.mxu0 %v2462
    %v7337 = vpop.f32.mrf.mxu0
    %v7338 = vadd.f32 %v4184, %v7337
    %7339 = vmatmul.f32.gmra.mxu0 %v2470
    %v7340 = vpop.f32.mrf.mxu0
    %v7341 = vadd.f32 %v4184, %v7340
    %7342 = vmatmul.f32.gmra.mxu0 %v2478
    %v7343 = vpop.f32.mrf.mxu0
    %v7344 = vadd.f32 %v4184, %v7343
    %7345 = vmatmul.f32.gmra.mxu0 %v2486
    %v7346 = vpop.f32.mrf.mxu0
    %v7347 = vadd.f32 %v4184, %v7346
    %7348 = vmatmul.f32.gmra.mxu0 %v2494
    %v7349 = vpop.f32.mrf.mxu0
    %v7350 = vadd.f32 %v4184, %v7349
    %7351 = vmatmul.f32.gmra.mxu0 %v2502
    %v7352 = vpop.f32.mrf.mxu0
    %v7353 = vadd.f32 %v4184, %v7352
    %7354 = vmatmul.f32.gmra.mxu0 %v2510
    %v7355 = vpop.f32.mrf.mxu0
    %v7356 = vadd.f32 %v4184, %v7355
    %7357 = vmatmul.f32.gmra.mxu0 %v2518
    %v7358 = vpop.f32.mrf.mxu0
    %v7359 = vadd.f32 %v4184, %v7358
    %7360 = vmatmul.f32.gmra.mxu0 %v2526
    %v7361 = vpop.f32.mrf.mxu0
    %v7362 = vadd.f32 %v4184, %v7361
    %7363 = vmatmul.f32.gmra.mxu0 %v2534
    %v7364 = vpop.f32.mrf.mxu0
    %v7365 = vadd.f32 %v4184, %v7364
    %7366 = vmatmul.f32.gmra.mxu0 %v2542
    %v7367 = vpop.f32.mrf.mxu0
    %v7368 = vadd.f32 %v4184, %v7367
    %7369 = vmatmul.f32.gmra.mxu0 %v2550
    %v7370 = vpop.f32.mrf.mxu0
    %v7371 = vadd.f32 %v4184, %v7370
    %7372 = vmatmul.f32.gmra.mxu0 %v2558
    %v7373 = vpop.f32.mrf.mxu0
    %v7374 = vadd.f32 %v4184, %v7373
    %7375 = vmatmul.f32.gmra.mxu0 %v2566
    %v7376 = vpop.f32.mrf.mxu0
    %v7377 = vadd.f32 %v4184, %v7376
    %7378 = vdwg.mxu0
    %7379 = vmatpush.msra.mxu0 %v3055
    %7380 = vmatpush.msra.mxu0 %v3048
    %7381 = vmatpush.msra.mxu0 %v3041
    %7382 = vmatpush.msra.mxu0 %v3034
    %7383 = vmatpush.msra.mxu0 %v3027
    %7384 = vmatpush.msra.mxu0 %v3020
    %7385 = vmatpush.msra.mxu0 %v3013
    %7386 = vmatpush.msra.mxu0 %v3006
    %7387 = vmatpush.msra.mxu0 %v2999
    %7388 = vmatpush.msra.mxu0 %v2992
    %7389 = vmatpush.msra.mxu0 %v2985
    %7390 = vmatpush.msra.mxu0 %v2978
    %7391 = vmatpush.msra.mxu0 %v2971
    %7392 = vmatpush.msra.mxu0 %v2964
    %7393 = vmatpush.msra.mxu0 %v2957
    %7394 = vmatpush.msra.mxu0 %v2950
    %7395 = vmatmul.f32.gmra.mxu0 %v2638
    %v7396 = vpop.f32.mrf.mxu0
    %v7397 = vadd.f32 %v7332, %v7396
    %7398 = vmatmul.f32.gmra.mxu0 %v2456
    %v7399 = vpop.f32.mrf.mxu0
    %v7400 = vadd.f32 %v7335, %v7399
    %7401 = vmatmul.f32.gmra.mxu0 %v2464
    %v7402 = vpop.f32.mrf.mxu0
    %v7403 = vadd.f32 %v7338, %v7402
    %7404 = vmatmul.f32.gmra.mxu0 %v2472
    %v7405 = vpop.f32.mrf.mxu0
    %v7406 = vadd.f32 %v7341, %v7405
    %7407 = vmatmul.f32.gmra.mxu0 %v2480
    %v7408 = vpop.f32.mrf.mxu0
    %v7409 = vadd.f32 %v7344, %v7408
    %7410 = vmatmul.f32.gmra.mxu0 %v2488
    %v7411 = vpop.f32.mrf.mxu0
    %v7412 = vadd.f32 %v7347, %v7411
    %7413 = vmatmul.f32.gmra.mxu0 %v2496
    %v7414 = vpop.f32.mrf.mxu0
    %v7415 = vadd.f32 %v7350, %v7414
    %7416 = vmatmul.f32.gmra.mxu0 %v2504
    %v7417 = vpop.f32.mrf.mxu0
    %v7418 = vadd.f32 %v7353, %v7417
    %7419 = vmatmul.f32.gmra.mxu0 %v2512
    %v7420 = vpop.f32.mrf.mxu0
    %v7421 = vadd.f32 %v7356, %v7420
    %7422 = vmatmul.f32.gmra.mxu0 %v2520
    %v7423 = vpop.f32.mrf.mxu0
    %v7424 = vadd.f32 %v7359, %v7423
    %7425 = vmatmul.f32.gmra.mxu0 %v2528
    %v7426 = vpop.f32.mrf.mxu0
    %v7427 = vadd.f32 %v7362, %v7426
    %7428 = vmatmul.f32.gmra.mxu0 %v2536
    %v7429 = vpop.f32.mrf.mxu0
    %v7430 = vadd.f32 %v7365, %v7429
    %7431 = vmatmul.f32.gmra.mxu0 %v2544
    %v7432 = vpop.f32.mrf.mxu0
    %v7433 = vadd.f32 %v7368, %v7432
    %7434 = vmatmul.f32.gmra.mxu0 %v2552
    %v7435 = vpop.f32.mrf.mxu0
    %v7436 = vadd.f32 %v7371, %v7435
    %7437 = vmatmul.f32.gmra.mxu0 %v2560
    %v7438 = vpop.f32.mrf.mxu0
    %v7439 = vadd.f32 %v7374, %v7438
    %7440 = vmatmul.f32.gmra.mxu0 %v2568
    %v7441 = vpop.f32.mrf.mxu0
    %v7442 = vadd.f32 %v7377, %v7441
    %7443 = vdwg.mxu0
    %7444 = vmatpush.msra.mxu0 %v3167
    %7445 = vmatpush.msra.mxu0 %v3160
    %7446 = vmatpush.msra.mxu0 %v3153
    %7447 = vmatpush.msra.mxu0 %v3146
    %7448 = vmatpush.msra.mxu0 %v3139
    %7449 = vmatpush.msra.mxu0 %v3132
    %7450 = vmatpush.msra.mxu0 %v3125
    %7451 = vmatpush.msra.mxu0 %v3118
    %7452 = vmatpush.msra.mxu0 %v3111
    %7453 = vmatpush.msra.mxu0 %v3104
    %7454 = vmatpush.msra.mxu0 %v3097
    %7455 = vmatpush.msra.mxu0 %v3090
    %7456 = vmatpush.msra.mxu0 %v3083
    %7457 = vmatpush.msra.mxu0 %v3076
    %7458 = vmatpush.msra.mxu0 %v3069
    %7459 = vmatpush.msra.mxu0 %v3062
    %7460 = vmatmul.f32.gmra.mxu0 %v2639
    %v7461 = vpop.f32.mrf.mxu0
    %v7462 = vadd.f32 %v7397, %v7461
    %7463 = vmatmul.f32.gmra.mxu0 %v2458
    %v7464 = vpop.f32.mrf.mxu0
    %v7465 = vadd.f32 %v7400, %v7464
    %7466 = vmatmul.f32.gmra.mxu0 %v2466
    %v7467 = vpop.f32.mrf.mxu0
    %v7468 = vadd.f32 %v7403, %v7467
    %7469 = vmatmul.f32.gmra.mxu0 %v2474
    %v7470 = vpop.f32.mrf.mxu0
    %v7471 = vadd.f32 %v7406, %v7470
    %7472 = vmatmul.f32.gmra.mxu0 %v2482
    %v7473 = vpop.f32.mrf.mxu0
    %v7474 = vadd.f32 %v7409, %v7473
    %7475 = vmatmul.f32.gmra.mxu0 %v2490
    %v7476 = vpop.f32.mrf.mxu0
    %v7477 = vadd.f32 %v7412, %v7476
    %7478 = vmatmul.f32.gmra.mxu0 %v2498
    %v7479 = vpop.f32.mrf.mxu0
    %v7480 = vadd.f32 %v7415, %v7479
    %7481 = vmatmul.f32.gmra.mxu0 %v2506
    %v7482 = vpop.f32.mrf.mxu0
    %v7483 = vadd.f32 %v7418, %v7482
    %7484 = vmatmul.f32.gmra.mxu0 %v2514
    %v7485 = vpop.f32.mrf.mxu0
    %v7486 = vadd.f32 %v7421, %v7485
    %7487 = vmatmul.f32.gmra.mxu0 %v2522
    %v7488 = vpop.f32.mrf.mxu0
    %v7489 = vadd.f32 %v7424, %v7488
    %7490 = vmatmul.f32.gmra.mxu0 %v2530
    %v7491 = vpop.f32.mrf.mxu0
    %v7492 = vadd.f32 %v7427, %v7491
    %7493 = vmatmul.f32.gmra.mxu0 %v2538
    %v7494 = vpop.f32.mrf.mxu0
    %v7495 = vadd.f32 %v7430, %v7494
    %7496 = vmatmul.f32.gmra.mxu0 %v2546
    %v7497 = vpop.f32.mrf.mxu0
    %v7498 = vadd.f32 %v7433, %v7497
    %7499 = vmatmul.f32.gmra.mxu0 %v2554
    %v7500 = vpop.f32.mrf.mxu0
    %v7501 = vadd.f32 %v7436, %v7500
    %7502 = vmatmul.f32.gmra.mxu0 %v2562
    %v7503 = vpop.f32.mrf.mxu0
    %v7504 = vadd.f32 %v7439, %v7503
    %7505 = vmatmul.f32.gmra.mxu0 %v2570
    %v7506 = vpop.f32.mrf.mxu0
    %v7507 = vadd.f32 %v7442, %v7506
    %7508 = vdwg.mxu0
    %7509 = vmatpush.msra.mxu0 %v3279
    %7510 = vmatpush.msra.mxu0 %v3272
    %7511 = vmatpush.msra.mxu0 %v3265
    %7512 = vmatpush.msra.mxu0 %v3258
    %7513 = vmatpush.msra.mxu0 %v3251
    %7514 = vmatpush.msra.mxu0 %v3244
    %7515 = vmatpush.msra.mxu0 %v3237
    %7516 = vmatpush.msra.mxu0 %v3230
    %7517 = vmatpush.msra.mxu0 %v3223
    %7518 = vmatpush.msra.mxu0 %v3216
    %7519 = vmatpush.msra.mxu0 %v3209
    %7520 = vmatpush.msra.mxu0 %v3202
    %7521 = vmatpush.msra.mxu0 %v3195
    %7522 = vmatpush.msra.mxu0 %v3188
    %7523 = vmatpush.msra.mxu0 %v3181
    %7524 = vmatpush.msra.mxu0 %v3174
    %7525 = vmatmul.f32.gmra.mxu0 %v2640
    %v7526 = vpop.f32.mrf.mxu0
    %v7527 = vadd.f32 %v7462, %v7526
    %7528 = vmatmul.f32.gmra.mxu0 %v2460
    %v7529 = vpop.f32.mrf.mxu0
    %v7530 = vadd.f32 %v7465, %v7529
    %7531 = vmatmul.f32.gmra.mxu0 %v2468
    %v7532 = vpop.f32.mrf.mxu0
    %v7533 = vadd.f32 %v7468, %v7532
    %7534 = vmatmul.f32.gmra.mxu0 %v2476
    %v7535 = vpop.f32.mrf.mxu0
    %v7536 = vadd.f32 %v7471, %v7535
    %7537 = vmatmul.f32.gmra.mxu0 %v2484
    %v7538 = vpop.f32.mrf.mxu0
    %v7539 = vadd.f32 %v7474, %v7538
    %7540 = vmatmul.f32.gmra.mxu0 %v2492
    %v7541 = vpop.f32.mrf.mxu0
    %v7542 = vadd.f32 %v7477, %v7541
    %7543 = vmatmul.f32.gmra.mxu0 %v2500
    %v7544 = vpop.f32.mrf.mxu0
    %v7545 = vadd.f32 %v7480, %v7544
    %7546 = vmatmul.f32.gmra.mxu0 %v2508
    %v7547 = vpop.f32.mrf.mxu0
    %v7548 = vadd.f32 %v7483, %v7547
    %7549 = vmatmul.f32.gmra.mxu0 %v2516
    %v7550 = vpop.f32.mrf.mxu0
    %v7551 = vadd.f32 %v7486, %v7550
    %7552 = vmatmul.f32.gmra.mxu0 %v2524
    %v7553 = vpop.f32.mrf.mxu0
    %v7554 = vadd.f32 %v7489, %v7553
    %7555 = vmatmul.f32.gmra.mxu0 %v2532
    %v7556 = vpop.f32.mrf.mxu0
    %v7557 = vadd.f32 %v7492, %v7556
    %7558 = vmatmul.f32.gmra.mxu0 %v2540
    %v7559 = vpop.f32.mrf.mxu0
    %v7560 = vadd.f32 %v7495, %v7559
    %7561 = vmatmul.f32.gmra.mxu0 %v2548
    %v7562 = vpop.f32.mrf.mxu0
    %v7563 = vadd.f32 %v7498, %v7562
    %7564 = vmatmul.f32.gmra.mxu0 %v2556
    %v7565 = vpop.f32.mrf.mxu0
    %v7566 = vadd.f32 %v7501, %v7565
    %7567 = vmatmul.f32.gmra.mxu0 %v2564
    %v7568 = vpop.f32.mrf.mxu0
    %v7569 = vadd.f32 %v7504, %v7568
    %7570 = vmatmul.f32.gmra.mxu0 %v2572
    %v7571 = vpop.f32.mrf.mxu0
    %v7572 = vadd.f32 %v7507, %v7571
    %7573 = vdwg.mxu0
    %7574 = vmatpush.msra.mxu0 %v3391
    %7575 = vmatpush.msra.mxu0 %v3384
    %7576 = vmatpush.msra.mxu0 %v3377
    %7577 = vmatpush.msra.mxu0 %v3370
    %7578 = vmatpush.msra.mxu0 %v3363
    %7579 = vmatpush.msra.mxu0 %v3356
    %7580 = vmatpush.msra.mxu0 %v3349
    %7581 = vmatpush.msra.mxu0 %v3342
    %7582 = vmatpush.msra.mxu0 %v3335
    %7583 = vmatpush.msra.mxu0 %v3328
    %7584 = vmatpush.msra.mxu0 %v3321
    %7585 = vmatpush.msra.mxu0 %v3314
    %7586 = vmatpush.msra.mxu0 %v3307
    %7587 = vmatpush.msra.mxu0 %v3300
    %7588 = vmatpush.msra.mxu0 %v3293
    %7589 = vmatpush.msra.mxu0 %v3286
    %7590 = vmatmul.f32.gmra.mxu0 %v2384
    %v7591 = vpop.f32.mrf.mxu0
    %v7592 = vadd.f32 %v7527, %v7591
    %7593 = vmatmul.f32.gmra.mxu0 %v2385
    %v7594 = vpop.f32.mrf.mxu0
    %v7595 = vadd.f32 %v7530, %v7594
    %7596 = vmatmul.f32.gmra.mxu0 %v2386
    %v7597 = vpop.f32.mrf.mxu0
    %v7598 = vadd.f32 %v7533, %v7597
    %7599 = vmatmul.f32.gmra.mxu0 %v2387
    %v7600 = vpop.f32.mrf.mxu0
    %v7601 = vadd.f32 %v7536, %v7600
    %7602 = vmatmul.f32.gmra.mxu0 %v2388
    %v7603 = vpop.f32.mrf.mxu0
    %v7604 = vadd.f32 %v7539, %v7603
    %7605 = vmatmul.f32.gmra.mxu0 %v2389
    %v7606 = vpop.f32.mrf.mxu0
    %v7607 = vadd.f32 %v7542, %v7606
    %7608 = vmatmul.f32.gmra.mxu0 %v2390
    %v7609 = vpop.f32.mrf.mxu0
    %v7610 = vadd.f32 %v7545, %v7609
    %7611 = vmatmul.f32.gmra.mxu0 %v2391
    %v7612 = vpop.f32.mrf.mxu0
    %v7613 = vadd.f32 %v7548, %v7612
    %7614 = vmatmul.f32.gmra.mxu0 %v2392
    %v7615 = vpop.f32.mrf.mxu0
    %v7616 = vadd.f32 %v7551, %v7615
    %7617 = vmatmul.f32.gmra.mxu0 %v2393
    %v7618 = vpop.f32.mrf.mxu0
    %v7619 = vadd.f32 %v7554, %v7618
    %7620 = vmatmul.f32.gmra.mxu0 %v2394
    %v7621 = vpop.f32.mrf.mxu0
    %v7622 = vadd.f32 %v7557, %v7621
    %7623 = vmatmul.f32.gmra.mxu0 %v2395
    %v7624 = vpop.f32.mrf.mxu0
    %v7625 = vadd.f32 %v7560, %v7624
    %7626 = vmatmul.f32.gmra.mxu0 %v2396
    %v7627 = vpop.f32.mrf.mxu0
    %v7628 = vadd.f32 %v7563, %v7627
    %7629 = vmatmul.f32.gmra.mxu0 %v2397
    %v7630 = vpop.f32.mrf.mxu0
    %v7631 = vadd.f32 %v7566, %v7630
    %7632 = vmatmul.f32.gmra.mxu0 %v2398
    %v7633 = vpop.f32.mrf.mxu0
    %v7634 = vadd.f32 %v7569, %v7633
    %7635 = vmatmul.f32.gmra.mxu0 %v2399
    %v7636 = vpop.f32.mrf.mxu0
    %v7637 = vadd.f32 %v7572, %v7636
    %7638 = vdwg.mxu0
    %7639 = vmatpush.msra.mxu0 %v3503
    %7640 = vmatpush.msra.mxu0 %v3496
    %7641 = vmatpush.msra.mxu0 %v3489
    %7642 = vmatpush.msra.mxu0 %v3482
    %7643 = vmatpush.msra.mxu0 %v3475
    %7644 = vmatpush.msra.mxu0 %v3468
    %7645 = vmatpush.msra.mxu0 %v3461
    %7646 = vmatpush.msra.mxu0 %v3454
    %7647 = vmatpush.msra.mxu0 %v3447
    %7648 = vmatpush.msra.mxu0 %v3440
    %7649 = vmatpush.msra.mxu0 %v3433
    %7650 = vmatpush.msra.mxu0 %v3426
    %7651 = vmatpush.msra.mxu0 %v3419
    %7652 = vmatpush.msra.mxu0 %v3412
    %7653 = vmatpush.msra.mxu0 %v3405
    %7654 = vmatpush.msra.mxu0 %v3398
    %7655 = vmatmul.f32.gmra.mxu0 %v2272
    %v7656 = vpop.f32.mrf.mxu0
    %v7657 = vadd.f32 %v7592, %v7656
    %7658 = vmatmul.f32.gmra.mxu0 %v2275
    %v7659 = vpop.f32.mrf.mxu0
    %v7660 = vadd.f32 %v7595, %v7659
    %7661 = vmatmul.f32.gmra.mxu0 %v2278
    %v7662 = vpop.f32.mrf.mxu0
    %v7663 = vadd.f32 %v7598, %v7662
    %7664 = vmatmul.f32.gmra.mxu0 %v2281
    %v7665 = vpop.f32.mrf.mxu0
    %v7666 = vadd.f32 %v7601, %v7665
    %7667 = vmatmul.f32.gmra.mxu0 %v2284
    %v7668 = vpop.f32.mrf.mxu0
    %v7669 = vadd.f32 %v7604, %v7668
    %7670 = vmatmul.f32.gmra.mxu0 %v2287
    %v7671 = vpop.f32.mrf.mxu0
    %v7672 = vadd.f32 %v7607, %v7671
    %7673 = vmatmul.f32.gmra.mxu0 %v2290
    %v7674 = vpop.f32.mrf.mxu0
    %v7675 = vadd.f32 %v7610, %v7674
    %7676 = vmatmul.f32.gmra.mxu0 %v2293
    %v7677 = vpop.f32.mrf.mxu0
    %v7678 = vadd.f32 %v7613, %v7677
    %7679 = vmatmul.f32.gmra.mxu0 %v2296
    %v7680 = vpop.f32.mrf.mxu0
    %v7681 = vadd.f32 %v7616, %v7680
    %7682 = vmatmul.f32.gmra.mxu0 %v2299
    %v7683 = vpop.f32.mrf.mxu0
    %v7684 = vadd.f32 %v7619, %v7683
    %7685 = vmatmul.f32.gmra.mxu0 %v2302
    %v7686 = vpop.f32.mrf.mxu0
    %v7687 = vadd.f32 %v7622, %v7686
    %7688 = vmatmul.f32.gmra.mxu0 %v2305
    %v7689 = vpop.f32.mrf.mxu0
    %v7690 = vadd.f32 %v7625, %v7689
    %7691 = vmatmul.f32.gmra.mxu0 %v2308
    %v7692 = vpop.f32.mrf.mxu0
    %v7693 = vadd.f32 %v7628, %v7692
    %7694 = vmatmul.f32.gmra.mxu0 %v2311
    %v7695 = vpop.f32.mrf.mxu0
    %v7696 = vadd.f32 %v7631, %v7695
    %7697 = vmatmul.f32.gmra.mxu0 %v2314
    %v7698 = vpop.f32.mrf.mxu0
    %v7699 = vadd.f32 %v7634, %v7698
    %7700 = vmatmul.f32.gmra.mxu0 %v2317
    %v7701 = vpop.f32.mrf.mxu0
    %v7702 = vadd.f32 %v7637, %v7701
    %7703 = vdwg.mxu0
    %7704 = vmatpush.msra.mxu0 %v3615
    %7705 = vmatpush.msra.mxu0 %v3608
    %7706 = vmatpush.msra.mxu0 %v3601
    %7707 = vmatpush.msra.mxu0 %v3594
    %7708 = vmatpush.msra.mxu0 %v3587
    %7709 = vmatpush.msra.mxu0 %v3580
    %7710 = vmatpush.msra.mxu0 %v3573
    %7711 = vmatpush.msra.mxu0 %v3566
    %7712 = vmatpush.msra.mxu0 %v3559
    %7713 = vmatpush.msra.mxu0 %v3552
    %7714 = vmatpush.msra.mxu0 %v3545
    %7715 = vmatpush.msra.mxu0 %v3538
    %7716 = vmatpush.msra.mxu0 %v3531
    %7717 = vmatpush.msra.mxu0 %v3524
    %7718 = vmatpush.msra.mxu0 %v3517
    %7719 = vmatpush.msra.mxu0 %v3510
    %7720 = vmatmul.f32.gmra.mxu0 %v2273
    %v7721 = vpop.f32.mrf.mxu0
    %v7722 = vadd.f32 %v7657, %v7721
    %7723 = vmatmul.f32.gmra.mxu0 %v2276
    %v7724 = vpop.f32.mrf.mxu0
    %v7725 = vadd.f32 %v7660, %v7724
    %7726 = vmatmul.f32.gmra.mxu0 %v2279
    %v7727 = vpop.f32.mrf.mxu0
    %v7728 = vadd.f32 %v7663, %v7727
    %7729 = vmatmul.f32.gmra.mxu0 %v2282
    %v7730 = vpop.f32.mrf.mxu0
    %v7731 = vadd.f32 %v7666, %v7730
    %7732 = vmatmul.f32.gmra.mxu0 %v2285
    %v7733 = vpop.f32.mrf.mxu0
    %v7734 = vadd.f32 %v7669, %v7733
    %7735 = vmatmul.f32.gmra.mxu0 %v2288
    %v7736 = vpop.f32.mrf.mxu0
    %v7737 = vadd.f32 %v7672, %v7736
    %7738 = vmatmul.f32.gmra.mxu0 %v2291
    %v7739 = vpop.f32.mrf.mxu0
    %v7740 = vadd.f32 %v7675, %v7739
    %7741 = vmatmul.f32.gmra.mxu0 %v2294
    %v7742 = vpop.f32.mrf.mxu0
    %v7743 = vadd.f32 %v7678, %v7742
    %7744 = vmatmul.f32.gmra.mxu0 %v2297
    %v7745 = vpop.f32.mrf.mxu0
    %v7746 = vadd.f32 %v7681, %v7745
    %7747 = vmatmul.f32.gmra.mxu0 %v2300
    %v7748 = vpop.f32.mrf.mxu0
    %v7749 = vadd.f32 %v7684, %v7748
    %7750 = vmatmul.f32.gmra.mxu0 %v2303
    %v7751 = vpop.f32.mrf.mxu0
    %v7752 = vadd.f32 %v7687, %v7751
    %7753 = vmatmul.f32.gmra.mxu0 %v2306
    %v7754 = vpop.f32.mrf.mxu0
    %v7755 = vadd.f32 %v7690, %v7754
    %7756 = vmatmul.f32.gmra.mxu0 %v2309
    %v7757 = vpop.f32.mrf.mxu0
    %v7758 = vadd.f32 %v7693, %v7757
    %7759 = vmatmul.f32.gmra.mxu0 %v2312
    %v7760 = vpop.f32.mrf.mxu0
    %v7761 = vadd.f32 %v7696, %v7760
    %7762 = vmatmul.f32.gmra.mxu0 %v2315
    %v7763 = vpop.f32.mrf.mxu0
    %v7764 = vadd.f32 %v7699, %v7763
    %7765 = vmatmul.f32.gmra.mxu0 %v2318
    %v7766 = vpop.f32.mrf.mxu0
    %v7767 = vadd.f32 %v7702, %v7766
    %7768 = vdwg.mxu0
    %7769 = vmatpush.msra.mxu0 %v3727
    %7770 = vmatpush.msra.mxu0 %v3720
    %7771 = vmatpush.msra.mxu0 %v3713
    %7772 = vmatpush.msra.mxu0 %v3706
    %7773 = vmatpush.msra.mxu0 %v3699
    %7774 = vmatpush.msra.mxu0 %v3692
    %7775 = vmatpush.msra.mxu0 %v3685
    %7776 = vmatpush.msra.mxu0 %v3678
    %7777 = vmatpush.msra.mxu0 %v3671
    %7778 = vmatpush.msra.mxu0 %v3664
    %7779 = vmatpush.msra.mxu0 %v3657
    %7780 = vmatpush.msra.mxu0 %v3650
    %7781 = vmatpush.msra.mxu0 %v3643
    %7782 = vmatpush.msra.mxu0 %v3636
    %7783 = vmatpush.msra.mxu0 %v3629
    %7784 = vmatpush.msra.mxu0 %v3622
    %7785 = vmatmul.f32.gmra.mxu0 %v2401
    %v7786 = vpop.f32.mrf.mxu0
    %v7787 = vadd.f32 %v7722, %v7786
    %7788 = vmatmul.f32.gmra.mxu0 %v2402
    %v7789 = vpop.f32.mrf.mxu0
    %v7790 = vadd.f32 %v7725, %v7789
    %7791 = vmatmul.f32.gmra.mxu0 %v2403
    %v7792 = vpop.f32.mrf.mxu0
    %v7793 = vadd.f32 %v7728, %v7792
    %7794 = vmatmul.f32.gmra.mxu0 %v2404
    %v7795 = vpop.f32.mrf.mxu0
    %v7796 = vadd.f32 %v7731, %v7795
    %7797 = vmatmul.f32.gmra.mxu0 %v2405
    %v7798 = vpop.f32.mrf.mxu0
    %v7799 = vadd.f32 %v7734, %v7798
    %7800 = vmatmul.f32.gmra.mxu0 %v2406
    %v7801 = vpop.f32.mrf.mxu0
    %v7802 = vadd.f32 %v7737, %v7801
    %7803 = vmatmul.f32.gmra.mxu0 %v2407
    %v7804 = vpop.f32.mrf.mxu0
    %v7805 = vadd.f32 %v7740, %v7804
    %7806 = vmatmul.f32.gmra.mxu0 %v2408
    %v7807 = vpop.f32.mrf.mxu0
    %v7808 = vadd.f32 %v7743, %v7807
    %7809 = vmatmul.f32.gmra.mxu0 %v2409
    %v7810 = vpop.f32.mrf.mxu0
    %v7811 = vadd.f32 %v7746, %v7810
    %7812 = vmatmul.f32.gmra.mxu0 %v2410
    %v7813 = vpop.f32.mrf.mxu0
    %v7814 = vadd.f32 %v7749, %v7813
    %7815 = vmatmul.f32.gmra.mxu0 %v2411
    %v7816 = vpop.f32.mrf.mxu0
    %v7817 = vadd.f32 %v7752, %v7816
    %7818 = vmatmul.f32.gmra.mxu0 %v2412
    %v7819 = vpop.f32.mrf.mxu0
    %v7820 = vadd.f32 %v7755, %v7819
    %7821 = vmatmul.f32.gmra.mxu0 %v2413
    %v7822 = vpop.f32.mrf.mxu0
    %v7823 = vadd.f32 %v7758, %v7822
    %7824 = vmatmul.f32.gmra.mxu0 %v2414
    %v7825 = vpop.f32.mrf.mxu0
    %v7826 = vadd.f32 %v7761, %v7825
    %7827 = vmatmul.f32.gmra.mxu0 %v2415
    %v7828 = vpop.f32.mrf.mxu0
    %v7829 = vadd.f32 %v7764, %v7828
    %7830 = vmatmul.f32.gmra.mxu0 %v2416
    %v7831 = vpop.f32.mrf.mxu0
    %v7832 = vadd.f32 %v7767, %v7831
    %7833 = vdwg.mxu0
    %7834 = vmatpush.msra.mxu0 %v3839
    %7835 = vmatpush.msra.mxu0 %v3832
    %7836 = vmatpush.msra.mxu0 %v3825
    %7837 = vmatpush.msra.mxu0 %v3818
    %7838 = vmatpush.msra.mxu0 %v3811
    %7839 = vmatpush.msra.mxu0 %v3804
    %7840 = vmatpush.msra.mxu0 %v3797
    %7841 = vmatpush.msra.mxu0 %v3790
    %7842 = vmatpush.msra.mxu0 %v3783
    %7843 = vmatpush.msra.mxu0 %v3776
    %7844 = vmatpush.msra.mxu0 %v3769
    %7845 = vmatpush.msra.mxu0 %v3762
    %7846 = vmatpush.msra.mxu0 %v3755
    %7847 = vmatpush.msra.mxu0 %v3748
    %7848 = vmatpush.msra.mxu0 %v3741
    %7849 = vmatpush.msra.mxu0 %v3734
    %7850 = vmatmul.f32.gmra.mxu0 %v2644
    %v7851 = vpop.f32.mrf.mxu0
    %v7852 = vadd.f32 %v7787, %v7851
    %7853 = vmatmul.f32.gmra.mxu0 %v2655
    %v7854 = vpop.f32.mrf.mxu0
    %v7855 = vadd.f32 %v7790, %v7854
    %7856 = vmatmul.f32.gmra.mxu0 %v2663
    %v7857 = vpop.f32.mrf.mxu0
    %v7858 = vadd.f32 %v7793, %v7857
    %7859 = vmatmul.f32.gmra.mxu0 %v2671
    %v7860 = vpop.f32.mrf.mxu0
    %v7861 = vadd.f32 %v7796, %v7860
    %7862 = vmatmul.f32.gmra.mxu0 %v2679
    %v7863 = vpop.f32.mrf.mxu0
    %v7864 = vadd.f32 %v7799, %v7863
    %7865 = vmatmul.f32.gmra.mxu0 %v2687
    %v7866 = vpop.f32.mrf.mxu0
    %v7867 = vadd.f32 %v7802, %v7866
    %7868 = vmatmul.f32.gmra.mxu0 %v2695
    %v7869 = vpop.f32.mrf.mxu0
    %v7870 = vadd.f32 %v7805, %v7869
    %7871 = vmatmul.f32.gmra.mxu0 %v2703
    %v7872 = vpop.f32.mrf.mxu0
    %v7873 = vadd.f32 %v7808, %v7872
    %7874 = vmatmul.f32.gmra.mxu0 %v2711
    %v7875 = vpop.f32.mrf.mxu0
    %v7876 = vadd.f32 %v7811, %v7875
    %7877 = vmatmul.f32.gmra.mxu0 %v2719
    %v7878 = vpop.f32.mrf.mxu0
    %v7879 = vadd.f32 %v7814, %v7878
    %7880 = vmatmul.f32.gmra.mxu0 %v2727
    %v7881 = vpop.f32.mrf.mxu0
    %v7882 = vadd.f32 %v7817, %v7881
    %7883 = vmatmul.f32.gmra.mxu0 %v2735
    %v7884 = vpop.f32.mrf.mxu0
    %v7885 = vadd.f32 %v7820, %v7884
    %7886 = vmatmul.f32.gmra.mxu0 %v2743
    %v7887 = vpop.f32.mrf.mxu0
    %v7888 = vadd.f32 %v7823, %v7887
    %7889 = vmatmul.f32.gmra.mxu0 %v2751
    %v7890 = vpop.f32.mrf.mxu0
    %v7891 = vadd.f32 %v7826, %v7890
    %7892 = vmatmul.f32.gmra.mxu0 %v2759
    %v7893 = vpop.f32.mrf.mxu0
    %v7894 = vadd.f32 %v7829, %v7893
    %7895 = vmatmul.f32.gmra.mxu0 %v2830
    %v7896 = vpop.f32.mrf.mxu0
    %v7897 = vadd.f32 %v7832, %v7896
    %7898 = vdwg.mxu0
    %7899 = vmatpush.msra.mxu0 %v3951
    %7900 = vmatpush.msra.mxu0 %v3944
    %7901 = vmatpush.msra.mxu0 %v3937
    %7902 = vmatpush.msra.mxu0 %v3930
    %7903 = vmatpush.msra.mxu0 %v3923
    %7904 = vmatpush.msra.mxu0 %v3916
    %7905 = vmatpush.msra.mxu0 %v3909
    %7906 = vmatpush.msra.mxu0 %v3902
    %7907 = vmatpush.msra.mxu0 %v3895
    %7908 = vmatpush.msra.mxu0 %v3888
    %7909 = vmatpush.msra.mxu0 %v3881
    %7910 = vmatpush.msra.mxu0 %v3874
    %7911 = vmatpush.msra.mxu0 %v3867
    %7912 = vmatpush.msra.mxu0 %v3860
    %7913 = vmatpush.msra.mxu0 %v3853
    %7914 = vmatpush.msra.mxu0 %v3846
    %7915 = vmatmul.f32.gmra.mxu0 %v2647
    %v7916 = vpop.f32.mrf.mxu0
    %v7917 = vadd.f32 %v7852, %v7916
    %7918 = vmatmul.f32.gmra.mxu0 %v2657
    %v7919 = vpop.f32.mrf.mxu0
    %v7920 = vadd.f32 %v7855, %v7919
    %7921 = vmatmul.f32.gmra.mxu0 %v2665
    %v7922 = vpop.f32.mrf.mxu0
    %v7923 = vadd.f32 %v7858, %v7922
    %7924 = vmatmul.f32.gmra.mxu0 %v2673
    %v7925 = vpop.f32.mrf.mxu0
    %v7926 = vadd.f32 %v7861, %v7925
    %7927 = vmatmul.f32.gmra.mxu0 %v2681
    %v7928 = vpop.f32.mrf.mxu0
    %v7929 = vadd.f32 %v7864, %v7928
    %7930 = vmatmul.f32.gmra.mxu0 %v2689
    %v7931 = vpop.f32.mrf.mxu0
    %v7932 = vadd.f32 %v7867, %v7931
    %7933 = vmatmul.f32.gmra.mxu0 %v2697
    %v7934 = vpop.f32.mrf.mxu0
    %v7935 = vadd.f32 %v7870, %v7934
    %7936 = vmatmul.f32.gmra.mxu0 %v2705
    %v7937 = vpop.f32.mrf.mxu0
    %v7938 = vadd.f32 %v7873, %v7937
    %7939 = vmatmul.f32.gmra.mxu0 %v2713
    %v7940 = vpop.f32.mrf.mxu0
    %v7941 = vadd.f32 %v7876, %v7940
    %7942 = vmatmul.f32.gmra.mxu0 %v2721
    %v7943 = vpop.f32.mrf.mxu0
    %v7944 = vadd.f32 %v7879, %v7943
    %7945 = vmatmul.f32.gmra.mxu0 %v2729
    %v7946 = vpop.f32.mrf.mxu0
    %v7947 = vadd.f32 %v7882, %v7946
    %7948 = vmatmul.f32.gmra.mxu0 %v2737
    %v7949 = vpop.f32.mrf.mxu0
    %v7950 = vadd.f32 %v7885, %v7949
    %7951 = vmatmul.f32.gmra.mxu0 %v2745
    %v7952 = vpop.f32.mrf.mxu0
    %v7953 = vadd.f32 %v7888, %v7952
    %7954 = vmatmul.f32.gmra.mxu0 %v2753
    %v7955 = vpop.f32.mrf.mxu0
    %v7956 = vadd.f32 %v7891, %v7955
    %7957 = vmatmul.f32.gmra.mxu0 %v2761
    %v7958 = vpop.f32.mrf.mxu0
    %v7959 = vadd.f32 %v7894, %v7958
    %7960 = vmatmul.f32.gmra.mxu0 %v2831
    %v7961 = vpop.f32.mrf.mxu0
    %v7962 = vadd.f32 %v7897, %v7961
    %7963 = vdwg.mxu0
    %7964 = vmatpush.msra.mxu0 %v4063
    %7965 = vmatpush.msra.mxu0 %v4056
    %7966 = vmatpush.msra.mxu0 %v4049
    %7967 = vmatpush.msra.mxu0 %v4042
    %7968 = vmatpush.msra.mxu0 %v4035
    %7969 = vmatpush.msra.mxu0 %v4028
    %7970 = vmatpush.msra.mxu0 %v4021
    %7971 = vmatpush.msra.mxu0 %v4014
    %7972 = vmatpush.msra.mxu0 %v4007
    %7973 = vmatpush.msra.mxu0 %v4000
    %7974 = vmatpush.msra.mxu0 %v3993
    %7975 = vmatpush.msra.mxu0 %v3986
    %7976 = vmatpush.msra.mxu0 %v3979
    %7977 = vmatpush.msra.mxu0 %v3972
    %7978 = vmatpush.msra.mxu0 %v3965
    %7979 = vmatpush.msra.mxu0 %v3958
    %7980 = vmatmul.f32.gmra.mxu0 %v2650
    %v7981 = vpop.f32.mrf.mxu0
    %v7982 = vadd.f32 %v7917, %v7981
    %7983 = vmatmul.f32.gmra.mxu0 %v2659
    %v7984 = vpop.f32.mrf.mxu0
    %v7985 = vadd.f32 %v7920, %v7984
    %7986 = vmatmul.f32.gmra.mxu0 %v2667
    %v7987 = vpop.f32.mrf.mxu0
    %v7988 = vadd.f32 %v7923, %v7987
    %7989 = vmatmul.f32.gmra.mxu0 %v2675
    %v7990 = vpop.f32.mrf.mxu0
    %v7991 = vadd.f32 %v7926, %v7990
    %7992 = vmatmul.f32.gmra.mxu0 %v2683
    %v7993 = vpop.f32.mrf.mxu0
    %v7994 = vadd.f32 %v7929, %v7993
    %7995 = vmatmul.f32.gmra.mxu0 %v2691
    %v7996 = vpop.f32.mrf.mxu0
    %v7997 = vadd.f32 %v7932, %v7996
    %7998 = vmatmul.f32.gmra.mxu0 %v2699
    %v7999 = vpop.f32.mrf.mxu0
    %v8000 = vadd.f32 %v7935, %v7999
    %8001 = vmatmul.f32.gmra.mxu0 %v2707
    %v8002 = vpop.f32.mrf.mxu0
    %v8003 = vadd.f32 %v7938, %v8002
    %8004 = vmatmul.f32.gmra.mxu0 %v2715
    %v8005 = vpop.f32.mrf.mxu0
    %v8006 = vadd.f32 %v7941, %v8005
    %8007 = vmatmul.f32.gmra.mxu0 %v2723
    %v8008 = vpop.f32.mrf.mxu0
    %v8009 = vadd.f32 %v7944, %v8008
    %8010 = vmatmul.f32.gmra.mxu0 %v2731
    %v8011 = vpop.f32.mrf.mxu0
    %v8012 = vadd.f32 %v7947, %v8011
    %8013 = vmatmul.f32.gmra.mxu0 %v2739
    %v8014 = vpop.f32.mrf.mxu0
    %v8015 = vadd.f32 %v7950, %v8014
    %8016 = vmatmul.f32.gmra.mxu0 %v2747
    %v8017 = vpop.f32.mrf.mxu0
    %v8018 = vadd.f32 %v7953, %v8017
    %8019 = vmatmul.f32.gmra.mxu0 %v2755
    %v8020 = vpop.f32.mrf.mxu0
    %v8021 = vadd.f32 %v7956, %v8020
    %8022 = vmatmul.f32.gmra.mxu0 %v2763
    %v8023 = vpop.f32.mrf.mxu0
    %v8024 = vadd.f32 %v7959, %v8023
    %8025 = vmatmul.f32.gmra.mxu0 %v2832
    %v8026 = vpop.f32.mrf.mxu0
    %v8027 = vadd.f32 %v7962, %v8026
    %8028 = vdwg.mxu0
    %8029 = vmatpush.msra.mxu0 %v4175
    %8030 = vmatpush.msra.mxu0 %v4168
    %8031 = vmatpush.msra.mxu0 %v4161
    %8032 = vmatpush.msra.mxu0 %v4154
    %8033 = vmatpush.msra.mxu0 %v4147
    %8034 = vmatpush.msra.mxu0 %v4140
    %8035 = vmatpush.msra.mxu0 %v4133
    %8036 = vmatpush.msra.mxu0 %v4126
    %8037 = vmatpush.msra.mxu0 %v4119
    %8038 = vmatpush.msra.mxu0 %v4112
    %8039 = vmatpush.msra.mxu0 %v4105
    %8040 = vmatpush.msra.mxu0 %v4098
    %8041 = vmatpush.msra.mxu0 %v4091
    %8042 = vmatpush.msra.mxu0 %v4084
    %8043 = vmatpush.msra.mxu0 %v4077
    %8044 = vmatpush.msra.mxu0 %v4070
    %8045 = vmatmul.f32.gmra.mxu0 %v2653
    %v8046 = vpop.f32.mrf.mxu0
    %v8047 = vadd.f32 %v7982, %v8046
    %8048 = vmatmul.f32.gmra.mxu0 %v2661
    %v8049 = vpop.f32.mrf.mxu0
    %v8050 = vadd.f32 %v7985, %v8049
    %8051 = vmatmul.f32.gmra.mxu0 %v2669
    %v8052 = vpop.f32.mrf.mxu0
    %v8053 = vadd.f32 %v7988, %v8052
    %8054 = vmatmul.f32.gmra.mxu0 %v2677
    %v8055 = vpop.f32.mrf.mxu0
    %v8056 = vadd.f32 %v7991, %v8055
    %8057 = vmatmul.f32.gmra.mxu0 %v2685
    %v8058 = vpop.f32.mrf.mxu0
    %v8059 = vadd.f32 %v7994, %v8058
    %8060 = vmatmul.f32.gmra.mxu0 %v2693
    %v8061 = vpop.f32.mrf.mxu0
    %v8062 = vadd.f32 %v7997, %v8061
    %8063 = vmatmul.f32.gmra.mxu0 %v2701
    %v8064 = vpop.f32.mrf.mxu0
    %v8065 = vadd.f32 %v8000, %v8064
    %8066 = vmatmul.f32.gmra.mxu0 %v2709
    %v8067 = vpop.f32.mrf.mxu0
    %v8068 = vadd.f32 %v8003, %v8067
    %8069 = vmatmul.f32.gmra.mxu0 %v2717
    %v8070 = vpop.f32.mrf.mxu0
    %v8071 = vadd.f32 %v8006, %v8070
    %8072 = vmatmul.f32.gmra.mxu0 %v2725
    %v8073 = vpop.f32.mrf.mxu0
    %v8074 = vadd.f32 %v8009, %v8073
    %8075 = vmatmul.f32.gmra.mxu0 %v2733
    %v8076 = vpop.f32.mrf.mxu0
    %v8077 = vadd.f32 %v8012, %v8076
    %8078 = vmatmul.f32.gmra.mxu0 %v2741
    %v8079 = vpop.f32.mrf.mxu0
    %v8080 = vadd.f32 %v8015, %v8079
    %8081 = vmatmul.f32.gmra.mxu0 %v2749
    %v8082 = vpop.f32.mrf.mxu0
    %v8083 = vadd.f32 %v8018, %v8082
    %8084 = vmatmul.f32.gmra.mxu0 %v2757
    %v8085 = vpop.f32.mrf.mxu0
    %v8086 = vadd.f32 %v8021, %v8085
    %8087 = vmatmul.f32.gmra.mxu0 %v2765
    %v8088 = vpop.f32.mrf.mxu0
    %v8089 = vadd.f32 %v8024, %v8088
    %8090 = vmatmul.f32.gmra.mxu0 %v2833
    %v8091 = vpop.f32.mrf.mxu0
    %v8092 = vadd.f32 %v8027, %v8091
    %8093 = vdwg.mxu0
    %8094 = vmatpush.msra.mxu0 %v2944
    %8095 = vmatpush.msra.mxu0 %v2937
    %8096 = vmatpush.msra.mxu0 %v2930
    %8097 = vmatpush.msra.mxu0 %v2923
    %8098 = vmatpush.msra.mxu0 %v2916
    %8099 = vmatpush.msra.mxu0 %v2909
    %8100 = vmatpush.msra.mxu0 %v2902
    %8101 = vmatpush.msra.mxu0 %v2895
    %8102 = vmatpush.msra.mxu0 %v2888
    %8103 = vmatpush.msra.mxu0 %v2881
    %8104 = vmatpush.msra.mxu0 %v2874
    %8105 = vmatpush.msra.mxu0 %v2867
    %8106 = vmatpush.msra.mxu0 %v2860
    %8107 = vmatpush.msra.mxu0 %v2853
    %8108 = vmatpush.msra.mxu0 %v2846
    %8109 = vmatpush.msra.mxu0 %v2839
    %8110 = vmatmul.f32.gmra.mxu0 %v2637
    %v8111 = vpop.f32.mrf.mxu0
    %v8112 = vadd.f32 %v4185, %v8111
    %8113 = vmatmul.f32.gmra.mxu0 %v2454
    %v8114 = vpop.f32.mrf.mxu0
    %v8115 = vadd.f32 %v4185, %v8114
    %8116 = vmatmul.f32.gmra.mxu0 %v2462
    %v8117 = vpop.f32.mrf.mxu0
    %v8118 = vadd.f32 %v4185, %v8117
    %8119 = vmatmul.f32.gmra.mxu0 %v2470
    %v8120 = vpop.f32.mrf.mxu0
    %v8121 = vadd.f32 %v4185, %v8120
    %8122 = vmatmul.f32.gmra.mxu0 %v2478
    %v8123 = vpop.f32.mrf.mxu0
    %v8124 = vadd.f32 %v4185, %v8123
    %8125 = vmatmul.f32.gmra.mxu0 %v2486
    %v8126 = vpop.f32.mrf.mxu0
    %v8127 = vadd.f32 %v4185, %v8126
    %8128 = vmatmul.f32.gmra.mxu0 %v2494
    %v8129 = vpop.f32.mrf.mxu0
    %v8130 = vadd.f32 %v4185, %v8129
    %8131 = vmatmul.f32.gmra.mxu0 %v2502
    %v8132 = vpop.f32.mrf.mxu0
    %v8133 = vadd.f32 %v4185, %v8132
    %8134 = vmatmul.f32.gmra.mxu0 %v2510
    %v8135 = vpop.f32.mrf.mxu0
    %v8136 = vadd.f32 %v4185, %v8135
    %8137 = vmatmul.f32.gmra.mxu0 %v2518
    %v8138 = vpop.f32.mrf.mxu0
    %v8139 = vadd.f32 %v4185, %v8138
    %8140 = vmatmul.f32.gmra.mxu0 %v2526
    %v8141 = vpop.f32.mrf.mxu0
    %v8142 = vadd.f32 %v4185, %v8141
    %8143 = vmatmul.f32.gmra.mxu0 %v2534
    %v8144 = vpop.f32.mrf.mxu0
    %v8145 = vadd.f32 %v4185, %v8144
    %8146 = vmatmul.f32.gmra.mxu0 %v2542
    %v8147 = vpop.f32.mrf.mxu0
    %v8148 = vadd.f32 %v4185, %v8147
    %8149 = vmatmul.f32.gmra.mxu0 %v2550
    %v8150 = vpop.f32.mrf.mxu0
    %v8151 = vadd.f32 %v4185, %v8150
    %8152 = vmatmul.f32.gmra.mxu0 %v2558
    %v8153 = vpop.f32.mrf.mxu0
    %v8154 = vadd.f32 %v4185, %v8153
    %8155 = vmatmul.f32.gmra.mxu0 %v2566
    %v8156 = vpop.f32.mrf.mxu0
    %v8157 = vadd.f32 %v4185, %v8156
    %8158 = vdwg.mxu0
    %8159 = vmatpush.msra.mxu0 %v3056
    %8160 = vmatpush.msra.mxu0 %v3049
    %8161 = vmatpush.msra.mxu0 %v3042
    %8162 = vmatpush.msra.mxu0 %v3035
    %8163 = vmatpush.msra.mxu0 %v3028
    %8164 = vmatpush.msra.mxu0 %v3021
    %8165 = vmatpush.msra.mxu0 %v3014
    %8166 = vmatpush.msra.mxu0 %v3007
    %8167 = vmatpush.msra.mxu0 %v3000
    %8168 = vmatpush.msra.mxu0 %v2993
    %8169 = vmatpush.msra.mxu0 %v2986
    %8170 = vmatpush.msra.mxu0 %v2979
    %8171 = vmatpush.msra.mxu0 %v2972
    %8172 = vmatpush.msra.mxu0 %v2965
    %8173 = vmatpush.msra.mxu0 %v2958
    %8174 = vmatpush.msra.mxu0 %v2951
    %8175 = vmatmul.f32.gmra.mxu0 %v2638
    %v8176 = vpop.f32.mrf.mxu0
    %v8177 = vadd.f32 %v8112, %v8176
    %8178 = vmatmul.f32.gmra.mxu0 %v2456
    %v8179 = vpop.f32.mrf.mxu0
    %v8180 = vadd.f32 %v8115, %v8179
    %8181 = vmatmul.f32.gmra.mxu0 %v2464
    %v8182 = vpop.f32.mrf.mxu0
    %v8183 = vadd.f32 %v8118, %v8182
    %8184 = vmatmul.f32.gmra.mxu0 %v2472
    %v8185 = vpop.f32.mrf.mxu0
    %v8186 = vadd.f32 %v8121, %v8185
    %8187 = vmatmul.f32.gmra.mxu0 %v2480
    %v8188 = vpop.f32.mrf.mxu0
    %v8189 = vadd.f32 %v8124, %v8188
    %8190 = vmatmul.f32.gmra.mxu0 %v2488
    %v8191 = vpop.f32.mrf.mxu0
    %v8192 = vadd.f32 %v8127, %v8191
    %8193 = vmatmul.f32.gmra.mxu0 %v2496
    %v8194 = vpop.f32.mrf.mxu0
    %v8195 = vadd.f32 %v8130, %v8194
    %8196 = vmatmul.f32.gmra.mxu0 %v2504
    %v8197 = vpop.f32.mrf.mxu0
    %v8198 = vadd.f32 %v8133, %v8197
    %8199 = vmatmul.f32.gmra.mxu0 %v2512
    %v8200 = vpop.f32.mrf.mxu0
    %v8201 = vadd.f32 %v8136, %v8200
    %8202 = vmatmul.f32.gmra.mxu0 %v2520
    %v8203 = vpop.f32.mrf.mxu0
    %v8204 = vadd.f32 %v8139, %v8203
    %8205 = vmatmul.f32.gmra.mxu0 %v2528
    %v8206 = vpop.f32.mrf.mxu0
    %v8207 = vadd.f32 %v8142, %v8206
    %8208 = vmatmul.f32.gmra.mxu0 %v2536
    %v8209 = vpop.f32.mrf.mxu0
    %v8210 = vadd.f32 %v8145, %v8209
    %8211 = vmatmul.f32.gmra.mxu0 %v2544
    %v8212 = vpop.f32.mrf.mxu0
    %v8213 = vadd.f32 %v8148, %v8212
    %8214 = vmatmul.f32.gmra.mxu0 %v2552
    %v8215 = vpop.f32.mrf.mxu0
    %v8216 = vadd.f32 %v8151, %v8215
    %8217 = vmatmul.f32.gmra.mxu0 %v2560
    %v8218 = vpop.f32.mrf.mxu0
    %v8219 = vadd.f32 %v8154, %v8218
    %8220 = vmatmul.f32.gmra.mxu0 %v2568
    %v8221 = vpop.f32.mrf.mxu0
    %v8222 = vadd.f32 %v8157, %v8221
    %8223 = vdwg.mxu0
    %8224 = vmatpush.msra.mxu0 %v3168
    %8225 = vmatpush.msra.mxu0 %v3161
    %8226 = vmatpush.msra.mxu0 %v3154
    %8227 = vmatpush.msra.mxu0 %v3147
    %8228 = vmatpush.msra.mxu0 %v3140
    %8229 = vmatpush.msra.mxu0 %v3133
    %8230 = vmatpush.msra.mxu0 %v3126
    %8231 = vmatpush.msra.mxu0 %v3119
    %8232 = vmatpush.msra.mxu0 %v3112
    %8233 = vmatpush.msra.mxu0 %v3105
    %8234 = vmatpush.msra.mxu0 %v3098
    %8235 = vmatpush.msra.mxu0 %v3091
    %8236 = vmatpush.msra.mxu0 %v3084
    %8237 = vmatpush.msra.mxu0 %v3077
    %8238 = vmatpush.msra.mxu0 %v3070
    %8239 = vmatpush.msra.mxu0 %v3063
    %8240 = vmatmul.f32.gmra.mxu0 %v2639
    %v8241 = vpop.f32.mrf.mxu0
    %v8242 = vadd.f32 %v8177, %v8241
    %8243 = vmatmul.f32.gmra.mxu0 %v2458
    %v8244 = vpop.f32.mrf.mxu0
    %v8245 = vadd.f32 %v8180, %v8244
    %8246 = vmatmul.f32.gmra.mxu0 %v2466
    %v8247 = vpop.f32.mrf.mxu0
    %v8248 = vadd.f32 %v8183, %v8247
    %8249 = vmatmul.f32.gmra.mxu0 %v2474
    %v8250 = vpop.f32.mrf.mxu0
    %v8251 = vadd.f32 %v8186, %v8250
    %8252 = vmatmul.f32.gmra.mxu0 %v2482
    %v8253 = vpop.f32.mrf.mxu0
    %v8254 = vadd.f32 %v8189, %v8253
    %8255 = vmatmul.f32.gmra.mxu0 %v2490
    %v8256 = vpop.f32.mrf.mxu0
    %v8257 = vadd.f32 %v8192, %v8256
    %8258 = vmatmul.f32.gmra.mxu0 %v2498
    %v8259 = vpop.f32.mrf.mxu0
    %v8260 = vadd.f32 %v8195, %v8259
    %8261 = vmatmul.f32.gmra.mxu0 %v2506
    %v8262 = vpop.f32.mrf.mxu0
    %v8263 = vadd.f32 %v8198, %v8262
    %8264 = vmatmul.f32.gmra.mxu0 %v2514
    %v8265 = vpop.f32.mrf.mxu0
    %v8266 = vadd.f32 %v8201, %v8265
    %8267 = vmatmul.f32.gmra.mxu0 %v2522
    %v8268 = vpop.f32.mrf.mxu0
    %v8269 = vadd.f32 %v8204, %v8268
    %8270 = vmatmul.f32.gmra.mxu0 %v2530
    %v8271 = vpop.f32.mrf.mxu0
    %v8272 = vadd.f32 %v8207, %v8271
    %8273 = vmatmul.f32.gmra.mxu0 %v2538
    %v8274 = vpop.f32.mrf.mxu0
    %v8275 = vadd.f32 %v8210, %v8274
    %8276 = vmatmul.f32.gmra.mxu0 %v2546
    %v8277 = vpop.f32.mrf.mxu0
    %v8278 = vadd.f32 %v8213, %v8277
    %8279 = vmatmul.f32.gmra.mxu0 %v2554
    %v8280 = vpop.f32.mrf.mxu0
    %v8281 = vadd.f32 %v8216, %v8280
    %8282 = vmatmul.f32.gmra.mxu0 %v2562
    %v8283 = vpop.f32.mrf.mxu0
    %v8284 = vadd.f32 %v8219, %v8283
    %8285 = vmatmul.f32.gmra.mxu0 %v2570
    %v8286 = vpop.f32.mrf.mxu0
    %v8287 = vadd.f32 %v8222, %v8286
    %8288 = vdwg.mxu0
    %8289 = vmatpush.msra.mxu0 %v3280
    %8290 = vmatpush.msra.mxu0 %v3273
    %8291 = vmatpush.msra.mxu0 %v3266
    %8292 = vmatpush.msra.mxu0 %v3259
    %8293 = vmatpush.msra.mxu0 %v3252
    %8294 = vmatpush.msra.mxu0 %v3245
    %8295 = vmatpush.msra.mxu0 %v3238
    %8296 = vmatpush.msra.mxu0 %v3231
    %8297 = vmatpush.msra.mxu0 %v3224
    %8298 = vmatpush.msra.mxu0 %v3217
    %8299 = vmatpush.msra.mxu0 %v3210
    %8300 = vmatpush.msra.mxu0 %v3203
    %8301 = vmatpush.msra.mxu0 %v3196
    %8302 = vmatpush.msra.mxu0 %v3189
    %8303 = vmatpush.msra.mxu0 %v3182
    %8304 = vmatpush.msra.mxu0 %v3175
    %8305 = vmatmul.f32.gmra.mxu0 %v2640
    %v8306 = vpop.f32.mrf.mxu0
    %v8307 = vadd.f32 %v8242, %v8306
    %8308 = vmatmul.f32.gmra.mxu0 %v2460
    %v8309 = vpop.f32.mrf.mxu0
    %v8310 = vadd.f32 %v8245, %v8309
    %8311 = vmatmul.f32.gmra.mxu0 %v2468
    %v8312 = vpop.f32.mrf.mxu0
    %v8313 = vadd.f32 %v8248, %v8312
    %8314 = vmatmul.f32.gmra.mxu0 %v2476
    %v8315 = vpop.f32.mrf.mxu0
    %v8316 = vadd.f32 %v8251, %v8315
    %8317 = vmatmul.f32.gmra.mxu0 %v2484
    %v8318 = vpop.f32.mrf.mxu0
    %v8319 = vadd.f32 %v8254, %v8318
    %8320 = vmatmul.f32.gmra.mxu0 %v2492
    %v8321 = vpop.f32.mrf.mxu0
    %v8322 = vadd.f32 %v8257, %v8321
    %8323 = vmatmul.f32.gmra.mxu0 %v2500
    %v8324 = vpop.f32.mrf.mxu0
    %v8325 = vadd.f32 %v8260, %v8324
    %8326 = vmatmul.f32.gmra.mxu0 %v2508
    %v8327 = vpop.f32.mrf.mxu0
    %v8328 = vadd.f32 %v8263, %v8327
    %8329 = vmatmul.f32.gmra.mxu0 %v2516
    %v8330 = vpop.f32.mrf.mxu0
    %v8331 = vadd.f32 %v8266, %v8330
    %8332 = vmatmul.f32.gmra.mxu0 %v2524
    %v8333 = vpop.f32.mrf.mxu0
    %v8334 = vadd.f32 %v8269, %v8333
    %8335 = vmatmul.f32.gmra.mxu0 %v2532
    %v8336 = vpop.f32.mrf.mxu0
    %v8337 = vadd.f32 %v8272, %v8336
    %8338 = vmatmul.f32.gmra.mxu0 %v2540
    %v8339 = vpop.f32.mrf.mxu0
    %v8340 = vadd.f32 %v8275, %v8339
    %8341 = vmatmul.f32.gmra.mxu0 %v2548
    %v8342 = vpop.f32.mrf.mxu0
    %v8343 = vadd.f32 %v8278, %v8342
    %8344 = vmatmul.f32.gmra.mxu0 %v2556
    %v8345 = vpop.f32.mrf.mxu0
    %v8346 = vadd.f32 %v8281, %v8345
    %8347 = vmatmul.f32.gmra.mxu0 %v2564
    %v8348 = vpop.f32.mrf.mxu0
    %v8349 = vadd.f32 %v8284, %v8348
    %8350 = vmatmul.f32.gmra.mxu0 %v2572
    %v8351 = vpop.f32.mrf.mxu0
    %v8352 = vadd.f32 %v8287, %v8351
    %8353 = vdwg.mxu0
    %8354 = vmatpush.msra.mxu0 %v3392
    %8355 = vmatpush.msra.mxu0 %v3385
    %8356 = vmatpush.msra.mxu0 %v3378
    %8357 = vmatpush.msra.mxu0 %v3371
    %8358 = vmatpush.msra.mxu0 %v3364
    %8359 = vmatpush.msra.mxu0 %v3357
    %8360 = vmatpush.msra.mxu0 %v3350
    %8361 = vmatpush.msra.mxu0 %v3343
    %8362 = vmatpush.msra.mxu0 %v3336
    %8363 = vmatpush.msra.mxu0 %v3329
    %8364 = vmatpush.msra.mxu0 %v3322
    %8365 = vmatpush.msra.mxu0 %v3315
    %8366 = vmatpush.msra.mxu0 %v3308
    %8367 = vmatpush.msra.mxu0 %v3301
    %8368 = vmatpush.msra.mxu0 %v3294
    %8369 = vmatpush.msra.mxu0 %v3287
    %8370 = vmatmul.f32.gmra.mxu0 %v2384
    %v8371 = vpop.f32.mrf.mxu0
    %v8372 = vadd.f32 %v8307, %v8371
    %8373 = vmatmul.f32.gmra.mxu0 %v2385
    %v8374 = vpop.f32.mrf.mxu0
    %v8375 = vadd.f32 %v8310, %v8374
    %8376 = vmatmul.f32.gmra.mxu0 %v2386
    %v8377 = vpop.f32.mrf.mxu0
    %v8378 = vadd.f32 %v8313, %v8377
    %8379 = vmatmul.f32.gmra.mxu0 %v2387
    %v8380 = vpop.f32.mrf.mxu0
    %v8381 = vadd.f32 %v8316, %v8380
    %8382 = vmatmul.f32.gmra.mxu0 %v2388
    %v8383 = vpop.f32.mrf.mxu0
    %v8384 = vadd.f32 %v8319, %v8383
    %8385 = vmatmul.f32.gmra.mxu0 %v2389
    %v8386 = vpop.f32.mrf.mxu0
    %v8387 = vadd.f32 %v8322, %v8386
    %8388 = vmatmul.f32.gmra.mxu0 %v2390
    %v8389 = vpop.f32.mrf.mxu0
    %v8390 = vadd.f32 %v8325, %v8389
    %8391 = vmatmul.f32.gmra.mxu0 %v2391
    %v8392 = vpop.f32.mrf.mxu0
    %v8393 = vadd.f32 %v8328, %v8392
    %8394 = vmatmul.f32.gmra.mxu0 %v2392
    %v8395 = vpop.f32.mrf.mxu0
    %v8396 = vadd.f32 %v8331, %v8395
    %8397 = vmatmul.f32.gmra.mxu0 %v2393
    %v8398 = vpop.f32.mrf.mxu0
    %v8399 = vadd.f32 %v8334, %v8398
    %8400 = vmatmul.f32.gmra.mxu0 %v2394
    %v8401 = vpop.f32.mrf.mxu0
    %v8402 = vadd.f32 %v8337, %v8401
    %8403 = vmatmul.f32.gmra.mxu0 %v2395
    %v8404 = vpop.f32.mrf.mxu0
    %v8405 = vadd.f32 %v8340, %v8404
    %8406 = vmatmul.f32.gmra.mxu0 %v2396
    %v8407 = vpop.f32.mrf.mxu0
    %v8408 = vadd.f32 %v8343, %v8407
    %8409 = vmatmul.f32.gmra.mxu0 %v2397
    %v8410 = vpop.f32.mrf.mxu0
    %v8411 = vadd.f32 %v8346, %v8410
    %8412 = vmatmul.f32.gmra.mxu0 %v2398
    %v8413 = vpop.f32.mrf.mxu0
    %v8414 = vadd.f32 %v8349, %v8413
    %8415 = vmatmul.f32.gmra.mxu0 %v2399
    %v8416 = vpop.f32.mrf.mxu0
    %v8417 = vadd.f32 %v8352, %v8416
    %8418 = vdwg.mxu0
    %8419 = vmatpush.msra.mxu0 %v3504
    %8420 = vmatpush.msra.mxu0 %v3497
    %8421 = vmatpush.msra.mxu0 %v3490
    %8422 = vmatpush.msra.mxu0 %v3483
    %8423 = vmatpush.msra.mxu0 %v3476
    %8424 = vmatpush.msra.mxu0 %v3469
    %8425 = vmatpush.msra.mxu0 %v3462
    %8426 = vmatpush.msra.mxu0 %v3455
    %8427 = vmatpush.msra.mxu0 %v3448
    %8428 = vmatpush.msra.mxu0 %v3441
    %8429 = vmatpush.msra.mxu0 %v3434
    %8430 = vmatpush.msra.mxu0 %v3427
    %8431 = vmatpush.msra.mxu0 %v3420
    %8432 = vmatpush.msra.mxu0 %v3413
    %8433 = vmatpush.msra.mxu0 %v3406
    %8434 = vmatpush.msra.mxu0 %v3399
    %8435 = vmatmul.f32.gmra.mxu0 %v2272
    %v8436 = vpop.f32.mrf.mxu0
    %v8437 = vadd.f32 %v8372, %v8436
    %8438 = vmatmul.f32.gmra.mxu0 %v2275
    %v8439 = vpop.f32.mrf.mxu0
    %v8440 = vadd.f32 %v8375, %v8439
    %8441 = vmatmul.f32.gmra.mxu0 %v2278
    %v8442 = vpop.f32.mrf.mxu0
    %v8443 = vadd.f32 %v8378, %v8442
    %8444 = vmatmul.f32.gmra.mxu0 %v2281
    %v8445 = vpop.f32.mrf.mxu0
    %v8446 = vadd.f32 %v8381, %v8445
    %8447 = vmatmul.f32.gmra.mxu0 %v2284
    %v8448 = vpop.f32.mrf.mxu0
    %v8449 = vadd.f32 %v8384, %v8448
    %8450 = vmatmul.f32.gmra.mxu0 %v2287
    %v8451 = vpop.f32.mrf.mxu0
    %v8452 = vadd.f32 %v8387, %v8451
    %8453 = vmatmul.f32.gmra.mxu0 %v2290
    %v8454 = vpop.f32.mrf.mxu0
    %v8455 = vadd.f32 %v8390, %v8454
    %8456 = vmatmul.f32.gmra.mxu0 %v2293
    %v8457 = vpop.f32.mrf.mxu0
    %v8458 = vadd.f32 %v8393, %v8457
    %8459 = vmatmul.f32.gmra.mxu0 %v2296
    %v8460 = vpop.f32.mrf.mxu0
    %v8461 = vadd.f32 %v8396, %v8460
    %8462 = vmatmul.f32.gmra.mxu0 %v2299
    %v8463 = vpop.f32.mrf.mxu0
    %v8464 = vadd.f32 %v8399, %v8463
    %8465 = vmatmul.f32.gmra.mxu0 %v2302
    %v8466 = vpop.f32.mrf.mxu0
    %v8467 = vadd.f32 %v8402, %v8466
    %8468 = vmatmul.f32.gmra.mxu0 %v2305
    %v8469 = vpop.f32.mrf.mxu0
    %v8470 = vadd.f32 %v8405, %v8469
    %8471 = vmatmul.f32.gmra.mxu0 %v2308
    %v8472 = vpop.f32.mrf.mxu0
    %v8473 = vadd.f32 %v8408, %v8472
    %8474 = vmatmul.f32.gmra.mxu0 %v2311
    %v8475 = vpop.f32.mrf.mxu0
    %v8476 = vadd.f32 %v8411, %v8475
    %8477 = vmatmul.f32.gmra.mxu0 %v2314
    %v8478 = vpop.f32.mrf.mxu0
    %v8479 = vadd.f32 %v8414, %v8478
    %8480 = vmatmul.f32.gmra.mxu0 %v2317
    %v8481 = vpop.f32.mrf.mxu0
    %v8482 = vadd.f32 %v8417, %v8481
    %8483 = vdwg.mxu0
    %8484 = vmatpush.msra.mxu0 %v3616
    %8485 = vmatpush.msra.mxu0 %v3609
    %8486 = vmatpush.msra.mxu0 %v3602
    %8487 = vmatpush.msra.mxu0 %v3595
    %8488 = vmatpush.msra.mxu0 %v3588
    %8489 = vmatpush.msra.mxu0 %v3581
    %8490 = vmatpush.msra.mxu0 %v3574
    %8491 = vmatpush.msra.mxu0 %v3567
    %8492 = vmatpush.msra.mxu0 %v3560
    %8493 = vmatpush.msra.mxu0 %v3553
    %8494 = vmatpush.msra.mxu0 %v3546
    %8495 = vmatpush.msra.mxu0 %v3539
    %8496 = vmatpush.msra.mxu0 %v3532
    %8497 = vmatpush.msra.mxu0 %v3525
    %8498 = vmatpush.msra.mxu0 %v3518
    %8499 = vmatpush.msra.mxu0 %v3511
    %8500 = vmatmul.f32.gmra.mxu0 %v2273
    %v8501 = vpop.f32.mrf.mxu0
    %v8502 = vadd.f32 %v8437, %v8501
    %8503 = vmatmul.f32.gmra.mxu0 %v2276
    %v8504 = vpop.f32.mrf.mxu0
    %v8505 = vadd.f32 %v8440, %v8504
    %8506 = vmatmul.f32.gmra.mxu0 %v2279
    %v8507 = vpop.f32.mrf.mxu0
    %v8508 = vadd.f32 %v8443, %v8507
    %8509 = vmatmul.f32.gmra.mxu0 %v2282
    %v8510 = vpop.f32.mrf.mxu0
    %v8511 = vadd.f32 %v8446, %v8510
    %8512 = vmatmul.f32.gmra.mxu0 %v2285
    %v8513 = vpop.f32.mrf.mxu0
    %v8514 = vadd.f32 %v8449, %v8513
    %8515 = vmatmul.f32.gmra.mxu0 %v2288
    %v8516 = vpop.f32.mrf.mxu0
    %v8517 = vadd.f32 %v8452, %v8516
    %8518 = vmatmul.f32.gmra.mxu0 %v2291
    %v8519 = vpop.f32.mrf.mxu0
    %v8520 = vadd.f32 %v8455, %v8519
    %8521 = vmatmul.f32.gmra.mxu0 %v2294
    %v8522 = vpop.f32.mrf.mxu0
    %v8523 = vadd.f32 %v8458, %v8522
    %8524 = vmatmul.f32.gmra.mxu0 %v2297
    %v8525 = vpop.f32.mrf.mxu0
    %v8526 = vadd.f32 %v8461, %v8525
    %8527 = vmatmul.f32.gmra.mxu0 %v2300
    %v8528 = vpop.f32.mrf.mxu0
    %v8529 = vadd.f32 %v8464, %v8528
    %8530 = vmatmul.f32.gmra.mxu0 %v2303
    %v8531 = vpop.f32.mrf.mxu0
    %v8532 = vadd.f32 %v8467, %v8531
    %8533 = vmatmul.f32.gmra.mxu0 %v2306
    %v8534 = vpop.f32.mrf.mxu0
    %v8535 = vadd.f32 %v8470, %v8534
    %8536 = vmatmul.f32.gmra.mxu0 %v2309
    %v8537 = vpop.f32.mrf.mxu0
    %v8538 = vadd.f32 %v8473, %v8537
    %8539 = vmatmul.f32.gmra.mxu0 %v2312
    %v8540 = vpop.f32.mrf.mxu0
    %v8541 = vadd.f32 %v8476, %v8540
    %8542 = vmatmul.f32.gmra.mxu0 %v2315
    %v8543 = vpop.f32.mrf.mxu0
    %v8544 = vadd.f32 %v8479, %v8543
    %8545 = vmatmul.f32.gmra.mxu0 %v2318
    %v8546 = vpop.f32.mrf.mxu0
    %v8547 = vadd.f32 %v8482, %v8546
    %8548 = vdwg.mxu0
    %8549 = vmatpush.msra.mxu0 %v3728
    %8550 = vmatpush.msra.mxu0 %v3721
    %8551 = vmatpush.msra.mxu0 %v3714
    %8552 = vmatpush.msra.mxu0 %v3707
    %8553 = vmatpush.msra.mxu0 %v3700
    %8554 = vmatpush.msra.mxu0 %v3693
    %8555 = vmatpush.msra.mxu0 %v3686
    %8556 = vmatpush.msra.mxu0 %v3679
    %8557 = vmatpush.msra.mxu0 %v3672
    %8558 = vmatpush.msra.mxu0 %v3665
    %8559 = vmatpush.msra.mxu0 %v3658
    %8560 = vmatpush.msra.mxu0 %v3651
    %8561 = vmatpush.msra.mxu0 %v3644
    %8562 = vmatpush.msra.mxu0 %v3637
    %8563 = vmatpush.msra.mxu0 %v3630
    %8564 = vmatpush.msra.mxu0 %v3623
    %8565 = vmatmul.f32.gmra.mxu0 %v2401
    %v8566 = vpop.f32.mrf.mxu0
    %v8567 = vadd.f32 %v8502, %v8566
    %8568 = vmatmul.f32.gmra.mxu0 %v2402
    %v8569 = vpop.f32.mrf.mxu0
    %v8570 = vadd.f32 %v8505, %v8569
    %8571 = vmatmul.f32.gmra.mxu0 %v2403
    %v8572 = vpop.f32.mrf.mxu0
    %v8573 = vadd.f32 %v8508, %v8572
    %8574 = vmatmul.f32.gmra.mxu0 %v2404
    %v8575 = vpop.f32.mrf.mxu0
    %v8576 = vadd.f32 %v8511, %v8575
    %8577 = vmatmul.f32.gmra.mxu0 %v2405
    %v8578 = vpop.f32.mrf.mxu0
    %v8579 = vadd.f32 %v8514, %v8578
    %8580 = vmatmul.f32.gmra.mxu0 %v2406
    %v8581 = vpop.f32.mrf.mxu0
    %v8582 = vadd.f32 %v8517, %v8581
    %8583 = vmatmul.f32.gmra.mxu0 %v2407
    %v8584 = vpop.f32.mrf.mxu0
    %v8585 = vadd.f32 %v8520, %v8584
    %8586 = vmatmul.f32.gmra.mxu0 %v2408
    %v8587 = vpop.f32.mrf.mxu0
    %v8588 = vadd.f32 %v8523, %v8587
    %8589 = vmatmul.f32.gmra.mxu0 %v2409
    %v8590 = vpop.f32.mrf.mxu0
    %v8591 = vadd.f32 %v8526, %v8590
    %8592 = vmatmul.f32.gmra.mxu0 %v2410
    %v8593 = vpop.f32.mrf.mxu0
    %v8594 = vadd.f32 %v8529, %v8593
    %8595 = vmatmul.f32.gmra.mxu0 %v2411
    %v8596 = vpop.f32.mrf.mxu0
    %v8597 = vadd.f32 %v8532, %v8596
    %8598 = vmatmul.f32.gmra.mxu0 %v2412
    %v8599 = vpop.f32.mrf.mxu0
    %v8600 = vadd.f32 %v8535, %v8599
    %8601 = vmatmul.f32.gmra.mxu0 %v2413
    %v8602 = vpop.f32.mrf.mxu0
    %v8603 = vadd.f32 %v8538, %v8602
    %8604 = vmatmul.f32.gmra.mxu0 %v2414
    %v8605 = vpop.f32.mrf.mxu0
    %v8606 = vadd.f32 %v8541, %v8605
    %8607 = vmatmul.f32.gmra.mxu0 %v2415
    %v8608 = vpop.f32.mrf.mxu0
    %v8609 = vadd.f32 %v8544, %v8608
    %8610 = vmatmul.f32.gmra.mxu0 %v2416
    %v8611 = vpop.f32.mrf.mxu0
    %v8612 = vadd.f32 %v8547, %v8611
    %8613 = vdwg.mxu0
    %8614 = vmatpush.msra.mxu0 %v3840
    %8615 = vmatpush.msra.mxu0 %v3833
    %8616 = vmatpush.msra.mxu0 %v3826
    %8617 = vmatpush.msra.mxu0 %v3819
    %8618 = vmatpush.msra.mxu0 %v3812
    %8619 = vmatpush.msra.mxu0 %v3805
    %8620 = vmatpush.msra.mxu0 %v3798
    %8621 = vmatpush.msra.mxu0 %v3791
    %8622 = vmatpush.msra.mxu0 %v3784
    %8623 = vmatpush.msra.mxu0 %v3777
    %8624 = vmatpush.msra.mxu0 %v3770
    %8625 = vmatpush.msra.mxu0 %v3763
    %8626 = vmatpush.msra.mxu0 %v3756
    %8627 = vmatpush.msra.mxu0 %v3749
    %8628 = vmatpush.msra.mxu0 %v3742
    %8629 = vmatpush.msra.mxu0 %v3735
    %8630 = vmatmul.f32.gmra.mxu0 %v2644
    %v8631 = vpop.f32.mrf.mxu0
    %v8632 = vadd.f32 %v8567, %v8631
    %8633 = vmatmul.f32.gmra.mxu0 %v2655
    %v8634 = vpop.f32.mrf.mxu0
    %v8635 = vadd.f32 %v8570, %v8634
    %8636 = vmatmul.f32.gmra.mxu0 %v2663
    %v8637 = vpop.f32.mrf.mxu0
    %v8638 = vadd.f32 %v8573, %v8637
    %8639 = vmatmul.f32.gmra.mxu0 %v2671
    %v8640 = vpop.f32.mrf.mxu0
    %v8641 = vadd.f32 %v8576, %v8640
    %8642 = vmatmul.f32.gmra.mxu0 %v2679
    %v8643 = vpop.f32.mrf.mxu0
    %v8644 = vadd.f32 %v8579, %v8643
    %8645 = vmatmul.f32.gmra.mxu0 %v2687
    %v8646 = vpop.f32.mrf.mxu0
    %v8647 = vadd.f32 %v8582, %v8646
    %8648 = vmatmul.f32.gmra.mxu0 %v2695
    %v8649 = vpop.f32.mrf.mxu0
    %v8650 = vadd.f32 %v8585, %v8649
    %8651 = vmatmul.f32.gmra.mxu0 %v2703
    %v8652 = vpop.f32.mrf.mxu0
    %v8653 = vadd.f32 %v8588, %v8652
    %8654 = vmatmul.f32.gmra.mxu0 %v2711
    %v8655 = vpop.f32.mrf.mxu0
    %v8656 = vadd.f32 %v8591, %v8655
    %8657 = vmatmul.f32.gmra.mxu0 %v2719
    %v8658 = vpop.f32.mrf.mxu0
    %v8659 = vadd.f32 %v8594, %v8658
    %8660 = vmatmul.f32.gmra.mxu0 %v2727
    %v8661 = vpop.f32.mrf.mxu0
    %v8662 = vadd.f32 %v8597, %v8661
    %8663 = vmatmul.f32.gmra.mxu0 %v2735
    %v8664 = vpop.f32.mrf.mxu0
    %v8665 = vadd.f32 %v8600, %v8664
    %8666 = vmatmul.f32.gmra.mxu0 %v2743
    %v8667 = vpop.f32.mrf.mxu0
    %v8668 = vadd.f32 %v8603, %v8667
    %8669 = vmatmul.f32.gmra.mxu0 %v2751
    %v8670 = vpop.f32.mrf.mxu0
    %v8671 = vadd.f32 %v8606, %v8670
    %8672 = vmatmul.f32.gmra.mxu0 %v2759
    %v8673 = vpop.f32.mrf.mxu0
    %v8674 = vadd.f32 %v8609, %v8673
    %8675 = vmatmul.f32.gmra.mxu0 %v2830
    %v8676 = vpop.f32.mrf.mxu0
    %v8677 = vadd.f32 %v8612, %v8676
    %8678 = vdwg.mxu0
    %8679 = vmatpush.msra.mxu0 %v3952
    %8680 = vmatpush.msra.mxu0 %v3945
    %8681 = vmatpush.msra.mxu0 %v3938
    %8682 = vmatpush.msra.mxu0 %v3931
    %8683 = vmatpush.msra.mxu0 %v3924
    %8684 = vmatpush.msra.mxu0 %v3917
    %8685 = vmatpush.msra.mxu0 %v3910
    %8686 = vmatpush.msra.mxu0 %v3903
    %8687 = vmatpush.msra.mxu0 %v3896
    %8688 = vmatpush.msra.mxu0 %v3889
    %8689 = vmatpush.msra.mxu0 %v3882
    %8690 = vmatpush.msra.mxu0 %v3875
    %8691 = vmatpush.msra.mxu0 %v3868
    %8692 = vmatpush.msra.mxu0 %v3861
    %8693 = vmatpush.msra.mxu0 %v3854
    %8694 = vmatpush.msra.mxu0 %v3847
    %8695 = vmatmul.f32.gmra.mxu0 %v2647
    %v8696 = vpop.f32.mrf.mxu0
    %v8697 = vadd.f32 %v8632, %v8696
    %8698 = vmatmul.f32.gmra.mxu0 %v2657
    %v8699 = vpop.f32.mrf.mxu0
    %v8700 = vadd.f32 %v8635, %v8699
    %8701 = vmatmul.f32.gmra.mxu0 %v2665
    %v8702 = vpop.f32.mrf.mxu0
    %v8703 = vadd.f32 %v8638, %v8702
    %8704 = vmatmul.f32.gmra.mxu0 %v2673
    %v8705 = vpop.f32.mrf.mxu0
    %v8706 = vadd.f32 %v8641, %v8705
    %8707 = vmatmul.f32.gmra.mxu0 %v2681
    %v8708 = vpop.f32.mrf.mxu0
    %v8709 = vadd.f32 %v8644, %v8708
    %8710 = vmatmul.f32.gmra.mxu0 %v2689
    %v8711 = vpop.f32.mrf.mxu0
    %v8712 = vadd.f32 %v8647, %v8711
    %8713 = vmatmul.f32.gmra.mxu0 %v2697
    %v8714 = vpop.f32.mrf.mxu0
    %v8715 = vadd.f32 %v8650, %v8714
    %8716 = vmatmul.f32.gmra.mxu0 %v2705
    %v8717 = vpop.f32.mrf.mxu0
    %v8718 = vadd.f32 %v8653, %v8717
    %8719 = vmatmul.f32.gmra.mxu0 %v2713
    %v8720 = vpop.f32.mrf.mxu0
    %v8721 = vadd.f32 %v8656, %v8720
    %8722 = vmatmul.f32.gmra.mxu0 %v2721
    %v8723 = vpop.f32.mrf.mxu0
    %v8724 = vadd.f32 %v8659, %v8723
    %8725 = vmatmul.f32.gmra.mxu0 %v2729
    %v8726 = vpop.f32.mrf.mxu0
    %v8727 = vadd.f32 %v8662, %v8726
    %8728 = vmatmul.f32.gmra.mxu0 %v2737
    %v8729 = vpop.f32.mrf.mxu0
    %v8730 = vadd.f32 %v8665, %v8729
    %8731 = vmatmul.f32.gmra.mxu0 %v2745
    %v8732 = vpop.f32.mrf.mxu0
    %v8733 = vadd.f32 %v8668, %v8732
    %8734 = vmatmul.f32.gmra.mxu0 %v2753
    %v8735 = vpop.f32.mrf.mxu0
    %v8736 = vadd.f32 %v8671, %v8735
    %8737 = vmatmul.f32.gmra.mxu0 %v2761
    %v8738 = vpop.f32.mrf.mxu0
    %v8739 = vadd.f32 %v8674, %v8738
    %8740 = vmatmul.f32.gmra.mxu0 %v2831
    %v8741 = vpop.f32.mrf.mxu0
    %v8742 = vadd.f32 %v8677, %v8741
    %8743 = vdwg.mxu0
    %8744 = vmatpush.msra.mxu0 %v4064
    %8745 = vmatpush.msra.mxu0 %v4057
    %8746 = vmatpush.msra.mxu0 %v4050
    %8747 = vmatpush.msra.mxu0 %v4043
    %8748 = vmatpush.msra.mxu0 %v4036
    %8749 = vmatpush.msra.mxu0 %v4029
    %8750 = vmatpush.msra.mxu0 %v4022
    %8751 = vmatpush.msra.mxu0 %v4015
    %8752 = vmatpush.msra.mxu0 %v4008
    %8753 = vmatpush.msra.mxu0 %v4001
    %8754 = vmatpush.msra.mxu0 %v3994
    %8755 = vmatpush.msra.mxu0 %v3987
    %8756 = vmatpush.msra.mxu0 %v3980
    %8757 = vmatpush.msra.mxu0 %v3973
    %8758 = vmatpush.msra.mxu0 %v3966
    %8759 = vmatpush.msra.mxu0 %v3959
    %8760 = vmatmul.f32.gmra.mxu0 %v2650
    %v8761 = vpop.f32.mrf.mxu0
    %v8762 = vadd.f32 %v8697, %v8761
    %8763 = vmatmul.f32.gmra.mxu0 %v2659
    %v8764 = vpop.f32.mrf.mxu0
    %v8765 = vadd.f32 %v8700, %v8764
    %8766 = vmatmul.f32.gmra.mxu0 %v2667
    %v8767 = vpop.f32.mrf.mxu0
    %v8768 = vadd.f32 %v8703, %v8767
    %8769 = vmatmul.f32.gmra.mxu0 %v2675
    %v8770 = vpop.f32.mrf.mxu0
    %v8771 = vadd.f32 %v8706, %v8770
    %8772 = vmatmul.f32.gmra.mxu0 %v2683
    %v8773 = vpop.f32.mrf.mxu0
    %v8774 = vadd.f32 %v8709, %v8773
    %8775 = vmatmul.f32.gmra.mxu0 %v2691
    %v8776 = vpop.f32.mrf.mxu0
    %v8777 = vadd.f32 %v8712, %v8776
    %8778 = vmatmul.f32.gmra.mxu0 %v2699
    %v8779 = vpop.f32.mrf.mxu0
    %v8780 = vadd.f32 %v8715, %v8779
    %8781 = vmatmul.f32.gmra.mxu0 %v2707
    %v8782 = vpop.f32.mrf.mxu0
    %v8783 = vadd.f32 %v8718, %v8782
    %8784 = vmatmul.f32.gmra.mxu0 %v2715
    %v8785 = vpop.f32.mrf.mxu0
    %v8786 = vadd.f32 %v8721, %v8785
    %8787 = vmatmul.f32.gmra.mxu0 %v2723
    %v8788 = vpop.f32.mrf.mxu0
    %v8789 = vadd.f32 %v8724, %v8788
    %8790 = vmatmul.f32.gmra.mxu0 %v2731
    %v8791 = vpop.f32.mrf.mxu0
    %v8792 = vadd.f32 %v8727, %v8791
    %8793 = vmatmul.f32.gmra.mxu0 %v2739
    %v8794 = vpop.f32.mrf.mxu0
    %v8795 = vadd.f32 %v8730, %v8794
    %8796 = vmatmul.f32.gmra.mxu0 %v2747
    %v8797 = vpop.f32.mrf.mxu0
    %v8798 = vadd.f32 %v8733, %v8797
    %8799 = vmatmul.f32.gmra.mxu0 %v2755
    %v8800 = vpop.f32.mrf.mxu0
    %v8801 = vadd.f32 %v8736, %v8800
    %8802 = vmatmul.f32.gmra.mxu0 %v2763
    %v8803 = vpop.f32.mrf.mxu0
    %v8804 = vadd.f32 %v8739, %v8803
    %8805 = vmatmul.f32.gmra.mxu0 %v2832
    %v8806 = vpop.f32.mrf.mxu0
    %v8807 = vadd.f32 %v8742, %v8806
    %8808 = vdwg.mxu0
    %8809 = vmatpush.msra.mxu0 %v4176
    %8810 = vmatpush.msra.mxu0 %v4169
    %8811 = vmatpush.msra.mxu0 %v4162
    %8812 = vmatpush.msra.mxu0 %v4155
    %8813 = vmatpush.msra.mxu0 %v4148
    %8814 = vmatpush.msra.mxu0 %v4141
    %8815 = vmatpush.msra.mxu0 %v4134
    %8816 = vmatpush.msra.mxu0 %v4127
    %8817 = vmatpush.msra.mxu0 %v4120
    %8818 = vmatpush.msra.mxu0 %v4113
    %8819 = vmatpush.msra.mxu0 %v4106
    %8820 = vmatpush.msra.mxu0 %v4099
    %8821 = vmatpush.msra.mxu0 %v4092
    %8822 = vmatpush.msra.mxu0 %v4085
    %8823 = vmatpush.msra.mxu0 %v4078
    %8824 = vmatpush.msra.mxu0 %v4071
    %8825 = vmatmul.f32.gmra.mxu0 %v2653
    %v8826 = vpop.f32.mrf.mxu0
    %v8827 = vadd.f32 %v8762, %v8826
    %8828 = vmatmul.f32.gmra.mxu0 %v2661
    %v8829 = vpop.f32.mrf.mxu0
    %v8830 = vadd.f32 %v8765, %v8829
    %8831 = vmatmul.f32.gmra.mxu0 %v2669
    %v8832 = vpop.f32.mrf.mxu0
    %v8833 = vadd.f32 %v8768, %v8832
    %8834 = vmatmul.f32.gmra.mxu0 %v2677
    %v8835 = vpop.f32.mrf.mxu0
    %v8836 = vadd.f32 %v8771, %v8835
    %8837 = vmatmul.f32.gmra.mxu0 %v2685
    %v8838 = vpop.f32.mrf.mxu0
    %v8839 = vadd.f32 %v8774, %v8838
    %8840 = vmatmul.f32.gmra.mxu0 %v2693
    %v8841 = vpop.f32.mrf.mxu0
    %v8842 = vadd.f32 %v8777, %v8841
    %8843 = vmatmul.f32.gmra.mxu0 %v2701
    %v8844 = vpop.f32.mrf.mxu0
    %v8845 = vadd.f32 %v8780, %v8844
    %8846 = vmatmul.f32.gmra.mxu0 %v2709
    %v8847 = vpop.f32.mrf.mxu0
    %v8848 = vadd.f32 %v8783, %v8847
    %8849 = vmatmul.f32.gmra.mxu0 %v2717
    %v8850 = vpop.f32.mrf.mxu0
    %v8851 = vadd.f32 %v8786, %v8850
    %8852 = vmatmul.f32.gmra.mxu0 %v2725
    %v8853 = vpop.f32.mrf.mxu0
    %v8854 = vadd.f32 %v8789, %v8853
    %8855 = vmatmul.f32.gmra.mxu0 %v2733
    %v8856 = vpop.f32.mrf.mxu0
    %v8857 = vadd.f32 %v8792, %v8856
    %8858 = vmatmul.f32.gmra.mxu0 %v2741
    %v8859 = vpop.f32.mrf.mxu0
    %v8860 = vadd.f32 %v8795, %v8859
    %8861 = vmatmul.f32.gmra.mxu0 %v2749
    %v8862 = vpop.f32.mrf.mxu0
    %v8863 = vadd.f32 %v8798, %v8862
    %8864 = vmatmul.f32.gmra.mxu0 %v2757
    %v8865 = vpop.f32.mrf.mxu0
    %v8866 = vadd.f32 %v8801, %v8865
    %8867 = vmatmul.f32.gmra.mxu0 %v2765
    %v8868 = vpop.f32.mrf.mxu0
    %v8869 = vadd.f32 %v8804, %v8868
    %8870 = vmatmul.f32.gmra.mxu0 %v2833
    %v8871 = vpop.f32.mrf.mxu0
    %v8872 = vadd.f32 %v8807, %v8871
    %8873 = vdwg.mxu0
    %8874 = vmatpush.msra.mxu0 %v2945
    %8875 = vmatpush.msra.mxu0 %v2938
    %8876 = vmatpush.msra.mxu0 %v2931
    %8877 = vmatpush.msra.mxu0 %v2924
    %8878 = vmatpush.msra.mxu0 %v2917
    %8879 = vmatpush.msra.mxu0 %v2910
    %8880 = vmatpush.msra.mxu0 %v2903
    %8881 = vmatpush.msra.mxu0 %v2896
    %8882 = vmatpush.msra.mxu0 %v2889
    %8883 = vmatpush.msra.mxu0 %v2882
    %8884 = vmatpush.msra.mxu0 %v2875
    %8885 = vmatpush.msra.mxu0 %v2868
    %8886 = vmatpush.msra.mxu0 %v2861
    %8887 = vmatpush.msra.mxu0 %v2854
    %8888 = vmatpush.msra.mxu0 %v2847
    %8889 = vmatpush.msra.mxu0 %v2840
    %8890 = vmatmul.f32.gmra.mxu0 %v2637
    %v8891 = vpop.f32.mrf.mxu0
    %v8892 = vadd.f32 %v4186, %v8891
    %8893 = vmatmul.f32.gmra.mxu0 %v2454
    %v8894 = vpop.f32.mrf.mxu0
    %v8895 = vadd.f32 %v4186, %v8894
    %8896 = vmatmul.f32.gmra.mxu0 %v2462
    %v8897 = vpop.f32.mrf.mxu0
    %v8898 = vadd.f32 %v4186, %v8897
    %8899 = vmatmul.f32.gmra.mxu0 %v2470
    %v8900 = vpop.f32.mrf.mxu0
    %v8901 = vadd.f32 %v4186, %v8900
    %8902 = vmatmul.f32.gmra.mxu0 %v2478
    %v8903 = vpop.f32.mrf.mxu0
    %v8904 = vadd.f32 %v4186, %v8903
    %8905 = vmatmul.f32.gmra.mxu0 %v2486
    %v8906 = vpop.f32.mrf.mxu0
    %v8907 = vadd.f32 %v4186, %v8906
    %8908 = vmatmul.f32.gmra.mxu0 %v2494
    %v8909 = vpop.f32.mrf.mxu0
    %v8910 = vadd.f32 %v4186, %v8909
    %8911 = vmatmul.f32.gmra.mxu0 %v2502
    %v8912 = vpop.f32.mrf.mxu0
    %v8913 = vadd.f32 %v4186, %v8912
    %8914 = vmatmul.f32.gmra.mxu0 %v2510
    %v8915 = vpop.f32.mrf.mxu0
    %v8916 = vadd.f32 %v4186, %v8915
    %8917 = vmatmul.f32.gmra.mxu0 %v2518
    %v8918 = vpop.f32.mrf.mxu0
    %v8919 = vadd.f32 %v4186, %v8918
    %8920 = vmatmul.f32.gmra.mxu0 %v2526
    %v8921 = vpop.f32.mrf.mxu0
    %v8922 = vadd.f32 %v4186, %v8921
    %8923 = vmatmul.f32.gmra.mxu0 %v2534
    %v8924 = vpop.f32.mrf.mxu0
    %v8925 = vadd.f32 %v4186, %v8924
    %8926 = vmatmul.f32.gmra.mxu0 %v2542
    %v8927 = vpop.f32.mrf.mxu0
    %v8928 = vadd.f32 %v4186, %v8927
    %8929 = vmatmul.f32.gmra.mxu0 %v2550
    %v8930 = vpop.f32.mrf.mxu0
    %v8931 = vadd.f32 %v4186, %v8930
    %8932 = vmatmul.f32.gmra.mxu0 %v2558
    %v8933 = vpop.f32.mrf.mxu0
    %v8934 = vadd.f32 %v4186, %v8933
    %8935 = vmatmul.f32.gmra.mxu0 %v2566
    %v8936 = vpop.f32.mrf.mxu0
    %v8937 = vadd.f32 %v4186, %v8936
    %8938 = vdwg.mxu0
    %8939 = vmatpush.msra.mxu0 %v3057
    %8940 = vmatpush.msra.mxu0 %v3050
    %8941 = vmatpush.msra.mxu0 %v3043
    %8942 = vmatpush.msra.mxu0 %v3036
    %8943 = vmatpush.msra.mxu0 %v3029
    %8944 = vmatpush.msra.mxu0 %v3022
    %8945 = vmatpush.msra.mxu0 %v3015
    %8946 = vmatpush.msra.mxu0 %v3008
    %8947 = vmatpush.msra.mxu0 %v3001
    %8948 = vmatpush.msra.mxu0 %v2994
    %8949 = vmatpush.msra.mxu0 %v2987
    %8950 = vmatpush.msra.mxu0 %v2980
    %8951 = vmatpush.msra.mxu0 %v2973
    %8952 = vmatpush.msra.mxu0 %v2966
    %8953 = vmatpush.msra.mxu0 %v2959
    %8954 = vmatpush.msra.mxu0 %v2952
    %8955 = vmatmul.f32.gmra.mxu0 %v2638
    %v8956 = vpop.f32.mrf.mxu0
    %v8957 = vadd.f32 %v8892, %v8956
    %8958 = vmatmul.f32.gmra.mxu0 %v2456
    %v8959 = vpop.f32.mrf.mxu0
    %v8960 = vadd.f32 %v8895, %v8959
    %8961 = vmatmul.f32.gmra.mxu0 %v2464
    %v8962 = vpop.f32.mrf.mxu0
    %v8963 = vadd.f32 %v8898, %v8962
    %8964 = vmatmul.f32.gmra.mxu0 %v2472
    %v8965 = vpop.f32.mrf.mxu0
    %v8966 = vadd.f32 %v8901, %v8965
    %8967 = vmatmul.f32.gmra.mxu0 %v2480
    %v8968 = vpop.f32.mrf.mxu0
    %v8969 = vadd.f32 %v8904, %v8968
    %8970 = vmatmul.f32.gmra.mxu0 %v2488
    %v8971 = vpop.f32.mrf.mxu0
    %v8972 = vadd.f32 %v8907, %v8971
    %8973 = vmatmul.f32.gmra.mxu0 %v2496
    %v8974 = vpop.f32.mrf.mxu0
    %v8975 = vadd.f32 %v8910, %v8974
    %8976 = vmatmul.f32.gmra.mxu0 %v2504
    %v8977 = vpop.f32.mrf.mxu0
    %v8978 = vadd.f32 %v8913, %v8977
    %8979 = vmatmul.f32.gmra.mxu0 %v2512
    %v8980 = vpop.f32.mrf.mxu0
    %v8981 = vadd.f32 %v8916, %v8980
    %8982 = vmatmul.f32.gmra.mxu0 %v2520
    %v8983 = vpop.f32.mrf.mxu0
    %v8984 = vadd.f32 %v8919, %v8983
    %8985 = vmatmul.f32.gmra.mxu0 %v2528
    %v8986 = vpop.f32.mrf.mxu0
    %v8987 = vadd.f32 %v8922, %v8986
    %8988 = vmatmul.f32.gmra.mxu0 %v2536
    %v8989 = vpop.f32.mrf.mxu0
    %v8990 = vadd.f32 %v8925, %v8989
    %8991 = vmatmul.f32.gmra.mxu0 %v2544
    %v8992 = vpop.f32.mrf.mxu0
    %v8993 = vadd.f32 %v8928, %v8992
    %8994 = vmatmul.f32.gmra.mxu0 %v2552
    %v8995 = vpop.f32.mrf.mxu0
    %v8996 = vadd.f32 %v8931, %v8995
    %8997 = vmatmul.f32.gmra.mxu0 %v2560
    %v8998 = vpop.f32.mrf.mxu0
    %v8999 = vadd.f32 %v8934, %v8998
    %9000 = vmatmul.f32.gmra.mxu0 %v2568
    %v9001 = vpop.f32.mrf.mxu0
    %v9002 = vadd.f32 %v8937, %v9001
    %9003 = vdwg.mxu0
    %9004 = vmatpush.msra.mxu0 %v3169
    %9005 = vmatpush.msra.mxu0 %v3162
    %9006 = vmatpush.msra.mxu0 %v3155
    %9007 = vmatpush.msra.mxu0 %v3148
    %9008 = vmatpush.msra.mxu0 %v3141
    %9009 = vmatpush.msra.mxu0 %v3134
    %9010 = vmatpush.msra.mxu0 %v3127
    %9011 = vmatpush.msra.mxu0 %v3120
    %9012 = vmatpush.msra.mxu0 %v3113
    %9013 = vmatpush.msra.mxu0 %v3106
    %9014 = vmatpush.msra.mxu0 %v3099
    %9015 = vmatpush.msra.mxu0 %v3092
    %9016 = vmatpush.msra.mxu0 %v3085
    %9017 = vmatpush.msra.mxu0 %v3078
    %9018 = vmatpush.msra.mxu0 %v3071
    %9019 = vmatpush.msra.mxu0 %v3064
    %9020 = vmatmul.f32.gmra.mxu0 %v2639
    %v9021 = vpop.f32.mrf.mxu0
    %v9022 = vadd.f32 %v8957, %v9021
    %9023 = vmatmul.f32.gmra.mxu0 %v2458
    %v9024 = vpop.f32.mrf.mxu0
    %v9025 = vadd.f32 %v8960, %v9024
    %9026 = vmatmul.f32.gmra.mxu0 %v2466
    %v9027 = vpop.f32.mrf.mxu0
    %v9028 = vadd.f32 %v8963, %v9027
    %9029 = vmatmul.f32.gmra.mxu0 %v2474
    %v9030 = vpop.f32.mrf.mxu0
    %v9031 = vadd.f32 %v8966, %v9030
    %9032 = vmatmul.f32.gmra.mxu0 %v2482
    %v9033 = vpop.f32.mrf.mxu0
    %v9034 = vadd.f32 %v8969, %v9033
    %9035 = vmatmul.f32.gmra.mxu0 %v2490
    %v9036 = vpop.f32.mrf.mxu0
    %v9037 = vadd.f32 %v8972, %v9036
    %9038 = vmatmul.f32.gmra.mxu0 %v2498
    %v9039 = vpop.f32.mrf.mxu0
    %v9040 = vadd.f32 %v8975, %v9039
    %9041 = vmatmul.f32.gmra.mxu0 %v2506
    %v9042 = vpop.f32.mrf.mxu0
    %v9043 = vadd.f32 %v8978, %v9042
    %9044 = vmatmul.f32.gmra.mxu0 %v2514
    %v9045 = vpop.f32.mrf.mxu0
    %v9046 = vadd.f32 %v8981, %v9045
    %9047 = vmatmul.f32.gmra.mxu0 %v2522
    %v9048 = vpop.f32.mrf.mxu0
    %v9049 = vadd.f32 %v8984, %v9048
    %9050 = vmatmul.f32.gmra.mxu0 %v2530
    %v9051 = vpop.f32.mrf.mxu0
    %v9052 = vadd.f32 %v8987, %v9051
    %9053 = vmatmul.f32.gmra.mxu0 %v2538
    %v9054 = vpop.f32.mrf.mxu0
    %v9055 = vadd.f32 %v8990, %v9054
    %9056 = vmatmul.f32.gmra.mxu0 %v2546
    %v9057 = vpop.f32.mrf.mxu0
    %v9058 = vadd.f32 %v8993, %v9057
    %9059 = vmatmul.f32.gmra.mxu0 %v2554
    %v9060 = vpop.f32.mrf.mxu0
    %v9061 = vadd.f32 %v8996, %v9060
    %9062 = vmatmul.f32.gmra.mxu0 %v2562
    %v9063 = vpop.f32.mrf.mxu0
    %v9064 = vadd.f32 %v8999, %v9063
    %9065 = vmatmul.f32.gmra.mxu0 %v2570
    %v9066 = vpop.f32.mrf.mxu0
    %v9067 = vadd.f32 %v9002, %v9066
    %9068 = vdwg.mxu0
    %9069 = vmatpush.msra.mxu0 %v3281
    %9070 = vmatpush.msra.mxu0 %v3274
    %9071 = vmatpush.msra.mxu0 %v3267
    %9072 = vmatpush.msra.mxu0 %v3260
    %9073 = vmatpush.msra.mxu0 %v3253
    %9074 = vmatpush.msra.mxu0 %v3246
    %9075 = vmatpush.msra.mxu0 %v3239
    %9076 = vmatpush.msra.mxu0 %v3232
    %9077 = vmatpush.msra.mxu0 %v3225
    %9078 = vmatpush.msra.mxu0 %v3218
    %9079 = vmatpush.msra.mxu0 %v3211
    %9080 = vmatpush.msra.mxu0 %v3204
    %9081 = vmatpush.msra.mxu0 %v3197
    %9082 = vmatpush.msra.mxu0 %v3190
    %9083 = vmatpush.msra.mxu0 %v3183
    %9084 = vmatpush.msra.mxu0 %v3176
    %9085 = vmatmul.f32.gmra.mxu0 %v2640
    %v9086 = vpop.f32.mrf.mxu0
    %v9087 = vadd.f32 %v9022, %v9086
    %9088 = vmatmul.f32.gmra.mxu0 %v2460
    %v9089 = vpop.f32.mrf.mxu0
    %v9090 = vadd.f32 %v9025, %v9089
    %9091 = vmatmul.f32.gmra.mxu0 %v2468
    %v9092 = vpop.f32.mrf.mxu0
    %v9093 = vadd.f32 %v9028, %v9092
    %9094 = vmatmul.f32.gmra.mxu0 %v2476
    %v9095 = vpop.f32.mrf.mxu0
    %v9096 = vadd.f32 %v9031, %v9095
    %9097 = vmatmul.f32.gmra.mxu0 %v2484
    %v9098 = vpop.f32.mrf.mxu0
    %v9099 = vadd.f32 %v9034, %v9098
    %9100 = vmatmul.f32.gmra.mxu0 %v2492
    %v9101 = vpop.f32.mrf.mxu0
    %v9102 = vadd.f32 %v9037, %v9101
    %9103 = vmatmul.f32.gmra.mxu0 %v2500
    %v9104 = vpop.f32.mrf.mxu0
    %v9105 = vadd.f32 %v9040, %v9104
    %9106 = vmatmul.f32.gmra.mxu0 %v2508
    %v9107 = vpop.f32.mrf.mxu0
    %v9108 = vadd.f32 %v9043, %v9107
    %9109 = vmatmul.f32.gmra.mxu0 %v2516
    %v9110 = vpop.f32.mrf.mxu0
    %v9111 = vadd.f32 %v9046, %v9110
    %9112 = vmatmul.f32.gmra.mxu0 %v2524
    %v9113 = vpop.f32.mrf.mxu0
    %v9114 = vadd.f32 %v9049, %v9113
    %9115 = vmatmul.f32.gmra.mxu0 %v2532
    %v9116 = vpop.f32.mrf.mxu0
    %v9117 = vadd.f32 %v9052, %v9116
    %9118 = vmatmul.f32.gmra.mxu0 %v2540
    %v9119 = vpop.f32.mrf.mxu0
    %v9120 = vadd.f32 %v9055, %v9119
    %9121 = vmatmul.f32.gmra.mxu0 %v2548
    %v9122 = vpop.f32.mrf.mxu0
    %v9123 = vadd.f32 %v9058, %v9122
    %9124 = vmatmul.f32.gmra.mxu0 %v2556
    %v9125 = vpop.f32.mrf.mxu0
    %v9126 = vadd.f32 %v9061, %v9125
    %9127 = vmatmul.f32.gmra.mxu0 %v2564
    %v9128 = vpop.f32.mrf.mxu0
    %v9129 = vadd.f32 %v9064, %v9128
    %9130 = vmatmul.f32.gmra.mxu0 %v2572
    %v9131 = vpop.f32.mrf.mxu0
    %v9132 = vadd.f32 %v9067, %v9131
    %9133 = vdwg.mxu0
    %9134 = vmatpush.msra.mxu0 %v3393
    %9135 = vmatpush.msra.mxu0 %v3386
    %9136 = vmatpush.msra.mxu0 %v3379
    %9137 = vmatpush.msra.mxu0 %v3372
    %9138 = vmatpush.msra.mxu0 %v3365
    %9139 = vmatpush.msra.mxu0 %v3358
    %9140 = vmatpush.msra.mxu0 %v3351
    %9141 = vmatpush.msra.mxu0 %v3344
    %9142 = vmatpush.msra.mxu0 %v3337
    %9143 = vmatpush.msra.mxu0 %v3330
    %9144 = vmatpush.msra.mxu0 %v3323
    %9145 = vmatpush.msra.mxu0 %v3316
    %9146 = vmatpush.msra.mxu0 %v3309
    %9147 = vmatpush.msra.mxu0 %v3302
    %9148 = vmatpush.msra.mxu0 %v3295
    %9149 = vmatpush.msra.mxu0 %v3288
    %9150 = vmatmul.f32.gmra.mxu0 %v2384
    %v9151 = vpop.f32.mrf.mxu0
    %v9152 = vadd.f32 %v9087, %v9151
    %9153 = vmatmul.f32.gmra.mxu0 %v2385
    %v9154 = vpop.f32.mrf.mxu0
    %v9155 = vadd.f32 %v9090, %v9154
    %9156 = vmatmul.f32.gmra.mxu0 %v2386
    %v9157 = vpop.f32.mrf.mxu0
    %v9158 = vadd.f32 %v9093, %v9157
    %9159 = vmatmul.f32.gmra.mxu0 %v2387
    %v9160 = vpop.f32.mrf.mxu0
    %v9161 = vadd.f32 %v9096, %v9160
    %9162 = vmatmul.f32.gmra.mxu0 %v2388
    %v9163 = vpop.f32.mrf.mxu0
    %v9164 = vadd.f32 %v9099, %v9163
    %9165 = vmatmul.f32.gmra.mxu0 %v2389
    %v9166 = vpop.f32.mrf.mxu0
    %v9167 = vadd.f32 %v9102, %v9166
    %9168 = vmatmul.f32.gmra.mxu0 %v2390
    %v9169 = vpop.f32.mrf.mxu0
    %v9170 = vadd.f32 %v9105, %v9169
    %9171 = vmatmul.f32.gmra.mxu0 %v2391
    %v9172 = vpop.f32.mrf.mxu0
    %v9173 = vadd.f32 %v9108, %v9172
    %9174 = vmatmul.f32.gmra.mxu0 %v2392
    %v9175 = vpop.f32.mrf.mxu0
    %v9176 = vadd.f32 %v9111, %v9175
    %9177 = vmatmul.f32.gmra.mxu0 %v2393
    %v9178 = vpop.f32.mrf.mxu0
    %v9179 = vadd.f32 %v9114, %v9178
    %9180 = vmatmul.f32.gmra.mxu0 %v2394
    %v9181 = vpop.f32.mrf.mxu0
    %v9182 = vadd.f32 %v9117, %v9181
    %9183 = vmatmul.f32.gmra.mxu0 %v2395
    %v9184 = vpop.f32.mrf.mxu0
    %v9185 = vadd.f32 %v9120, %v9184
    %9186 = vmatmul.f32.gmra.mxu0 %v2396
    %v9187 = vpop.f32.mrf.mxu0
    %v9188 = vadd.f32 %v9123, %v9187
    %9189 = vmatmul.f32.gmra.mxu0 %v2397
    %v9190 = vpop.f32.mrf.mxu0
    %v9191 = vadd.f32 %v9126, %v9190
    %9192 = vmatmul.f32.gmra.mxu0 %v2398
    %v9193 = vpop.f32.mrf.mxu0
    %v9194 = vadd.f32 %v9129, %v9193
    %9195 = vmatmul.f32.gmra.mxu0 %v2399
    %v9196 = vpop.f32.mrf.mxu0
    %v9197 = vadd.f32 %v9132, %v9196
    %9198 = vdwg.mxu0
    %9199 = vmatpush.msra.mxu0 %v3505
    %9200 = vmatpush.msra.mxu0 %v3498
    %9201 = vmatpush.msra.mxu0 %v3491
    %9202 = vmatpush.msra.mxu0 %v3484
    %9203 = vmatpush.msra.mxu0 %v3477
    %9204 = vmatpush.msra.mxu0 %v3470
    %9205 = vmatpush.msra.mxu0 %v3463
    %9206 = vmatpush.msra.mxu0 %v3456
    %9207 = vmatpush.msra.mxu0 %v3449
    %9208 = vmatpush.msra.mxu0 %v3442
    %9209 = vmatpush.msra.mxu0 %v3435
    %9210 = vmatpush.msra.mxu0 %v3428
    %9211 = vmatpush.msra.mxu0 %v3421
    %9212 = vmatpush.msra.mxu0 %v3414
    %9213 = vmatpush.msra.mxu0 %v3407
    %9214 = vmatpush.msra.mxu0 %v3400
    %9215 = vmatmul.f32.gmra.mxu0 %v2272
    %v9216 = vpop.f32.mrf.mxu0
    %v9217 = vadd.f32 %v9152, %v9216
    %9218 = vmatmul.f32.gmra.mxu0 %v2275
    %v9219 = vpop.f32.mrf.mxu0
    %v9220 = vadd.f32 %v9155, %v9219
    %9221 = vmatmul.f32.gmra.mxu0 %v2278
    %v9222 = vpop.f32.mrf.mxu0
    %v9223 = vadd.f32 %v9158, %v9222
    %9224 = vmatmul.f32.gmra.mxu0 %v2281
    %v9225 = vpop.f32.mrf.mxu0
    %v9226 = vadd.f32 %v9161, %v9225
    %9227 = vmatmul.f32.gmra.mxu0 %v2284
    %v9228 = vpop.f32.mrf.mxu0
    %v9229 = vadd.f32 %v9164, %v9228
    %9230 = vmatmul.f32.gmra.mxu0 %v2287
    %v9231 = vpop.f32.mrf.mxu0
    %v9232 = vadd.f32 %v9167, %v9231
    %9233 = vmatmul.f32.gmra.mxu0 %v2290
    %v9234 = vpop.f32.mrf.mxu0
    %v9235 = vadd.f32 %v9170, %v9234
    %9236 = vmatmul.f32.gmra.mxu0 %v2293
    %v9237 = vpop.f32.mrf.mxu0
    %v9238 = vadd.f32 %v9173, %v9237
    %9239 = vmatmul.f32.gmra.mxu0 %v2296
    %v9240 = vpop.f32.mrf.mxu0
    %v9241 = vadd.f32 %v9176, %v9240
    %9242 = vmatmul.f32.gmra.mxu0 %v2299
    %v9243 = vpop.f32.mrf.mxu0
    %v9244 = vadd.f32 %v9179, %v9243
    %9245 = vmatmul.f32.gmra.mxu0 %v2302
    %v9246 = vpop.f32.mrf.mxu0
    %v9247 = vadd.f32 %v9182, %v9246
    %9248 = vmatmul.f32.gmra.mxu0 %v2305
    %v9249 = vpop.f32.mrf.mxu0
    %v9250 = vadd.f32 %v9185, %v9249
    %9251 = vmatmul.f32.gmra.mxu0 %v2308
    %v9252 = vpop.f32.mrf.mxu0
    %v9253 = vadd.f32 %v9188, %v9252
    %9254 = vmatmul.f32.gmra.mxu0 %v2311
    %v9255 = vpop.f32.mrf.mxu0
    %v9256 = vadd.f32 %v9191, %v9255
    %9257 = vmatmul.f32.gmra.mxu0 %v2314
    %v9258 = vpop.f32.mrf.mxu0
    %v9259 = vadd.f32 %v9194, %v9258
    %9260 = vmatmul.f32.gmra.mxu0 %v2317
    %v9261 = vpop.f32.mrf.mxu0
    %v9262 = vadd.f32 %v9197, %v9261
    %9263 = vdwg.mxu0
    %9264 = vmatpush.msra.mxu0 %v3617
    %9265 = vmatpush.msra.mxu0 %v3610
    %9266 = vmatpush.msra.mxu0 %v3603
    %9267 = vmatpush.msra.mxu0 %v3596
    %9268 = vmatpush.msra.mxu0 %v3589
    %9269 = vmatpush.msra.mxu0 %v3582
    %9270 = vmatpush.msra.mxu0 %v3575
    %9271 = vmatpush.msra.mxu0 %v3568
    %9272 = vmatpush.msra.mxu0 %v3561
    %9273 = vmatpush.msra.mxu0 %v3554
    %9274 = vmatpush.msra.mxu0 %v3547
    %9275 = vmatpush.msra.mxu0 %v3540
    %9276 = vmatpush.msra.mxu0 %v3533
    %9277 = vmatpush.msra.mxu0 %v3526
    %9278 = vmatpush.msra.mxu0 %v3519
    %9279 = vmatpush.msra.mxu0 %v3512
    %9280 = vmatmul.f32.gmra.mxu0 %v2273
    %v9281 = vpop.f32.mrf.mxu0
    %v9282 = vadd.f32 %v9217, %v9281
    %9283 = vmatmul.f32.gmra.mxu0 %v2276
    %v9284 = vpop.f32.mrf.mxu0
    %v9285 = vadd.f32 %v9220, %v9284
    %9286 = vmatmul.f32.gmra.mxu0 %v2279
    %v9287 = vpop.f32.mrf.mxu0
    %v9288 = vadd.f32 %v9223, %v9287
    %9289 = vmatmul.f32.gmra.mxu0 %v2282
    %v9290 = vpop.f32.mrf.mxu0
    %v9291 = vadd.f32 %v9226, %v9290
    %9292 = vmatmul.f32.gmra.mxu0 %v2285
    %v9293 = vpop.f32.mrf.mxu0
    %v9294 = vadd.f32 %v9229, %v9293
    %9295 = vmatmul.f32.gmra.mxu0 %v2288
    %v9296 = vpop.f32.mrf.mxu0
    %v9297 = vadd.f32 %v9232, %v9296
    %9298 = vmatmul.f32.gmra.mxu0 %v2291
    %v9299 = vpop.f32.mrf.mxu0
    %v9300 = vadd.f32 %v9235, %v9299
    %9301 = vmatmul.f32.gmra.mxu0 %v2294
    %v9302 = vpop.f32.mrf.mxu0
    %v9303 = vadd.f32 %v9238, %v9302
    %9304 = vmatmul.f32.gmra.mxu0 %v2297
    %v9305 = vpop.f32.mrf.mxu0
    %v9306 = vadd.f32 %v9241, %v9305
    %9307 = vmatmul.f32.gmra.mxu0 %v2300
    %v9308 = vpop.f32.mrf.mxu0
    %v9309 = vadd.f32 %v9244, %v9308
    %9310 = vmatmul.f32.gmra.mxu0 %v2303
    %v9311 = vpop.f32.mrf.mxu0
    %v9312 = vadd.f32 %v9247, %v9311
    %9313 = vmatmul.f32.gmra.mxu0 %v2306
    %v9314 = vpop.f32.mrf.mxu0
    %v9315 = vadd.f32 %v9250, %v9314
    %9316 = vmatmul.f32.gmra.mxu0 %v2309
    %v9317 = vpop.f32.mrf.mxu0
    %v9318 = vadd.f32 %v9253, %v9317
    %9319 = vmatmul.f32.gmra.mxu0 %v2312
    %v9320 = vpop.f32.mrf.mxu0
    %v9321 = vadd.f32 %v9256, %v9320
    %9322 = vmatmul.f32.gmra.mxu0 %v2315
    %v9323 = vpop.f32.mrf.mxu0
    %v9324 = vadd.f32 %v9259, %v9323
    %9325 = vmatmul.f32.gmra.mxu0 %v2318
    %v9326 = vpop.f32.mrf.mxu0
    %v9327 = vadd.f32 %v9262, %v9326
    %9328 = vdwg.mxu0
    %9329 = vmatpush.msra.mxu0 %v3729
    %9330 = vmatpush.msra.mxu0 %v3722
    %9331 = vmatpush.msra.mxu0 %v3715
    %9332 = vmatpush.msra.mxu0 %v3708
    %9333 = vmatpush.msra.mxu0 %v3701
    %9334 = vmatpush.msra.mxu0 %v3694
    %9335 = vmatpush.msra.mxu0 %v3687
    %9336 = vmatpush.msra.mxu0 %v3680
    %9337 = vmatpush.msra.mxu0 %v3673
    %9338 = vmatpush.msra.mxu0 %v3666
    %9339 = vmatpush.msra.mxu0 %v3659
    %9340 = vmatpush.msra.mxu0 %v3652
    %9341 = vmatpush.msra.mxu0 %v3645
    %9342 = vmatpush.msra.mxu0 %v3638
    %9343 = vmatpush.msra.mxu0 %v3631
    %9344 = vmatpush.msra.mxu0 %v3624
    %9345 = vmatmul.f32.gmra.mxu0 %v2401
    %v9346 = vpop.f32.mrf.mxu0
    %v9347 = vadd.f32 %v9282, %v9346
    %9348 = vmatmul.f32.gmra.mxu0 %v2402
    %v9349 = vpop.f32.mrf.mxu0
    %v9350 = vadd.f32 %v9285, %v9349
    %9351 = vmatmul.f32.gmra.mxu0 %v2403
    %v9352 = vpop.f32.mrf.mxu0
    %v9353 = vadd.f32 %v9288, %v9352
    %9354 = vmatmul.f32.gmra.mxu0 %v2404
    %v9355 = vpop.f32.mrf.mxu0
    %v9356 = vadd.f32 %v9291, %v9355
    %9357 = vmatmul.f32.gmra.mxu0 %v2405
    %v9358 = vpop.f32.mrf.mxu0
    %v9359 = vadd.f32 %v9294, %v9358
    %9360 = vmatmul.f32.gmra.mxu0 %v2406
    %v9361 = vpop.f32.mrf.mxu0
    %v9362 = vadd.f32 %v9297, %v9361
    %9363 = vmatmul.f32.gmra.mxu0 %v2407
    %v9364 = vpop.f32.mrf.mxu0
    %v9365 = vadd.f32 %v9300, %v9364
    %9366 = vmatmul.f32.gmra.mxu0 %v2408
    %v9367 = vpop.f32.mrf.mxu0
    %v9368 = vadd.f32 %v9303, %v9367
    %9369 = vmatmul.f32.gmra.mxu0 %v2409
    %v9370 = vpop.f32.mrf.mxu0
    %v9371 = vadd.f32 %v9306, %v9370
    %9372 = vmatmul.f32.gmra.mxu0 %v2410
    %v9373 = vpop.f32.mrf.mxu0
    %v9374 = vadd.f32 %v9309, %v9373
    %9375 = vmatmul.f32.gmra.mxu0 %v2411
    %v9376 = vpop.f32.mrf.mxu0
    %v9377 = vadd.f32 %v9312, %v9376
    %9378 = vmatmul.f32.gmra.mxu0 %v2412
    %v9379 = vpop.f32.mrf.mxu0
    %v9380 = vadd.f32 %v9315, %v9379
    %9381 = vmatmul.f32.gmra.mxu0 %v2413
    %v9382 = vpop.f32.mrf.mxu0
    %v9383 = vadd.f32 %v9318, %v9382
    %9384 = vmatmul.f32.gmra.mxu0 %v2414
    %v9385 = vpop.f32.mrf.mxu0
    %v9386 = vadd.f32 %v9321, %v9385
    %9387 = vmatmul.f32.gmra.mxu0 %v2415
    %v9388 = vpop.f32.mrf.mxu0
    %v9389 = vadd.f32 %v9324, %v9388
    %9390 = vmatmul.f32.gmra.mxu0 %v2416
    %v9391 = vpop.f32.mrf.mxu0
    %v9392 = vadd.f32 %v9327, %v9391
    %9393 = vdwg.mxu0
    %9394 = vmatpush.msra.mxu0 %v3841
    %9395 = vmatpush.msra.mxu0 %v3834
    %9396 = vmatpush.msra.mxu0 %v3827
    %9397 = vmatpush.msra.mxu0 %v3820
    %9398 = vmatpush.msra.mxu0 %v3813
    %9399 = vmatpush.msra.mxu0 %v3806
    %9400 = vmatpush.msra.mxu0 %v3799
    %9401 = vmatpush.msra.mxu0 %v3792
    %9402 = vmatpush.msra.mxu0 %v3785
    %9403 = vmatpush.msra.mxu0 %v3778
    %9404 = vmatpush.msra.mxu0 %v3771
    %9405 = vmatpush.msra.mxu0 %v3764
    %9406 = vmatpush.msra.mxu0 %v3757
    %9407 = vmatpush.msra.mxu0 %v3750
    %9408 = vmatpush.msra.mxu0 %v3743
    %9409 = vmatpush.msra.mxu0 %v3736
    %9410 = vmatmul.f32.gmra.mxu0 %v2644
    %v9411 = vpop.f32.mrf.mxu0
    %v9412 = vadd.f32 %v9347, %v9411
    %9413 = vmatmul.f32.gmra.mxu0 %v2655
    %v9414 = vpop.f32.mrf.mxu0
    %v9415 = vadd.f32 %v9350, %v9414
    %9416 = vmatmul.f32.gmra.mxu0 %v2663
    %v9417 = vpop.f32.mrf.mxu0
    %v9418 = vadd.f32 %v9353, %v9417
    %9419 = vmatmul.f32.gmra.mxu0 %v2671
    %v9420 = vpop.f32.mrf.mxu0
    %v9421 = vadd.f32 %v9356, %v9420
    %9422 = vmatmul.f32.gmra.mxu0 %v2679
    %v9423 = vpop.f32.mrf.mxu0
    %v9424 = vadd.f32 %v9359, %v9423
    %9425 = vmatmul.f32.gmra.mxu0 %v2687
    %v9426 = vpop.f32.mrf.mxu0
    %v9427 = vadd.f32 %v9362, %v9426
    %9428 = vmatmul.f32.gmra.mxu0 %v2695
    %v9429 = vpop.f32.mrf.mxu0
    %v9430 = vadd.f32 %v9365, %v9429
    %9431 = vmatmul.f32.gmra.mxu0 %v2703
    %v9432 = vpop.f32.mrf.mxu0
    %v9433 = vadd.f32 %v9368, %v9432
    %9434 = vmatmul.f32.gmra.mxu0 %v2711
    %v9435 = vpop.f32.mrf.mxu0
    %v9436 = vadd.f32 %v9371, %v9435
    %9437 = vmatmul.f32.gmra.mxu0 %v2719
    %v9438 = vpop.f32.mrf.mxu0
    %v9439 = vadd.f32 %v9374, %v9438
    %9440 = vmatmul.f32.gmra.mxu0 %v2727
    %v9441 = vpop.f32.mrf.mxu0
    %v9442 = vadd.f32 %v9377, %v9441
    %9443 = vmatmul.f32.gmra.mxu0 %v2735
    %v9444 = vpop.f32.mrf.mxu0
    %v9445 = vadd.f32 %v9380, %v9444
    %9446 = vmatmul.f32.gmra.mxu0 %v2743
    %v9447 = vpop.f32.mrf.mxu0
    %v9448 = vadd.f32 %v9383, %v9447
    %9449 = vmatmul.f32.gmra.mxu0 %v2751
    %v9450 = vpop.f32.mrf.mxu0
    %v9451 = vadd.f32 %v9386, %v9450
    %9452 = vmatmul.f32.gmra.mxu0 %v2759
    %v9453 = vpop.f32.mrf.mxu0
    %v9454 = vadd.f32 %v9389, %v9453
    %9455 = vmatmul.f32.gmra.mxu0 %v2830
    %v9456 = vpop.f32.mrf.mxu0
    %v9457 = vadd.f32 %v9392, %v9456
    %9458 = vdwg.mxu0
    %9459 = vmatpush.msra.mxu0 %v3953
    %9460 = vmatpush.msra.mxu0 %v3946
    %9461 = vmatpush.msra.mxu0 %v3939
    %9462 = vmatpush.msra.mxu0 %v3932
    %9463 = vmatpush.msra.mxu0 %v3925
    %9464 = vmatpush.msra.mxu0 %v3918
    %9465 = vmatpush.msra.mxu0 %v3911
    %9466 = vmatpush.msra.mxu0 %v3904
    %9467 = vmatpush.msra.mxu0 %v3897
    %9468 = vmatpush.msra.mxu0 %v3890
    %9469 = vmatpush.msra.mxu0 %v3883
    %9470 = vmatpush.msra.mxu0 %v3876
    %9471 = vmatpush.msra.mxu0 %v3869
    %9472 = vmatpush.msra.mxu0 %v3862
    %9473 = vmatpush.msra.mxu0 %v3855
    %9474 = vmatpush.msra.mxu0 %v3848
    %9475 = vmatmul.f32.gmra.mxu0 %v2647
    %v9476 = vpop.f32.mrf.mxu0
    %v9477 = vadd.f32 %v9412, %v9476
    %9478 = vmatmul.f32.gmra.mxu0 %v2657
    %v9479 = vpop.f32.mrf.mxu0
    %v9480 = vadd.f32 %v9415, %v9479
    %9481 = vmatmul.f32.gmra.mxu0 %v2665
    %v9482 = vpop.f32.mrf.mxu0
    %v9483 = vadd.f32 %v9418, %v9482
    %9484 = vmatmul.f32.gmra.mxu0 %v2673
    %v9485 = vpop.f32.mrf.mxu0
    %v9486 = vadd.f32 %v9421, %v9485
    %9487 = vmatmul.f32.gmra.mxu0 %v2681
    %v9488 = vpop.f32.mrf.mxu0
    %v9489 = vadd.f32 %v9424, %v9488
    %9490 = vmatmul.f32.gmra.mxu0 %v2689
    %v9491 = vpop.f32.mrf.mxu0
    %v9492 = vadd.f32 %v9427, %v9491
    %9493 = vmatmul.f32.gmra.mxu0 %v2697
    %v9494 = vpop.f32.mrf.mxu0
    %v9495 = vadd.f32 %v9430, %v9494
    %9496 = vmatmul.f32.gmra.mxu0 %v2705
    %v9497 = vpop.f32.mrf.mxu0
    %v9498 = vadd.f32 %v9433, %v9497
    %9499 = vmatmul.f32.gmra.mxu0 %v2713
    %v9500 = vpop.f32.mrf.mxu0
    %v9501 = vadd.f32 %v9436, %v9500
    %9502 = vmatmul.f32.gmra.mxu0 %v2721
    %v9503 = vpop.f32.mrf.mxu0
    %v9504 = vadd.f32 %v9439, %v9503
    %9505 = vmatmul.f32.gmra.mxu0 %v2729
    %v9506 = vpop.f32.mrf.mxu0
    %v9507 = vadd.f32 %v9442, %v9506
    %9508 = vmatmul.f32.gmra.mxu0 %v2737
    %v9509 = vpop.f32.mrf.mxu0
    %v9510 = vadd.f32 %v9445, %v9509
    %9511 = vmatmul.f32.gmra.mxu0 %v2745
    %v9512 = vpop.f32.mrf.mxu0
    %v9513 = vadd.f32 %v9448, %v9512
    %9514 = vmatmul.f32.gmra.mxu0 %v2753
    %v9515 = vpop.f32.mrf.mxu0
    %v9516 = vadd.f32 %v9451, %v9515
    %9517 = vmatmul.f32.gmra.mxu0 %v2761
    %v9518 = vpop.f32.mrf.mxu0
    %v9519 = vadd.f32 %v9454, %v9518
    %9520 = vmatmul.f32.gmra.mxu0 %v2831
    %v9521 = vpop.f32.mrf.mxu0
    %v9522 = vadd.f32 %v9457, %v9521
    %9523 = vdwg.mxu0
    %9524 = vmatpush.msra.mxu0 %v4065
    %9525 = vmatpush.msra.mxu0 %v4058
    %9526 = vmatpush.msra.mxu0 %v4051
    %9527 = vmatpush.msra.mxu0 %v4044
    %9528 = vmatpush.msra.mxu0 %v4037
    %9529 = vmatpush.msra.mxu0 %v4030
    %9530 = vmatpush.msra.mxu0 %v4023
    %9531 = vmatpush.msra.mxu0 %v4016
    %9532 = vmatpush.msra.mxu0 %v4009
    %9533 = vmatpush.msra.mxu0 %v4002
    %9534 = vmatpush.msra.mxu0 %v3995
    %9535 = vmatpush.msra.mxu0 %v3988
    %9536 = vmatpush.msra.mxu0 %v3981
    %9537 = vmatpush.msra.mxu0 %v3974
    %9538 = vmatpush.msra.mxu0 %v3967
    %9539 = vmatpush.msra.mxu0 %v3960
    %9540 = vmatmul.f32.gmra.mxu0 %v2650
    %v9541 = vpop.f32.mrf.mxu0
    %v9542 = vadd.f32 %v9477, %v9541
    %9543 = vmatmul.f32.gmra.mxu0 %v2659
    %v9544 = vpop.f32.mrf.mxu0
    %v9545 = vadd.f32 %v9480, %v9544
    %9546 = vmatmul.f32.gmra.mxu0 %v2667
    %v9547 = vpop.f32.mrf.mxu0
    %v9548 = vadd.f32 %v9483, %v9547
    %9549 = vmatmul.f32.gmra.mxu0 %v2675
    %v9550 = vpop.f32.mrf.mxu0
    %v9551 = vadd.f32 %v9486, %v9550
    %9552 = vmatmul.f32.gmra.mxu0 %v2683
    %v9553 = vpop.f32.mrf.mxu0
    %v9554 = vadd.f32 %v9489, %v9553
    %9555 = vmatmul.f32.gmra.mxu0 %v2691
    %v9556 = vpop.f32.mrf.mxu0
    %v9557 = vadd.f32 %v9492, %v9556
    %9558 = vmatmul.f32.gmra.mxu0 %v2699
    %v9559 = vpop.f32.mrf.mxu0
    %v9560 = vadd.f32 %v9495, %v9559
    %9561 = vmatmul.f32.gmra.mxu0 %v2707
    %v9562 = vpop.f32.mrf.mxu0
    %v9563 = vadd.f32 %v9498, %v9562
    %9564 = vmatmul.f32.gmra.mxu0 %v2715
    %v9565 = vpop.f32.mrf.mxu0
    %v9566 = vadd.f32 %v9501, %v9565
    %9567 = vmatmul.f32.gmra.mxu0 %v2723
    %v9568 = vpop.f32.mrf.mxu0
    %v9569 = vadd.f32 %v9504, %v9568
    %9570 = vmatmul.f32.gmra.mxu0 %v2731
    %v9571 = vpop.f32.mrf.mxu0
    %v9572 = vadd.f32 %v9507, %v9571
    %9573 = vmatmul.f32.gmra.mxu0 %v2739
    %v9574 = vpop.f32.mrf.mxu0
    %v9575 = vadd.f32 %v9510, %v9574
    %9576 = vmatmul.f32.gmra.mxu0 %v2747
    %v9577 = vpop.f32.mrf.mxu0
    %v9578 = vadd.f32 %v9513, %v9577
    %9579 = vmatmul.f32.gmra.mxu0 %v2755
    %v9580 = vpop.f32.mrf.mxu0
    %v9581 = vadd.f32 %v9516, %v9580
    %9582 = vmatmul.f32.gmra.mxu0 %v2763
    %v9583 = vpop.f32.mrf.mxu0
    %v9584 = vadd.f32 %v9519, %v9583
    %9585 = vmatmul.f32.gmra.mxu0 %v2832
    %v9586 = vpop.f32.mrf.mxu0
    %v9587 = vadd.f32 %v9522, %v9586
    %9588 = vdwg.mxu0
    %9589 = vmatpush.msra.mxu0 %v4177
    %9590 = vmatpush.msra.mxu0 %v4170
    %9591 = vmatpush.msra.mxu0 %v4163
    %9592 = vmatpush.msra.mxu0 %v4156
    %9593 = vmatpush.msra.mxu0 %v4149
    %9594 = vmatpush.msra.mxu0 %v4142
    %9595 = vmatpush.msra.mxu0 %v4135
    %9596 = vmatpush.msra.mxu0 %v4128
    %9597 = vmatpush.msra.mxu0 %v4121
    %9598 = vmatpush.msra.mxu0 %v4114
    %9599 = vmatpush.msra.mxu0 %v4107
    %9600 = vmatpush.msra.mxu0 %v4100
    %9601 = vmatpush.msra.mxu0 %v4093
    %9602 = vmatpush.msra.mxu0 %v4086
    %9603 = vmatpush.msra.mxu0 %v4079
    %9604 = vmatpush.msra.mxu0 %v4072
    %9605 = vmatmul.f32.gmra.mxu0 %v2653
    %v9606 = vpop.f32.mrf.mxu0
    %v9607 = vadd.f32 %v9542, %v9606
    %9608 = vmatmul.f32.gmra.mxu0 %v2661
    %v9609 = vpop.f32.mrf.mxu0
    %v9610 = vadd.f32 %v9545, %v9609
    %9611 = vmatmul.f32.gmra.mxu0 %v2669
    %v9612 = vpop.f32.mrf.mxu0
    %v9613 = vadd.f32 %v9548, %v9612
    %9614 = vmatmul.f32.gmra.mxu0 %v2677
    %v9615 = vpop.f32.mrf.mxu0
    %v9616 = vadd.f32 %v9551, %v9615
    %9617 = vmatmul.f32.gmra.mxu0 %v2685
    %v9618 = vpop.f32.mrf.mxu0
    %v9619 = vadd.f32 %v9554, %v9618
    %9620 = vmatmul.f32.gmra.mxu0 %v2693
    %v9621 = vpop.f32.mrf.mxu0
    %v9622 = vadd.f32 %v9557, %v9621
    %9623 = vmatmul.f32.gmra.mxu0 %v2701
    %v9624 = vpop.f32.mrf.mxu0
    %v9625 = vadd.f32 %v9560, %v9624
    %9626 = vmatmul.f32.gmra.mxu0 %v2709
    %v9627 = vpop.f32.mrf.mxu0
    %v9628 = vadd.f32 %v9563, %v9627
    %9629 = vmatmul.f32.gmra.mxu0 %v2717
    %v9630 = vpop.f32.mrf.mxu0
    %v9631 = vadd.f32 %v9566, %v9630
    %9632 = vmatmul.f32.gmra.mxu0 %v2725
    %v9633 = vpop.f32.mrf.mxu0
    %v9634 = vadd.f32 %v9569, %v9633
    %9635 = vmatmul.f32.gmra.mxu0 %v2733
    %v9636 = vpop.f32.mrf.mxu0
    %v9637 = vadd.f32 %v9572, %v9636
    %9638 = vmatmul.f32.gmra.mxu0 %v2741
    %v9639 = vpop.f32.mrf.mxu0
    %v9640 = vadd.f32 %v9575, %v9639
    %9641 = vmatmul.f32.gmra.mxu0 %v2749
    %v9642 = vpop.f32.mrf.mxu0
    %v9643 = vadd.f32 %v9578, %v9642
    %9644 = vmatmul.f32.gmra.mxu0 %v2757
    %v9645 = vpop.f32.mrf.mxu0
    %v9646 = vadd.f32 %v9581, %v9645
    %9647 = vmatmul.f32.gmra.mxu0 %v2765
    %v9648 = vpop.f32.mrf.mxu0
    %v9649 = vadd.f32 %v9584, %v9648
    %9650 = vmatmul.f32.gmra.mxu0 %v2833
    %v9651 = vpop.f32.mrf.mxu0
    %v9652 = vadd.f32 %v9587, %v9651
    %9653 = vdwg.mxu0
    %v9654 = vmax.f32 %v4927, 0.0
    %v9655 = vmax.f32 %v5707, 0.0
    %v9656 = vmax.f32 %v6487, 0.0
    %v9657 = vmax.f32 %v7267, 0.0
    %v9658 = vmax.f32 %v8047, 0.0
    %v9659 = vmax.f32 %v8827, 0.0
    %v9660 = vmax.f32 %v9607, 0.0
    %v9661 = vmax.f32 %v4930, 0.0
    %v9662 = vmax.f32 %v5710, 0.0
    %v9663 = vmax.f32 %v6490, 0.0
    %v9664 = vmax.f32 %v7270, 0.0
    %v9665 = vmax.f32 %v8050, 0.0
    %v9666 = vmax.f32 %v8830, 0.0
    %v9667 = vmax.f32 %v9610, 0.0
    %v9668 = vmax.f32 %v4933, 0.0
    %v9669 = vmax.f32 %v5713, 0.0
    %v9670 = vmax.f32 %v6493, 0.0
    %v9671 = vmax.f32 %v7273, 0.0
    %v9672 = vmax.f32 %v8053, 0.0
    %v9673 = vmax.f32 %v8833, 0.0
    %v9674 = vmax.f32 %v9613, 0.0
    %v9675 = vmax.f32 %v4936, 0.0
    %v9676 = vmax.f32 %v5716, 0.0
    %v9677 = vmax.f32 %v6496, 0.0
    %v9678 = vmax.f32 %v7276, 0.0
    %v9679 = vmax.f32 %v8056, 0.0
    %v9680 = vmax.f32 %v8836, 0.0
    %v9681 = vmax.f32 %v9616, 0.0
    %v9682 = vmax.f32 %v4939, 0.0
    %v9683 = vmax.f32 %v5719, 0.0
    %v9684 = vmax.f32 %v6499, 0.0
    %v9685 = vmax.f32 %v7279, 0.0
    %v9686 = vmax.f32 %v8059, 0.0
    %v9687 = vmax.f32 %v8839, 0.0
    %v9688 = vmax.f32 %v9619, 0.0
    %v9689 = vmax.f32 %v4942, 0.0
    %v9690 = vmax.f32 %v5722, 0.0
    %v9691 = vmax.f32 %v6502, 0.0
    %v9692 = vmax.f32 %v7282, 0.0
    %v9693 = vmax.f32 %v8062, 0.0
    %v9694 = vmax.f32 %v8842, 0.0
    %v9695 = vmax.f32 %v9622, 0.0
    %v9696 = vmax.f32 %v4945, 0.0
    %v9697 = vmax.f32 %v5725, 0.0
    %v9698 = vmax.f32 %v6505, 0.0
    %v9699 = vmax.f32 %v7285, 0.0
    %v9700 = vmax.f32 %v8065, 0.0
    %v9701 = vmax.f32 %v8845, 0.0
    %v9702 = vmax.f32 %v9625, 0.0
    %v9703 = vmax.f32 %v4948, 0.0
    %v9704 = vmax.f32 %v5728, 0.0
    %v9705 = vmax.f32 %v6508, 0.0
    %v9706 = vmax.f32 %v7288, 0.0
    %v9707 = vmax.f32 %v8068, 0.0
    %v9708 = vmax.f32 %v8848, 0.0
    %v9709 = vmax.f32 %v9628, 0.0
    %v9710 = vmax.f32 %v4951, 0.0
    %v9711 = vmax.f32 %v5731, 0.0
    %v9712 = vmax.f32 %v6511, 0.0
    %v9713 = vmax.f32 %v7291, 0.0
    %v9714 = vmax.f32 %v8071, 0.0
    %v9715 = vmax.f32 %v8851, 0.0
    %v9716 = vmax.f32 %v9631, 0.0
    %v9717 = vmax.f32 %v4954, 0.0
    %v9718 = vmax.f32 %v5734, 0.0
    %v9719 = vmax.f32 %v6514, 0.0
    %v9720 = vmax.f32 %v7294, 0.0
    %v9721 = vmax.f32 %v8074, 0.0
    %v9722 = vmax.f32 %v8854, 0.0
    %v9723 = vmax.f32 %v9634, 0.0
    %v9724 = vmax.f32 %v4957, 0.0
    %v9725 = vmax.f32 %v5737, 0.0
    %v9726 = vmax.f32 %v6517, 0.0
    %v9727 = vmax.f32 %v7297, 0.0
    %v9728 = vmax.f32 %v8077, 0.0
    %v9729 = vmax.f32 %v8857, 0.0
    %v9730 = vmax.f32 %v9637, 0.0
    %v9731 = vmax.f32 %v4960, 0.0
    %v9732 = vmax.f32 %v5740, 0.0
    %v9733 = vmax.f32 %v6520, 0.0
    %v9734 = vmax.f32 %v7300, 0.0
    %v9735 = vmax.f32 %v8080, 0.0
    %v9736 = vmax.f32 %v8860, 0.0
    %v9737 = vmax.f32 %v9640, 0.0
    %v9738 = vmax.f32 %v4963, 0.0
    %v9739 = vmax.f32 %v5743, 0.0
    %v9740 = vmax.f32 %v6523, 0.0
    %v9741 = vmax.f32 %v7303, 0.0
    %v9742 = vmax.f32 %v8083, 0.0
    %v9743 = vmax.f32 %v8863, 0.0
    %v9744 = vmax.f32 %v9643, 0.0
    %v9745 = vmax.f32 %v4966, 0.0
    %v9746 = vmax.f32 %v5746, 0.0
    %v9747 = vmax.f32 %v6526, 0.0
    %v9748 = vmax.f32 %v7306, 0.0
    %v9749 = vmax.f32 %v8086, 0.0
    %v9750 = vmax.f32 %v8866, 0.0
    %v9751 = vmax.f32 %v9646, 0.0
    %v9752 = vmax.f32 %v4969, 0.0
    %v9753 = vmax.f32 %v5749, 0.0
    %v9754 = vmax.f32 %v6529, 0.0
    %v9755 = vmax.f32 %v7309, 0.0
    %v9756 = vmax.f32 %v8089, 0.0
    %v9757 = vmax.f32 %v8869, 0.0
    %v9758 = vmax.f32 %v9649, 0.0
    %v9759 = vmax.f32 %v4972, 0.0
    %v9760 = vmax.f32 %v5752, 0.0
    %v9761 = vmax.f32 %v6532, 0.0
    %v9762 = vmax.f32 %v7312, 0.0
    %v9763 = vmax.f32 %v8092, 0.0
    %v9764 = vmax.f32 %v8872, 0.0
    %v9765 = vmax.f32 %v9652, 0.0
    %9830 = vrot.lane.b32.xlu0 %v9657, 64
    %v9831 = vpop.permute.xlu0 %9830
    %9832 = vrot.lane.b32.xlu0 %v9658, 64
    %v9833 = vpop.permute.xlu0 %9832
    %9834 = vrot.lane.b32.xlu0 %v9659, 64
    %v9835 = vpop.permute.xlu0 %9834
    %9836 = vrot.lane.b32.xlu0 %v9660, 64
    %v9837 = vpop.permute.xlu0 %9836
    %9838 = vrot.lane.b32.xlu0 %v9664, 64
    %v9839 = vpop.permute.xlu0 %9838
    %9840 = vrot.lane.b32.xlu0 %v9665, 64
    %v9841 = vpop.permute.xlu0 %9840
    %9842 = vrot.lane.b32.xlu0 %v9666, 64
    %v9843 = vpop.permute.xlu0 %9842
    %9844 = vrot.lane.b32.xlu0 %v9667, 64
    %v9845 = vpop.permute.xlu0 %9844
    %9846 = vrot.lane.b32.xlu0 %v9671, 64
    %v9847 = vpop.permute.xlu0 %9846
    %9848 = vrot.lane.b32.xlu0 %v9672, 64
    %v9849 = vpop.permute.xlu0 %9848
    %9850 = vrot.lane.b32.xlu0 %v9673, 64
    %v9851 = vpop.permute.xlu0 %9850
    %9852 = vrot.lane.b32.xlu0 %v9674, 64
    %v9853 = vpop.permute.xlu0 %9852
    %9854 = vrot.lane.b32.xlu0 %v9678, 64
    %v9855 = vpop.permute.xlu0 %9854
    %9856 = vrot.lane.b32.xlu0 %v9679, 64
    %v9857 = vpop.permute.xlu0 %9856
    %9858 = vrot.lane.b32.xlu0 %v9680, 64
    %v9859 = vpop.permute.xlu0 %9858
    %9860 = vrot.lane.b32.xlu0 %v9681, 64
    %v9861 = vpop.permute.xlu0 %9860
    %9862 = vrot.lane.b32.xlu0 %v9685, 64
    %v9863 = vpop.permute.xlu0 %9862
    %9864 = vrot.lane.b32.xlu0 %v9686, 64
    %v9865 = vpop.permute.xlu0 %9864
    %9866 = vrot.lane.b32.xlu0 %v9687, 64
    %v9867 = vpop.permute.xlu0 %9866
    %9868 = vrot.lane.b32.xlu0 %v9688, 64
    %v9869 = vpop.permute.xlu0 %9868
    %9870 = vrot.lane.b32.xlu0 %v9692, 64
    %v9871 = vpop.permute.xlu0 %9870
    %9872 = vrot.lane.b32.xlu0 %v9693, 64
    %v9873 = vpop.permute.xlu0 %9872
    %9874 = vrot.lane.b32.xlu0 %v9694, 64
    %v9875 = vpop.permute.xlu0 %9874
    %9876 = vrot.lane.b32.xlu0 %v9695, 64
    %v9877 = vpop.permute.xlu0 %9876
    %9878 = vrot.lane.b32.xlu0 %v9699, 64
    %v9879 = vpop.permute.xlu0 %9878
    %9880 = vrot.lane.b32.xlu0 %v9700, 64
    %v9881 = vpop.permute.xlu0 %9880
    %9882 = vrot.lane.b32.xlu0 %v9701, 64
    %v9883 = vpop.permute.xlu0 %9882
    %9884 = vrot.lane.b32.xlu0 %v9702, 64
    %v9885 = vpop.permute.xlu0 %9884
    %9886 = vrot.lane.b32.xlu0 %v9706, 64
    %v9887 = vpop.permute.xlu0 %9886
    %9888 = vrot.lane.b32.xlu0 %v9707, 64
    %v9889 = vpop.permute.xlu0 %9888
    %9890 = vrot.lane.b32.xlu0 %v9708, 64
    %v9891 = vpop.permute.xlu0 %9890
    %9892 = vrot.lane.b32.xlu0 %v9709, 64
    %v9893 = vpop.permute.xlu0 %9892
    %9894 = vrot.lane.b32.xlu0 %v9713, 64
    %v9895 = vpop.permute.xlu0 %9894
    %9896 = vrot.lane.b32.xlu0 %v9714, 64
    %v9897 = vpop.permute.xlu0 %9896
    %9898 = vrot.lane.b32.xlu0 %v9715, 64
    %v9899 = vpop.permute.xlu0 %9898
    %9900 = vrot.lane.b32.xlu0 %v9716, 64
    %v9901 = vpop.permute.xlu0 %9900
    %9902 = vrot.lane.b32.xlu0 %v9720, 64
    %v9903 = vpop.permute.xlu0 %9902
    %9904 = vrot.lane.b32.xlu0 %v9721, 64
    %v9905 = vpop.permute.xlu0 %9904
    %9906 = vrot.lane.b32.xlu0 %v9722, 64
    %v9907 = vpop.permute.xlu0 %9906
    %9908 = vrot.lane.b32.xlu0 %v9723, 64
    %v9909 = vpop.permute.xlu0 %9908
    %9910 = vrot.lane.b32.xlu0 %v9727, 64
    %v9911 = vpop.permute.xlu0 %9910
    %9912 = vrot.lane.b32.xlu0 %v9728, 64
    %v9913 = vpop.permute.xlu0 %9912
    %9914 = vrot.lane.b32.xlu0 %v9729, 64
    %v9915 = vpop.permute.xlu0 %9914
    %9916 = vrot.lane.b32.xlu0 %v9730, 64
    %v9917 = vpop.permute.xlu0 %9916
    %9918 = vrot.lane.b32.xlu0 %v9734, 64
    %v9919 = vpop.permute.xlu0 %9918
    %9920 = vrot.lane.b32.xlu0 %v9735, 64
    %v9921 = vpop.permute.xlu0 %9920
    %9922 = vrot.lane.b32.xlu0 %v9736, 64
    %v9923 = vpop.permute.xlu0 %9922
    %9924 = vrot.lane.b32.xlu0 %v9737, 64
    %v9925 = vpop.permute.xlu0 %9924
    %9926 = vrot.lane.b32.xlu0 %v9741, 64
    %v9927 = vpop.permute.xlu0 %9926
    %9928 = vrot.lane.b32.xlu0 %v9742, 64
    %v9929 = vpop.permute.xlu0 %9928
    %9930 = vrot.lane.b32.xlu0 %v9743, 64
    %v9931 = vpop.permute.xlu0 %9930
    %9932 = vrot.lane.b32.xlu0 %v9744, 64
    %v9933 = vpop.permute.xlu0 %9932
    %9934 = vrot.lane.b32.xlu0 %v9748, 64
    %v9935 = vpop.permute.xlu0 %9934
    %9936 = vrot.lane.b32.xlu0 %v9749, 64
    %v9937 = vpop.permute.xlu0 %9936
    %9938 = vrot.lane.b32.xlu0 %v9750, 64
    %v9939 = vpop.permute.xlu0 %9938
    %9940 = vrot.lane.b32.xlu0 %v9751, 64
    %v9941 = vpop.permute.xlu0 %9940
    %9942 = vrot.lane.b32.xlu0 %v9755, 64
    %v9943 = vpop.permute.xlu0 %9942
    %9944 = vrot.lane.b32.xlu0 %v9756, 64
    %v9945 = vpop.permute.xlu0 %9944
    %9946 = vrot.lane.b32.xlu0 %v9757, 64
    %v9947 = vpop.permute.xlu0 %9946
    %9948 = vrot.lane.b32.xlu0 %v9758, 64
    %v9949 = vpop.permute.xlu0 %9948
    %9950 = vrot.lane.b32.xlu0 %v9762, 64
    %v9951 = vpop.permute.xlu0 %9950
    %9952 = vrot.lane.b32.xlu0 %v9763, 64
    %v9953 = vpop.permute.xlu0 %9952
    %9954 = vrot.lane.b32.xlu0 %v9764, 64
    %v9955 = vpop.permute.xlu0 %9954
    %9956 = vrot.lane.b32.xlu0 %v9765, 64
    %v9957 = vpop.permute.xlu0 %9956
    %v9958 = vsel %vm1902, %v9831, %v9833
    %v9959 = vsel %vm1902, %v9833, %v9835
    %v9960 = vsel %vm1902, %v9835, %v9837
    %v9961 = vsel %vm1902, %v9839, %v9841
    %v9962 = vsel %vm1902, %v9841, %v9843
    %v9963 = vsel %vm1902, %v9843, %v9845
    %v9964 = vsel %vm1902, %v9847, %v9849
    %v9965 = vsel %vm1902, %v9849, %v9851
    %v9966 = vsel %vm1902, %v9851, %v9853
    %v9967 = vsel %vm1902, %v9855, %v9857
    %v9968 = vsel %vm1902, %v9857, %v9859
    %v9969 = vsel %vm1902, %v9859, %v9861
    %v9970 = vsel %vm1902, %v9863, %v9865
    %v9971 = vsel %vm1902, %v9865, %v9867
    %v9972 = vsel %vm1902, %v9867, %v9869
    %v9973 = vsel %vm1902, %v9871, %v9873
    %v9974 = vsel %vm1902, %v9873, %v9875
    %v9975 = vsel %vm1902, %v9875, %v9877
    %v9976 = vsel %vm1902, %v9879, %v9881
    %v9977 = vsel %vm1902, %v9881, %v9883
    %v9978 = vsel %vm1902, %v9883, %v9885
    %v9979 = vsel %vm1902, %v9887, %v9889
    %v9980 = vsel %vm1902, %v9889, %v9891
    %v9981 = vsel %vm1902, %v9891, %v9893
    %v9982 = vsel %vm1902, %v9895, %v9897
    %v9983 = vsel %vm1902, %v9897, %v9899
    %v9984 = vsel %vm1902, %v9899, %v9901
    %v9985 = vsel %vm1902, %v9903, %v9905
    %v9986 = vsel %vm1902, %v9905, %v9907
    %v9987 = vsel %vm1902, %v9907, %v9909
    %v9988 = vsel %vm1902, %v9911, %v9913
    %v9989 = vsel %vm1902, %v9913, %v9915
    %v9990 = vsel %vm1902, %v9915, %v9917
    %v9991 = vsel %vm1902, %v9919, %v9921
    %v9992 = vsel %vm1902, %v9921, %v9923
    %v9993 = vsel %vm1902, %v9923, %v9925
    %v9994 = vsel %vm1902, %v9927, %v9929
    %v9995 = vsel %vm1902, %v9929, %v9931
    %v9996 = vsel %vm1902, %v9931, %v9933
    %v9997 = vsel %vm1902, %v9935, %v9937
    %v9998 = vsel %vm1902, %v9937, %v9939
    %v9999 = vsel %vm1902, %v9939, %v9941
    %v10000 = vsel %vm1902, %v9943, %v9945
    %v10001 = vsel %vm1902, %v9945, %v9947
    %v10002 = vsel %vm1902, %v9947, %v9949
    %v10003 = vsel %vm1902, %v9951, %v9953
    %v10004 = vsel %vm1902, %v9953, %v9955
    %v10005 = vsel %vm1902, %v9955, %v9957
    %v10070 = vmax.f32 %v9654, %v9958
    %v10071 = vmax.f32 %v9655, %v9959
    %v10072 = vmax.f32 %v9656, %v9960
    %v10073 = vmax.f32 %v9657, %v9837
    %v10074 = vmax.f32 %v9661, %v9961
    %v10075 = vmax.f32 %v9662, %v9962
    %v10076 = vmax.f32 %v9663, %v9963
    %v10077 = vmax.f32 %v9664, %v9845
    %v10078 = vmax.f32 %v9668, %v9964
    %v10079 = vmax.f32 %v9669, %v9965
    %v10080 = vmax.f32 %v9670, %v9966
    %v10081 = vmax.f32 %v9671, %v9853
    %v10082 = vmax.f32 %v9675, %v9967
    %v10083 = vmax.f32 %v9676, %v9968
    %v10084 = vmax.f32 %v9677, %v9969
    %v10085 = vmax.f32 %v9678, %v9861
    %v10086 = vmax.f32 %v9682, %v9970
    %v10087 = vmax.f32 %v9683, %v9971
    %v10088 = vmax.f32 %v9684, %v9972
    %v10089 = vmax.f32 %v9685, %v9869
    %v10090 = vmax.f32 %v9689, %v9973
    %v10091 = vmax.f32 %v9690, %v9974
    %v10092 = vmax.f32 %v9691, %v9975
    %v10093 = vmax.f32 %v9692, %v9877
    %v10094 = vmax.f32 %v9696, %v9976
    %v10095 = vmax.f32 %v9697, %v9977
    %v10096 = vmax.f32 %v9698, %v9978
    %v10097 = vmax.f32 %v9699, %v9885
    %v10098 = vmax.f32 %v9703, %v9979
    %v10099 = vmax.f32 %v9704, %v9980
    %v10100 = vmax.f32 %v9705, %v9981
    %v10101 = vmax.f32 %v9706, %v9893
    %v10102 = vmax.f32 %v9710, %v9982
    %v10103 = vmax.f32 %v9711, %v9983
    %v10104 = vmax.f32 %v9712, %v9984
    %v10105 = vmax.f32 %v9713, %v9901
    %v10106 = vmax.f32 %v9717, %v9985
    %v10107 = vmax.f32 %v9718, %v9986
    %v10108 = vmax.f32 %v9719, %v9987
    %v10109 = vmax.f32 %v9720, %v9909
    %v10110 = vmax.f32 %v9724, %v9988
    %v10111 = vmax.f32 %v9725, %v9989
    %v10112 = vmax.f32 %v9726, %v9990
    %v10113 = vmax.f32 %v9727, %v9917
    %v10114 = vmax.f32 %v9731, %v9991
    %v10115 = vmax.f32 %v9732, %v9992
    %v10116 = vmax.f32 %v9733, %v9993
    %v10117 = vmax.f32 %v9734, %v9925
    %v10118 = vmax.f32 %v9738, %v9994
    %v10119 = vmax.f32 %v9739, %v9995
    %v10120 = vmax.f32 %v9740, %v9996
    %v10121 = vmax.f32 %v9741, %v9933
    %v10122 = vmax.f32 %v9745, %v9997
    %v10123 = vmax.f32 %v9746, %v9998
    %v10124 = vmax.f32 %v9747, %v9999
    %v10125 = vmax.f32 %v9748, %v9941
    %v10126 = vmax.f32 %v9752, %v10000
    %v10127 = vmax.f32 %v9753, %v10001
    %v10128 = vmax.f32 %v9754, %v10002
    %v10129 = vmax.f32 %v9755, %v9949
    %v10130 = vmax.f32 %v9759, %v10003
    %v10131 = vmax.f32 %v9760, %v10004
    %v10132 = vmax.f32 %v9761, %v10005
    %v10133 = vmax.f32 %v9762, %v9957
    %v10166 = vrot.slane %v10070, 1
    %v10167 = vrot.slane %v10071, 1
    %v10168 = vrot.slane %v10072, 1
    %v10169 = vrot.slane %v10073, 1
    %v10170 = vrot.slane %v10078, 1
    %v10171 = vrot.slane %v10079, 1
    %v10172 = vrot.slane %v10080, 1
    %v10173 = vrot.slane %v10081, 1
    %v10174 = vrot.slane %v10086, 1
    %v10175 = vrot.slane %v10087, 1
    %v10176 = vrot.slane %v10088, 1
    %v10177 = vrot.slane %v10089, 1
    %v10178 = vrot.slane %v10094, 1
    %v10179 = vrot.slane %v10095, 1
    %v10180 = vrot.slane %v10096, 1
    %v10181 = vrot.slane %v10097, 1
    %v10182 = vrot.slane %v10102, 1
    %v10183 = vrot.slane %v10103, 1
    %v10184 = vrot.slane %v10104, 1
    %v10185 = vrot.slane %v10105, 1
    %v10186 = vrot.slane %v10110, 1
    %v10187 = vrot.slane %v10111, 1
    %v10188 = vrot.slane %v10112, 1
    %v10189 = vrot.slane %v10113, 1
    %v10190 = vrot.slane %v10118, 1
    %v10191 = vrot.slane %v10119, 1
    %v10192 = vrot.slane %v10120, 1
    %v10193 = vrot.slane %v10121, 1
    %v10194 = vrot.slane %v10126, 1
    %v10195 = vrot.slane %v10127, 1
    %v10196 = vrot.slane %v10128, 1
    %v10197 = vrot.slane %v10129, 1
    %v10230 = vmax.f32 %v10070, %v10166
    %v10231 = vmax.f32 %v10071, %v10167
    %v10232 = vmax.f32 %v10072, %v10168
    %v10233 = vmax.f32 %v10073, %v10169
    %v10234 = vmax.f32 %v10078, %v10170
    %v10235 = vmax.f32 %v10079, %v10171
    %v10236 = vmax.f32 %v10080, %v10172
    %v10237 = vmax.f32 %v10081, %v10173
    %v10238 = vmax.f32 %v10086, %v10174
    %v10239 = vmax.f32 %v10087, %v10175
    %v10240 = vmax.f32 %v10088, %v10176
    %v10241 = vmax.f32 %v10089, %v10177
    %v10242 = vmax.f32 %v10094, %v10178
    %v10243 = vmax.f32 %v10095, %v10179
    %v10244 = vmax.f32 %v10096, %v10180
    %v10245 = vmax.f32 %v10097, %v10181
    %v10246 = vmax.f32 %v10102, %v10182
    %v10247 = vmax.f32 %v10103, %v10183
    %v10248 = vmax.f32 %v10104, %v10184
    %v10249 = vmax.f32 %v10105, %v10185
    %v10250 = vmax.f32 %v10110, %v10186
    %v10251 = vmax.f32 %v10111, %v10187
    %v10252 = vmax.f32 %v10112, %v10188
    %v10253 = vmax.f32 %v10113, %v10189
    %v10254 = vmax.f32 %v10118, %v10190
    %v10255 = vmax.f32 %v10119, %v10191
    %v10256 = vmax.f32 %v10120, %v10192
    %v10257 = vmax.f32 %v10121, %v10193
    %v10258 = vmax.f32 %v10126, %v10194
    %v10259 = vmax.f32 %v10127, %v10195
    %v10260 = vmax.f32 %v10128, %v10196
    %v10261 = vmax.f32 %v10129, %v10197
    %v10294 = vrot.slane %v10074, 1
    %v10295 = vrot.slane %v10075, 1
    %v10296 = vrot.slane %v10076, 1
    %v10297 = vrot.slane %v10077, 1
    %v10298 = vrot.slane %v10082, 1
    %v10299 = vrot.slane %v10083, 1
    %v10300 = vrot.slane %v10084, 1
    %v10301 = vrot.slane %v10085, 1
    %v10302 = vrot.slane %v10090, 1
    %v10303 = vrot.slane %v10091, 1
    %v10304 = vrot.slane %v10092, 1
    %v10305 = vrot.slane %v10093, 1
    %v10306 = vrot.slane %v10098, 1
    %v10307 = vrot.slane %v10099, 1
    %v10308 = vrot.slane %v10100, 1
    %v10309 = vrot.slane %v10101, 1
    %v10310 = vrot.slane %v10106, 1
    %v10311 = vrot.slane %v10107, 1
    %v10312 = vrot.slane %v10108, 1
    %v10313 = vrot.slane %v10109, 1
    %v10314 = vrot.slane %v10114, 1
    %v10315 = vrot.slane %v10115, 1
    %v10316 = vrot.slane %v10116, 1
    %v10317 = vrot.slane %v10117, 1
    %v10318 = vrot.slane %v10122, 1
    %v10319 = vrot.slane %v10123, 1
    %v10320 = vrot.slane %v10124, 1
    %v10321 = vrot.slane %v10125, 1
    %v10322 = vrot.slane %v10130, 1
    %v10323 = vrot.slane %v10131, 1
    %v10324 = vrot.slane %v10132, 1
    %v10325 = vrot.slane %v10133, 1
    %v10358 = vmax.f32 %v10070, %v10294
    %v10359 = vmax.f32 %v10071, %v10295
    %v10360 = vmax.f32 %v10072, %v10296
    %v10361 = vmax.f32 %v10073, %v10297
    %v10362 = vmax.f32 %v10078, %v10298
    %v10363 = vmax.f32 %v10079, %v10299
    %v10364 = vmax.f32 %v10080, %v10300
    %v10365 = vmax.f32 %v10081, %v10301
    %v10366 = vmax.f32 %v10086, %v10302
    %v10367 = vmax.f32 %v10087, %v10303
    %v10368 = vmax.f32 %v10088, %v10304
    %v10369 = vmax.f32 %v10089, %v10305
    %v10370 = vmax.f32 %v10094, %v10306
    %v10371 = vmax.f32 %v10095, %v10307
    %v10372 = vmax.f32 %v10096, %v10308
    %v10373 = vmax.f32 %v10097, %v10309
    %v10374 = vmax.f32 %v10102, %v10310
    %v10375 = vmax.f32 %v10103, %v10311
    %v10376 = vmax.f32 %v10104, %v10312
    %v10377 = vmax.f32 %v10105, %v10313
    %v10378 = vmax.f32 %v10110, %v10314
    %v10379 = vmax.f32 %v10111, %v10315
    %v10380 = vmax.f32 %v10112, %v10316
    %v10381 = vmax.f32 %v10113, %v10317
    %v10382 = vmax.f32 %v10118, %v10318
    %v10383 = vmax.f32 %v10119, %v10319
    %v10384 = vmax.f32 %v10120, %v10320
    %v10385 = vmax.f32 %v10121, %v10321
    %v10386 = vmax.f32 %v10126, %v10322
    %v10387 = vmax.f32 %v10127, %v10323
    %v10388 = vmax.f32 %v10128, %v10324
    %v10389 = vmax.f32 %v10129, %v10325
    %v10390 = vmax.f32 %v10074, %v10294
    %v10391 = vmax.f32 %v10075, %v10295
    %v10392 = vmax.f32 %v10076, %v10296
    %v10393 = vmax.f32 %v10077, %v10297
    %v10394 = vmax.f32 %v10082, %v10298
    %v10395 = vmax.f32 %v10083, %v10299
    %v10396 = vmax.f32 %v10084, %v10300
    %v10397 = vmax.f32 %v10085, %v10301
    %v10398 = vmax.f32 %v10090, %v10302
    %v10399 = vmax.f32 %v10091, %v10303
    %v10400 = vmax.f32 %v10092, %v10304
    %v10401 = vmax.f32 %v10093, %v10305
    %v10402 = vmax.f32 %v10098, %v10306
    %v10403 = vmax.f32 %v10099, %v10307
    %v10404 = vmax.f32 %v10100, %v10308
    %v10405 = vmax.f32 %v10101, %v10309
    %v10406 = vmax.f32 %v10106, %v10310
    %v10407 = vmax.f32 %v10107, %v10311
    %v10408 = vmax.f32 %v10108, %v10312
    %v10409 = vmax.f32 %v10109, %v10313
    %v10410 = vmax.f32 %v10114, %v10314
    %v10411 = vmax.f32 %v10115, %v10315
    %v10412 = vmax.f32 %v10116, %v10316
    %v10413 = vmax.f32 %v10117, %v10317
    %v10414 = vmax.f32 %v10122, %v10318
    %v10415 = vmax.f32 %v10123, %v10319
    %v10416 = vmax.f32 %v10124, %v10320
    %v10417 = vmax.f32 %v10125, %v10321
    %v10418 = vmax.f32 %v10130, %v10322
    %v10419 = vmax.f32 %v10131, %v10323
    %v10420 = vmax.f32 %v10132, %v10324
    %v10421 = vmax.f32 %v10133, %v10325
    %v10454 = vrot.slane %v10234, 7
    %vm10455 = vcmask 1042434
    %v10456 = vsel %vm10455, %v10454, %v10230
    %v10457 = vrot.slane %v10238, 6
    %vm10458 = vcmask 1043459
    %v10459 = vsel %vm10458, %v10457, %v10456
    %v10460 = vrot.slane %v10242, 5
    %vm10461 = vcmask 1044484
    %v10462 = vsel %vm10461, %v10460, %v10459
    %v10463 = vrot.slane %v10246, 4
    %vm10464 = vcmask 1045509
    %v10465 = vsel %vm10464, %v10463, %v10462
    %v10466 = vrot.slane %v10250, 3
    %vm10467 = vcmask 1046534
    %v10468 = vsel %vm10467, %v10466, %v10465
    %v10469 = vrot.slane %v10254, 2
    %vm10470 = vcmask 1047559
    %v10471 = vsel %vm10470, %v10469, %v10468
    %v10472 = vrot.slane %v10235, 7
    %v10473 = vsel %vm10455, %v10472, %v10231
    %v10474 = vrot.slane %v10239, 6
    %v10475 = vsel %vm10458, %v10474, %v10473
    %v10476 = vrot.slane %v10243, 5
    %v10477 = vsel %vm10461, %v10476, %v10475
    %v10478 = vrot.slane %v10247, 4
    %v10479 = vsel %vm10464, %v10478, %v10477
    %v10480 = vrot.slane %v10251, 3
    %v10481 = vsel %vm10467, %v10480, %v10479
    %v10482 = vrot.slane %v10255, 2
    %v10483 = vsel %vm10470, %v10482, %v10481
    %v10484 = vrot.slane %v10236, 7
    %v10485 = vsel %vm10455, %v10484, %v10232
    %v10486 = vrot.slane %v10240, 6
    %v10487 = vsel %vm10458, %v10486, %v10485
    %v10488 = vrot.slane %v10244, 5
    %v10489 = vsel %vm10461, %v10488, %v10487
    %v10490 = vrot.slane %v10248, 4
    %v10491 = vsel %vm10464, %v10490, %v10489
    %v10492 = vrot.slane %v10252, 3
    %v10493 = vsel %vm10467, %v10492, %v10491
    %v10494 = vrot.slane %v10256, 2
    %v10495 = vsel %vm10470, %v10494, %v10493
    %v10496 = vrot.slane %v10237, 7
    %v10497 = vsel %vm10455, %v10496, %v10233
    %v10498 = vrot.slane %v10241, 6
    %v10499 = vsel %vm10458, %v10498, %v10497
    %v10500 = vrot.slane %v10245, 5
    %v10501 = vsel %vm10461, %v10500, %v10499
    %v10502 = vrot.slane %v10249, 4
    %v10503 = vsel %vm10464, %v10502, %v10501
    %v10504 = vrot.slane %v10253, 3
    %v10505 = vsel %vm10467, %v10504, %v10503
    %v10506 = vrot.slane %v10257, 2
    %v10507 = vsel %vm10470, %v10506, %v10505
    %v10508 = vrot.slane %v10258, 1
    %v10509 = vrot.slane %v10259, 1
    %v10510 = vrot.slane %v10260, 1
    %v10511 = vrot.slane %v10261, 1
    %v10514 = vrot.slane %v10230, 2
    %v10515 = vrot.slane %v10234, 1
    %v10516 = vsel %vm10455, %v10515, %v10514
    %v10517 = vsel %vm10458, %v10238, %v10516
    %v10518 = vrot.slane %v10242, 7
    %v10519 = vsel %vm10461, %v10518, %v10517
    %v10520 = vrot.slane %v10246, 6
    %v10521 = vsel %vm10464, %v10520, %v10519
    %v10522 = vrot.slane %v10250, 5
    %v10523 = vsel %vm10467, %v10522, %v10521
    %v10524 = vrot.slane %v10254, 4
    %v10525 = vsel %vm10470, %v10524, %v10523
    %v10526 = vrot.slane %v10231, 2
    %v10527 = vrot.slane %v10235, 1
    %v10528 = vsel %vm10455, %v10527, %v10526
    %v10529 = vsel %vm10458, %v10239, %v10528
    %v10530 = vrot.slane %v10243, 7
    %v10531 = vsel %vm10461, %v10530, %v10529
    %v10532 = vrot.slane %v10247, 6
    %v10533 = vsel %vm10464, %v10532, %v10531
    %v10534 = vrot.slane %v10251, 5
    %v10535 = vsel %vm10467, %v10534, %v10533
    %v10536 = vrot.slane %v10255, 4
    %v10537 = vsel %vm10470, %v10536, %v10535
    %v10538 = vrot.slane %v10232, 2
    %v10539 = vrot.slane %v10236, 1
    %v10540 = vsel %vm10455, %v10539, %v10538
    %v10541 = vsel %vm10458, %v10240, %v10540
    %v10542 = vrot.slane %v10244, 7
    %v10543 = vsel %vm10461, %v10542, %v10541
    %v10544 = vrot.slane %v10248, 6
    %v10545 = vsel %vm10464, %v10544, %v10543
    %v10546 = vrot.slane %v10252, 5
    %v10547 = vsel %vm10467, %v10546, %v10545
    %v10548 = vrot.slane %v10256, 4
    %v10549 = vsel %vm10470, %v10548, %v10547
    %v10550 = vrot.slane %v10233, 2
    %v10551 = vrot.slane %v10237, 1
    %v10552 = vsel %vm10455, %v10551, %v10550
    %v10553 = vsel %vm10458, %v10241, %v10552
    %v10554 = vrot.slane %v10245, 7
    %v10555 = vsel %vm10461, %v10554, %v10553
    %v10556 = vrot.slane %v10249, 6
    %v10557 = vsel %vm10464, %v10556, %v10555
    %v10558 = vrot.slane %v10253, 5
    %v10559 = vsel %vm10467, %v10558, %v10557
    %v10560 = vrot.slane %v10257, 4
    %v10561 = vsel %vm10470, %v10560, %v10559
    %v10562 = vrot.slane %v10258, 3
    %v10563 = vrot.slane %v10259, 3
    %v10564 = vrot.slane %v10260, 3
    %v10565 = vrot.slane %v10261, 3
    %10566 = vrot.lane.b32.xlu0 %v10525, 64
    %v10567 = vpop.permute.xlu0 %10566
    %10568 = vrot.lane.b32.xlu0 %v10537, 64
    %v10569 = vpop.permute.xlu0 %10568
    %10570 = vrot.lane.b32.xlu0 %v10549, 64
    %v10571 = vpop.permute.xlu0 %10570
    %10572 = vrot.lane.b32.xlu0 %v10561, 64
    %v10573 = vpop.permute.xlu0 %10572
    %10574 = vrot.lane.b32.xlu0 %v10562, 64
    %v10575 = vpop.permute.xlu0 %10574
    %10576 = vrot.lane.b32.xlu0 %v10563, 64
    %v10577 = vpop.permute.xlu0 %10576
    %10578 = vrot.lane.b32.xlu0 %v10564, 64
    %v10579 = vpop.permute.xlu0 %10578
    %10580 = vrot.lane.b32.xlu0 %v10565, 64
    %v10581 = vpop.permute.xlu0 %10580
    %v10582 = vsel %vm1902, %v10567, %v10569
    %v10583 = vsel %vm1902, %v10569, %v10571
    %v10584 = vsel %vm1902, %v10571, %v10573
    %v10585 = vsel %vm1902, %v10575, %v10577
    %v10586 = vsel %vm1902, %v10577, %v10579
    %v10587 = vsel %vm1902, %v10579, %v10581
    %v10590 = vrot.slane %v10230, 4
    %v10591 = vrot.slane %v10234, 3
    %v10592 = vsel %vm10455, %v10591, %v10590
    %v10593 = vrot.slane %v10238, 2
    %v10594 = vsel %vm10458, %v10593, %v10592
    %v10595 = vrot.slane %v10242, 1
    %v10596 = vsel %vm10461, %v10595, %v10594
    %v10597 = vsel %vm10464, %v10246, %v10596
    %v10598 = vrot.slane %v10250, 7
    %v10599 = vsel %vm10467, %v10598, %v10597
    %v10600 = vrot.slane %v10254, 6
    %v10601 = vsel %vm10470, %v10600, %v10599
    %v10602 = vrot.slane %v10231, 4
    %v10603 = vrot.slane %v10235, 3
    %v10604 = vsel %vm10455, %v10603, %v10602
    %v10605 = vrot.slane %v10239, 2
    %v10606 = vsel %vm10458, %v10605, %v10604
    %v10607 = vrot.slane %v10243, 1
    %v10608 = vsel %vm10461, %v10607, %v10606
    %v10609 = vsel %vm10464, %v10247, %v10608
    %v10610 = vrot.slane %v10251, 7
    %v10611 = vsel %vm10467, %v10610, %v10609
    %v10612 = vrot.slane %v10255, 6
    %v10613 = vsel %vm10470, %v10612, %v10611
    %v10614 = vrot.slane %v10232, 4
    %v10615 = vrot.slane %v10236, 3
    %v10616 = vsel %vm10455, %v10615, %v10614
    %v10617 = vrot.slane %v10240, 2
    %v10618 = vsel %vm10458, %v10617, %v10616
    %v10619 = vrot.slane %v10244, 1
    %v10620 = vsel %vm10461, %v10619, %v10618
    %v10621 = vsel %vm10464, %v10248, %v10620
    %v10622 = vrot.slane %v10252, 7
    %v10623 = vsel %vm10467, %v10622, %v10621
    %v10624 = vrot.slane %v10256, 6
    %v10625 = vsel %vm10470, %v10624, %v10623
    %v10626 = vrot.slane %v10233, 4
    %v10627 = vrot.slane %v10237, 3
    %v10628 = vsel %vm10455, %v10627, %v10626
    %v10629 = vrot.slane %v10241, 2
    %v10630 = vsel %vm10458, %v10629, %v10628
    %v10631 = vrot.slane %v10245, 1
    %v10632 = vsel %vm10461, %v10631, %v10630
    %v10633 = vsel %vm10464, %v10249, %v10632
    %v10634 = vrot.slane %v10253, 7
    %v10635 = vsel %vm10467, %v10634, %v10633
    %v10636 = vrot.slane %v10257, 6
    %v10637 = vsel %vm10470, %v10636, %v10635
    %v10638 = vrot.slane %v10258, 5
    %v10639 = vrot.slane %v10259, 5
    %v10640 = vrot.slane %v10260, 5
    %v10641 = vrot.slane %v10261, 5
    %v10676 = vrot.slane %v10358, 6
    %v10677 = vrot.slane %v10362, 5
    %v10678 = vsel %vm10455, %v10677, %v10676
    %v10679 = vrot.slane %v10366, 4
    %v10680 = vsel %vm10458, %v10679, %v10678
    %v10681 = vrot.slane %v10370, 3
    %v10682 = vsel %vm10461, %v10681, %v10680
    %v10683 = vrot.slane %v10374, 2
    %v10684 = vsel %vm10464, %v10683, %v10682
    %v10685 = vrot.slane %v10378, 1
    %v10686 = vsel %vm10467, %v10685, %v10684
    %v10687 = vsel %vm10470, %v10382, %v10686
    %v10688 = vrot.slane %v10359, 6
    %v10689 = vrot.slane %v10363, 5
    %v10690 = vsel %vm10455, %v10689, %v10688
    %v10691 = vrot.slane %v10367, 4
    %v10692 = vsel %vm10458, %v10691, %v10690
    %v10693 = vrot.slane %v10371, 3
    %v10694 = vsel %vm10461, %v10693, %v10692
    %v10695 = vrot.slane %v10375, 2
    %v10696 = vsel %vm10464, %v10695, %v10694
    %v10697 = vrot.slane %v10379, 1
    %v10698 = vsel %vm10467, %v10697, %v10696
    %v10699 = vsel %vm10470, %v10383, %v10698
    %v10700 = vrot.slane %v10360, 6
    %v10701 = vrot.slane %v10364, 5
    %v10702 = vsel %vm10455, %v10701, %v10700
    %v10703 = vrot.slane %v10368, 4
    %v10704 = vsel %vm10458, %v10703, %v10702
    %v10705 = vrot.slane %v10372, 3
    %v10706 = vsel %vm10461, %v10705, %v10704
    %v10707 = vrot.slane %v10376, 2
    %v10708 = vsel %vm10464, %v10707, %v10706
    %v10709 = vrot.slane %v10380, 1
    %v10710 = vsel %vm10467, %v10709, %v10708
    %v10711 = vsel %vm10470, %v10384, %v10710
    %v10712 = vrot.slane %v10361, 6
    %v10713 = vrot.slane %v10365, 5
    %v10714 = vsel %vm10455, %v10713, %v10712
    %v10715 = vrot.slane %v10369, 4
    %v10716 = vsel %vm10458, %v10715, %v10714
    %v10717 = vrot.slane %v10373, 3
    %v10718 = vsel %vm10461, %v10717, %v10716
    %v10719 = vrot.slane %v10377, 2
    %v10720 = vsel %vm10464, %v10719, %v10718
    %v10721 = vrot.slane %v10381, 1
    %v10722 = vsel %vm10467, %v10721, %v10720
    %v10723 = vsel %vm10470, %v10385, %v10722
    %v10724 = vrot.slane %v10386, 7
    %v10725 = vrot.slane %v10387, 7
    %v10726 = vrot.slane %v10388, 7
    %v10727 = vrot.slane %v10389, 7
    %10728 = vrot.lane.b32.xlu0 %v10687, 64
    %v10729 = vpop.permute.xlu0 %10728
    %10730 = vrot.lane.b32.xlu0 %v10699, 64
    %v10731 = vpop.permute.xlu0 %10730
    %10732 = vrot.lane.b32.xlu0 %v10711, 64
    %v10733 = vpop.permute.xlu0 %10732
    %10734 = vrot.lane.b32.xlu0 %v10723, 64
    %v10735 = vpop.permute.xlu0 %10734
    %10736 = vrot.lane.b32.xlu0 %v10724, 64
    %v10737 = vpop.permute.xlu0 %10736
    %10738 = vrot.lane.b32.xlu0 %v10725, 64
    %v10739 = vpop.permute.xlu0 %10738
    %10740 = vrot.lane.b32.xlu0 %v10726, 64
    %v10741 = vpop.permute.xlu0 %10740
    %10742 = vrot.lane.b32.xlu0 %v10727, 64
    %v10743 = vpop.permute.xlu0 %10742
    %v10744 = vsel %vm1902, %v10729, %v10731
    %v10745 = vsel %vm1902, %v10731, %v10733
    %v10746 = vsel %vm1902, %v10733, %v10735
    %v10747 = vsel %vm1902, %v10737, %v10739
    %v10748 = vsel %vm1902, %v10739, %v10741
    %v10749 = vsel %vm1902, %v10741, %v10743
    %v10784 = vrot.slane %v10394, 7
    %v10785 = vsel %vm10455, %v10784, %v10390
    %v10786 = vrot.slane %v10398, 6
    %v10787 = vsel %vm10458, %v10786, %v10785
    %v10788 = vrot.slane %v10402, 5
    %v10789 = vsel %vm10461, %v10788, %v10787
    %v10790 = vrot.slane %v10406, 4
    %v10791 = vsel %vm10464, %v10790, %v10789
    %v10792 = vrot.slane %v10410, 3
    %v10793 = vsel %vm10467, %v10792, %v10791
    %v10794 = vrot.slane %v10414, 2
    %v10795 = vsel %vm10470, %v10794, %v10793
    %v10796 = vrot.slane %v10395, 7
    %v10797 = vsel %vm10455, %v10796, %v10391
    %v10798 = vrot.slane %v10399, 6
    %v10799 = vsel %vm10458, %v10798, %v10797
    %v10800 = vrot.slane %v10403, 5
    %v10801 = vsel %vm10461, %v10800, %v10799
    %v10802 = vrot.slane %v10407, 4
    %v10803 = vsel %vm10464, %v10802, %v10801
    %v10804 = vrot.slane %v10411, 3
    %v10805 = vsel %vm10467, %v10804, %v10803
    %v10806 = vrot.slane %v10415, 2
    %v10807 = vsel %vm10470, %v10806, %v10805
    %v10808 = vrot.slane %v10396, 7
    %v10809 = vsel %vm10455, %v10808, %v10392
    %v10810 = vrot.slane %v10400, 6
    %v10811 = vsel %vm10458, %v10810, %v10809
    %v10812 = vrot.slane %v10404, 5
    %v10813 = vsel %vm10461, %v10812, %v10811
    %v10814 = vrot.slane %v10408, 4
    %v10815 = vsel %vm10464, %v10814, %v10813
    %v10816 = vrot.slane %v10412, 3
    %v10817 = vsel %vm10467, %v10816, %v10815
    %v10818 = vrot.slane %v10416, 2
    %v10819 = vsel %vm10470, %v10818, %v10817
    %v10820 = vrot.slane %v10397, 7
    %v10821 = vsel %vm10455, %v10820, %v10393
    %v10822 = vrot.slane %v10401, 6
    %v10823 = vsel %vm10458, %v10822, %v10821
    %v10824 = vrot.slane %v10405, 5
    %v10825 = vsel %vm10461, %v10824, %v10823
    %v10826 = vrot.slane %v10409, 4
    %v10827 = vsel %vm10464, %v10826, %v10825
    %v10828 = vrot.slane %v10413, 3
    %v10829 = vsel %vm10467, %v10828, %v10827
    %v10830 = vrot.slane %v10417, 2
    %v10831 = vsel %vm10470, %v10830, %v10829
    %v10832 = vrot.slane %v10418, 1
    %v10833 = vrot.slane %v10419, 1
    %v10834 = vrot.slane %v10420, 1
    %v10835 = vrot.slane %v10421, 1
    %v10838 = vrot.slane %v10390, 2
    %v10839 = vrot.slane %v10394, 1
    %v10840 = vsel %vm10455, %v10839, %v10838
    %v10841 = vsel %vm10458, %v10398, %v10840
    %v10842 = vrot.slane %v10402, 7
    %v10843 = vsel %vm10461, %v10842, %v10841
    %v10844 = vrot.slane %v10406, 6
    %v10845 = vsel %vm10464, %v10844, %v10843
    %v10846 = vrot.slane %v10410, 5
    %v10847 = vsel %vm10467, %v10846, %v10845
    %v10848 = vrot.slane %v10414, 4
    %v10849 = vsel %vm10470, %v10848, %v10847
    %v10850 = vrot.slane %v10391, 2
    %v10851 = vrot.slane %v10395, 1
    %v10852 = vsel %vm10455, %v10851, %v10850
    %v10853 = vsel %vm10458, %v10399, %v10852
    %v10854 = vrot.slane %v10403, 7
    %v10855 = vsel %vm10461, %v10854, %v10853
    %v10856 = vrot.slane %v10407, 6
    %v10857 = vsel %vm10464, %v10856, %v10855
    %v10858 = vrot.slane %v10411, 5
    %v10859 = vsel %vm10467, %v10858, %v10857
    %v10860 = vrot.slane %v10415, 4
    %v10861 = vsel %vm10470, %v10860, %v10859
    %v10862 = vrot.slane %v10392, 2
    %v10863 = vrot.slane %v10396, 1
    %v10864 = vsel %vm10455, %v10863, %v10862
    %v10865 = vsel %vm10458, %v10400, %v10864
    %v10866 = vrot.slane %v10404, 7
    %v10867 = vsel %vm10461, %v10866, %v10865
    %v10868 = vrot.slane %v10408, 6
    %v10869 = vsel %vm10464, %v10868, %v10867
    %v10870 = vrot.slane %v10412, 5
    %v10871 = vsel %vm10467, %v10870, %v10869
    %v10872 = vrot.slane %v10416, 4
    %v10873 = vsel %vm10470, %v10872, %v10871
    %v10874 = vrot.slane %v10393, 2
    %v10875 = vrot.slane %v10397, 1
    %v10876 = vsel %vm10455, %v10875, %v10874
    %v10877 = vsel %vm10458, %v10401, %v10876
    %v10878 = vrot.slane %v10405, 7
    %v10879 = vsel %vm10461, %v10878, %v10877
    %v10880 = vrot.slane %v10409, 6
    %v10881 = vsel %vm10464, %v10880, %v10879
    %v10882 = vrot.slane %v10413, 5
    %v10883 = vsel %vm10467, %v10882, %v10881
    %v10884 = vrot.slane %v10417, 4
    %v10885 = vsel %vm10470, %v10884, %v10883
    %v10886 = vrot.slane %v10418, 3
    %v10887 = vrot.slane %v10419, 3
    %v10888 = vrot.slane %v10420, 3
    %v10889 = vrot.slane %v10421, 3
    %10890 = vrot.lane.b32.xlu0 %v10849, 64
    %v10891 = vpop.permute.xlu0 %10890
    %10892 = vrot.lane.b32.xlu0 %v10861, 64
    %v10893 = vpop.permute.xlu0 %10892
    %10894 = vrot.lane.b32.xlu0 %v10873, 64
    %v10895 = vpop.permute.xlu0 %10894
    %10896 = vrot.lane.b32.xlu0 %v10885, 64
    %v10897 = vpop.permute.xlu0 %10896
    %10898 = vrot.lane.b32.xlu0 %v10886, 64
    %v10899 = vpop.permute.xlu0 %10898
    %10900 = vrot.lane.b32.xlu0 %v10887, 64
    %v10901 = vpop.permute.xlu0 %10900
    %10902 = vrot.lane.b32.xlu0 %v10888, 64
    %v10903 = vpop.permute.xlu0 %10902
    %10904 = vrot.lane.b32.xlu0 %v10889, 64
    %v10905 = vpop.permute.xlu0 %10904
    %v10906 = vsel %vm1902, %v10891, %v10893
    %v10907 = vsel %vm1902, %v10893, %v10895
    %v10908 = vsel %vm1902, %v10895, %v10897
    %v10909 = vsel %vm1902, %v10899, %v10901
    %v10910 = vsel %vm1902, %v10901, %v10903
    %v10911 = vsel %vm1902, %v10903, %v10905
    %v10914 = vrot.slane %v10390, 4
    %v10915 = vrot.slane %v10394, 3
    %v10916 = vsel %vm10455, %v10915, %v10914
    %v10917 = vrot.slane %v10398, 2
    %v10918 = vsel %vm10458, %v10917, %v10916
    %v10919 = vrot.slane %v10402, 1
    %v10920 = vsel %vm10461, %v10919, %v10918
    %v10921 = vsel %vm10464, %v10406, %v10920
    %v10922 = vrot.slane %v10410, 7
    %v10923 = vsel %vm10467, %v10922, %v10921
    %v10924 = vrot.slane %v10414, 6
    %v10925 = vsel %vm10470, %v10924, %v10923
    %v10926 = vrot.slane %v10391, 4
    %v10927 = vrot.slane %v10395, 3
    %v10928 = vsel %vm10455, %v10927, %v10926
    %v10929 = vrot.slane %v10399, 2
    %v10930 = vsel %vm10458, %v10929, %v10928
    %v10931 = vrot.slane %v10403, 1
    %v10932 = vsel %vm10461, %v10931, %v10930
    %v10933 = vsel %vm10464, %v10407, %v10932
    %v10934 = vrot.slane %v10411, 7
    %v10935 = vsel %vm10467, %v10934, %v10933
    %v10936 = vrot.slane %v10415, 6
    %v10937 = vsel %vm10470, %v10936, %v10935
    %v10938 = vrot.slane %v10392, 4
    %v10939 = vrot.slane %v10396, 3
    %v10940 = vsel %vm10455, %v10939, %v10938
    %v10941 = vrot.slane %v10400, 2
    %v10942 = vsel %vm10458, %v10941, %v10940
    %v10943 = vrot.slane %v10404, 1
    %v10944 = vsel %vm10461, %v10943, %v10942
    %v10945 = vsel %vm10464, %v10408, %v10944
    %v10946 = vrot.slane %v10412, 7
    %v10947 = vsel %vm10467, %v10946, %v10945
    %v10948 = vrot.slane %v10416, 6
    %v10949 = vsel %vm10470, %v10948, %v10947
    %v10950 = vrot.slane %v10393, 4
    %v10951 = vrot.slane %v10397, 3
    %v10952 = vsel %vm10455, %v10951, %v10950
    %v10953 = vrot.slane %v10401, 2
    %v10954 = vsel %vm10458, %v10953, %v10952
    %v10955 = vrot.slane %v10405, 1
    %v10956 = vsel %vm10461, %v10955, %v10954
    %v10957 = vsel %vm10464, %v10409, %v10956
    %v10958 = vrot.slane %v10413, 7
    %v10959 = vsel %vm10467, %v10958, %v10957
    %v10960 = vrot.slane %v10417, 6
    %v10961 = vsel %vm10470, %v10960, %v10959
    %v10962 = vrot.slane %v10418, 5
    %v10963 = vrot.slane %v10419, 5
    %v10964 = vrot.slane %v10420, 5
    %v10965 = vrot.slane %v10421, 5
    %v10966 = vsel %vm1902, %v10507, %v10567
    %v10967 = vsel %vm1902, %v10511, %v10575
    %v10968 = vsel %vm1902, %v10637, %v10729
    %v10969 = vsel %vm1902, %v10641, %v10737
    %v10970 = vsel %vm1902, %v10831, %v10891
    %v10971 = vsel %vm1902, %v10835, %v10899
    %v10972 = vld [vmem:[#allocation7] sm:$0xff]
    %v10973 = vld [vmem:[#allocation7 + $0x8] sm:$0xff]
    %v10974 = vld [vmem:[#allocation7 + $0x10] sm:$0xff]
    %v10975 = vld [vmem:[#allocation7 + $0x18] sm:$0xff]
    %v10976 = vld [vmem:[#allocation7 + $0x20] sm:$0xff]
    %v10977 = vld [vmem:[#allocation7 + $0x28] sm:$0xff]
    %v10978 = vld [vmem:[#allocation7 + $0x30] sm:$0xff]
    %v10979 = vld [vmem:[#allocation7 + $0x38] sm:$0xff]
    %v10980 = vld [vmem:[#allocation7 + $0x40] sm:$0xff]
    %v10981 = vld [vmem:[#allocation7 + $0x48] sm:$0xff]
    %v10982 = vld [vmem:[#allocation7 + $0x50] sm:$0xff]
    %v10983 = vld [vmem:[#allocation7 + $0x58] sm:$0xff]
    %v10984 = vld [vmem:[#allocation7 + $0x60] sm:$0xff]
    %v10985 = vld [vmem:[#allocation7 + $0x68] sm:$0xff]
    %v10986 = vld [vmem:[#allocation7 + $0x70] sm:$0xff]
    %v10987 = vld [vmem:[#allocation7 + $0x78] sm:$0xff]
    %v10988 = vld [vmem:[#allocation7 + $0x80] sm:$0xff]
    %v10989 = vld [vmem:[#allocation7 + $0x88] sm:$0xff]
    %v10990 = vld [vmem:[#allocation7 + $0x90] sm:$0xff]
    %v10991 = vld [vmem:[#allocation7 + $0x98] sm:$0xff]
    %v10992 = vld [vmem:[#allocation7 + $0xa0] sm:$0xff]
    %v10993 = vld [vmem:[#allocation7 + $0xa8] sm:$0xff]
    %v10994 = vld [vmem:[#allocation7 + $0xb0] sm:$0xff]
    %v10995 = vld [vmem:[#allocation7 + $0xb8] sm:$0xff]
    %v10996 = vld [vmem:[#allocation7 + $0xc0] sm:$0xff]
    %v10997 = vld [vmem:[#allocation7 + $0xc8] sm:$0xff]
    %v10998 = vld [vmem:[#allocation7 + $0xd0] sm:$0xff]
    %v10999 = vld [vmem:[#allocation7 + $0xd8] sm:$0xff]
    %v11000 = vld [vmem:[#allocation7 + $0xe0] sm:$0xff]
    %v11001 = vld [vmem:[#allocation7 + $0xe8] sm:$0xff]
    %v11002 = vld [vmem:[#allocation7 + $0xf0] sm:$0xff]
    %v11003 = vld [vmem:[#allocation7 + $0xf8] sm:$0xff]
    %v11004 = vld [vmem:[#allocation7 + $0x100] sm:$0xff]
    %v11005 = vld [vmem:[#allocation7 + $0x108] sm:$0xff]
    %v11006 = vld [vmem:[#allocation7 + $0x110] sm:$0xff]
    %v11007 = vld [vmem:[#allocation7 + $0x118] sm:$0xff]
    %v11008 = vld [vmem:[#allocation7 + $0x120] sm:$0xff]
    %v11009 = vld [vmem:[#allocation7 + $0x128] sm:$0xff]
    %v11010 = vld [vmem:[#allocation7 + $0x130] sm:$0xff]
    %v11011 = vld [vmem:[#allocation7 + $0x138] sm:$0xff]
    %v11012 = vld [vmem:[#allocation7 + $0x140] sm:$0xff]
    %v11013 = vld [vmem:[#allocation7 + $0x148] sm:$0xff]
    %v11014 = vld [vmem:[#allocation7 + $0x150] sm:$0xff]
    %v11015 = vld [vmem:[#allocation7 + $0x158] sm:$0xff]
    %v11016 = vld [vmem:[#allocation7 + $0x160] sm:$0xff]
    %v11017 = vld [vmem:[#allocation7 + $0x168] sm:$0xff]
    %v11018 = vld [vmem:[#allocation7 + $0x170] sm:$0xff]
    %v11019 = vld [vmem:[#allocation7 + $0x178] sm:$0xff]
    %v11020 = vld [vmem:[#allocation7 + $0x180] sm:$0xff]
    %v11021 = vld [vmem:[#allocation7 + $0x188] sm:$0xff]
    %v11022 = vld [vmem:[#allocation7 + $0x190] sm:$0xff]
    %v11023 = vld [vmem:[#allocation7 + $0x198] sm:$0xff]
    %v11024 = vld [vmem:[#allocation7 + $0x1a0] sm:$0xff]
    %v11025 = vld [vmem:[#allocation7 + $0x1a8] sm:$0xff]
    %v11026 = vld [vmem:[#allocation7 + $0x1b0] sm:$0xff]
    %v11027 = vld [vmem:[#allocation7 + $0x1b8] sm:$0xff]
    %v11028 = vld [vmem:[#allocation7 + $0x1c0] sm:$0xff]
    %v11029 = vld [vmem:[#allocation7 + $0x1c8] sm:$0xff]
    %v11030 = vld [vmem:[#allocation7 + $0x1d0] sm:$0xff]
    %v11031 = vld [vmem:[#allocation7 + $0x1d8] sm:$0xff]
    %v11032 = vld [vmem:[#allocation7 + $0x1e0] sm:$0xff]
    %v11033 = vld [vmem:[#allocation7 + $0x1e8] sm:$0xff]
    %v11034 = vld [vmem:[#allocation7 + $0x1f0] sm:$0xff]
    %v11035 = vld [vmem:[#allocation7 + $0x1f8] sm:$0xff]
    %v11036 = vld [vmem:[#allocation7 + $0x200] sm:$0xff]
    %v11037 = vld [vmem:[#allocation7 + $0x208] sm:$0xff]
    %v11038 = vld [vmem:[#allocation7 + $0x210] sm:$0xff]
    %v11039 = vld [vmem:[#allocation7 + $0x218] sm:$0xff]
    %v11040 = vld [vmem:[#allocation7 + $0x220] sm:$0xff]
    %v11041 = vld [vmem:[#allocation7 + $0x228] sm:$0xff]
    %v11042 = vld [vmem:[#allocation7 + $0x230] sm:$0xff]
    %v11043 = vld [vmem:[#allocation7 + $0x238] sm:$0xff]
    %v11044 = vld [vmem:[#allocation7 + $0x240] sm:$0xff]
    %v11045 = vld [vmem:[#allocation7 + $0x248] sm:$0xff]
    %v11046 = vld [vmem:[#allocation7 + $0x250] sm:$0xff]
    %v11047 = vld [vmem:[#allocation7 + $0x258] sm:$0xff]
    %v11048 = vld [vmem:[#allocation7 + $0x260] sm:$0xff]
    %v11049 = vld [vmem:[#allocation7 + $0x268] sm:$0xff]
    %v11050 = vld [vmem:[#allocation7 + $0x270] sm:$0xff]
    %v11051 = vld [vmem:[#allocation7 + $0x278] sm:$0xff]
    %v11052 = vld [vmem:[#allocation7 + $0x280] sm:$0xff]
    %v11053 = vld [vmem:[#allocation7 + $0x288] sm:$0xff]
    %v11054 = vld [vmem:[#allocation7 + $0x290] sm:$0xff]
    %v11055 = vld [vmem:[#allocation7 + $0x298] sm:$0xff]
    %v11056 = vld [vmem:[#allocation7 + $0x2a0] sm:$0xff]
    %v11057 = vld [vmem:[#allocation7 + $0x2a8] sm:$0xff]
    %v11058 = vld [vmem:[#allocation7 + $0x2b0] sm:$0xff]
    %v11059 = vld [vmem:[#allocation7 + $0x2b8] sm:$0xff]
    %v11060 = vld [vmem:[#allocation7 + $0x2c0] sm:$0xff]
    %v11061 = vld [vmem:[#allocation7 + $0x2c8] sm:$0xff]
    %v11062 = vld [vmem:[#allocation7 + $0x2d0] sm:$0xff]
    %v11063 = vld [vmem:[#allocation7 + $0x2d8] sm:$0xff]
    %v11064 = vld [vmem:[#allocation7 + $0x2e0] sm:$0xff]
    %v11065 = vld [vmem:[#allocation7 + $0x2e8] sm:$0xff]
    %v11066 = vld [vmem:[#allocation7 + $0x2f0] sm:$0xff]
    %v11067 = vld [vmem:[#allocation7 + $0x2f8] sm:$0xff]
    %v11068 = vld [vmem:[#allocation7 + $0x300] sm:$0xff]
    %v11069 = vld [vmem:[#allocation7 + $0x308] sm:$0xff]
    %v11070 = vld [vmem:[#allocation7 + $0x310] sm:$0xff]
    %v11071 = vld [vmem:[#allocation7 + $0x318] sm:$0xff]
    %v11072 = vld [vmem:[#allocation7 + $0x320] sm:$0xff]
    %v11073 = vld [vmem:[#allocation7 + $0x328] sm:$0xff]
    %v11074 = vld [vmem:[#allocation7 + $0x330] sm:$0xff]
    %v11075 = vld [vmem:[#allocation7 + $0x338] sm:$0xff]
    %v11076 = vld [vmem:[#allocation7 + $0x340] sm:$0xff]
    %v11077 = vld [vmem:[#allocation7 + $0x348] sm:$0xff]
    %v11078 = vld [vmem:[#allocation7 + $0x350] sm:$0xff]
    %v11079 = vld [vmem:[#allocation7 + $0x358] sm:$0xff]
    %v11080 = vld [vmem:[#allocation7 + $0x360] sm:$0xff]
    %v11081 = vld [vmem:[#allocation7 + $0x368] sm:$0xff]
    %v11082 = vld [vmem:[#allocation7 + $0x370] sm:$0xff]
    %v11083 = vld [vmem:[#allocation7 + $0x378] sm:$0xff]
    %v11084 = vld [vmem:[#allocation7 + $0x380] sm:$0xff]
    %v11085 = vld [vmem:[#allocation7 + $0x388] sm:$0xff]
    %v11086 = vld [vmem:[#allocation7 + $0x390] sm:$0xff]
    %v11087 = vld [vmem:[#allocation7 + $0x398] sm:$0xff]
    %v11088 = vld [vmem:[#allocation7 + $0x3a0] sm:$0xff]
    %v11089 = vld [vmem:[#allocation7 + $0x3a8] sm:$0xff]
    %v11090 = vld [vmem:[#allocation7 + $0x3b0] sm:$0xff]
    %v11091 = vld [vmem:[#allocation7 + $0x3b8] sm:$0xff]
    %v11092 = vld [vmem:[#allocation7 + $0x3c0] sm:$0xff]
    %v11093 = vld [vmem:[#allocation7 + $0x3c8] sm:$0xff]
    %v11094 = vld [vmem:[#allocation7 + $0x3d0] sm:$0xff]
    %v11095 = vld [vmem:[#allocation7 + $0x3d8] sm:$0xff]
    %v11096 = vld [vmem:[#allocation7 + $0x3e0] sm:$0xff]
    %v11097 = vld [vmem:[#allocation7 + $0x3e8] sm:$0xff]
    %v11098 = vld [vmem:[#allocation7 + $0x3f0] sm:$0xff]
    %v11099 = vld [vmem:[#allocation7 + $0x3f8] sm:$0xff]
    %v11100 = vld [vmem:[#allocation7 + $0x400] sm:$0xff]
    %v11101 = vld [vmem:[#allocation7 + $0x408] sm:$0xff]
    %v11102 = vld [vmem:[#allocation7 + $0x410] sm:$0xff]
    %v11103 = vld [vmem:[#allocation7 + $0x418] sm:$0xff]
    %v11104 = vld [vmem:[#allocation7 + $0x420] sm:$0xff]
    %v11105 = vld [vmem:[#allocation7 + $0x428] sm:$0xff]
    %v11106 = vld [vmem:[#allocation7 + $0x430] sm:$0xff]
    %v11107 = vld [vmem:[#allocation7 + $0x438] sm:$0xff]
    %v11108 = vld [vmem:[#allocation7 + $0x440] sm:$0xff]
    %v11109 = vld [vmem:[#allocation7 + $0x448] sm:$0xff]
    %v11110 = vld [vmem:[#allocation7 + $0x450] sm:$0xff]
    %v11111 = vld [vmem:[#allocation7 + $0x458] sm:$0xff]
    %v11112 = vld [vmem:[#allocation7 + $0x460] sm:$0xff]
    %v11113 = vld [vmem:[#allocation7 + $0x468] sm:$0xff]
    %v11114 = vld [vmem:[#allocation7 + $0x470] sm:$0xff]
    %v11115 = vld [vmem:[#allocation7 + $0x478] sm:$0xff]
    %v11116 = vld [vmem:[#allocation7 + $0x480] sm:$0xff]
    %v11117 = vld [vmem:[#allocation7 + $0x488] sm:$0xff]
    %v11118 = vld [vmem:[#allocation7 + $0x490] sm:$0xff]
    %v11119 = vld [vmem:[#allocation7 + $0x498] sm:$0xff]
    %v11120 = vld [vmem:[#allocation7 + $0x4a0] sm:$0xff]
    %v11121 = vld [vmem:[#allocation7 + $0x4a8] sm:$0xff]
    %v11122 = vld [vmem:[#allocation7 + $0x4b0] sm:$0xff]
    %v11123 = vld [vmem:[#allocation7 + $0x4b8] sm:$0xff]
    %v11124 = vld [vmem:[#allocation7 + $0x4c0] sm:$0xff]
    %v11125 = vld [vmem:[#allocation7 + $0x4c8] sm:$0xff]
    %v11126 = vld [vmem:[#allocation7 + $0x4d0] sm:$0xff]
    %v11127 = vld [vmem:[#allocation7 + $0x4d8] sm:$0xff]
    %v11128 = vld [vmem:[#allocation7 + $0x4e0] sm:$0xff]
    %v11129 = vld [vmem:[#allocation7 + $0x4e8] sm:$0xff]
    %v11130 = vld [vmem:[#allocation7 + $0x4f0] sm:$0xff]
    %v11131 = vld [vmem:[#allocation7 + $0x4f8] sm:$0xff]
    %v11132 = vld [vmem:[#allocation7 + $0x500] sm:$0xff]
    %v11133 = vld [vmem:[#allocation7 + $0x508] sm:$0xff]
    %v11134 = vld [vmem:[#allocation7 + $0x510] sm:$0xff]
    %v11135 = vld [vmem:[#allocation7 + $0x518] sm:$0xff]
    %v11136 = vld [vmem:[#allocation7 + $0x520] sm:$0xff]
    %v11137 = vld [vmem:[#allocation7 + $0x528] sm:$0xff]
    %v11138 = vld [vmem:[#allocation7 + $0x530] sm:$0xff]
    %v11139 = vld [vmem:[#allocation7 + $0x538] sm:$0xff]
    %v11140 = vld [vmem:[#allocation7 + $0x540] sm:$0xff]
    %v11141 = vld [vmem:[#allocation7 + $0x548] sm:$0xff]
    %v11142 = vld [vmem:[#allocation7 + $0x550] sm:$0xff]
    %v11143 = vld [vmem:[#allocation7 + $0x558] sm:$0xff]
    %v11144 = vld [vmem:[#allocation7 + $0x560] sm:$0xff]
    %v11145 = vld [vmem:[#allocation7 + $0x568] sm:$0xff]
    %v11146 = vld [vmem:[#allocation7 + $0x570] sm:$0xff]
    %v11147 = vld [vmem:[#allocation7 + $0x578] sm:$0xff]
    %v11148 = vld [vmem:[#allocation7 + $0x580] sm:$0xff]
    %v11149 = vld [vmem:[#allocation7 + $0x588] sm:$0xff]
    %v11150 = vld [vmem:[#allocation7 + $0x590] sm:$0xff]
    %v11151 = vld [vmem:[#allocation7 + $0x598] sm:$0xff]
    %v11152 = vld [vmem:[#allocation7 + $0x5a0] sm:$0xff]
    %v11153 = vld [vmem:[#allocation7 + $0x5a8] sm:$0xff]
    %v11154 = vld [vmem:[#allocation7 + $0x5b0] sm:$0xff]
    %v11155 = vld [vmem:[#allocation7 + $0x5b8] sm:$0xff]
    %v11156 = vld [vmem:[#allocation7 + $0x5c0] sm:$0xff]
    %v11157 = vld [vmem:[#allocation7 + $0x5c8] sm:$0xff]
    %v11158 = vld [vmem:[#allocation7 + $0x5d0] sm:$0xff]
    %v11159 = vld [vmem:[#allocation7 + $0x5d8] sm:$0xff]
    %v11160 = vld [vmem:[#allocation7 + $0x5e0] sm:$0xff]
    %v11161 = vld [vmem:[#allocation7 + $0x5e8] sm:$0xff]
    %v11162 = vld [vmem:[#allocation7 + $0x5f0] sm:$0xff]
    %v11163 = vld [vmem:[#allocation7 + $0x5f8] sm:$0xff]
    %v11164 = vld [vmem:[#allocation7 + $0x600] sm:$0xff]
    %v11165 = vld [vmem:[#allocation7 + $0x608] sm:$0xff]
    %v11166 = vld [vmem:[#allocation7 + $0x610] sm:$0xff]
    %v11167 = vld [vmem:[#allocation7 + $0x618] sm:$0xff]
    %v11168 = vld [vmem:[#allocation7 + $0x620] sm:$0xff]
    %v11169 = vld [vmem:[#allocation7 + $0x628] sm:$0xff]
    %v11170 = vld [vmem:[#allocation7 + $0x630] sm:$0xff]
    %v11171 = vld [vmem:[#allocation7 + $0x638] sm:$0xff]
    %v11172 = vld [vmem:[#allocation7 + $0x640] sm:$0xff]
    %v11173 = vld [vmem:[#allocation7 + $0x648] sm:$0xff]
    %v11174 = vld [vmem:[#allocation7 + $0x650] sm:$0xff]
    %v11175 = vld [vmem:[#allocation7 + $0x658] sm:$0xff]
    %v11176 = vld [vmem:[#allocation7 + $0x660] sm:$0xff]
    %v11177 = vld [vmem:[#allocation7 + $0x668] sm:$0xff]
    %v11178 = vld [vmem:[#allocation7 + $0x670] sm:$0xff]
    %v11179 = vld [vmem:[#allocation7 + $0x678] sm:$0xff]
    %v11180 = vld [vmem:[#allocation7 + $0x680] sm:$0xff]
    %v11181 = vld [vmem:[#allocation7 + $0x688] sm:$0xff]
    %v11182 = vld [vmem:[#allocation7 + $0x690] sm:$0xff]
    %v11183 = vld [vmem:[#allocation7 + $0x698] sm:$0xff]
    %v11184 = vld [vmem:[#allocation7 + $0x6a0] sm:$0xff]
    %v11185 = vld [vmem:[#allocation7 + $0x6a8] sm:$0xff]
    %v11186 = vld [vmem:[#allocation7 + $0x6b0] sm:$0xff]
    %v11187 = vld [vmem:[#allocation7 + $0x6b8] sm:$0xff]
    %v11188 = vld [vmem:[#allocation7 + $0x6c0] sm:$0xff]
    %v11189 = vld [vmem:[#allocation7 + $0x6c8] sm:$0xff]
    %v11190 = vld [vmem:[#allocation7 + $0x6d0] sm:$0xff]
    %v11191 = vld [vmem:[#allocation7 + $0x6d8] sm:$0xff]
    %v11192 = vld [vmem:[#allocation7 + $0x6e0] sm:$0xff]
    %v11193 = vld [vmem:[#allocation7 + $0x6e8] sm:$0xff]
    %v11194 = vld [vmem:[#allocation7 + $0x6f0] sm:$0xff]
    %v11195 = vld [vmem:[#allocation7 + $0x6f8] sm:$0xff]
    %v11196 = vld [vmem:[#allocation7 + $0x700] sm:$0xff]
    %v11197 = vld [vmem:[#allocation7 + $0x708] sm:$0xff]
    %v11198 = vld [vmem:[#allocation7 + $0x710] sm:$0xff]
    %v11199 = vld [vmem:[#allocation7 + $0x718] sm:$0xff]
    %v11200 = vld [vmem:[#allocation7 + $0x720] sm:$0xff]
    %v11201 = vld [vmem:[#allocation7 + $0x728] sm:$0xff]
    %v11202 = vld [vmem:[#allocation7 + $0x730] sm:$0xff]
    %v11203 = vld [vmem:[#allocation7 + $0x738] sm:$0xff]
    %v11204 = vld [vmem:[#allocation7 + $0x740] sm:$0xff]
    %v11205 = vld [vmem:[#allocation7 + $0x748] sm:$0xff]
    %v11206 = vld [vmem:[#allocation7 + $0x750] sm:$0xff]
    %v11207 = vld [vmem:[#allocation7 + $0x758] sm:$0xff]
    %v11208 = vld [vmem:[#allocation7 + $0x760] sm:$0xff]
    %v11209 = vld [vmem:[#allocation7 + $0x768] sm:$0xff]
    %v11210 = vld [vmem:[#allocation7 + $0x770] sm:$0xff]
    %v11211 = vld [vmem:[#allocation7 + $0x778] sm:$0xff]
    %v11212 = vld [vmem:[#allocation7 + $0x780] sm:$0xff]
    %v11213 = vld [vmem:[#allocation7 + $0x788] sm:$0xff]
    %v11214 = vld [vmem:[#allocation7 + $0x790] sm:$0xff]
    %v11215 = vld [vmem:[#allocation7 + $0x798] sm:$0xff]
    %v11216 = vld [vmem:[#allocation7 + $0x7a0] sm:$0xff]
    %v11217 = vld [vmem:[#allocation7 + $0x7a8] sm:$0xff]
    %v11218 = vld [vmem:[#allocation7 + $0x7b0] sm:$0xff]
    %v11219 = vld [vmem:[#allocation7 + $0x7b8] sm:$0xff]
    %v11220 = vld [vmem:[#allocation7 + $0x7c0] sm:$0xff]
    %v11221 = vld [vmem:[#allocation7 + $0x7c8] sm:$0xff]
    %v11222 = vld [vmem:[#allocation7 + $0x7d0] sm:$0xff]
    %v11223 = vld [vmem:[#allocation7 + $0x7d8] sm:$0xff]
    %v11224 = vld [vmem:[#allocation7 + $0x7e0] sm:$0xff]
    %v11225 = vld [vmem:[#allocation7 + $0x7e8] sm:$0xff]
    %v11226 = vld [vmem:[#allocation7 + $0x7f0] sm:$0xff]
    %v11227 = vld [vmem:[#allocation7 + $0x7f8] sm:$0xff]
    %v11228 = vld [vmem:[#allocation7 + $0x800] sm:$0xff]
    %v11229 = vld [vmem:[#allocation7 + $0x808] sm:$0xff]
    %v11230 = vld [vmem:[#allocation7 + $0x810] sm:$0xff]
    %v11231 = vld [vmem:[#allocation7 + $0x818] sm:$0xff]
    %v11232 = vld [vmem:[#allocation7 + $0x820] sm:$0xff]
    %v11233 = vld [vmem:[#allocation7 + $0x828] sm:$0xff]
    %v11234 = vld [vmem:[#allocation7 + $0x830] sm:$0xff]
    %v11235 = vld [vmem:[#allocation7 + $0x838] sm:$0xff]
    %v11236 = vld [vmem:[#allocation7 + $0x840] sm:$0xff]
    %v11237 = vld [vmem:[#allocation7 + $0x848] sm:$0xff]
    %v11238 = vld [vmem:[#allocation7 + $0x850] sm:$0xff]
    %v11239 = vld [vmem:[#allocation7 + $0x858] sm:$0xff]
    %v11240 = vld [vmem:[#allocation7 + $0x860] sm:$0xff]
    %v11241 = vld [vmem:[#allocation7 + $0x868] sm:$0xff]
    %v11242 = vld [vmem:[#allocation7 + $0x870] sm:$0xff]
    %v11243 = vld [vmem:[#allocation7 + $0x878] sm:$0xff]
    %v11244 = vld [vmem:[#allocation7 + $0x880] sm:$0xff]
    %v11245 = vld [vmem:[#allocation7 + $0x888] sm:$0xff]
    %v11246 = vld [vmem:[#allocation7 + $0x890] sm:$0xff]
    %v11247 = vld [vmem:[#allocation7 + $0x898] sm:$0xff]
    %v11248 = vld [vmem:[#allocation7 + $0x8a0] sm:$0xff]
    %v11249 = vld [vmem:[#allocation7 + $0x8a8] sm:$0xff]
    %v11250 = vld [vmem:[#allocation7 + $0x8b0] sm:$0xff]
    %v11251 = vld [vmem:[#allocation7 + $0x8b8] sm:$0xff]
    %v11252 = vld [vmem:[#allocation7 + $0x8c0] sm:$0xff]
    %v11253 = vld [vmem:[#allocation7 + $0x8c8] sm:$0xff]
    %v11254 = vld [vmem:[#allocation7 + $0x8d0] sm:$0xff]
    %v11255 = vld [vmem:[#allocation7 + $0x8d8] sm:$0xff]
    %v11256 = vld [vmem:[#allocation7 + $0x8e0] sm:$0xff]
    %v11257 = vld [vmem:[#allocation7 + $0x8e8] sm:$0xff]
    %v11258 = vld [vmem:[#allocation7 + $0x8f0] sm:$0xff]
    %v11259 = vld [vmem:[#allocation7 + $0x8f8] sm:$0xff]
    %v11260 = vld [vmem:[#allocation7 + $0x900] sm:$0xff]
    %v11261 = vld [vmem:[#allocation7 + $0x908] sm:$0xff]
    %v11262 = vld [vmem:[#allocation7 + $0x910] sm:$0xff]
    %v11263 = vld [vmem:[#allocation7 + $0x918] sm:$0xff]
    %v11264 = vld [vmem:[#allocation7 + $0x920] sm:$0xff]
    %v11265 = vld [vmem:[#allocation7 + $0x928] sm:$0xff]
    %v11266 = vld [vmem:[#allocation7 + $0x930] sm:$0xff]
    %v11267 = vld [vmem:[#allocation7 + $0x938] sm:$0xff]
    %v11268 = vld [vmem:[#allocation7 + $0x940] sm:$0xff]
    %v11269 = vld [vmem:[#allocation7 + $0x948] sm:$0xff]
    %v11270 = vld [vmem:[#allocation7 + $0x950] sm:$0xff]
    %v11271 = vld [vmem:[#allocation7 + $0x958] sm:$0xff]
    %v11272 = vld [vmem:[#allocation7 + $0x960] sm:$0xff]
    %v11273 = vld [vmem:[#allocation7 + $0x968] sm:$0xff]
    %v11274 = vld [vmem:[#allocation7 + $0x970] sm:$0xff]
    %v11275 = vld [vmem:[#allocation7 + $0x978] sm:$0xff]
    %v11276 = vld [vmem:[#allocation7 + $0x980] sm:$0xff]
    %v11277 = vld [vmem:[#allocation7 + $0x988] sm:$0xff]
    %v11278 = vld [vmem:[#allocation7 + $0x990] sm:$0xff]
    %v11279 = vld [vmem:[#allocation7 + $0x998] sm:$0xff]
    %v11280 = vld [vmem:[#allocation7 + $0x9a0] sm:$0xff]
    %v11281 = vld [vmem:[#allocation7 + $0x9a8] sm:$0xff]
    %v11282 = vld [vmem:[#allocation7 + $0x9b0] sm:$0xff]
    %v11283 = vld [vmem:[#allocation7 + $0x9b8] sm:$0xff]
    %v11284 = vld [vmem:[#allocation7 + $0x9c0] sm:$0xff]
    %v11285 = vld [vmem:[#allocation7 + $0x9c8] sm:$0xff]
    %v11286 = vld [vmem:[#allocation7 + $0x9d0] sm:$0xff]
    %v11287 = vld [vmem:[#allocation7 + $0x9d8] sm:$0xff]
    %v11288 = vld [vmem:[#allocation7 + $0x9e0] sm:$0xff]
    %v11289 = vld [vmem:[#allocation7 + $0x9e8] sm:$0xff]
    %v11290 = vld [vmem:[#allocation7 + $0x9f0] sm:$0xff]
    %v11291 = vld [vmem:[#allocation7 + $0x9f8] sm:$0xff]
    %v11292 = vld [vmem:[#allocation7 + $0xa00] sm:$0xff]
    %v11293 = vld [vmem:[#allocation7 + $0xa08] sm:$0xff]
    %v11294 = vld [vmem:[#allocation7 + $0xa10] sm:$0xff]
    %v11295 = vld [vmem:[#allocation7 + $0xa18] sm:$0xff]
    %v11296 = vld [vmem:[#allocation7 + $0xa20] sm:$0xff]
    %v11297 = vld [vmem:[#allocation7 + $0xa28] sm:$0xff]
    %v11298 = vld [vmem:[#allocation7 + $0xa30] sm:$0xff]
    %v11299 = vld [vmem:[#allocation7 + $0xa38] sm:$0xff]
    %v11300 = vld [vmem:[#allocation7 + $0xa40] sm:$0xff]
    %v11301 = vld [vmem:[#allocation7 + $0xa48] sm:$0xff]
    %v11302 = vld [vmem:[#allocation7 + $0xa50] sm:$0xff]
    %v11303 = vld [vmem:[#allocation7 + $0xa58] sm:$0xff]
    %v11304 = vld [vmem:[#allocation7 + $0xa60] sm:$0xff]
    %v11305 = vld [vmem:[#allocation7 + $0xa68] sm:$0xff]
    %v11306 = vld [vmem:[#allocation7 + $0xa70] sm:$0xff]
    %v11307 = vld [vmem:[#allocation7 + $0xa78] sm:$0xff]
    %v11308 = vld [vmem:[#allocation7 + $0xa80] sm:$0xff]
    %v11309 = vld [vmem:[#allocation7 + $0xa88] sm:$0xff]
    %v11310 = vld [vmem:[#allocation7 + $0xa90] sm:$0xff]
    %v11311 = vld [vmem:[#allocation7 + $0xa98] sm:$0xff]
    %v11312 = vld [vmem:[#allocation7 + $0xaa0] sm:$0xff]
    %v11313 = vld [vmem:[#allocation7 + $0xaa8] sm:$0xff]
    %v11314 = vld [vmem:[#allocation7 + $0xab0] sm:$0xff]
    %v11315 = vld [vmem:[#allocation7 + $0xab8] sm:$0xff]
    %v11316 = vld [vmem:[#allocation7 + $0xac0] sm:$0xff]
    %v11317 = vld [vmem:[#allocation7 + $0xac8] sm:$0xff]
    %v11318 = vld [vmem:[#allocation7 + $0xad0] sm:$0xff]
    %v11319 = vld [vmem:[#allocation7 + $0xad8] sm:$0xff]
    %v11320 = vld [vmem:[#allocation7 + $0xae0] sm:$0xff]
    %v11321 = vld [vmem:[#allocation7 + $0xae8] sm:$0xff]
    %v11322 = vld [vmem:[#allocation7 + $0xaf0] sm:$0xff]
    %v11323 = vld [vmem:[#allocation7 + $0xaf8] sm:$0xff]
    %v11324 = vld [vmem:[#allocation7 + $0xb00] sm:$0xff]
    %v11325 = vld [vmem:[#allocation7 + $0xb08] sm:$0xff]
    %v11326 = vld [vmem:[#allocation7 + $0xb10] sm:$0xff]
    %v11327 = vld [vmem:[#allocation7 + $0xb18] sm:$0xff]
    %v11328 = vld [vmem:[#allocation7 + $0xb20] sm:$0xff]
    %v11329 = vld [vmem:[#allocation7 + $0xb28] sm:$0xff]
    %v11330 = vld [vmem:[#allocation7 + $0xb30] sm:$0xff]
    %v11331 = vld [vmem:[#allocation7 + $0xb38] sm:$0xff]
    %v11332 = vld [vmem:[#allocation7 + $0xb40] sm:$0xff]
    %v11333 = vld [vmem:[#allocation7 + $0xb48] sm:$0xff]
    %v11334 = vld [vmem:[#allocation7 + $0xb50] sm:$0xff]
    %v11335 = vld [vmem:[#allocation7 + $0xb58] sm:$0xff]
    %v11336 = vld [vmem:[#allocation7 + $0xb60] sm:$0xff]
    %v11337 = vld [vmem:[#allocation7 + $0xb68] sm:$0xff]
    %v11338 = vld [vmem:[#allocation7 + $0xb70] sm:$0xff]
    %v11339 = vld [vmem:[#allocation7 + $0xb78] sm:$0xff]
    %v11340 = vld [vmem:[#allocation7 + $0xb80] sm:$0xff]
    %v11341 = vld [vmem:[#allocation7 + $0xb88] sm:$0xff]
    %v11342 = vld [vmem:[#allocation7 + $0xb90] sm:$0xff]
    %v11343 = vld [vmem:[#allocation7 + $0xb98] sm:$0xff]
    %v11344 = vld [vmem:[#allocation7 + $0xba0] sm:$0xff]
    %v11345 = vld [vmem:[#allocation7 + $0xba8] sm:$0xff]
    %v11346 = vld [vmem:[#allocation7 + $0xbb0] sm:$0xff]
    %v11347 = vld [vmem:[#allocation7 + $0xbb8] sm:$0xff]
    %v11348 = vld [vmem:[#allocation7 + $0xbc0] sm:$0xff]
    %v11349 = vld [vmem:[#allocation7 + $0xbc8] sm:$0xff]
    %v11350 = vld [vmem:[#allocation7 + $0xbd0] sm:$0xff]
    %v11351 = vld [vmem:[#allocation7 + $0xbd8] sm:$0xff]
    %v11352 = vld [vmem:[#allocation7 + $0xbe0] sm:$0xff]
    %v11353 = vld [vmem:[#allocation7 + $0xbe8] sm:$0xff]
    %v11354 = vld [vmem:[#allocation7 + $0xbf0] sm:$0xff]
    %v11355 = vld [vmem:[#allocation7 + $0xbf8] sm:$0xff]
    %v11356 = vld [vmem:[#allocation7 + $0xc00] sm:$0xff]
    %v11357 = vld [vmem:[#allocation7 + $0xc08] sm:$0xff]
    %v11358 = vld [vmem:[#allocation7 + $0xc10] sm:$0xff]
    %v11359 = vld [vmem:[#allocation7 + $0xc18] sm:$0xff]
    %v11360 = vld [vmem:[#allocation7 + $0xc20] sm:$0xff]
    %v11361 = vld [vmem:[#allocation7 + $0xc28] sm:$0xff]
    %v11362 = vld [vmem:[#allocation7 + $0xc30] sm:$0xff]
    %v11363 = vld [vmem:[#allocation7 + $0xc38] sm:$0xff]
    %v11364 = vld [vmem:[#allocation9] sm:$0x1]
    %v11366 = vperm.slane %v11364, 0
    %v11374 = vrot.slane %v10471, 1
    %v11375 = vrot.slane %v10508, 1
    %v11376 = vsel %vm2641, %v11374, %v11375
    %v11377 = vrot.slane %v10483, 1
    %v11378 = vrot.slane %v10509, 1
    %v11379 = vsel %vm2641, %v11377, %v11378
    %v11380 = vrot.slane %v10495, 1
    %v11381 = vrot.slane %v10510, 1
    %v11382 = vsel %vm2641, %v11380, %v11381
    %v11383 = vrot.slane %v10966, 1
    %v11384 = vrot.slane %v10967, 1
    %v11385 = vsel %vm2641, %v11383, %v11384
    %v11386 = vrot.slane %v10582, 1
    %v11387 = vrot.slane %v10585, 1
    %v11388 = vsel %vm2641, %v11386, %v11387
    %v11389 = vrot.slane %v10583, 1
    %v11390 = vrot.slane %v10586, 1
    %v11391 = vsel %vm2641, %v11389, %v11390
    %v11392 = vrot.slane %v10584, 1
    %v11393 = vrot.slane %v10587, 1
    %v11394 = vsel %vm2641, %v11392, %v11393
    %v11395 = vrot.slane %v10601, 1
    %v11396 = vrot.slane %v10638, 1
    %v11397 = vsel %vm2641, %v11395, %v11396
    %v11398 = vrot.slane %v10613, 1
    %v11399 = vrot.slane %v10639, 1
    %v11400 = vsel %vm2641, %v11398, %v11399
    %v11401 = vrot.slane %v10625, 1
    %v11402 = vrot.slane %v10640, 1
    %v11403 = vsel %vm2641, %v11401, %v11402
    %v11404 = vrot.slane %v10968, 1
    %v11405 = vrot.slane %v10969, 1
    %v11406 = vsel %vm2641, %v11404, %v11405
    %v11407 = vrot.slane %v10744, 1
    %v11408 = vrot.slane %v10747, 1
    %v11409 = vsel %vm2641, %v11407, %v11408
    %v11410 = vrot.slane %v10745, 1
    %v11411 = vrot.slane %v10748, 1
    %v11412 = vsel %vm2641, %v11410, %v11411
    %v11413 = vrot.slane %v10746, 1
    %v11414 = vrot.slane %v10749, 1
    %v11415 = vsel %vm2641, %v11413, %v11414
    %v11416 = vrot.slane %v10795, 1
    %v11417 = vrot.slane %v10832, 1
    %v11418 = vsel %vm2641, %v11416, %v11417
    %v11419 = vrot.slane %v10807, 1
    %v11420 = vrot.slane %v10833, 1
    %v11421 = vsel %vm2641, %v11419, %v11420
    %v11422 = vrot.slane %v10819, 1
    %v11423 = vrot.slane %v10834, 1
    %v11424 = vsel %vm2641, %v11422, %v11423
    %v11425 = vrot.slane %v10970, 1
    %v11426 = vrot.slane %v10971, 1
    %v11427 = vsel %vm2641, %v11425, %v11426
    %v11428 = vrot.slane %v10906, 1
    %v11429 = vrot.slane %v10909, 1
    %v11430 = vsel %vm2641, %v11428, %v11429
    %v11431 = vrot.slane %v10907, 1
    %v11432 = vrot.slane %v10910, 1
    %v11433 = vsel %vm2641, %v11431, %v11432
    %v11434 = vrot.slane %v10908, 1
    %v11435 = vrot.slane %v10911, 1
    %v11436 = vsel %vm2641, %v11434, %v11435
    %v11437 = vrot.slane %v10925, 1
    %v11438 = vrot.slane %v10962, 1
    %v11439 = vsel %vm2641, %v11437, %v11438
    %v11440 = vrot.slane %v10937, 1
    %v11441 = vrot.slane %v10963, 1
    %v11442 = vsel %vm2641, %v11440, %v11441
    %v11443 = vrot.slane %v10949, 1
    %v11444 = vrot.slane %v10964, 1
    %v11445 = vsel %vm2641, %v11443, %v11444
    %v11446 = vrot.slane %v10961, 1
    %v11447 = vrot.slane %v10965, 1
    %v11448 = vsel %vm2641, %v11446, %v11447
    %v11473 = vsel %vm1902, %v11448, 0
    %11475 = vmatpush.msra.mxu0 %v10987
    %11476 = vmatpush.msra.mxu0 %v10986
    %11477 = vmatpush.msra.mxu0 %v10985
    %11478 = vmatpush.msra.mxu0 %v10984
    %11479 = vmatpush.msra.mxu0 %v10983
    %11480 = vmatpush.msra.mxu0 %v10982
    %11481 = vmatpush.msra.mxu0 %v10981
    %11482 = vmatpush.msra.mxu0 %v10980
    %11483 = vmatpush.msra.mxu0 %v10979
    %11484 = vmatpush.msra.mxu0 %v10978
    %11485 = vmatpush.msra.mxu0 %v10977
    %11486 = vmatpush.msra.mxu0 %v10976
    %11487 = vmatpush.msra.mxu0 %v10975
    %11488 = vmatpush.msra.mxu0 %v10974
    %11489 = vmatpush.msra.mxu0 %v10973
    %11490 = vmatpush.msra.mxu0 %v10972
    %11491 = vmatmul.f32.gmra.mxu0 %v11376
    %v11492 = vpop.f32.mrf.mxu0
    %v11493 = vadd.f32 %v11366, %v11492
    %11494 = vdwg.mxu0
    %11495 = vmatpush.msra.mxu0 %v11003
    %11496 = vmatpush.msra.mxu0 %v11002
    %11497 = vmatpush.msra.mxu0 %v11001
    %11498 = vmatpush.msra.mxu0 %v11000
    %11499 = vmatpush.msra.mxu0 %v10999
    %11500 = vmatpush.msra.mxu0 %v10998
    %11501 = vmatpush.msra.mxu0 %v10997
    %11502 = vmatpush.msra.mxu0 %v10996
    %11503 = vmatpush.msra.mxu0 %v10995
    %11504 = vmatpush.msra.mxu0 %v10994
    %11505 = vmatpush.msra.mxu0 %v10993
    %11506 = vmatpush.msra.mxu0 %v10992
    %11507 = vmatpush.msra.mxu0 %v10991
    %11508 = vmatpush.msra.mxu0 %v10990
    %11509 = vmatpush.msra.mxu0 %v10989
    %11510 = vmatpush.msra.mxu0 %v10988
    %11511 = vmatmul.f32.gmra.mxu0 %v11379
    %v11512 = vpop.f32.mrf.mxu0
    %v11513 = vadd.f32 %v11493, %v11512
    %11514 = vdwg.mxu0
    %11515 = vmatpush.msra.mxu0 %v11019
    %11516 = vmatpush.msra.mxu0 %v11018
    %11517 = vmatpush.msra.mxu0 %v11017
    %11518 = vmatpush.msra.mxu0 %v11016
    %11519 = vmatpush.msra.mxu0 %v11015
    %11520 = vmatpush.msra.mxu0 %v11014
    %11521 = vmatpush.msra.mxu0 %v11013
    %11522 = vmatpush.msra.mxu0 %v11012
    %11523 = vmatpush.msra.mxu0 %v11011
    %11524 = vmatpush.msra.mxu0 %v11010
    %11525 = vmatpush.msra.mxu0 %v11009
    %11526 = vmatpush.msra.mxu0 %v11008
    %11527 = vmatpush.msra.mxu0 %v11007
    %11528 = vmatpush.msra.mxu0 %v11006
    %11529 = vmatpush.msra.mxu0 %v11005
    %11530 = vmatpush.msra.mxu0 %v11004
    %11531 = vmatmul.f32.gmra.mxu0 %v11382
    %v11532 = vpop.f32.mrf.mxu0
    %v11533 = vadd.f32 %v11513, %v11532
    %11534 = vdwg.mxu0
    %11535 = vmatpush.msra.mxu0 %v11035
    %11536 = vmatpush.msra.mxu0 %v11034
    %11537 = vmatpush.msra.mxu0 %v11033
    %11538 = vmatpush.msra.mxu0 %v11032
    %11539 = vmatpush.msra.mxu0 %v11031
    %11540 = vmatpush.msra.mxu0 %v11030
    %11541 = vmatpush.msra.mxu0 %v11029
    %11542 = vmatpush.msra.mxu0 %v11028
    %11543 = vmatpush.msra.mxu0 %v11027
    %11544 = vmatpush.msra.mxu0 %v11026
    %11545 = vmatpush.msra.mxu0 %v11025
    %11546 = vmatpush.msra.mxu0 %v11024
    %11547 = vmatpush.msra.mxu0 %v11023
    %11548 = vmatpush.msra.mxu0 %v11022
    %11549 = vmatpush.msra.mxu0 %v11021
    %11550 = vmatpush.msra.mxu0 %v11020
    %11551 = vmatmul.f32.gmra.mxu0 %v11385
    %v11552 = vpop.f32.mrf.mxu0
    %v11553 = vadd.f32 %v11533, %v11552
    %11554 = vdwg.mxu0
    %11555 = vmatpush.msra.mxu0 %v11051
    %11556 = vmatpush.msra.mxu0 %v11050
    %11557 = vmatpush.msra.mxu0 %v11049
    %11558 = vmatpush.msra.mxu0 %v11048
    %11559 = vmatpush.msra.mxu0 %v11047
    %11560 = vmatpush.msra.mxu0 %v11046
    %11561 = vmatpush.msra.mxu0 %v11045
    %11562 = vmatpush.msra.mxu0 %v11044
    %11563 = vmatpush.msra.mxu0 %v11043
    %11564 = vmatpush.msra.mxu0 %v11042
    %11565 = vmatpush.msra.mxu0 %v11041
    %11566 = vmatpush.msra.mxu0 %v11040
    %11567 = vmatpush.msra.mxu0 %v11039
    %11568 = vmatpush.msra.mxu0 %v11038
    %11569 = vmatpush.msra.mxu0 %v11037
    %11570 = vmatpush.msra.mxu0 %v11036
    %11571 = vmatmul.f32.gmra.mxu0 %v11388
    %v11572 = vpop.f32.mrf.mxu0
    %v11573 = vadd.f32 %v11553, %v11572
    %11574 = vdwg.mxu0
    %11575 = vmatpush.msra.mxu0 %v11067
    %11576 = vmatpush.msra.mxu0 %v11066
    %11577 = vmatpush.msra.mxu0 %v11065
    %11578 = vmatpush.msra.mxu0 %v11064
    %11579 = vmatpush.msra.mxu0 %v11063
    %11580 = vmatpush.msra.mxu0 %v11062
    %11581 = vmatpush.msra.mxu0 %v11061
    %11582 = vmatpush.msra.mxu0 %v11060
    %11583 = vmatpush.msra.mxu0 %v11059
    %11584 = vmatpush.msra.mxu0 %v11058
    %11585 = vmatpush.msra.mxu0 %v11057
    %11586 = vmatpush.msra.mxu0 %v11056
    %11587 = vmatpush.msra.mxu0 %v11055
    %11588 = vmatpush.msra.mxu0 %v11054
    %11589 = vmatpush.msra.mxu0 %v11053
    %11590 = vmatpush.msra.mxu0 %v11052
    %11591 = vmatmul.f32.gmra.mxu0 %v11391
    %v11592 = vpop.f32.mrf.mxu0
    %v11593 = vadd.f32 %v11573, %v11592
    %11594 = vdwg.mxu0
    %11595 = vmatpush.msra.mxu0 %v11083
    %11596 = vmatpush.msra.mxu0 %v11082
    %11597 = vmatpush.msra.mxu0 %v11081
    %11598 = vmatpush.msra.mxu0 %v11080
    %11599 = vmatpush.msra.mxu0 %v11079
    %11600 = vmatpush.msra.mxu0 %v11078
    %11601 = vmatpush.msra.mxu0 %v11077
    %11602 = vmatpush.msra.mxu0 %v11076
    %11603 = vmatpush.msra.mxu0 %v11075
    %11604 = vmatpush.msra.mxu0 %v11074
    %11605 = vmatpush.msra.mxu0 %v11073
    %11606 = vmatpush.msra.mxu0 %v11072
    %11607 = vmatpush.msra.mxu0 %v11071
    %11608 = vmatpush.msra.mxu0 %v11070
    %11609 = vmatpush.msra.mxu0 %v11069
    %11610 = vmatpush.msra.mxu0 %v11068
    %11611 = vmatmul.f32.gmra.mxu0 %v11394
    %v11612 = vpop.f32.mrf.mxu0
    %v11613 = vadd.f32 %v11593, %v11612
    %11614 = vdwg.mxu0
    %11615 = vmatpush.msra.mxu0 %v11099
    %11616 = vmatpush.msra.mxu0 %v11098
    %11617 = vmatpush.msra.mxu0 %v11097
    %11618 = vmatpush.msra.mxu0 %v11096
    %11619 = vmatpush.msra.mxu0 %v11095
    %11620 = vmatpush.msra.mxu0 %v11094
    %11621 = vmatpush.msra.mxu0 %v11093
    %11622 = vmatpush.msra.mxu0 %v11092
    %11623 = vmatpush.msra.mxu0 %v11091
    %11624 = vmatpush.msra.mxu0 %v11090
    %11625 = vmatpush.msra.mxu0 %v11089
    %11626 = vmatpush.msra.mxu0 %v11088
    %11627 = vmatpush.msra.mxu0 %v11087
    %11628 = vmatpush.msra.mxu0 %v11086
    %11629 = vmatpush.msra.mxu0 %v11085
    %11630 = vmatpush.msra.mxu0 %v11084
    %11631 = vmatmul.f32.gmra.mxu0 %v11397
    %v11632 = vpop.f32.mrf.mxu0
    %v11633 = vadd.f32 %v11613, %v11632
    %11634 = vdwg.mxu0
    %11635 = vmatpush.msra.mxu0 %v11115
    %11636 = vmatpush.msra.mxu0 %v11114
    %11637 = vmatpush.msra.mxu0 %v11113
    %11638 = vmatpush.msra.mxu0 %v11112
    %11639 = vmatpush.msra.mxu0 %v11111
    %11640 = vmatpush.msra.mxu0 %v11110
    %11641 = vmatpush.msra.mxu0 %v11109
    %11642 = vmatpush.msra.mxu0 %v11108
    %11643 = vmatpush.msra.mxu0 %v11107
    %11644 = vmatpush.msra.mxu0 %v11106
    %11645 = vmatpush.msra.mxu0 %v11105
    %11646 = vmatpush.msra.mxu0 %v11104
    %11647 = vmatpush.msra.mxu0 %v11103
    %11648 = vmatpush.msra.mxu0 %v11102
    %11649 = vmatpush.msra.mxu0 %v11101
    %11650 = vmatpush.msra.mxu0 %v11100
    %11651 = vmatmul.f32.gmra.mxu0 %v11400
    %v11652 = vpop.f32.mrf.mxu0
    %v11653 = vadd.f32 %v11633, %v11652
    %11654 = vdwg.mxu0
    %11655 = vmatpush.msra.mxu0 %v11131
    %11656 = vmatpush.msra.mxu0 %v11130
    %11657 = vmatpush.msra.mxu0 %v11129
    %11658 = vmatpush.msra.mxu0 %v11128
    %11659 = vmatpush.msra.mxu0 %v11127
    %11660 = vmatpush.msra.mxu0 %v11126
    %11661 = vmatpush.msra.mxu0 %v11125
    %11662 = vmatpush.msra.mxu0 %v11124
    %11663 = vmatpush.msra.mxu0 %v11123
    %11664 = vmatpush.msra.mxu0 %v11122
    %11665 = vmatpush.msra.mxu0 %v11121
    %11666 = vmatpush.msra.mxu0 %v11120
    %11667 = vmatpush.msra.mxu0 %v11119
    %11668 = vmatpush.msra.mxu0 %v11118
    %11669 = vmatpush.msra.mxu0 %v11117
    %11670 = vmatpush.msra.mxu0 %v11116
    %11671 = vmatmul.f32.gmra.mxu0 %v11403
    %v11672 = vpop.f32.mrf.mxu0
    %v11673 = vadd.f32 %v11653, %v11672
    %11674 = vdwg.mxu0
    %11675 = vmatpush.msra.mxu0 %v11147
    %11676 = vmatpush.msra.mxu0 %v11146
    %11677 = vmatpush.msra.mxu0 %v11145
    %11678 = vmatpush.msra.mxu0 %v11144
    %11679 = vmatpush.msra.mxu0 %v11143
    %11680 = vmatpush.msra.mxu0 %v11142
    %11681 = vmatpush.msra.mxu0 %v11141
    %11682 = vmatpush.msra.mxu0 %v11140
    %11683 = vmatpush.msra.mxu0 %v11139
    %11684 = vmatpush.msra.mxu0 %v11138
    %11685 = vmatpush.msra.mxu0 %v11137
    %11686 = vmatpush.msra.mxu0 %v11136
    %11687 = vmatpush.msra.mxu0 %v11135
    %11688 = vmatpush.msra.mxu0 %v11134
    %11689 = vmatpush.msra.mxu0 %v11133
    %11690 = vmatpush.msra.mxu0 %v11132
    %11691 = vmatmul.f32.gmra.mxu0 %v11406
    %v11692 = vpop.f32.mrf.mxu0
    %v11693 = vadd.f32 %v11673, %v11692
    %11694 = vdwg.mxu0
    %11695 = vmatpush.msra.mxu0 %v11163
    %11696 = vmatpush.msra.mxu0 %v11162
    %11697 = vmatpush.msra.mxu0 %v11161
    %11698 = vmatpush.msra.mxu0 %v11160
    %11699 = vmatpush.msra.mxu0 %v11159
    %11700 = vmatpush.msra.mxu0 %v11158
    %11701 = vmatpush.msra.mxu0 %v11157
    %11702 = vmatpush.msra.mxu0 %v11156
    %11703 = vmatpush.msra.mxu0 %v11155
    %11704 = vmatpush.msra.mxu0 %v11154
    %11705 = vmatpush.msra.mxu0 %v11153
    %11706 = vmatpush.msra.mxu0 %v11152
    %11707 = vmatpush.msra.mxu0 %v11151
    %11708 = vmatpush.msra.mxu0 %v11150
    %11709 = vmatpush.msra.mxu0 %v11149
    %11710 = vmatpush.msra.mxu0 %v11148
    %11711 = vmatmul.f32.gmra.mxu0 %v11409
    %v11712 = vpop.f32.mrf.mxu0
    %v11713 = vadd.f32 %v11693, %v11712
    %11714 = vdwg.mxu0
    %11715 = vmatpush.msra.mxu0 %v11179
    %11716 = vmatpush.msra.mxu0 %v11178
    %11717 = vmatpush.msra.mxu0 %v11177
    %11718 = vmatpush.msra.mxu0 %v11176
    %11719 = vmatpush.msra.mxu0 %v11175
    %11720 = vmatpush.msra.mxu0 %v11174
    %11721 = vmatpush.msra.mxu0 %v11173
    %11722 = vmatpush.msra.mxu0 %v11172
    %11723 = vmatpush.msra.mxu0 %v11171
    %11724 = vmatpush.msra.mxu0 %v11170
    %11725 = vmatpush.msra.mxu0 %v11169
    %11726 = vmatpush.msra.mxu0 %v11168
    %11727 = vmatpush.msra.mxu0 %v11167
    %11728 = vmatpush.msra.mxu0 %v11166
    %11729 = vmatpush.msra.mxu0 %v11165
    %11730 = vmatpush.msra.mxu0 %v11164
    %11731 = vmatmul.f32.gmra.mxu0 %v11412
    %v11732 = vpop.f32.mrf.mxu0
    %v11733 = vadd.f32 %v11713, %v11732
    %11734 = vdwg.mxu0
    %11735 = vmatpush.msra.mxu0 %v11195
    %11736 = vmatpush.msra.mxu0 %v11194
    %11737 = vmatpush.msra.mxu0 %v11193
    %11738 = vmatpush.msra.mxu0 %v11192
    %11739 = vmatpush.msra.mxu0 %v11191
    %11740 = vmatpush.msra.mxu0 %v11190
    %11741 = vmatpush.msra.mxu0 %v11189
    %11742 = vmatpush.msra.mxu0 %v11188
    %11743 = vmatpush.msra.mxu0 %v11187
    %11744 = vmatpush.msra.mxu0 %v11186
    %11745 = vmatpush.msra.mxu0 %v11185
    %11746 = vmatpush.msra.mxu0 %v11184
    %11747 = vmatpush.msra.mxu0 %v11183
    %11748 = vmatpush.msra.mxu0 %v11182
    %11749 = vmatpush.msra.mxu0 %v11181
    %11750 = vmatpush.msra.mxu0 %v11180
    %11751 = vmatmul.f32.gmra.mxu0 %v11415
    %v11752 = vpop.f32.mrf.mxu0
    %v11753 = vadd.f32 %v11733, %v11752
    %11754 = vdwg.mxu0
    %11755 = vmatpush.msra.mxu0 %v11211
    %11756 = vmatpush.msra.mxu0 %v11210
    %11757 = vmatpush.msra.mxu0 %v11209
    %11758 = vmatpush.msra.mxu0 %v11208
    %11759 = vmatpush.msra.mxu0 %v11207
    %11760 = vmatpush.msra.mxu0 %v11206
    %11761 = vmatpush.msra.mxu0 %v11205
    %11762 = vmatpush.msra.mxu0 %v11204
    %11763 = vmatpush.msra.mxu0 %v11203
    %11764 = vmatpush.msra.mxu0 %v11202
    %11765 = vmatpush.msra.mxu0 %v11201
    %11766 = vmatpush.msra.mxu0 %v11200
    %11767 = vmatpush.msra.mxu0 %v11199
    %11768 = vmatpush.msra.mxu0 %v11198
    %11769 = vmatpush.msra.mxu0 %v11197
    %11770 = vmatpush.msra.mxu0 %v11196
    %11771 = vmatmul.f32.gmra.mxu0 %v11418
    %v11772 = vpop.f32.mrf.mxu0
    %v11773 = vadd.f32 %v11753, %v11772
    %11774 = vdwg.mxu0
    %11775 = vmatpush.msra.mxu0 %v11227
    %11776 = vmatpush.msra.mxu0 %v11226
    %11777 = vmatpush.msra.mxu0 %v11225
    %11778 = vmatpush.msra.mxu0 %v11224
    %11779 = vmatpush.msra.mxu0 %v11223
    %11780 = vmatpush.msra.mxu0 %v11222
    %11781 = vmatpush.msra.mxu0 %v11221
    %11782 = vmatpush.msra.mxu0 %v11220
    %11783 = vmatpush.msra.mxu0 %v11219
    %11784 = vmatpush.msra.mxu0 %v11218
    %11785 = vmatpush.msra.mxu0 %v11217
    %11786 = vmatpush.msra.mxu0 %v11216
    %11787 = vmatpush.msra.mxu0 %v11215
    %11788 = vmatpush.msra.mxu0 %v11214
    %11789 = vmatpush.msra.mxu0 %v11213
    %11790 = vmatpush.msra.mxu0 %v11212
    %11791 = vmatmul.f32.gmra.mxu0 %v11421
    %v11792 = vpop.f32.mrf.mxu0
    %v11793 = vadd.f32 %v11773, %v11792
    %11794 = vdwg.mxu0
    %11795 = vmatpush.msra.mxu0 %v11243
    %11796 = vmatpush.msra.mxu0 %v11242
    %11797 = vmatpush.msra.mxu0 %v11241
    %11798 = vmatpush.msra.mxu0 %v11240
    %11799 = vmatpush.msra.mxu0 %v11239
    %11800 = vmatpush.msra.mxu0 %v11238
    %11801 = vmatpush.msra.mxu0 %v11237
    %11802 = vmatpush.msra.mxu0 %v11236
    %11803 = vmatpush.msra.mxu0 %v11235
    %11804 = vmatpush.msra.mxu0 %v11234
    %11805 = vmatpush.msra.mxu0 %v11233
    %11806 = vmatpush.msra.mxu0 %v11232
    %11807 = vmatpush.msra.mxu0 %v11231
    %11808 = vmatpush.msra.mxu0 %v11230
    %11809 = vmatpush.msra.mxu0 %v11229
    %11810 = vmatpush.msra.mxu0 %v11228
    %11811 = vmatmul.f32.gmra.mxu0 %v11424
    %v11812 = vpop.f32.mrf.mxu0
    %v11813 = vadd.f32 %v11793, %v11812
    %11814 = vdwg.mxu0
    %11815 = vmatpush.msra.mxu0 %v11259
    %11816 = vmatpush.msra.mxu0 %v11258
    %11817 = vmatpush.msra.mxu0 %v11257
    %11818 = vmatpush.msra.mxu0 %v11256
    %11819 = vmatpush.msra.mxu0 %v11255
    %11820 = vmatpush.msra.mxu0 %v11254
    %11821 = vmatpush.msra.mxu0 %v11253
    %11822 = vmatpush.msra.mxu0 %v11252
    %11823 = vmatpush.msra.mxu0 %v11251
    %11824 = vmatpush.msra.mxu0 %v11250
    %11825 = vmatpush.msra.mxu0 %v11249
    %11826 = vmatpush.msra.mxu0 %v11248
    %11827 = vmatpush.msra.mxu0 %v11247
    %11828 = vmatpush.msra.mxu0 %v11246
    %11829 = vmatpush.msra.mxu0 %v11245
    %11830 = vmatpush.msra.mxu0 %v11244
    %11831 = vmatmul.f32.gmra.mxu0 %v11427
    %v11832 = vpop.f32.mrf.mxu0
    %v11833 = vadd.f32 %v11813, %v11832
    %11834 = vdwg.mxu0
    %11835 = vmatpush.msra.mxu0 %v11275
    %11836 = vmatpush.msra.mxu0 %v11274
    %11837 = vmatpush.msra.mxu0 %v11273
    %11838 = vmatpush.msra.mxu0 %v11272
    %11839 = vmatpush.msra.mxu0 %v11271
    %11840 = vmatpush.msra.mxu0 %v11270
    %11841 = vmatpush.msra.mxu0 %v11269
    %11842 = vmatpush.msra.mxu0 %v11268
    %11843 = vmatpush.msra.mxu0 %v11267
    %11844 = vmatpush.msra.mxu0 %v11266
    %11845 = vmatpush.msra.mxu0 %v11265
    %11846 = vmatpush.msra.mxu0 %v11264
    %11847 = vmatpush.msra.mxu0 %v11263
    %11848 = vmatpush.msra.mxu0 %v11262
    %11849 = vmatpush.msra.mxu0 %v11261
    %11850 = vmatpush.msra.mxu0 %v11260
    %11851 = vmatmul.f32.gmra.mxu0 %v11430
    %v11852 = vpop.f32.mrf.mxu0
    %v11853 = vadd.f32 %v11833, %v11852
    %11854 = vdwg.mxu0
    %11855 = vmatpush.msra.mxu0 %v11291
    %11856 = vmatpush.msra.mxu0 %v11290
    %11857 = vmatpush.msra.mxu0 %v11289
    %11858 = vmatpush.msra.mxu0 %v11288
    %11859 = vmatpush.msra.mxu0 %v11287
    %11860 = vmatpush.msra.mxu0 %v11286
    %11861 = vmatpush.msra.mxu0 %v11285
    %11862 = vmatpush.msra.mxu0 %v11284
    %11863 = vmatpush.msra.mxu0 %v11283
    %11864 = vmatpush.msra.mxu0 %v11282
    %11865 = vmatpush.msra.mxu0 %v11281
    %11866 = vmatpush.msra.mxu0 %v11280
    %11867 = vmatpush.msra.mxu0 %v11279
    %11868 = vmatpush.msra.mxu0 %v11278
    %11869 = vmatpush.msra.mxu0 %v11277
    %11870 = vmatpush.msra.mxu0 %v11276
    %11871 = vmatmul.f32.gmra.mxu0 %v11433
    %v11872 = vpop.f32.mrf.mxu0
    %v11873 = vadd.f32 %v11853, %v11872
    %11874 = vdwg.mxu0
    %11875 = vmatpush.msra.mxu0 %v11307
    %11876 = vmatpush.msra.mxu0 %v11306
    %11877 = vmatpush.msra.mxu0 %v11305
    %11878 = vmatpush.msra.mxu0 %v11304
    %11879 = vmatpush.msra.mxu0 %v11303
    %11880 = vmatpush.msra.mxu0 %v11302
    %11881 = vmatpush.msra.mxu0 %v11301
    %11882 = vmatpush.msra.mxu0 %v11300
    %11883 = vmatpush.msra.mxu0 %v11299
    %11884 = vmatpush.msra.mxu0 %v11298
    %11885 = vmatpush.msra.mxu0 %v11297
    %11886 = vmatpush.msra.mxu0 %v11296
    %11887 = vmatpush.msra.mxu0 %v11295
    %11888 = vmatpush.msra.mxu0 %v11294
    %11889 = vmatpush.msra.mxu0 %v11293
    %11890 = vmatpush.msra.mxu0 %v11292
    %11891 = vmatmul.f32.gmra.mxu0 %v11436
    %v11892 = vpop.f32.mrf.mxu0
    %v11893 = vadd.f32 %v11873, %v11892
    %11894 = vdwg.mxu0
    %11895 = vmatpush.msra.mxu0 %v11323
    %11896 = vmatpush.msra.mxu0 %v11322
    %11897 = vmatpush.msra.mxu0 %v11321
    %11898 = vmatpush.msra.mxu0 %v11320
    %11899 = vmatpush.msra.mxu0 %v11319
    %11900 = vmatpush.msra.mxu0 %v11318
    %11901 = vmatpush.msra.mxu0 %v11317
    %11902 = vmatpush.msra.mxu0 %v11316
    %11903 = vmatpush.msra.mxu0 %v11315
    %11904 = vmatpush.msra.mxu0 %v11314
    %11905 = vmatpush.msra.mxu0 %v11313
    %11906 = vmatpush.msra.mxu0 %v11312
    %11907 = vmatpush.msra.mxu0 %v11311
    %11908 = vmatpush.msra.mxu0 %v11310
    %11909 = vmatpush.msra.mxu0 %v11309
    %11910 = vmatpush.msra.mxu0 %v11308
    %11911 = vmatmul.f32.gmra.mxu0 %v11439
    %v11912 = vpop.f32.mrf.mxu0
    %v11913 = vadd.f32 %v11893, %v11912
    %11914 = vdwg.mxu0
    %11915 = vmatpush.msra.mxu0 %v11339
    %11916 = vmatpush.msra.mxu0 %v11338
    %11917 = vmatpush.msra.mxu0 %v11337
    %11918 = vmatpush.msra.mxu0 %v11336
    %11919 = vmatpush.msra.mxu0 %v11335
    %11920 = vmatpush.msra.mxu0 %v11334
    %11921 = vmatpush.msra.mxu0 %v11333
    %11922 = vmatpush.msra.mxu0 %v11332
    %11923 = vmatpush.msra.mxu0 %v11331
    %11924 = vmatpush.msra.mxu0 %v11330
    %11925 = vmatpush.msra.mxu0 %v11329
    %11926 = vmatpush.msra.mxu0 %v11328
    %11927 = vmatpush.msra.mxu0 %v11327
    %11928 = vmatpush.msra.mxu0 %v11326
    %11929 = vmatpush.msra.mxu0 %v11325
    %11930 = vmatpush.msra.mxu0 %v11324
    %11931 = vmatmul.f32.gmra.mxu0 %v11442
    %v11932 = vpop.f32.mrf.mxu0
    %v11933 = vadd.f32 %v11913, %v11932
    %11934 = vdwg.mxu0
    %11935 = vmatpush.msra.mxu0 %v11355
    %11936 = vmatpush.msra.mxu0 %v11354
    %11937 = vmatpush.msra.mxu0 %v11353
    %11938 = vmatpush.msra.mxu0 %v11352
    %11939 = vmatpush.msra.mxu0 %v11351
    %11940 = vmatpush.msra.mxu0 %v11350
    %11941 = vmatpush.msra.mxu0 %v11349
    %11942 = vmatpush.msra.mxu0 %v11348
    %11943 = vmatpush.msra.mxu0 %v11347
    %11944 = vmatpush.msra.mxu0 %v11346
    %11945 = vmatpush.msra.mxu0 %v11345
    %11946 = vmatpush.msra.mxu0 %v11344
    %11947 = vmatpush.msra.mxu0 %v11343
    %11948 = vmatpush.msra.mxu0 %v11342
    %11949 = vmatpush.msra.mxu0 %v11341
    %11950 = vmatpush.msra.mxu0 %v11340
    %11951 = vmatmul.f32.gmra.mxu0 %v11445
    %v11952 = vpop.f32.mrf.mxu0
    %v11953 = vadd.f32 %v11933, %v11952
    %11954 = vdwg.mxu0
    %11955 = vmatpush.msra.mxu0 0.0
    %11956 = vmatpush.msra.mxu0 0.0
    %11957 = vmatpush.msra.mxu0 0.0
    %11958 = vmatpush.msra.mxu0 0.0
    %11959 = vmatpush.msra.mxu0 0.0
    %11960 = vmatpush.msra.mxu0 0.0
    %11961 = vmatpush.msra.mxu0 0.0
    %11962 = vmatpush.msra.mxu0 0.0
    %11963 = vmatpush.msra.mxu0 %v11363
    %11964 = vmatpush.msra.mxu0 %v11362
    %11965 = vmatpush.msra.mxu0 %v11361
    %11966 = vmatpush.msra.mxu0 %v11360
    %11967 = vmatpush.msra.mxu0 %v11359
    %11968 = vmatpush.msra.mxu0 %v11358
    %11969 = vmatpush.msra.mxu0 %v11357
    %11970 = vmatpush.msra.mxu0 %v11356
    %11971 = vmatmul.f32.gmra.mxu0 %v11473
    %v11972 = vpop.f32.mrf.mxu0
    %v11973 = vadd.f32 %v11953, %v11972
    %11974 = vdwg.mxu0
    %v11975 = vmax.f32 %v11973, 0.0
    %v11976 = vld [vmem:[#allocation10] sm:$0xff]
    %v11977 = vld [vmem:[#allocation10 + $0x8] sm:$0xff]
    %v11978 = vld [vmem:[#allocation10 + $0x10] sm:$0xff]
    %v11979 = vld [vmem:[#allocation10 + $0x18] sm:$0xff]
    %v11980 = vld [vmem:[#allocation10 + $0x20] sm:$0xff]
    %v11981 = vld [vmem:[#allocation10 + $0x28] sm:$0xff]
    %v11982 = vld [vmem:[#allocation10 + $0x30] sm:$0xff]
    %v11983 = vld [vmem:[#allocation10 + $0x38] sm:$0xff]
    %v11984 = vld [vmem:[#allocation10 + $0x40] sm:$0xff]
    %v11985 = vld [vmem:[#allocation10 + $0x48] sm:$0xff]
    %v11986 = vld [vmem:[#allocation10 + $0x50] sm:$0xff]
    %v11987 = vld [vmem:[#allocation10 + $0x58] sm:$0xff]
    %v11988 = vld [vmem:[#allocation10 + $0x60] sm:$0xff]
    %v11989 = vld [vmem:[#allocation10 + $0x68] sm:$0xff]
    %v11990 = vld [vmem:[#allocation10 + $0x70] sm:$0xff]
    %v11991 = vld [vmem:[#allocation10 + $0x78] sm:$0xff]
    %v11992 = vld [vmem:[#allocation12] sm:$0x1]
    %v11994 = vperm.slane %v11992, 0
    %11996 = vmatpush.msra.mxu0 %v11991
    %11997 = vmatpush.msra.mxu0 %v11990
    %11998 = vmatpush.msra.mxu0 %v11989
    %11999 = vmatpush.msra.mxu0 %v11988
    %12000 = vmatpush.msra.mxu0 %v11987
    %12001 = vmatpush.msra.mxu0 %v11986
    %12002 = vmatpush.msra.mxu0 %v11985
    %12003 = vmatpush.msra.mxu0 %v11984
    %12004 = vmatpush.msra.mxu0 %v11983
    %12005 = vmatpush.msra.mxu0 %v11982
    %12006 = vmatpush.msra.mxu0 %v11981
    %12007 = vmatpush.msra.mxu0 %v11980
    %12008 = vmatpush.msra.mxu0 %v11979
    %12009 = vmatpush.msra.mxu0 %v11978
    %12010 = vmatpush.msra.mxu0 %v11977
    %12011 = vmatpush.msra.mxu0 %v11976
    %12012 = vmatmul.f32.gmra.mxu0 %v11975
    %v12013 = vpop.f32.mrf.mxu0
    %v12014 = vadd.f32 %v11994, %v12013
    %12015 = vdwg.mxu0
    %12016 = vst [vmem:[%s8] sm:$0xff] %v12014
    // Predicated region
    $region62: #{_forward.1} parent=1 // pred_check
      _
    $region63: #{_forward.1} parent=1 // pred_check_branch
      %12018 = sbr.rel (0) target = $region65
    $region64: #{_forward.1} parent=1 // pred_region
      _
    $region65: #{_forward.1} parent=1 // pred_fallthru
      _
    // Predicated region
    $region66: #{_forward.1} parent=1 // pred_check
      _
    $region67: #{_forward.1} parent=1 // pred_check_branch
      %12020 = sbr.rel (0) target = $region69
    $region68: #{_forward.1} parent=1 // pred_region
      _
    $region69: #{_forward.1} parent=1 // pred_fallthru
      _
    %12021 = vsyncpa [#allocation3], 1
    %12022 = vsyncpa [#allocation5], 1
    %12023 = vsyncpa [#allocation8], 1
    %12024 = vsyncpa [#allocation11], 1

</llo_original>
